<compile_context>
chip_gen: v5e
topology: v5e:2x2
jax: 0.10.0
libtpu: 0.0.40
codegen_flags: <defaults>
</compile_context>

<pallas_src>
import functools

import jax
import jax.numpy as jnp
import numpy as np
from jax.experimental import pallas as pl
from jax.experimental.pallas import tpu as pltpu

BN_EPS = 1e-5
VMEM_LIMIT = 32 * 1024 * 1024


# ----------------------------------------------------------------------------
# Pallas kernel: tap-accumulated conv + folded BN + ReLU for one batch image
# ----------------------------------------------------------------------------
def _conv_bn_relu_kernel(x_ref, w_ref, s_ref, b_ref, o_ref, *, kh, kw, H, W):
    # x_ref: (Hp, Wp, Cin)       padded input tile (bf16), one image
    # w_ref: (kh*kw, Cin, Cout)  conv weights, tap-major (bf16)
    # s_ref, b_ref: (1, Cout)    folded BatchNorm scale / bias (f32)
    # o_ref: (H, W, Cout)
    cin = x_ref.shape[-1]
    cout = o_ref.shape[-1]
    acc = jnp.zeros((H * W, cout), jnp.float32)
    for t in range(kh * kw):  # static unroll over taps, all slices static
        i, j = t // kw, t % kw
        patch = x_ref[pl.ds(i, H), pl.ds(j, W), :].reshape(H * W, cin)
        acc = acc + jnp.dot(patch, w_ref[t],
                            preferred_element_type=jnp.float32)
    y = acc * s_ref[...] + b_ref[...]          # f32 epilogue (v5e-safe)
    o_ref[...] = jnp.maximum(y, 0.0).reshape(H, W, cout).astype(o_ref.dtype)


# ----------------------------------------------------------------------------
# Wrapper: conv (stride 1) + folded BN + ReLU
# ----------------------------------------------------------------------------
def conv_bn_relu(x_nhwc, w, scale, bias, padding, out_dtype=None):
    """w: HWIO (kh, kw, Cin, Cout), stride 1, 'same-style' explicit padding."""
    kh, kw, cin, cout = w.shape
    ph, pw = padding
    B, H, W, _ = x_nhwc.shape
    Hp, Wp = H + 2 * ph, W + 2 * pw
    out_dtype = out_dtype if out_dtype is not None else x_nhwc.dtype

    xp = jnp.pad(x_nhwc, ((0, 0), (ph, ph), (pw, pw), (0, 0))).astype(jnp.bfloat16)
    w_mat = w.reshape(kh * kw, cin, cout).astype(jnp.bfloat16)
    s = scale.reshape(1, cout).astype(jnp.float32)
    b = bias.reshape(1, cout).astype(jnp.float32)

    kernel = functools.partial(_conv_bn_relu_kernel, kh=kh, kw=kw, H=H, W=W)

    flops = 2 * B * H * W * kh * kw * cin * cout
    bytes_accessed = (
        B * Hp * Wp * cin * 2                      # bf16 padded activations
        + kh * kw * cin * cout * 2                 # bf16 weights
        + 2 * cout * 4                             # scale / bias
        + B * H * W * cout * np.dtype(out_dtype).itemsize
    )

    return pl.pallas_call(
        kernel,
        out_shape=jax.ShapeDtypeStruct((B, H, W, cout), out_dtype),
        grid=(B,),
        in_specs=[
            pl.BlockSpec((None, Hp, Wp, cin), lambda bi: (bi, 0, 0, 0)),
            pl.BlockSpec((kh * kw, cin, cout), lambda bi: (0, 0, 0)),
            pl.BlockSpec((1, cout), lambda bi: (0, 0)),
            pl.BlockSpec((1, cout), lambda bi: (0, 0)),
        ],
        out_specs=pl.BlockSpec((None, H, W, cout), lambda bi: (bi, 0, 0, 0)),
        compiler_params=pltpu.CompilerParams(
            dimension_semantics=("parallel",),
            vmem_limit_bytes=VMEM_LIMIT,
        ),
        cost_estimate=pl.CostEstimate(
            flops=flops, transcendentals=0, bytes_accessed=bytes_accessed),
    )(xp, w_mat, s, b)


def fused_conv1x1(x_nhwc, blocks, out_dtype):
    """Fuse several 1x1 ConvBlocks reading the same input into one matmul."""
    w = jnp.concatenate([blk["w"] for blk in blocks], axis=-1)        # (1,1,Cin,ΣCout)
    scale = jnp.concatenate([blk["scale"] for blk in blocks], axis=0)
    bias = jnp.concatenate([blk["bias"] for blk in blocks], axis=0)
    return conv_bn_relu(x_nhwc, w, scale, bias, (0, 0), out_dtype)


def avgpool_conv1x1(x_nhwc, blk, out_dtype):
    """AvgPool2d(3, s=1, p=1, count_include_pad=True) + 1x1 ConvBlock, folded
    exactly into a single 3x3 conv whose tap weights are w1x1 / 9."""
    w1 = blk["w"]                                   # (1, 1, Cin, Cout)
    cin, cout = w1.shape[2], w1.shape[3]
    w3 = jnp.broadcast_to(w1 / 9.0, (3, 3, cin, cout))
    return conv_bn_relu(x_nhwc, w3, blk["scale"], blk["bias"], (1, 1), out_dtype)


# ----------------------------------------------------------------------------
# InceptionAUnit forward
# ----------------------------------------------------------------------------
def inception_a_unit(x_nchw, params):
    x = jnp.transpose(x_nchw, (0, 2, 3, 1))  # NCHW -> NHWC
    dt = x.dtype

    # All three 1x1 convs on x fused into one Pallas call (x read once).
    c1 = params["b1"]["w"].shape[-1]         # 64
    c2 = params["b2_conv1"]["w"].shape[-1]   # 48
    c3 = params["b3_conv1"]["w"].shape[-1]   # 64
    fused = fused_conv1x1(x, [params["b1"], params["b2_conv1"],
                              params["b3_conv1"]], dt)
    y1 = fused[..., :c1]
    t2 = fused[..., c1:c1 + c2]
    t3 = fused[..., c1 + c2:c1 + c2 + c3]

    # branch2: 5x5 conv (pad 2) -> 64
    blk = params["b2_conv2"]
    y2 = conv_bn_relu(t2, blk["w"], blk["scale"], blk["bias"], (2, 2), dt)

    # branch3: 3x3 (pad 1) -> 96, 3x3 (pad 1) -> 96
    blk = params["b3_conv2"]
    t3 = conv_bn_relu(t3, blk["w"], blk["scale"], blk["bias"], (1, 1), dt)
    blk = params["b3_conv3"]
    y3 = conv_bn_relu(t3, blk["w"], blk["scale"], blk["bias"], (1, 1), dt)

    # branch4: avgpool + 1x1 conv, folded into one 3x3 conv
    y4 = avgpool_conv1x1(x, params["b4_conv"], dt)

    out = jnp.concatenate([y1, y2, y3, y4], axis=-1)
    return jnp.transpose(out, (0, 3, 1, 2))  # NHWC -> NCHW


# ----------------------------------------------------------------------------
# Deterministic synthetic parameters (BN folded, inference mode)
# ----------------------------------------------------------------------------
def init_conv_block(key, cin, cout, kh, kw, eps=BN_EPS):
    kw_, kg, kb, km, kv = jax.random.split(key, 5)
    fan_in = kh * kw * cin
    w = jax.random.normal(kw_, (kh, kw, cin, cout), jnp.float32) / np.sqrt(fan_in)
    gamma = 1.0 + 0.1 * jax.random.normal(kg, (cout,), jnp.float32)
    beta = 0.1 * jax.random.normal(kb, (cout,), jnp.float32)
    run_mean = 0.1 * jax.random.normal(km, (cout,), jnp.float32)
    run_var = 1.0 + 0.1 * jax.random.uniform(kv, (cout,), jnp.float32)
    scale = gamma / jnp.sqrt(run_var + eps)
    bias = beta - run_mean * scale
    return {"w": w, "scale": scale, "bias": bias}


def init_params(key, in_channels, out_channels):
    assert out_channels > 224
    pool_out = out_channels - 224
    ks = jax.random.split(key, 7)
    return {
        "b1":       init_conv_block(ks[0], in_channels, 64, 1, 1),
        "b2_conv1": init_conv_block(ks[1], in_channels, 48, 1, 1),
        "b2_conv2": init_conv_block(ks[2], 48, 64, 5, 5),
        "b3_conv1": init_conv_block(ks[3], in_channels, 64, 1, 1),
        "b3_conv2": init_conv_block(ks[4], 64, 96, 3, 3),
        "b3_conv3": init_conv_block(ks[5], 96, 96, 3, 3),
        "b4_conv":  init_conv_block(ks[6], in_channels, pool_out, 1, 1),
    }


# ----------------------------------------------------------------------------
# Pure-JAX reference (f32, no Pallas) for a correctness check
# ----------------------------------------------------------------------------
def _ref_conv_bn_relu(x, blk, padding):
    w, scale, bias = blk["w"], blk["scale"], blk["bias"]
    kh, kw, _, cout = w.shape
    ph, pw = padding
    B, H, W, _ = x.shape
    xp = jnp.pad(x, ((0, 0), (ph, ph), (pw, pw), (0, 0)))
    acc = jnp.zeros((B, H, W, cout), jnp.float32)
    for i in range(kh):
        for j in range(kw):
            acc = acc + jnp.einsum("bhwc,cd->bhwd",
                                   xp[:, i:i + H, j:j + W, :], w[i, j],
                                   preferred_element_type=jnp.float32)
    return jnp.maximum(acc * scale + bias, 0.0)


def _ref_avgpool(x):
    B, H, W, C = x.shape
    xp = jnp.pad(x, ((0, 0), (1, 1), (1, 1), (0, 0)))
    acc = jnp.zeros_like(x)
    for i in range(3):
        for j in range(3):
            acc = acc + xp[:, i:i + H, j:j + W, :]
    return acc / 9.0


def _ref_unit(x_nchw, params):
    x = jnp.transpose(x_nchw, (0, 2, 3, 1))
    y1 = _ref_conv_bn_relu(x, params["b1"], (0, 0))
    t2 = _ref_conv_bn_relu(x, params["b2_conv1"], (0, 0))
    y2 = _ref_conv_bn_relu(t2, params["b2_conv2"], (2, 2))
    t3 = _ref_conv_bn_relu(x, params["b3_conv1"], (0, 0))
    t3 = _ref_conv_bn_relu(t3, params["b3_conv2"], (1, 1))
    y3 = _ref_conv_bn_relu(t3, params["b3_conv3"], (1, 1))
    y4 = _ref_conv_bn_relu(_ref_avgpool(x), params["b4_conv"], (0, 0))
    out = jnp.concatenate([y1, y2, y3, y4], axis=-1)
    return jnp.transpose(out, (0, 3, 1, 2))


# ----------------------------------------------------------------------------
if __name__ == "__main__":
    key = jax.random.PRNGKey(0)
    k_x, k_p = jax.random.split(key)

    B, in_channels, H, W = 2, 64, 8, 8
    out_channels = 256                      # pool branch -> 256 - 224 = 32
    x = 0.5 * jax.random.normal(k_x, (B, in_channels, H, W), jnp.float32)  # NCHW
    params = init_params(k_p, in_channels, out_channels)

    fwd = jax.jit(inception_a_unit)
    out = jax.block_until_ready(fwd(x, params))
    assert out.shape == (B, out_channels, H, W), out.shape

    ref = jax.block_until_ready(_ref_unit(x, params))
    if not np.allclose(np.asarray(out), np.asarray(ref), atol=3e-2, rtol=3e-2):
        raise AssertionError("Pallas output does not match JAX reference")

    print("KERNEL_OK")
</pallas_src>

<mosaic_0001>
module attributes {stable_mosaic.version = 11 : i64} {
  func.func @_conv_bn_relu_kernel(%arg0: i32, %arg1: memref<1x10x10x64xbf16, #tpu.memory_space<vmem>>, %arg2: memref<9x64x32xbf16, #tpu.memory_space<vmem>>, %arg3: memref<1x32xf32, #tpu.memory_space<vmem>>, %arg4: memref<1x32xf32, #tpu.memory_space<vmem>>, %arg5: memref<1x8x8x32xf32, #tpu.memory_space<vmem>>) attributes {dimension_semantics = [#tpu.dimension_semantics<parallel>], iteration_bounds = array<i64: 2>, scalar_prefetch = 0 : i64, scratch_operands = 0 : i64, tpu.core_type = #tpu.core_type<tc>, window_params = [{transform_indices = @transform_0, window_bounds = array<i64: 1, 10, 10, 64>}, {pipeline_mode = #tpu.pipeline_mode<synchronous>, transform_indices = @transform_1, window_bounds = array<i64: 9, 64, 32>}, {pipeline_mode = #tpu.pipeline_mode<synchronous>, transform_indices = @transform_2, window_bounds = array<i64: 1, 32>}, {pipeline_mode = #tpu.pipeline_mode<synchronous>, transform_indices = @transform_3, window_bounds = array<i64: 1, 32>}, {transform_indices = @transform_4, window_bounds = array<i64: 1, 8, 8, 32>}]} {
    %cst = arith.constant 0.000000e+00 : f32
    %0 = vector.broadcast %cst : f32 to vector<64x32xf32>
    %c0 = arith.constant 0 : index
    %c0_0 = arith.constant 0 : index
    %c0_1 = arith.constant 0 : index
    %c0_2 = arith.constant 0 : index
    %1 = vector.load %arg1[%c0, %c0_0, %c0_1, %c0_2] : memref<1x10x10x64xbf16, #tpu.memory_space<vmem>>, vector<1x8x8x64xbf16>
    %2 = vector.shape_cast %1 : vector<1x8x8x64xbf16> to vector<8x8x64xbf16>
    %3 = vector.shape_cast %2 : vector<8x8x64xbf16> to vector<64x64xbf16>
    %c0_3 = arith.constant 0 : index
    %c0_4 = arith.constant 0 : index
    %c0_5 = arith.constant 0 : index
    %4 = vector.load %arg2[%c0_3, %c0_4, %c0_5] : memref<9x64x32xbf16, #tpu.memory_space<vmem>>, vector<1x64x32xbf16>
    %5 = vector.shape_cast %4 : vector<1x64x32xbf16> to vector<64x32xbf16>
    %cst_6 = arith.constant dense<0.000000e+00> : vector<64x32xf32>
    %6 = tpu.matmul %3, %5, %cst_6 {dimension_numbers = #tpu.dot_dimension_numbers<[1], [0], [0], [1], [0, 0, 1, 1], [], []>} : vector<64x64xbf16>, vector<64x32xbf16>, vector<64x32xf32> -> vector<64x32xf32>
    %7 = arith.addf %0, %6 : vector<64x32xf32>
    %c0_7 = arith.constant 0 : index
    %c0_8 = arith.constant 0 : index
    %c1 = arith.constant 1 : index
    %c0_9 = arith.constant 0 : index
    %8 = vector.load %arg1[%c0_7, %c0_8, %c1, %c0_9] : memref<1x10x10x64xbf16, #tpu.memory_space<vmem>>, vector<1x8x8x64xbf16>
    %9 = vector.shape_cast %8 : vector<1x8x8x64xbf16> to vector<8x8x64xbf16>
    %10 = vector.shape_cast %9 : vector<8x8x64xbf16> to vector<64x64xbf16>
    %c1_10 = arith.constant 1 : index
    %c0_11 = arith.constant 0 : index
    %c0_12 = arith.constant 0 : index
    %11 = vector.load %arg2[%c1_10, %c0_11, %c0_12] : memref<9x64x32xbf16, #tpu.memory_space<vmem>>, vector<1x64x32xbf16>
    %12 = vector.shape_cast %11 : vector<1x64x32xbf16> to vector<64x32xbf16>
    %cst_13 = arith.constant dense<0.000000e+00> : vector<64x32xf32>
    %13 = tpu.matmul %10, %12, %cst_13 {dimension_numbers = #tpu.dot_dimension_numbers<[1], [0], [0], [1], [0, 0, 1, 1], [], []>} : vector<64x64xbf16>, vector<64x32xbf16>, vector<64x32xf32> -> vector<64x32xf32>
    %14 = arith.addf %7, %13 : vector<64x32xf32>
    %c0_14 = arith.constant 0 : index
    %c0_15 = arith.constant 0 : index
    %c2 = arith.constant 2 : index
    %c0_16 = arith.constant 0 : index
    %15 = vector.load %arg1[%c0_14, %c0_15, %c2, %c0_16] : memref<1x10x10x64xbf16, #tpu.memory_space<vmem>>, vector<1x8x8x64xbf16>
    %16 = vector.shape_cast %15 : vector<1x8x8x64xbf16> to vector<8x8x64xbf16>
    %17 = vector.shape_cast %16 : vector<8x8x64xbf16> to vector<64x64xbf16>
    %c2_17 = arith.constant 2 : index
    %c0_18 = arith.constant 0 : index
    %c0_19 = arith.constant 0 : index
    %18 = vector.load %arg2[%c2_17, %c0_18, %c0_19] : memref<9x64x32xbf16, #tpu.memory_space<vmem>>, vector<1x64x32xbf16>
    %19 = vector.shape_cast %18 : vector<1x64x32xbf16> to vector<64x32xbf16>
    %cst_20 = arith.constant dense<0.000000e+00> : vector<64x32xf32>
    %20 = tpu.matmul %17, %19, %cst_20 {dimension_numbers = #tpu.dot_dimension_numbers<[1], [0], [0], [1], [0, 0, 1, 1], [], []>} : vector<64x64xbf16>, vector<64x32xbf16>, vector<64x32xf32> -> vector<64x32xf32>
    %21 = arith.addf %14, %20 : vector<64x32xf32>
    %c0_21 = arith.constant 0 : index
    %c1_22 = arith.constant 1 : index
    %c0_23 = arith.constant 0 : index
    %c0_24 = arith.constant 0 : index
    %22 = vector.load %arg1[%c0_21, %c1_22, %c0_23, %c0_24] : memref<1x10x10x64xbf16, #tpu.memory_space<vmem>>, vector<1x8x8x64xbf16>
    %23 = vector.shape_cast %22 : vector<1x8x8x64xbf16> to vector<8x8x64xbf16>
    %24 = vector.shape_cast %23 : vector<8x8x64xbf16> to vector<64x64xbf16>
    %c3 = arith.constant 3 : index
    %c0_25 = arith.constant 0 : index
    %c0_26 = arith.constant 0 : index
    %25 = vector.load %arg2[%c3, %c0_25, %c0_26] : memref<9x64x32xbf16, #tpu.memory_space<vmem>>, vector<1x64x32xbf16>
    %26 = vector.shape_cast %25 : vector<1x64x32xbf16> to vector<64x32xbf16>
    %cst_27 = arith.constant dense<0.000000e+00> : vector<64x32xf32>
    %27 = tpu.matmul %24, %26, %cst_27 {dimension_numbers = #tpu.dot_dimension_numbers<[1], [0], [0], [1], [0, 0, 1, 1], [], []>} : vector<64x64xbf16>, vector<64x32xbf16>, vector<64x32xf32> -> vector<64x32xf32>
    %28 = arith.addf %21, %27 : vector<64x32xf32>
    %c0_28 = arith.constant 0 : index
    %c1_29 = arith.constant 1 : index
    %c1_30 = arith.constant 1 : index
    %c0_31 = arith.constant 0 : index
    %29 = vector.load %arg1[%c0_28, %c1_29, %c1_30, %c0_31] : memref<1x10x10x64xbf16, #tpu.memory_space<vmem>>, vector<1x8x8x64xbf16>
    %30 = vector.shape_cast %29 : vector<1x8x8x64xbf16> to vector<8x8x64xbf16>
    %31 = vector.shape_cast %30 : vector<8x8x64xbf16> to vector<64x64xbf16>
    %c4 = arith.constant 4 : index
    %c0_32 = arith.constant 0 : index
    %c0_33 = arith.constant 0 : index
    %32 = vector.load %arg2[%c4, %c0_32, %c0_33] : memref<9x64x32xbf16, #tpu.memory_space<vmem>>, vector<1x64x32xbf16>
    %33 = vector.shape_cast %32 : vector<1x64x32xbf16> to vector<64x32xbf16>
    %cst_34 = arith.constant dense<0.000000e+00> : vector<64x32xf32>
    %34 = tpu.matmul %31, %33, %cst_34 {dimension_numbers = #tpu.dot_dimension_numbers<[1], [0], [0], [1], [0, 0, 1, 1], [], []>} : vector<64x64xbf16>, vector<64x32xbf16>, vector<64x32xf32> -> vector<64x32xf32>
    %35 = arith.addf %28, %34 : vector<64x32xf32>
    %c0_35 = arith.constant 0 : index
    %c1_36 = arith.constant 1 : index
    %c2_37 = arith.constant 2 : index
    %c0_38 = arith.constant 0 : index
    %36 = vector.load %arg1[%c0_35, %c1_36, %c2_37, %c0_38] : memref<1x10x10x64xbf16, #tpu.memory_space<vmem>>, vector<1x8x8x64xbf16>
    %37 = vector.shape_cast %36 : vector<1x8x8x64xbf16> to vector<8x8x64xbf16>
    %38 = vector.shape_cast %37 : vector<8x8x64xbf16> to vector<64x64xbf16>
    %c5 = arith.constant 5 : index
    %c0_39 = arith.constant 0 : index
    %c0_40 = arith.constant 0 : index
    %39 = vector.load %arg2[%c5, %c0_39, %c0_40] : memref<9x64x32xbf16, #tpu.memory_space<vmem>>, vector<1x64x32xbf16>
    %40 = vector.shape_cast %39 : vector<1x64x32xbf16> to vector<64x32xbf16>
    %cst_41 = arith.constant dense<0.000000e+00> : vector<64x32xf32>
    %41 = tpu.matmul %38, %40, %cst_41 {dimension_numbers = #tpu.dot_dimension_numbers<[1], [0], [0], [1], [0, 0, 1, 1], [], []>} : vector<64x64xbf16>, vector<64x32xbf16>, vector<64x32xf32> -> vector<64x32xf32>
    %42 = arith.addf %35, %41 : vector<64x32xf32>
    %c0_42 = arith.constant 0 : index
    %c2_43 = arith.constant 2 : index
    %c0_44 = arith.constant 0 : index
    %c0_45 = arith.constant 0 : index
    %43 = vector.load %arg1[%c0_42, %c2_43, %c0_44, %c0_45] : memref<1x10x10x64xbf16, #tpu.memory_space<vmem>>, vector<1x8x8x64xbf16>
    %44 = vector.shape_cast %43 : vector<1x8x8x64xbf16> to vector<8x8x64xbf16>
    %45 = vector.shape_cast %44 : vector<8x8x64xbf16> to vector<64x64xbf16>
    %c6 = arith.constant 6 : index
    %c0_46 = arith.constant 0 : index
    %c0_47 = arith.constant 0 : index
    %46 = vector.load %arg2[%c6, %c0_46, %c0_47] : memref<9x64x32xbf16, #tpu.memory_space<vmem>>, vector<1x64x32xbf16>
    %47 = vector.shape_cast %46 : vector<1x64x32xbf16> to vector<64x32xbf16>
    %cst_48 = arith.constant dense<0.000000e+00> : vector<64x32xf32>
    %48 = tpu.matmul %45, %47, %cst_48 {dimension_numbers = #tpu.dot_dimension_numbers<[1], [0], [0], [1], [0, 0, 1, 1], [], []>} : vector<64x64xbf16>, vector<64x32xbf16>, vector<64x32xf32> -> vector<64x32xf32>
    %49 = arith.addf %42, %48 : vector<64x32xf32>
    %c0_49 = arith.constant 0 : index
    %c2_50 = arith.constant 2 : index
    %c1_51 = arith.constant 1 : index
    %c0_52 = arith.constant 0 : index
    %50 = vector.load %arg1[%c0_49, %c2_50, %c1_51, %c0_52] : memref<1x10x10x64xbf16, #tpu.memory_space<vmem>>, vector<1x8x8x64xbf16>
    %51 = vector.shape_cast %50 : vector<1x8x8x64xbf16> to vector<8x8x64xbf16>
    %52 = vector.shape_cast %51 : vector<8x8x64xbf16> to vector<64x64xbf16>
    %c7 = arith.constant 7 : index
    %c0_53 = arith.constant 0 : index
    %c0_54 = arith.constant 0 : index
    %53 = vector.load %arg2[%c7, %c0_53, %c0_54] : memref<9x64x32xbf16, #tpu.memory_space<vmem>>, vector<1x64x32xbf16>
    %54 = vector.shape_cast %53 : vector<1x64x32xbf16> to vector<64x32xbf16>
    %cst_55 = arith.constant dense<0.000000e+00> : vector<64x32xf32>
    %55 = tpu.matmul %52, %54, %cst_55 {dimension_numbers = #tpu.dot_dimension_numbers<[1], [0], [0], [1], [0, 0, 1, 1], [], []>} : vector<64x64xbf16>, vector<64x32xbf16>, vector<64x32xf32> -> vector<64x32xf32>
    %56 = arith.addf %49, %55 : vector<64x32xf32>
    %c0_56 = arith.constant 0 : index
    %c2_57 = arith.constant 2 : index
    %c2_58 = arith.constant 2 : index
    %c0_59 = arith.constant 0 : index
    %57 = vector.load %arg1[%c0_56, %c2_57, %c2_58, %c0_59] : memref<1x10x10x64xbf16, #tpu.memory_space<vmem>>, vector<1x8x8x64xbf16>
    %58 = vector.shape_cast %57 : vector<1x8x8x64xbf16> to vector<8x8x64xbf16>
    %59 = vector.shape_cast %58 : vector<8x8x64xbf16> to vector<64x64xbf16>
    %c8 = arith.constant 8 : index
    %c0_60 = arith.constant 0 : index
    %c0_61 = arith.constant 0 : index
    %60 = vector.load %arg2[%c8, %c0_60, %c0_61] : memref<9x64x32xbf16, #tpu.memory_space<vmem>>, vector<1x64x32xbf16>
    %61 = vector.shape_cast %60 : vector<1x64x32xbf16> to vector<64x32xbf16>
    %cst_62 = arith.constant dense<0.000000e+00> : vector<64x32xf32>
    %62 = tpu.matmul %59, %61, %cst_62 {dimension_numbers = #tpu.dot_dimension_numbers<[1], [0], [0], [1], [0, 0, 1, 1], [], []>} : vector<64x64xbf16>, vector<64x32xbf16>, vector<64x32xf32> -> vector<64x32xf32>
    %63 = arith.addf %56, %62 : vector<64x32xf32>
    %c0_63 = arith.constant 0 : index
    %c0_64 = arith.constant 0 : index
    %64 = vector.load %arg3[%c0_63, %c0_64] : memref<1x32xf32, #tpu.memory_space<vmem>>, vector<1x32xf32>
    %65 = vector.broadcast %64 : vector<1x32xf32> to vector<64x32xf32>
    %66 = arith.mulf %63, %65 : vector<64x32xf32>
    %c0_65 = arith.constant 0 : index
    %c0_66 = arith.constant 0 : index
    %67 = vector.load %arg4[%c0_65, %c0_66] : memref<1x32xf32, #tpu.memory_space<vmem>>, vector<1x32xf32>
    %68 = vector.broadcast %67 : vector<1x32xf32> to vector<64x32xf32>
    %69 = arith.addf %66, %68 : vector<64x32xf32>
    %cst_67 = arith.constant 0.000000e+00 : f32
    %70 = vector.broadcast %cst_67 : f32 to vector<64x32xf32>
    %71 = arith.maximumf %69, %70 : vector<64x32xf32>
    %72 = vector.shape_cast %71 : vector<64x32xf32> to vector<8x8x32xf32>
    %c0_68 = arith.constant 0 : index
    %c0_69 = arith.constant 0 : index
    %c0_70 = arith.constant 0 : index
    %c0_71 = arith.constant 0 : index
    %73 = vector.load %arg5[%c0_68, %c0_69, %c0_70, %c0_71] : memref<1x8x8x32xf32, #tpu.memory_space<vmem>>, vector<1x8x8x32xf32>
    %74 = vector.shape_cast %73 : vector<1x8x8x32xf32> to vector<8x8x32xf32>
    %75 = vector.shape_cast %72 : vector<8x8x32xf32> to vector<1x8x8x32xf32>
    tpu.vector_store %arg5[%c0_68, %c0_69, %c0_70, %c0_71], %75 {strides = array<i32>} : memref<1x8x8x32xf32, #tpu.memory_space<vmem>>, vector<1x8x8x32xf32>,
    return
  }
  func.func @transform_0(%arg0: i32) -> (i32, i32, i32, i32) {
    %c0_i32 = arith.constant 0 : i32
    %c0_i32_0 = arith.constant 0 : i32
    %c0_i32_1 = arith.constant 0 : i32
    %c0_i32_2 = arith.constant 0 : i32
    return %arg0, %c0_i32, %c0_i32_0, %c0_i32_1 : i32, i32, i32, i32
  }
  func.func @transform_1(%arg0: i32) -> (i32, i32, i32) {
    %c0_i32 = arith.constant 0 : i32
    %c0_i32_0 = arith.constant 0 : i32
    %c0_i32_1 = arith.constant 0 : i32
    %c0_i32_2 = arith.constant 0 : i32
    return %c0_i32, %c0_i32_0, %c0_i32_1 : i32, i32, i32
  }
  func.func @transform_2(%arg0: i32) -> (i32, i32) {
    %c0_i32 = arith.constant 0 : i32
    %c0_i32_0 = arith.constant 0 : i32
    %c0_i32_1 = arith.constant 0 : i32
    return %c0_i32, %c0_i32_0 : i32, i32
  }
  func.func @transform_3(%arg0: i32) -> (i32, i32) {
    %c0_i32 = arith.constant 0 : i32
    %c0_i32_0 = arith.constant 0 : i32
    %c0_i32_1 = arith.constant 0 : i32
    return %c0_i32, %c0_i32_0 : i32, i32
  }
  func.func @transform_4(%arg0: i32) -> (i32, i32, i32, i32) {
    %c0_i32 = arith.constant 0 : i32
    %c0_i32_0 = arith.constant 0 : i32
    %c0_i32_1 = arith.constant 0 : i32
    %c0_i32_2 = arith.constant 0 : i32
    return %arg0, %c0_i32, %c0_i32_0, %c0_i32_1 : i32, i32, i32, i32
  }
}

module attributes {stable_mosaic.version = 11 : i64} {
  func.func @_conv_bn_relu_kernel(%arg0: i32, %arg1: memref<1x8x8x64xbf16, #tpu.memory_space<vmem>>, %arg2: memref<1x64x176xbf16, #tpu.memory_space<vmem>>, %arg3: memref<1x176xf32, #tpu.memory_space<vmem>>, %arg4: memref<1x176xf32, #tpu.memory_space<vmem>>, %arg5: memref<1x8x8x176xf32, #tpu.memory_space<vmem>>) attributes {dimension_semantics = [#tpu.dimension_semantics<parallel>], iteration_bounds = array<i64: 2>, scalar_prefetch = 0 : i64, scratch_operands = 0 : i64, tpu.core_type = #tpu.core_type<tc>, window_params = [{transform_indices = @transform_0, window_bounds = array<i64: 1, 8, 8, 64>}, {pipeline_mode = #tpu.pipeline_mode<synchronous>, transform_indices = @transform_1, window_bounds = array<i64: 1, 64, 176>}, {pipeline_mode = #tpu.pipeline_mode<synchronous>, transform_indices = @transform_2, window_bounds = array<i64: 1, 176>}, {pipeline_mode = #tpu.pipeline_mode<synchronous>, transform_indices = @transform_3, window_bounds = array<i64: 1, 176>}, {transform_indices = @transform_4, window_bounds = array<i64: 1, 8, 8, 176>}]} {
    %cst = arith.constant 0.000000e+00 : f32
    %0 = vector.broadcast %cst : f32 to vector<64x176xf32>
    %c0 = arith.constant 0 : index
    %c0_0 = arith.constant 0 : index
    %c0_1 = arith.constant 0 : index
    %c0_2 = arith.constant 0 : index
    %1 = vector.load %arg1[%c0, %c0_0, %c0_1, %c0_2] : memref<1x8x8x64xbf16, #tpu.memory_space<vmem>>, vector<1x8x8x64xbf16>
    %2 = vector.shape_cast %1 : vector<1x8x8x64xbf16> to vector<8x8x64xbf16>
    %3 = vector.shape_cast %2 : vector<8x8x64xbf16> to vector<64x64xbf16>
    %c0_3 = arith.constant 0 : index
    %c0_4 = arith.constant 0 : index
    %c0_5 = arith.constant 0 : index
    %4 = vector.load %arg2[%c0_3, %c0_4, %c0_5] : memref<1x64x176xbf16, #tpu.memory_space<vmem>>, vector<1x64x176xbf16>
    %5 = vector.shape_cast %4 : vector<1x64x176xbf16> to vector<64x176xbf16>
    %cst_6 = arith.constant dense<0.000000e+00> : vector<64x176xf32>
    %6 = tpu.matmul %3, %5, %cst_6 {dimension_numbers = #tpu.dot_dimension_numbers<[1], [0], [0], [1], [0, 0, 1, 1], [], []>} : vector<64x64xbf16>, vector<64x176xbf16>, vector<64x176xf32> -> vector<64x176xf32>
    %7 = arith.addf %0, %6 : vector<64x176xf32>
    %c0_7 = arith.constant 0 : index
    %c0_8 = arith.constant 0 : index
    %8 = vector.load %arg3[%c0_7, %c0_8] : memref<1x176xf32, #tpu.memory_space<vmem>>, vector<1x176xf32>
    %9 = vector.broadcast %8 : vector<1x176xf32> to vector<64x176xf32>
    %10 = arith.mulf %7, %9 : vector<64x176xf32>
    %c0_9 = arith.constant 0 : index
    %c0_10 = arith.constant 0 : index
    %11 = vector.load %arg4[%c0_9, %c0_10] : memref<1x176xf32, #tpu.memory_space<vmem>>, vector<1x176xf32>
    %12 = vector.broadcast %11 : vector<1x176xf32> to vector<64x176xf32>
    %13 = arith.addf %10, %12 : vector<64x176xf32>
    %cst_11 = arith.constant 0.000000e+00 : f32
    %14 = vector.broadcast %cst_11 : f32 to vector<64x176xf32>
    %15 = arith.maximumf %13, %14 : vector<64x176xf32>
    %16 = vector.shape_cast %15 : vector<64x176xf32> to vector<8x8x176xf32>
    %c0_12 = arith.constant 0 : index
    %c0_13 = arith.constant 0 : index
    %c0_14 = arith.constant 0 : index
    %c0_15 = arith.constant 0 : index
    %17 = vector.load %arg5[%c0_12, %c0_13, %c0_14, %c0_15] : memref<1x8x8x176xf32, #tpu.memory_space<vmem>>, vector<1x8x8x176xf32>
    %18 = vector.shape_cast %17 : vector<1x8x8x176xf32> to vector<8x8x176xf32>
    %19 = vector.shape_cast %16 : vector<8x8x176xf32> to vector<1x8x8x176xf32>
    tpu.vector_store %arg5[%c0_12, %c0_13, %c0_14, %c0_15], %19 {strides = array<i32>} : memref<1x8x8x176xf32, #tpu.memory_space<vmem>>, vector<1x8x8x176xf32>,
    return
  }
  func.func @transform_0(%arg0: i32) -> (i32, i32, i32, i32) {
    %c0_i32 = arith.constant 0 : i32
    %c0_i32_0 = arith.constant 0 : i32
    %c0_i32_1 = arith.constant 0 : i32
    %c0_i32_2 = arith.constant 0 : i32
    return %arg0, %c0_i32, %c0_i32_0, %c0_i32_1 : i32, i32, i32, i32
  }
  func.func @transform_1(%arg0: i32) -> (i32, i32, i32) {
    %c0_i32 = arith.constant 0 : i32
    %c0_i32_0 = arith.constant 0 : i32
    %c0_i32_1 = arith.constant 0 : i32
    %c0_i32_2 = arith.constant 0 : i32
    return %c0_i32, %c0_i32_0, %c0_i32_1 : i32, i32, i32
  }
  func.func @transform_2(%arg0: i32) -> (i32, i32) {
    %c0_i32 = arith.constant 0 : i32
    %c0_i32_0 = arith.constant 0 : i32
    %c0_i32_1 = arith.constant 0 : i32
    return %c0_i32, %c0_i32_0 : i32, i32
  }
  func.func @transform_3(%arg0: i32) -> (i32, i32) {
    %c0_i32 = arith.constant 0 : i32
    %c0_i32_0 = arith.constant 0 : i32
    %c0_i32_1 = arith.constant 0 : i32
    return %c0_i32, %c0_i32_0 : i32, i32
  }
  func.func @transform_4(%arg0: i32) -> (i32, i32, i32, i32) {
    %c0_i32 = arith.constant 0 : i32
    %c0_i32_0 = arith.constant 0 : i32
    %c0_i32_1 = arith.constant 0 : i32
    %c0_i32_2 = arith.constant 0 : i32
    return %arg0, %c0_i32, %c0_i32_0, %c0_i32_1 : i32, i32, i32, i32
  }
}

module attributes {stable_mosaic.version = 11 : i64} {
  func.func @_conv_bn_relu_kernel(%arg0: i32, %arg1: memref<1x10x10x64xbf16, #tpu.memory_space<vmem>>, %arg2: memref<9x64x96xbf16, #tpu.memory_space<vmem>>, %arg3: memref<1x96xf32, #tpu.memory_space<vmem>>, %arg4: memref<1x96xf32, #tpu.memory_space<vmem>>, %arg5: memref<1x8x8x96xf32, #tpu.memory_space<vmem>>) attributes {dimension_semantics = [#tpu.dimension_semantics<parallel>], iteration_bounds = array<i64: 2>, scalar_prefetch = 0 : i64, scratch_operands = 0 : i64, tpu.core_type = #tpu.core_type<tc>, window_params = [{transform_indices = @transform_0, window_bounds = array<i64: 1, 10, 10, 64>}, {pipeline_mode = #tpu.pipeline_mode<synchronous>, transform_indices = @transform_1, window_bounds = array<i64: 9, 64, 96>}, {pipeline_mode = #tpu.pipeline_mode<synchronous>, transform_indices = @transform_2, window_bounds = array<i64: 1, 96>}, {pipeline_mode = #tpu.pipeline_mode<synchronous>, transform_indices = @transform_3, window_bounds = array<i64: 1, 96>}, {transform_indices = @transform_4, window_bounds = array<i64: 1, 8, 8, 96>}]} {
    %cst = arith.constant 0.000000e+00 : f32
    %0 = vector.broadcast %cst : f32 to vector<64x96xf32>
    %c0 = arith.constant 0 : index
    %c0_0 = arith.constant 0 : index
    %c0_1 = arith.constant 0 : index
    %c0_2 = arith.constant 0 : index
    %1 = vector.load %arg1[%c0, %c0_0, %c0_1, %c0_2] : memref<1x10x10x64xbf16, #tpu.memory_space<vmem>>, vector<1x8x8x64xbf16>
    %2 = vector.shape_cast %1 : vector<1x8x8x64xbf16> to vector<8x8x64xbf16>
    %3 = vector.shape_cast %2 : vector<8x8x64xbf16> to vector<64x64xbf16>
    %c0_3 = arith.constant 0 : index
    %c0_4 = arith.constant 0 : index
    %c0_5 = arith.constant 0 : index
    %4 = vector.load %arg2[%c0_3, %c0_4, %c0_5] : memref<9x64x96xbf16, #tpu.memory_space<vmem>>, vector<1x64x96xbf16>
    %5 = vector.shape_cast %4 : vector<1x64x96xbf16> to vector<64x96xbf16>
    %cst_6 = arith.constant dense<0.000000e+00> : vector<64x96xf32>
    %6 = tpu.matmul %3, %5, %cst_6 {dimension_numbers = #tpu.dot_dimension_numbers<[1], [0], [0], [1], [0, 0, 1, 1], [], []>} : vector<64x64xbf16>, vector<64x96xbf16>, vector<64x96xf32> -> vector<64x96xf32>
    %7 = arith.addf %0, %6 : vector<64x96xf32>
    %c0_7 = arith.constant 0 : index
    %c0_8 = arith.constant 0 : index
    %c1 = arith.constant 1 : index
    %c0_9 = arith.constant 0 : index
    %8 = vector.load %arg1[%c0_7, %c0_8, %c1, %c0_9] : memref<1x10x10x64xbf16, #tpu.memory_space<vmem>>, vector<1x8x8x64xbf16>
    %9 = vector.shape_cast %8 : vector<1x8x8x64xbf16> to vector<8x8x64xbf16>
    %10 = vector.shape_cast %9 : vector<8x8x64xbf16> to vector<64x64xbf16>
    %c1_10 = arith.constant 1 : index
    %c0_11 = arith.constant 0 : index
    %c0_12 = arith.constant 0 : index
    %11 = vector.load %arg2[%c1_10, %c0_11, %c0_12] : memref<9x64x96xbf16, #tpu.memory_space<vmem>>, vector<1x64x96xbf16>
    %12 = vector.shape_cast %11 : vector<1x64x96xbf16> to vector<64x96xbf16>
    %cst_13 = arith.constant dense<0.000000e+00> : vector<64x96xf32>
    %13 = tpu.matmul %10, %12, %cst_13 {dimension_numbers = #tpu.dot_dimension_numbers<[1], [0], [0], [1], [0, 0, 1, 1], [], []>} : vector<64x64xbf16>, vector<64x96xbf16>, vector<64x96xf32> -> vector<64x96xf32>
    %14 = arith.addf %7, %13 : vector<64x96xf32>
    %c0_14 = arith.constant 0 : index
    %c0_15 = arith.constant 0 : index
    %c2 = arith.constant 2 : index
    %c0_16 = arith.constant 0 : index
    %15 = vector.load %arg1[%c0_14, %c0_15, %c2, %c0_16] : memref<1x10x10x64xbf16, #tpu.memory_space<vmem>>, vector<1x8x8x64xbf16>
    %16 = vector.shape_cast %15 : vector<1x8x8x64xbf16> to vector<8x8x64xbf16>
    %17 = vector.shape_cast %16 : vector<8x8x64xbf16> to vector<64x64xbf16>
    %c2_17 = arith.constant 2 : index
    %c0_18 = arith.constant 0 : index
    %c0_19 = arith.constant 0 : index
    %18 = vector.load %arg2[%c2_17, %c0_18, %c0_19] : memref<9x64x96xbf16, #tpu.memory_space<vmem>>, vector<1x64x96xbf16>
    %19 = vector.shape_cast %18 : vector<1x64x96xbf16> to vector<64x96xbf16>
    %cst_20 = arith.constant dense<0.000000e+00> : vector<64x96xf32>
    %20 = tpu.matmul %17, %19, %cst_20 {dimension_numbers = #tpu.dot_dimension_numbers<[1], [0], [0], [1], [0, 0, 1, 1], [], []>} : vector<64x64xbf16>, vector<64x96xbf16>, vector<64x96xf32> -> vector<64x96xf32>
    %21 = arith.addf %14, %20 : vector<64x96xf32>
    %c0_21 = arith.constant 0 : index
    %c1_22 = arith.constant 1 : index
    %c0_23 = arith.constant 0 : index
    %c0_24 = arith.constant 0 : index
    %22 = vector.load %arg1[%c0_21, %c1_22, %c0_23, %c0_24] : memref<1x10x10x64xbf16, #tpu.memory_space<vmem>>, vector<1x8x8x64xbf16>
    %23 = vector.shape_cast %22 : vector<1x8x8x64xbf16> to vector<8x8x64xbf16>
    %24 = vector.shape_cast %23 : vector<8x8x64xbf16> to vector<64x64xbf16>
    %c3 = arith.constant 3 : index
    %c0_25 = arith.constant 0 : index
    %c0_26 = arith.constant 0 : index
    %25 = vector.load %arg2[%c3, %c0_25, %c0_26] : memref<9x64x96xbf16, #tpu.memory_space<vmem>>, vector<1x64x96xbf16>
    %26 = vector.shape_cast %25 : vector<1x64x96xbf16> to vector<64x96xbf16>
    %cst_27 = arith.constant dense<0.000000e+00> : vector<64x96xf32>
    %27 = tpu.matmul %24, %26, %cst_27 {dimension_numbers = #tpu.dot_dimension_numbers<[1], [0], [0], [1], [0, 0, 1, 1], [], []>} : vector<64x64xbf16>, vector<64x96xbf16>, vector<64x96xf32> -> vector<64x96xf32>
    %28 = arith.addf %21, %27 : vector<64x96xf32>
    %c0_28 = arith.constant 0 : index
    %c1_29 = arith.constant 1 : index
    %c1_30 = arith.constant 1 : index
    %c0_31 = arith.constant 0 : index
    %29 = vector.load %arg1[%c0_28, %c1_29, %c1_30, %c0_31] : memref<1x10x10x64xbf16, #tpu.memory_space<vmem>>, vector<1x8x8x64xbf16>
    %30 = vector.shape_cast %29 : vector<1x8x8x64xbf16> to vector<8x8x64xbf16>
    %31 = vector.shape_cast %30 : vector<8x8x64xbf16> to vector<64x64xbf16>
    %c4 = arith.constant 4 : index
    %c0_32 = arith.constant 0 : index
    %c0_33 = arith.constant 0 : index
    %32 = vector.load %arg2[%c4, %c0_32, %c0_33] : memref<9x64x96xbf16, #tpu.memory_space<vmem>>, vector<1x64x96xbf16>
    %33 = vector.shape_cast %32 : vector<1x64x96xbf16> to vector<64x96xbf16>
    %cst_34 = arith.constant dense<0.000000e+00> : vector<64x96xf32>
    %34 = tpu.matmul %31, %33, %cst_34 {dimension_numbers = #tpu.dot_dimension_numbers<[1], [0], [0], [1], [0, 0, 1, 1], [], []>} : vector<64x64xbf16>, vector<64x96xbf16>, vector<64x96xf32> -> vector<64x96xf32>
    %35 = arith.addf %28, %34 : vector<64x96xf32>
    %c0_35 = arith.constant 0 : index
    %c1_36 = arith.constant 1 : index
    %c2_37 = arith.constant 2 : index
    %c0_38 = arith.constant 0 : index
    %36 = vector.load %arg1[%c0_35, %c1_36, %c2_37, %c0_38] : memref<1x10x10x64xbf16, #tpu.memory_space<vmem>>, vector<1x8x8x64xbf16>
    %37 = vector.shape_cast %36 : vector<1x8x8x64xbf16> to vector<8x8x64xbf16>
    %38 = vector.shape_cast %37 : vector<8x8x64xbf16> to vector<64x64xbf16>
    %c5 = arith.constant 5 : index
    %c0_39 = arith.constant 0 : index
    %c0_40 = arith.constant 0 : index
    %39 = vector.load %arg2[%c5, %c0_39, %c0_40] : memref<9x64x96xbf16, #tpu.memory_space<vmem>>, vector<1x64x96xbf16>
    %40 = vector.shape_cast %39 : vector<1x64x96xbf16> to vector<64x96xbf16>
    %cst_41 = arith.constant dense<0.000000e+00> : vector<64x96xf32>
    %41 = tpu.matmul %38, %40, %cst_41 {dimension_numbers = #tpu.dot_dimension_numbers<[1], [0], [0], [1], [0, 0, 1, 1], [], []>} : vector<64x64xbf16>, vector<64x96xbf16>, vector<64x96xf32> -> vector<64x96xf32>
    %42 = arith.addf %35, %41 : vector<64x96xf32>
    %c0_42 = arith.constant 0 : index
    %c2_43 = arith.constant 2 : index
    %c0_44 = arith.constant 0 : index
    %c0_45 = arith.constant 0 : index
    %43 = vector.load %arg1[%c0_42, %c2_43, %c0_44, %c0_45] : memref<1x10x10x64xbf16, #tpu.memory_space<vmem>>, vector<1x8x8x64xbf16>
    %44 = vector.shape_cast %43 : vector<1x8x8x64xbf16> to vector<8x8x64xbf16>
    %45 = vector.shape_cast %44 : vector<8x8x64xbf16> to vector<64x64xbf16>
    %c6 = arith.constant 6 : index
    %c0_46 = arith.constant 0 : index
    %c0_47 = arith.constant 0 : index
    %46 = vector.load %arg2[%c6, %c0_46, %c0_47] : memref<9x64x96xbf16, #tpu.memory_space<vmem>>, vector<1x64x96xbf16>
    %47 = vector.shape_cast %46 : vector<1x64x96xbf16> to vector<64x96xbf16>
    %cst_48 = arith.constant dense<0.000000e+00> : vector<64x96xf32>
    %48 = tpu.matmul %45, %47, %cst_48 {dimension_numbers = #tpu.dot_dimension_numbers<[1], [0], [0], [1], [0, 0, 1, 1], [], []>} : vector<64x64xbf16>, vector<64x96xbf16>, vector<64x96xf32> -> vector<64x96xf32>
    %49 = arith.addf %42, %48 : vector<64x96xf32>
    %c0_49 = arith.constant 0 : index
    %c2_50 = arith.constant 2 : index
    %c1_51 = arith.constant 1 : index
    %c0_52 = arith.constant 0 : index
    %50 = vector.load %arg1[%c0_49, %c2_50, %c1_51, %c0_52] : memref<1x10x10x64xbf16, #tpu.memory_space<vmem>>, vector<1x8x8x64xbf16>
    %51 = vector.shape_cast %50 : vector<1x8x8x64xbf16> to vector<8x8x64xbf16>
    %52 = vector.shape_cast %51 : vector<8x8x64xbf16> to vector<64x64xbf16>
    %c7 = arith.constant 7 : index
    %c0_53 = arith.constant 0 : index
    %c0_54 = arith.constant 0 : index
    %53 = vector.load %arg2[%c7, %c0_53, %c0_54] : memref<9x64x96xbf16, #tpu.memory_space<vmem>>, vector<1x64x96xbf16>
    %54 = vector.shape_cast %53 : vector<1x64x96xbf16> to vector<64x96xbf16>
    %cst_55 = arith.constant dense<0.000000e+00> : vector<64x96xf32>
    %55 = tpu.matmul %52, %54, %cst_55 {dimension_numbers = #tpu.dot_dimension_numbers<[1], [0], [0], [1], [0, 0, 1, 1], [], []>} : vector<64x64xbf16>, vector<64x96xbf16>, vector<64x96xf32> -> vector<64x96xf32>
    %56 = arith.addf %49, %55 : vector<64x96xf32>
    %c0_56 = arith.constant 0 : index
    %c2_57 = arith.constant 2 : index
    %c2_58 = arith.constant 2 : index
    %c0_59 = arith.constant 0 : index
    %57 = vector.load %arg1[%c0_56, %c2_57, %c2_58, %c0_59] : memref<1x10x10x64xbf16, #tpu.memory_space<vmem>>, vector<1x8x8x64xbf16>
    %58 = vector.shape_cast %57 : vector<1x8x8x64xbf16> to vector<8x8x64xbf16>
    %59 = vector.shape_cast %58 : vector<8x8x64xbf16> to vector<64x64xbf16>
    %c8 = arith.constant 8 : index
    %c0_60 = arith.constant 0 : index
    %c0_61 = arith.constant 0 : index
    %60 = vector.load %arg2[%c8, %c0_60, %c0_61] : memref<9x64x96xbf16, #tpu.memory_space<vmem>>, vector<1x64x96xbf16>
    %61 = vector.shape_cast %60 : vector<1x64x96xbf16> to vector<64x96xbf16>
    %cst_62 = arith.constant dense<0.000000e+00> : vector<64x96xf32>
    %62 = tpu.matmul %59, %61, %cst_62 {dimension_numbers = #tpu.dot_dimension_numbers<[1], [0], [0], [1], [0, 0, 1, 1], [], []>} : vector<64x64xbf16>, vector<64x96xbf16>, vector<64x96xf32> -> vector<64x96xf32>
    %63 = arith.addf %56, %62 : vector<64x96xf32>
    %c0_63 = arith.constant 0 : index
    %c0_64 = arith.constant 0 : index
    %64 = vector.load %arg3[%c0_63, %c0_64] : memref<1x96xf32, #tpu.memory_space<vmem>>, vector<1x96xf32>
    %65 = vector.broadcast %64 : vector<1x96xf32> to vector<64x96xf32>
    %66 = arith.mulf %63, %65 : vector<64x96xf32>
    %c0_65 = arith.constant 0 : index
    %c0_66 = arith.constant 0 : index
    %67 = vector.load %arg4[%c0_65, %c0_66] : memref<1x96xf32, #tpu.memory_space<vmem>>, vector<1x96xf32>
    %68 = vector.broadcast %67 : vector<1x96xf32> to vector<64x96xf32>
    %69 = arith.addf %66, %68 : vector<64x96xf32>
    %cst_67 = arith.constant 0.000000e+00 : f32
    %70 = vector.broadcast %cst_67 : f32 to vector<64x96xf32>
    %71 = arith.maximumf %69, %70 : vector<64x96xf32>
    %72 = vector.shape_cast %71 : vector<64x96xf32> to vector<8x8x96xf32>
    %c0_68 = arith.constant 0 : index
    %c0_69 = arith.constant 0 : index
    %c0_70 = arith.constant 0 : index
    %c0_71 = arith.constant 0 : index
    %73 = vector.load %arg5[%c0_68, %c0_69, %c0_70, %c0_71] : memref<1x8x8x96xf32, #tpu.memory_space<vmem>>, vector<1x8x8x96xf32>
    %74 = vector.shape_cast %73 : vector<1x8x8x96xf32> to vector<8x8x96xf32>
    %75 = vector.shape_cast %72 : vector<8x8x96xf32> to vector<1x8x8x96xf32>
    tpu.vector_store %arg5[%c0_68, %c0_69, %c0_70, %c0_71], %75 {strides = array<i32>} : memref<1x8x8x96xf32, #tpu.memory_space<vmem>>, vector<1x8x8x96xf32>,
    return
  }
  func.func @transform_0(%arg0: i32) -> (i32, i32, i32, i32) {
    %c0_i32 = arith.constant 0 : i32
    %c0_i32_0 = arith.constant 0 : i32
    %c0_i32_1 = arith.constant 0 : i32
    %c0_i32_2 = arith.constant 0 : i32
    return %arg0, %c0_i32, %c0_i32_0, %c0_i32_1 : i32, i32, i32, i32
  }
  func.func @transform_1(%arg0: i32) -> (i32, i32, i32) {
    %c0_i32 = arith.constant 0 : i32
    %c0_i32_0 = arith.constant 0 : i32
    %c0_i32_1 = arith.constant 0 : i32
    %c0_i32_2 = arith.constant 0 : i32
    return %c0_i32, %c0_i32_0, %c0_i32_1 : i32, i32, i32
  }
  func.func @transform_2(%arg0: i32) -> (i32, i32) {
    %c0_i32 = arith.constant 0 : i32
    %c0_i32_0 = arith.constant 0 : i32
    %c0_i32_1 = arith.constant 0 : i32
    return %c0_i32, %c0_i32_0 : i32, i32
  }
  func.func @transform_3(%arg0: i32) -> (i32, i32) {
    %c0_i32 = arith.constant 0 : i32
    %c0_i32_0 = arith.constant 0 : i32
    %c0_i32_1 = arith.constant 0 : i32
    return %c0_i32, %c0_i32_0 : i32, i32
  }
  func.func @transform_4(%arg0: i32) -> (i32, i32, i32, i32) {
    %c0_i32 = arith.constant 0 : i32
    %c0_i32_0 = arith.constant 0 : i32
    %c0_i32_1 = arith.constant 0 : i32
    %c0_i32_2 = arith.constant 0 : i32
    return %arg0, %c0_i32, %c0_i32_0, %c0_i32_1 : i32, i32, i32, i32
  }
}

module attributes {stable_mosaic.version = 11 : i64} {
  func.func @_conv_bn_relu_kernel(%arg0: i32, %arg1: memref<1x10x10x96xbf16, #tpu.memory_space<vmem>>, %arg2: memref<9x96x96xbf16, #tpu.memory_space<vmem>>, %arg3: memref<1x96xf32, #tpu.memory_space<vmem>>, %arg4: memref<1x96xf32, #tpu.memory_space<vmem>>, %arg5: memref<1x8x8x96xf32, #tpu.memory_space<vmem>>) attributes {dimension_semantics = [#tpu.dimension_semantics<parallel>], iteration_bounds = array<i64: 2>, scalar_prefetch = 0 : i64, scratch_operands = 0 : i64, tpu.core_type = #tpu.core_type<tc>, window_params = [{transform_indices = @transform_0, window_bounds = array<i64: 1, 10, 10, 96>}, {pipeline_mode = #tpu.pipeline_mode<synchronous>, transform_indices = @transform_1, window_bounds = array<i64: 9, 96, 96>}, {pipeline_mode = #tpu.pipeline_mode<synchronous>, transform_indices = @transform_2, window_bounds = array<i64: 1, 96>}, {pipeline_mode = #tpu.pipeline_mode<synchronous>, transform_indices = @transform_3, window_bounds = array<i64: 1, 96>}, {transform_indices = @transform_4, window_bounds = array<i64: 1, 8, 8, 96>}]} {
    %cst = arith.constant 0.000000e+00 : f32
    %0 = vector.broadcast %cst : f32 to vector<64x96xf32>
    %c0 = arith.constant 0 : index
    %c0_0 = arith.constant 0 : index
    %c0_1 = arith.constant 0 : index
    %c0_2 = arith.constant 0 : index
    %1 = vector.load %arg1[%c0, %c0_0, %c0_1, %c0_2] : memref<1x10x10x96xbf16, #tpu.memory_space<vmem>>, vector<1x8x8x96xbf16>
    %2 = vector.shape_cast %1 : vector<1x8x8x96xbf16> to vector<8x8x96xbf16>
    %3 = vector.shape_cast %2 : vector<8x8x96xbf16> to vector<64x96xbf16>
    %c0_3 = arith.constant 0 : index
    %c0_4 = arith.constant 0 : index
    %c0_5 = arith.constant 0 : index
    %4 = vector.load %arg2[%c0_3, %c0_4, %c0_5] : memref<9x96x96xbf16, #tpu.memory_space<vmem>>, vector<1x96x96xbf16>
    %5 = vector.shape_cast %4 : vector<1x96x96xbf16> to vector<96x96xbf16>
    %cst_6 = arith.constant dense<0.000000e+00> : vector<64x96xf32>
    %6 = tpu.matmul %3, %5, %cst_6 {dimension_numbers = #tpu.dot_dimension_numbers<[1], [0], [0], [1], [0, 0, 1, 1], [], []>} : vector<64x96xbf16>, vector<96x96xbf16>, vector<64x96xf32> -> vector<64x96xf32>
    %7 = arith.addf %0, %6 : vector<64x96xf32>
    %c0_7 = arith.constant 0 : index
    %c0_8 = arith.constant 0 : index
    %c1 = arith.constant 1 : index
    %c0_9 = arith.constant 0 : index
    %8 = vector.load %arg1[%c0_7, %c0_8, %c1, %c0_9] : memref<1x10x10x96xbf16, #tpu.memory_space<vmem>>, vector<1x8x8x96xbf16>
    %9 = vector.shape_cast %8 : vector<1x8x8x96xbf16> to vector<8x8x96xbf16>
    %10 = vector.shape_cast %9 : vector<8x8x96xbf16> to vector<64x96xbf16>
    %c1_10 = arith.constant 1 : index
    %c0_11 = arith.constant 0 : index
    %c0_12 = arith.constant 0 : index
    %11 = vector.load %arg2[%c1_10, %c0_11, %c0_12] : memref<9x96x96xbf16, #tpu.memory_space<vmem>>, vector<1x96x96xbf16>
    %12 = vector.shape_cast %11 : vector<1x96x96xbf16> to vector<96x96xbf16>
    %cst_13 = arith.constant dense<0.000000e+00> : vector<64x96xf32>
    %13 = tpu.matmul %10, %12, %cst_13 {dimension_numbers = #tpu.dot_dimension_numbers<[1], [0], [0], [1], [0, 0, 1, 1], [], []>} : vector<64x96xbf16>, vector<96x96xbf16>, vector<64x96xf32> -> vector<64x96xf32>
    %14 = arith.addf %7, %13 : vector<64x96xf32>
    %c0_14 = arith.constant 0 : index
    %c0_15 = arith.constant 0 : index
    %c2 = arith.constant 2 : index
    %c0_16 = arith.constant 0 : index
    %15 = vector.load %arg1[%c0_14, %c0_15, %c2, %c0_16] : memref<1x10x10x96xbf16, #tpu.memory_space<vmem>>, vector<1x8x8x96xbf16>
    %16 = vector.shape_cast %15 : vector<1x8x8x96xbf16> to vector<8x8x96xbf16>
    %17 = vector.shape_cast %16 : vector<8x8x96xbf16> to vector<64x96xbf16>
    %c2_17 = arith.constant 2 : index
    %c0_18 = arith.constant 0 : index
    %c0_19 = arith.constant 0 : index
    %18 = vector.load %arg2[%c2_17, %c0_18, %c0_19] : memref<9x96x96xbf16, #tpu.memory_space<vmem>>, vector<1x96x96xbf16>
    %19 = vector.shape_cast %18 : vector<1x96x96xbf16> to vector<96x96xbf16>
    %cst_20 = arith.constant dense<0.000000e+00> : vector<64x96xf32>
    %20 = tpu.matmul %17, %19, %cst_20 {dimension_numbers = #tpu.dot_dimension_numbers<[1], [0], [0], [1], [0, 0, 1, 1], [], []>} : vector<64x96xbf16>, vector<96x96xbf16>, vector<64x96xf32> -> vector<64x96xf32>
    %21 = arith.addf %14, %20 : vector<64x96xf32>
    %c0_21 = arith.constant 0 : index
    %c1_22 = arith.constant 1 : index
    %c0_23 = arith.constant 0 : index
    %c0_24 = arith.constant 0 : index
    %22 = vector.load %arg1[%c0_21, %c1_22, %c0_23, %c0_24] : memref<1x10x10x96xbf16, #tpu.memory_space<vmem>>, vector<1x8x8x96xbf16>
    %23 = vector.shape_cast %22 : vector<1x8x8x96xbf16> to vector<8x8x96xbf16>
    %24 = vector.shape_cast %23 : vector<8x8x96xbf16> to vector<64x96xbf16>
    %c3 = arith.constant 3 : index
    %c0_25 = arith.constant 0 : index
    %c0_26 = arith.constant 0 : index
    %25 = vector.load %arg2[%c3, %c0_25, %c0_26] : memref<9x96x96xbf16, #tpu.memory_space<vmem>>, vector<1x96x96xbf16>
    %26 = vector.shape_cast %25 : vector<1x96x96xbf16> to vector<96x96xbf16>
    %cst_27 = arith.constant dense<0.000000e+00> : vector<64x96xf32>
    %27 = tpu.matmul %24, %26, %cst_27 {dimension_numbers = #tpu.dot_dimension_numbers<[1], [0], [0], [1], [0, 0, 1, 1], [], []>} : vector<64x96xbf16>, vector<96x96xbf16>, vector<64x96xf32> -> vector<64x96xf32>
    %28 = arith.addf %21, %27 : vector<64x96xf32>
    %c0_28 = arith.constant 0 : index
    %c1_29 = arith.constant 1 : index
    %c1_30 = arith.constant 1 : index
    %c0_31 = arith.constant 0 : index
    %29 = vector.load %arg1[%c0_28, %c1_29, %c1_30, %c0_31] : memref<1x10x10x96xbf16, #tpu.memory_space<vmem>>, vector<1x8x8x96xbf16>
    %30 = vector.shape_cast %29 : vector<1x8x8x96xbf16> to vector<8x8x96xbf16>
    %31 = vector.shape_cast %30 : vector<8x8x96xbf16> to vector<64x96xbf16>
    %c4 = arith.constant 4 : index
    %c0_32 = arith.constant 0 : index
    %c0_33 = arith.constant 0 : index
    %32 = vector.load %arg2[%c4, %c0_32, %c0_33] : memref<9x96x96xbf16, #tpu.memory_space<vmem>>, vector<1x96x96xbf16>
    %33 = vector.shape_cast %32 : vector<1x96x96xbf16> to vector<96x96xbf16>
    %cst_34 = arith.constant dense<0.000000e+00> : vector<64x96xf32>
    %34 = tpu.matmul %31, %33, %cst_34 {dimension_numbers = #tpu.dot_dimension_numbers<[1], [0], [0], [1], [0, 0, 1, 1], [], []>} : vector<64x96xbf16>, vector<96x96xbf16>, vector<64x96xf32> -> vector<64x96xf32>
    %35 = arith.addf %28, %34 : vector<64x96xf32>
    %c0_35 = arith.constant 0 : index
    %c1_36 = arith.constant 1 : index
    %c2_37 = arith.constant 2 : index
    %c0_38 = arith.constant 0 : index
    %36 = vector.load %arg1[%c0_35, %c1_36, %c2_37, %c0_38] : memref<1x10x10x96xbf16, #tpu.memory_space<vmem>>, vector<1x8x8x96xbf16>
    %37 = vector.shape_cast %36 : vector<1x8x8x96xbf16> to vector<8x8x96xbf16>
    %38 = vector.shape_cast %37 : vector<8x8x96xbf16> to vector<64x96xbf16>
    %c5 = arith.constant 5 : index
    %c0_39 = arith.constant 0 : index
    %c0_40 = arith.constant 0 : index
    %39 = vector.load %arg2[%c5, %c0_39, %c0_40] : memref<9x96x96xbf16, #tpu.memory_space<vmem>>, vector<1x96x96xbf16>
    %40 = vector.shape_cast %39 : vector<1x96x96xbf16> to vector<96x96xbf16>
    %cst_41 = arith.constant dense<0.000000e+00> : vector<64x96xf32>
    %41 = tpu.matmul %38, %40, %cst_41 {dimension_numbers = #tpu.dot_dimension_numbers<[1], [0], [0], [1], [0, 0, 1, 1], [], []>} : vector<64x96xbf16>, vector<96x96xbf16>, vector<64x96xf32> -> vector<64x96xf32>
    %42 = arith.addf %35, %41 : vector<64x96xf32>
    %c0_42 = arith.constant 0 : index
    %c2_43 = arith.constant 2 : index
    %c0_44 = arith.constant 0 : index
    %c0_45 = arith.constant 0 : index
    %43 = vector.load %arg1[%c0_42, %c2_43, %c0_44, %c0_45] : memref<1x10x10x96xbf16, #tpu.memory_space<vmem>>, vector<1x8x8x96xbf16>
    %44 = vector.shape_cast %43 : vector<1x8x8x96xbf16> to vector<8x8x96xbf16>
    %45 = vector.shape_cast %44 : vector<8x8x96xbf16> to vector<64x96xbf16>
    %c6 = arith.constant 6 : index
    %c0_46 = arith.constant 0 : index
    %c0_47 = arith.constant 0 : index
    %46 = vector.load %arg2[%c6, %c0_46, %c0_47] : memref<9x96x96xbf16, #tpu.memory_space<vmem>>, vector<1x96x96xbf16>
    %47 = vector.shape_cast %46 : vector<1x96x96xbf16> to vector<96x96xbf16>
    %cst_48 = arith.constant dense<0.000000e+00> : vector<64x96xf32>
    %48 = tpu.matmul %45, %47, %cst_48 {dimension_numbers = #tpu.dot_dimension_numbers<[1], [0], [0], [1], [0, 0, 1, 1], [], []>} : vector<64x96xbf16>, vector<96x96xbf16>, vector<64x96xf32> -> vector<64x96xf32>
    %49 = arith.addf %42, %48 : vector<64x96xf32>
    %c0_49 = arith.constant 0 : index
    %c2_50 = arith.constant 2 : index
    %c1_51 = arith.constant 1 : index
    %c0_52 = arith.constant 0 : index
    %50 = vector.load %arg1[%c0_49, %c2_50, %c1_51, %c0_52] : memref<1x10x10x96xbf16, #tpu.memory_space<vmem>>, vector<1x8x8x96xbf16>
    %51 = vector.shape_cast %50 : vector<1x8x8x96xbf16> to vector<8x8x96xbf16>
    %52 = vector.shape_cast %51 : vector<8x8x96xbf16> to vector<64x96xbf16>
    %c7 = arith.constant 7 : index
    %c0_53 = arith.constant 0 : index
    %c0_54 = arith.constant 0 : index
    %53 = vector.load %arg2[%c7, %c0_53, %c0_54] : memref<9x96x96xbf16, #tpu.memory_space<vmem>>, vector<1x96x96xbf16>
    %54 = vector.shape_cast %53 : vector<1x96x96xbf16> to vector<96x96xbf16>
    %cst_55 = arith.constant dense<0.000000e+00> : vector<64x96xf32>
    %55 = tpu.matmul %52, %54, %cst_55 {dimension_numbers = #tpu.dot_dimension_numbers<[1], [0], [0], [1], [0, 0, 1, 1], [], []>} : vector<64x96xbf16>, vector<96x96xbf16>, vector<64x96xf32> -> vector<64x96xf32>
    %56 = arith.addf %49, %55 : vector<64x96xf32>
    %c0_56 = arith.constant 0 : index
    %c2_57 = arith.constant 2 : index
    %c2_58 = arith.constant 2 : index
    %c0_59 = arith.constant 0 : index
    %57 = vector.load %arg1[%c0_56, %c2_57, %c2_58, %c0_59] : memref<1x10x10x96xbf16, #tpu.memory_space<vmem>>, vector<1x8x8x96xbf16>
    %58 = vector.shape_cast %57 : vector<1x8x8x96xbf16> to vector<8x8x96xbf16>
    %59 = vector.shape_cast %58 : vector<8x8x96xbf16> to vector<64x96xbf16>
    %c8 = arith.constant 8 : index
    %c0_60 = arith.constant 0 : index
    %c0_61 = arith.constant 0 : index
    %60 = vector.load %arg2[%c8, %c0_60, %c0_61] : memref<9x96x96xbf16, #tpu.memory_space<vmem>>, vector<1x96x96xbf16>
    %61 = vector.shape_cast %60 : vector<1x96x96xbf16> to vector<96x96xbf16>
    %cst_62 = arith.constant dense<0.000000e+00> : vector<64x96xf32>
    %62 = tpu.matmul %59, %61, %cst_62 {dimension_numbers = #tpu.dot_dimension_numbers<[1], [0], [0], [1], [0, 0, 1, 1], [], []>} : vector<64x96xbf16>, vector<96x96xbf16>, vector<64x96xf32> -> vector<64x96xf32>
    %63 = arith.addf %56, %62 : vector<64x96xf32>
    %c0_63 = arith.constant 0 : index
    %c0_64 = arith.constant 0 : index
    %64 = vector.load %arg3[%c0_63, %c0_64] : memref<1x96xf32, #tpu.memory_space<vmem>>, vector<1x96xf32>
    %65 = vector.broadcast %64 : vector<1x96xf32> to vector<64x96xf32>
    %66 = arith.mulf %63, %65 : vector<64x96xf32>
    %c0_65 = arith.constant 0 : index
    %c0_66 = arith.constant 0 : index
    %67 = vector.load %arg4[%c0_65, %c0_66] : memref<1x96xf32, #tpu.memory_space<vmem>>, vector<1x96xf32>
    %68 = vector.broadcast %67 : vector<1x96xf32> to vector<64x96xf32>
    %69 = arith.addf %66, %68 : vector<64x96xf32>
    %cst_67 = arith.constant 0.000000e+00 : f32
    %70 = vector.broadcast %cst_67 : f32 to vector<64x96xf32>
    %71 = arith.maximumf %69, %70 : vector<64x96xf32>
    %72 = vector.shape_cast %71 : vector<64x96xf32> to vector<8x8x96xf32>
    %c0_68 = arith.constant 0 : index
    %c0_69 = arith.constant 0 : index
    %c0_70 = arith.constant 0 : index
    %c0_71 = arith.constant 0 : index
    %73 = vector.load %arg5[%c0_68, %c0_69, %c0_70, %c0_71] : memref<1x8x8x96xf32, #tpu.memory_space<vmem>>, vector<1x8x8x96xf32>
    %74 = vector.shape_cast %73 : vector<1x8x8x96xf32> to vector<8x8x96xf32>
    %75 = vector.shape_cast %72 : vector<8x8x96xf32> to vector<1x8x8x96xf32>
    tpu.vector_store %arg5[%c0_68, %c0_69, %c0_70, %c0_71], %75 {strides = array<i32>} : memref<1x8x8x96xf32, #tpu.memory_space<vmem>>, vector<1x8x8x96xf32>,
    return
  }
  func.func @transform_0(%arg0: i32) -> (i32, i32, i32, i32) {
    %c0_i32 = arith.constant 0 : i32
    %c0_i32_0 = arith.constant 0 : i32
    %c0_i32_1 = arith.constant 0 : i32
    %c0_i32_2 = arith.constant 0 : i32
    return %arg0, %c0_i32, %c0_i32_0, %c0_i32_1 : i32, i32, i32, i32
  }
  func.func @transform_1(%arg0: i32) -> (i32, i32, i32) {
    %c0_i32 = arith.constant 0 : i32
    %c0_i32_0 = arith.constant 0 : i32
    %c0_i32_1 = arith.constant 0 : i32
    %c0_i32_2 = arith.constant 0 : i32
    return %c0_i32, %c0_i32_0, %c0_i32_1 : i32, i32, i32
  }
  func.func @transform_2(%arg0: i32) -> (i32, i32) {
    %c0_i32 = arith.constant 0 : i32
    %c0_i32_0 = arith.constant 0 : i32
    %c0_i32_1 = arith.constant 0 : i32
    return %c0_i32, %c0_i32_0 : i32, i32
  }
  func.func @transform_3(%arg0: i32) -> (i32, i32) {
    %c0_i32 = arith.constant 0 : i32
    %c0_i32_0 = arith.constant 0 : i32
    %c0_i32_1 = arith.constant 0 : i32
    return %c0_i32, %c0_i32_0 : i32, i32
  }
  func.func @transform_4(%arg0: i32) -> (i32, i32, i32, i32) {
    %c0_i32 = arith.constant 0 : i32
    %c0_i32_0 = arith.constant 0 : i32
    %c0_i32_1 = arith.constant 0 : i32
    %c0_i32_2 = arith.constant 0 : i32
    return %arg0, %c0_i32, %c0_i32_0, %c0_i32_1 : i32, i32, i32, i32
  }
}

module attributes {stable_mosaic.version = 11 : i64} {
  func.func @_conv_bn_relu_kernel(%arg0: i32, %arg1: memref<1x12x12x48xbf16, #tpu.memory_space<vmem>>, %arg2: memref<25x48x64xbf16, #tpu.memory_space<vmem>>, %arg3: memref<1x64xf32, #tpu.memory_space<vmem>>, %arg4: memref<1x64xf32, #tpu.memory_space<vmem>>, %arg5: memref<1x8x8x64xf32, #tpu.memory_space<vmem>>) attributes {dimension_semantics = [#tpu.dimension_semantics<parallel>], iteration_bounds = array<i64: 2>, scalar_prefetch = 0 : i64, scratch_operands = 0 : i64, tpu.core_type = #tpu.core_type<tc>, window_params = [{transform_indices = @transform_0, window_bounds = array<i64: 1, 12, 12, 48>}, {pipeline_mode = #tpu.pipeline_mode<synchronous>, transform_indices = @transform_1, window_bounds = array<i64: 25, 48, 64>}, {pipeline_mode = #tpu.pipeline_mode<synchronous>, transform_indices = @transform_2, window_bounds = array<i64: 1, 64>}, {pipeline_mode = #tpu.pipeline_mode<synchronous>, transform_indices = @transform_3, window_bounds = array<i64: 1, 64>}, {transform_indices = @transform_4, window_bounds = array<i64: 1, 8, 8, 64>}]} {
    %cst = arith.constant 0.000000e+00 : f32
    %0 = vector.broadcast %cst : f32 to vector<64x64xf32>
    %c0 = arith.constant 0 : index
    %c0_0 = arith.constant 0 : index
    %c0_1 = arith.constant 0 : index
    %c0_2 = arith.constant 0 : index
    %1 = vector.load %arg1[%c0, %c0_0, %c0_1, %c0_2] : memref<1x12x12x48xbf16, #tpu.memory_space<vmem>>, vector<1x8x8x48xbf16>
    %2 = vector.shape_cast %1 : vector<1x8x8x48xbf16> to vector<8x8x48xbf16>
    %3 = vector.shape_cast %2 : vector<8x8x48xbf16> to vector<64x48xbf16>
    %c0_3 = arith.constant 0 : index
    %c0_4 = arith.constant 0 : index
    %c0_5 = arith.constant 0 : index
    %4 = vector.load %arg2[%c0_3, %c0_4, %c0_5] : memref<25x48x64xbf16, #tpu.memory_space<vmem>>, vector<1x48x64xbf16>
    %5 = vector.shape_cast %4 : vector<1x48x64xbf16> to vector<48x64xbf16>
    %cst_6 = arith.constant dense<0.000000e+00> : vector<64x64xf32>
    %6 = tpu.matmul %3, %5, %cst_6 {dimension_numbers = #tpu.dot_dimension_numbers<[1], [0], [0], [1], [0, 0, 1, 1], [], []>} : vector<64x48xbf16>, vector<48x64xbf16>, vector<64x64xf32> -> vector<64x64xf32>
    %7 = arith.addf %0, %6 : vector<64x64xf32>
    %c0_7 = arith.constant 0 : index
    %c0_8 = arith.constant 0 : index
    %c1 = arith.constant 1 : index
    %c0_9 = arith.constant 0 : index
    %8 = vector.load %arg1[%c0_7, %c0_8, %c1, %c0_9] : memref<1x12x12x48xbf16, #tpu.memory_space<vmem>>, vector<1x8x8x48xbf16>
    %9 = vector.shape_cast %8 : vector<1x8x8x48xbf16> to vector<8x8x48xbf16>
    %10 = vector.shape_cast %9 : vector<8x8x48xbf16> to vector<64x48xbf16>
    %c1_10 = arith.constant 1 : index
    %c0_11 = arith.constant 0 : index
    %c0_12 = arith.constant 0 : index
    %11 = vector.load %arg2[%c1_10, %c0_11, %c0_12] : memref<25x48x64xbf16, #tpu.memory_space<vmem>>, vector<1x48x64xbf16>
    %12 = vector.shape_cast %11 : vector<1x48x64xbf16> to vector<48x64xbf16>
    %cst_13 = arith.constant dense<0.000000e+00> : vector<64x64xf32>
    %13 = tpu.matmul %10, %12, %cst_13 {dimension_numbers = #tpu.dot_dimension_numbers<[1], [0], [0], [1], [0, 0, 1, 1], [], []>} : vector<64x48xbf16>, vector<48x64xbf16>, vector<64x64xf32> -> vector<64x64xf32>
    %14 = arith.addf %7, %13 : vector<64x64xf32>
    %c0_14 = arith.constant 0 : index
    %c0_15 = arith.constant 0 : index
    %c2 = arith.constant 2 : index
    %c0_16 = arith.constant 0 : index
    %15 = vector.load %arg1[%c0_14, %c0_15, %c2, %c0_16] : memref<1x12x12x48xbf16, #tpu.memory_space<vmem>>, vector<1x8x8x48xbf16>
    %16 = vector.shape_cast %15 : vector<1x8x8x48xbf16> to vector<8x8x48xbf16>
    %17 = vector.shape_cast %16 : vector<8x8x48xbf16> to vector<64x48xbf16>
    %c2_17 = arith.constant 2 : index
    %c0_18 = arith.constant 0 : index
    %c0_19 = arith.constant 0 : index
    %18 = vector.load %arg2[%c2_17, %c0_18, %c0_19] : memref<25x48x64xbf16, #tpu.memory_space<vmem>>, vector<1x48x64xbf16>
    %19 = vector.shape_cast %18 : vector<1x48x64xbf16> to vector<48x64xbf16>
    %cst_20 = arith.constant dense<0.000000e+00> : vector<64x64xf32>
    %20 = tpu.matmul %17, %19, %cst_20 {dimension_numbers = #tpu.dot_dimension_numbers<[1], [0], [0], [1], [0, 0, 1, 1], [], []>} : vector<64x48xbf16>, vector<48x64xbf16>, vector<64x64xf32> -> vector<64x64xf32>
    %21 = arith.addf %14, %20 : vector<64x64xf32>
    %c0_21 = arith.constant 0 : index
    %c0_22 = arith.constant 0 : index
    %c3 = arith.constant 3 : index
    %c0_23 = arith.constant 0 : index
    %22 = vector.load %arg1[%c0_21, %c0_22, %c3, %c0_23] : memref<1x12x12x48xbf16, #tpu.memory_space<vmem>>, vector<1x8x8x48xbf16>
    %23 = vector.shape_cast %22 : vector<1x8x8x48xbf16> to vector<8x8x48xbf16>
    %24 = vector.shape_cast %23 : vector<8x8x48xbf16> to vector<64x48xbf16>
    %c3_24 = arith.constant 3 : index
    %c0_25 = arith.constant 0 : index
    %c0_26 = arith.constant 0 : index
    %25 = vector.load %arg2[%c3_24, %c0_25, %c0_26] : memref<25x48x64xbf16, #tpu.memory_space<vmem>>, vector<1x48x64xbf16>
    %26 = vector.shape_cast %25 : vector<1x48x64xbf16> to vector<48x64xbf16>
    %cst_27 = arith.constant dense<0.000000e+00> : vector<64x64xf32>
    %27 = tpu.matmul %24, %26, %cst_27 {dimension_numbers = #tpu.dot_dimension_numbers<[1], [0], [0], [1], [0, 0, 1, 1], [], []>} : vector<64x48xbf16>, vector<48x64xbf16>, vector<64x64xf32> -> vector<64x64xf32>
    %28 = arith.addf %21, %27 : vector<64x64xf32>
    %c0_28 = arith.constant 0 : index
    %c0_29 = arith.constant 0 : index
    %c4 = arith.constant 4 : index
    %c0_30 = arith.constant 0 : index
    %29 = vector.load %arg1[%c0_28, %c0_29, %c4, %c0_30] : memref<1x12x12x48xbf16, #tpu.memory_space<vmem>>, vector<1x8x8x48xbf16>
    %30 = vector.shape_cast %29 : vector<1x8x8x48xbf16> to vector<8x8x48xbf16>
    %31 = vector.shape_cast %30 : vector<8x8x48xbf16> to vector<64x48xbf16>
    %c4_31 = arith.constant 4 : index
    %c0_32 = arith.constant 0 : index
    %c0_33 = arith.constant 0 : index
    %32 = vector.load %arg2[%c4_31, %c0_32, %c0_33] : memref<25x48x64xbf16, #tpu.memory_space<vmem>>, vector<1x48x64xbf16>
    %33 = vector.shape_cast %32 : vector<1x48x64xbf16> to vector<48x64xbf16>
    %cst_34 = arith.constant dense<0.000000e+00> : vector<64x64xf32>
    %34 = tpu.matmul %31, %33, %cst_34 {dimension_numbers = #tpu.dot_dimension_numbers<[1], [0], [0], [1], [0, 0, 1, 1], [], []>} : vector<64x48xbf16>, vector<48x64xbf16>, vector<64x64xf32> -> vector<64x64xf32>
    %35 = arith.addf %28, %34 : vector<64x64xf32>
    %c0_35 = arith.constant 0 : index
    %c1_36 = arith.constant 1 : index
    %c0_37 = arith.constant 0 : index
    %c0_38 = arith.constant 0 : index
    %36 = vector.load %arg1[%c0_35, %c1_36, %c0_37, %c0_38] : memref<1x12x12x48xbf16, #tpu.memory_space<vmem>>, vector<1x8x8x48xbf16>
    %37 = vector.shape_cast %36 : vector<1x8x8x48xbf16> to vector<8x8x48xbf16>
    %38 = vector.shape_cast %37 : vector<8x8x48xbf16> to vector<64x48xbf16>
    %c5 = arith.constant 5 : index
    %c0_39 = arith.constant 0 : index
    %c0_40 = arith.constant 0 : index
    %39 = vector.load %arg2[%c5, %c0_39, %c0_40] : memref<25x48x64xbf16, #tpu.memory_space<vmem>>, vector<1x48x64xbf16>
    %40 = vector.shape_cast %39 : vector<1x48x64xbf16> to vector<48x64xbf16>
    %cst_41 = arith.constant dense<0.000000e+00> : vector<64x64xf32>
    %41 = tpu.matmul %38, %40, %cst_41 {dimension_numbers = #tpu.dot_dimension_numbers<[1], [0], [0], [1], [0, 0, 1, 1], [], []>} : vector<64x48xbf16>, vector<48x64xbf16>, vector<64x64xf32> -> vector<64x64xf32>
    %42 = arith.addf %35, %41 : vector<64x64xf32>
    %c0_42 = arith.constant 0 : index
    %c1_43 = arith.constant 1 : index
    %c1_44 = arith.constant 1 : index
    %c0_45 = arith.constant 0 : index
    %43 = vector.load %arg1[%c0_42, %c1_43, %c1_44, %c0_45] : memref<1x12x12x48xbf16, #tpu.memory_space<vmem>>, vector<1x8x8x48xbf16>
    %44 = vector.shape_cast %43 : vector<1x8x8x48xbf16> to vector<8x8x48xbf16>
    %45 = vector.shape_cast %44 : vector<8x8x48xbf16> to vector<64x48xbf16>
    %c6 = arith.constant 6 : index
    %c0_46 = arith.constant 0 : index
    %c0_47 = arith.constant 0 : index
    %46 = vector.load %arg2[%c6, %c0_46, %c0_47] : memref<25x48x64xbf16, #tpu.memory_space<vmem>>, vector<1x48x64xbf16>
    %47 = vector.shape_cast %46 : vector<1x48x64xbf16> to vector<48x64xbf16>
    %cst_48 = arith.constant dense<0.000000e+00> : vector<64x64xf32>
    %48 = tpu.matmul %45, %47, %cst_48 {dimension_numbers = #tpu.dot_dimension_numbers<[1], [0], [0], [1], [0, 0, 1, 1], [], []>} : vector<64x48xbf16>, vector<48x64xbf16>, vector<64x64xf32> -> vector<64x64xf32>
    %49 = arith.addf %42, %48 : vector<64x64xf32>
    %c0_49 = arith.constant 0 : index
    %c1_50 = arith.constant 1 : index
    %c2_51 = arith.constant 2 : index
    %c0_52 = arith.constant 0 : index
    %50 = vector.load %arg1[%c0_49, %c1_50, %c2_51, %c0_52] : memref<1x12x12x48xbf16, #tpu.memory_space<vmem>>, vector<1x8x8x48xbf16>
    %51 = vector.shape_cast %50 : vector<1x8x8x48xbf16> to vector<8x8x48xbf16>
    %52 = vector.shape_cast %51 : vector<8x8x48xbf16> to vector<64x48xbf16>
    %c7 = arith.constant 7 : index
    %c0_53 = arith.constant 0 : index
    %c0_54 = arith.constant 0 : index
    %53 = vector.load %arg2[%c7, %c0_53, %c0_54] : memref<25x48x64xbf16, #tpu.memory_space<vmem>>, vector<1x48x64xbf16>
    %54 = vector.shape_cast %53 : vector<1x48x64xbf16> to vector<48x64xbf16>
    %cst_55 = arith.constant dense<0.000000e+00> : vector<64x64xf32>
    %55 = tpu.matmul %52, %54, %cst_55 {dimension_numbers = #tpu.dot_dimension_numbers<[1], [0], [0], [1], [0, 0, 1, 1], [], []>} : vector<64x48xbf16>, vector<48x64xbf16>, vector<64x64xf32> -> vector<64x64xf32>
    %56 = arith.addf %49, %55 : vector<64x64xf32>
    %c0_56 = arith.constant 0 : index
    %c1_57 = arith.constant 1 : index
    %c3_58 = arith.constant 3 : index
    %c0_59 = arith.constant 0 : index
    %57 = vector.load %arg1[%c0_56, %c1_57, %c3_58, %c0_59] : memref<1x12x12x48xbf16, #tpu.memory_space<vmem>>, vector<1x8x8x48xbf16>
    %58 = vector.shape_cast %57 : vector<1x8x8x48xbf16> to vector<8x8x48xbf16>
    %59 = vector.shape_cast %58 : vector<8x8x48xbf16> to vector<64x48xbf16>
    %c8 = arith.constant 8 : index
    %c0_60 = arith.constant 0 : index
    %c0_61 = arith.constant 0 : index
    %60 = vector.load %arg2[%c8, %c0_60, %c0_61] : memref<25x48x64xbf16, #tpu.memory_space<vmem>>, vector<1x48x64xbf16>
    %61 = vector.shape_cast %60 : vector<1x48x64xbf16> to vector<48x64xbf16>
    %cst_62 = arith.constant dense<0.000000e+00> : vector<64x64xf32>
    %62 = tpu.matmul %59, %61, %cst_62 {dimension_numbers = #tpu.dot_dimension_numbers<[1], [0], [0], [1], [0, 0, 1, 1], [], []>} : vector<64x48xbf16>, vector<48x64xbf16>, vector<64x64xf32> -> vector<64x64xf32>
    %63 = arith.addf %56, %62 : vector<64x64xf32>
    %c0_63 = arith.constant 0 : index
    %c1_64 = arith.constant 1 : index
    %c4_65 = arith.constant 4 : index
    %c0_66 = arith.constant 0 : index
    %64 = vector.load %arg1[%c0_63, %c1_64, %c4_65, %c0_66] : memref<1x12x12x48xbf16, #tpu.memory_space<vmem>>, vector<1x8x8x48xbf16>
    %65 = vector.shape_cast %64 : vector<1x8x8x48xbf16> to vector<8x8x48xbf16>
    %66 = vector.shape_cast %65 : vector<8x8x48xbf16> to vector<64x48xbf16>
    %c9 = arith.constant 9 : index
    %c0_67 = arith.constant 0 : index
    %c0_68 = arith.constant 0 : index
    %67 = vector.load %arg2[%c9, %c0_67, %c0_68] : memref<25x48x64xbf16, #tpu.memory_space<vmem>>, vector<1x48x64xbf16>
    %68 = vector.shape_cast %67 : vector<1x48x64xbf16> to vector<48x64xbf16>
    %cst_69 = arith.constant dense<0.000000e+00> : vector<64x64xf32>
    %69 = tpu.matmul %66, %68, %cst_69 {dimension_numbers = #tpu.dot_dimension_numbers<[1], [0], [0], [1], [0, 0, 1, 1], [], []>} : vector<64x48xbf16>, vector<48x64xbf16>, vector<64x64xf32> -> vector<64x64xf32>
    %70 = arith.addf %63, %69 : vector<64x64xf32>
    %c0_70 = arith.constant 0 : index
    %c2_71 = arith.constant 2 : index
    %c0_72 = arith.constant 0 : index
    %c0_73 = arith.constant 0 : index
    %71 = vector.load %arg1[%c0_70, %c2_71, %c0_72, %c0_73] : memref<1x12x12x48xbf16, #tpu.memory_space<vmem>>, vector<1x8x8x48xbf16>
    %72 = vector.shape_cast %71 : vector<1x8x8x48xbf16> to vector<8x8x48xbf16>
    %73 = vector.shape_cast %72 : vector<8x8x48xbf16> to vector<64x48xbf16>
    %c10 = arith.constant 10 : index
    %c0_74 = arith.constant 0 : index
    %c0_75 = arith.constant 0 : index
    %74 = vector.load %arg2[%c10, %c0_74, %c0_75] : memref<25x48x64xbf16, #tpu.memory_space<vmem>>, vector<1x48x64xbf16>
    %75 = vector.shape_cast %74 : vector<1x48x64xbf16> to vector<48x64xbf16>
    %cst_76 = arith.constant dense<0.000000e+00> : vector<64x64xf32>
    %76 = tpu.matmul %73, %75, %cst_76 {dimension_numbers = #tpu.dot_dimension_numbers<[1], [0], [0], [1], [0, 0, 1, 1], [], []>} : vector<64x48xbf16>, vector<48x64xbf16>, vector<64x64xf32> -> vector<64x64xf32>
    %77 = arith.addf %70, %76 : vector<64x64xf32>
    %c0_77 = arith.constant 0 : index
    %c2_78 = arith.constant 2 : index
    %c1_79 = arith.constant 1 : index
    %c0_80 = arith.constant 0 : index
    %78 = vector.load %arg1[%c0_77, %c2_78, %c1_79, %c0_80] : memref<1x12x12x48xbf16, #tpu.memory_space<vmem>>, vector<1x8x8x48xbf16>
    %79 = vector.shape_cast %78 : vector<1x8x8x48xbf16> to vector<8x8x48xbf16>
    %80 = vector.shape_cast %79 : vector<8x8x48xbf16> to vector<64x48xbf16>
    %c11 = arith.constant 11 : index
    %c0_81 = arith.constant 0 : index
    %c0_82 = arith.constant 0 : index
    %81 = vector.load %arg2[%c11, %c0_81, %c0_82] : memref<25x48x64xbf16, #tpu.memory_space<vmem>>, vector<1x48x64xbf16>
    %82 = vector.shape_cast %81 : vector<1x48x64xbf16> to vector<48x64xbf16>
    %cst_83 = arith.constant dense<0.000000e+00> : vector<64x64xf32>
    %83 = tpu.matmul %80, %82, %cst_83 {dimension_numbers = #tpu.dot_dimension_numbers<[1], [0], [0], [1], [0, 0, 1, 1], [], []>} : vector<64x48xbf16>, vector<48x64xbf16>, vector<64x64xf32> -> vector<64x64xf32>
    %84 = arith.addf %77, %83 : vector<64x64xf32>
    %c0_84 = arith.constant 0 : index
    %c2_85 = arith.constant 2 : index
    %c2_86 = arith.constant 2 : index
    %c0_87 = arith.constant 0 : index
    %85 = vector.load %arg1[%c0_84, %c2_85, %c2_86, %c0_87] : memref<1x12x12x48xbf16, #tpu.memory_space<vmem>>, vector<1x8x8x48xbf16>
    %86 = vector.shape_cast %85 : vector<1x8x8x48xbf16> to vector<8x8x48xbf16>
    %87 = vector.shape_cast %86 : vector<8x8x48xbf16> to vector<64x48xbf16>
    %c12 = arith.constant 12 : index
    %c0_88 = arith.constant 0 : index
    %c0_89 = arith.constant 0 : index
    %88 = vector.load %arg2[%c12, %c0_88, %c0_89] : memref<25x48x64xbf16, #tpu.memory_space<vmem>>, vector<1x48x64xbf16>
    %89 = vector.shape_cast %88 : vector<1x48x64xbf16> to vector<48x64xbf16>
    %cst_90 = arith.constant dense<0.000000e+00> : vector<64x64xf32>
    %90 = tpu.matmul %87, %89, %cst_90 {dimension_numbers = #tpu.dot_dimension_numbers<[1], [0], [0], [1], [0, 0, 1, 1], [], []>} : vector<64x48xbf16>, vector<48x64xbf16>, vector<64x64xf32> -> vector<64x64xf32>
    %91 = arith.addf %84, %90 : vector<64x64xf32>
    %c0_91 = arith.constant 0 : index
    %c2_92 = arith.constant 2 : index
    %c3_93 = arith.constant 3 : index
    %c0_94 = arith.constant 0 : index
    %92 = vector.load %arg1[%c0_91, %c2_92, %c3_93, %c0_94] : memref<1x12x12x48xbf16, #tpu.memory_space<vmem>>, vector<1x8x8x48xbf16>
    %93 = vector.shape_cast %92 : vector<1x8x8x48xbf16> to vector<8x8x48xbf16>
    %94 = vector.shape_cast %93 : vector<8x8x48xbf16> to vector<64x48xbf16>
    %c13 = arith.constant 13 : index
    %c0_95 = arith.constant 0 : index
    %c0_96 = arith.constant 0 : index
    %95 = vector.load %arg2[%c13, %c0_95, %c0_96] : memref<25x48x64xbf16, #tpu.memory_space<vmem>>, vector<1x48x64xbf16>
    %96 = vector.shape_cast %95 : vector<1x48x64xbf16> to vector<48x64xbf16>
    %cst_97 = arith.constant dense<0.000000e+00> : vector<64x64xf32>
    %97 = tpu.matmul %94, %96, %cst_97 {dimension_numbers = #tpu.dot_dimension_numbers<[1], [0], [0], [1], [0, 0, 1, 1], [], []>} : vector<64x48xbf16>, vector<48x64xbf16>, vector<64x64xf32> -> vector<64x64xf32>
    %98 = arith.addf %91, %97 : vector<64x64xf32>
    %c0_98 = arith.constant 0 : index
    %c2_99 = arith.constant 2 : index
    %c4_100 = arith.constant 4 : index
    %c0_101 = arith.constant 0 : index
    %99 = vector.load %arg1[%c0_98, %c2_99, %c4_100, %c0_101] : memref<1x12x12x48xbf16, #tpu.memory_space<vmem>>, vector<1x8x8x48xbf16>
    %100 = vector.shape_cast %99 : vector<1x8x8x48xbf16> to vector<8x8x48xbf16>
    %101 = vector.shape_cast %100 : vector<8x8x48xbf16> to vector<64x48xbf16>
    %c14 = arith.constant 14 : index
    %c0_102 = arith.constant 0 : index
    %c0_103 = arith.constant 0 : index
    %102 = vector.load %arg2[%c14, %c0_102, %c0_103] : memref<25x48x64xbf16, #tpu.memory_space<vmem>>, vector<1x48x64xbf16>
    %103 = vector.shape_cast %102 : vector<1x48x64xbf16> to vector<48x64xbf16>
    %cst_104 = arith.constant dense<0.000000e+00> : vector<64x64xf32>
    %104 = tpu.matmul %101, %103, %cst_104 {dimension_numbers = #tpu.dot_dimension_numbers<[1], [0], [0], [1], [0, 0, 1, 1], [], []>} : vector<64x48xbf16>, vector<48x64xbf16>, vector<64x64xf32> -> vector<64x64xf32>
    %105 = arith.addf %98, %104 : vector<64x64xf32>
    %c0_105 = arith.constant 0 : index
    %c3_106 = arith.constant 3 : index
    %c0_107 = arith.constant 0 : index
    %c0_108 = arith.constant 0 : index
    %106 = vector.load %arg1[%c0_105, %c3_106, %c0_107, %c0_108] : memref<1x12x12x48xbf16, #tpu.memory_space<vmem>>, vector<1x8x8x48xbf16>
    %107 = vector.shape_cast %106 : vector<1x8x8x48xbf16> to vector<8x8x48xbf16>
    %108 = vector.shape_cast %107 : vector<8x8x48xbf16> to vector<64x48xbf16>
    %c15 = arith.constant 15 : index
    %c0_109 = arith.constant 0 : index
    %c0_110 = arith.constant 0 : index
    %109 = vector.load %arg2[%c15, %c0_109, %c0_110] : memref<25x48x64xbf16, #tpu.memory_space<vmem>>, vector<1x48x64xbf16>
    %110 = vector.shape_cast %109 : vector<1x48x64xbf16> to vector<48x64xbf16>
    %cst_111 = arith.constant dense<0.000000e+00> : vector<64x64xf32>
    %111 = tpu.matmul %108, %110, %cst_111 {dimension_numbers = #tpu.dot_dimension_numbers<[1], [0], [0], [1], [0, 0, 1, 1], [], []>} : vector<64x48xbf16>, vector<48x64xbf16>, vector<64x64xf32> -> vector<64x64xf32>
    %112 = arith.addf %105, %111 : vector<64x64xf32>
    %c0_112 = arith.constant 0 : index
    %c3_113 = arith.constant 3 : index
    %c1_114 = arith.constant 1 : index
    %c0_115 = arith.constant 0 : index
    %113 = vector.load %arg1[%c0_112, %c3_113, %c1_114, %c0_115] : memref<1x12x12x48xbf16, #tpu.memory_space<vmem>>, vector<1x8x8x48xbf16>
    %114 = vector.shape_cast %113 : vector<1x8x8x48xbf16> to vector<8x8x48xbf16>
    %115 = vector.shape_cast %114 : vector<8x8x48xbf16> to vector<64x48xbf16>
    %c16 = arith.constant 16 : index
    %c0_116 = arith.constant 0 : index
    %c0_117 = arith.constant 0 : index
    %116 = vector.load %arg2[%c16, %c0_116, %c0_117] : memref<25x48x64xbf16, #tpu.memory_space<vmem>>, vector<1x48x64xbf16>
    %117 = vector.shape_cast %116 : vector<1x48x64xbf16> to vector<48x64xbf16>
    %cst_118 = arith.constant dense<0.000000e+00> : vector<64x64xf32>
    %118 = tpu.matmul %115, %117, %cst_118 {dimension_numbers = #tpu.dot_dimension_numbers<[1], [0], [0], [1], [0, 0, 1, 1], [], []>} : vector<64x48xbf16>, vector<48x64xbf16>, vector<64x64xf32> -> vector<64x64xf32>
    %119 = arith.addf %112, %118 : vector<64x64xf32>
    %c0_119 = arith.constant 0 : index
    %c3_120 = arith.constant 3 : index
    %c2_121 = arith.constant 2 : index
    %c0_122 = arith.constant 0 : index
    %120 = vector.load %arg1[%c0_119, %c3_120, %c2_121, %c0_122] : memref<1x12x12x48xbf16, #tpu.memory_space<vmem>>, vector<1x8x8x48xbf16>
    %121 = vector.shape_cast %120 : vector<1x8x8x48xbf16> to vector<8x8x48xbf16>
    %122 = vector.shape_cast %121 : vector<8x8x48xbf16> to vector<64x48xbf16>
    %c17 = arith.constant 17 : index
    %c0_123 = arith.constant 0 : index
    %c0_124 = arith.constant 0 : index
    %123 = vector.load %arg2[%c17, %c0_123, %c0_124] : memref<25x48x64xbf16, #tpu.memory_space<vmem>>, vector<1x48x64xbf16>
    %124 = vector.shape_cast %123 : vector<1x48x64xbf16> to vector<48x64xbf16>
    %cst_125 = arith.constant dense<0.000000e+00> : vector<64x64xf32>
    %125 = tpu.matmul %122, %124, %cst_125 {dimension_numbers = #tpu.dot_dimension_numbers<[1], [0], [0], [1], [0, 0, 1, 1], [], []>} : vector<64x48xbf16>, vector<48x64xbf16>, vector<64x64xf32> -> vector<64x64xf32>
    %126 = arith.addf %119, %125 : vector<64x64xf32>
    %c0_126 = arith.constant 0 : index
    %c3_127 = arith.constant 3 : index
    %c3_128 = arith.constant 3 : index
    %c0_129 = arith.constant 0 : index
    %127 = vector.load %arg1[%c0_126, %c3_127, %c3_128, %c0_129] : memref<1x12x12x48xbf16, #tpu.memory_space<vmem>>, vector<1x8x8x48xbf16>
    %128 = vector.shape_cast %127 : vector<1x8x8x48xbf16> to vector<8x8x48xbf16>
    %129 = vector.shape_cast %128 : vector<8x8x48xbf16> to vector<64x48xbf16>
    %c18 = arith.constant 18 : index
    %c0_130 = arith.constant 0 : index
    %c0_131 = arith.constant 0 : index
    %130 = vector.load %arg2[%c18, %c0_130, %c0_131] : memref<25x48x64xbf16, #tpu.memory_space<vmem>>, vector<1x48x64xbf16>
    %131 = vector.shape_cast %130 : vector<1x48x64xbf16> to vector<48x64xbf16>
    %cst_132 = arith.constant dense<0.000000e+00> : vector<64x64xf32>
    %132 = tpu.matmul %129, %131, %cst_132 {dimension_numbers = #tpu.dot_dimension_numbers<[1], [0], [0], [1], [0, 0, 1, 1], [], []>} : vector<64x48xbf16>, vector<48x64xbf16>, vector<64x64xf32> -> vector<64x64xf32>
    %133 = arith.addf %126, %132 : vector<64x64xf32>
    %c0_133 = arith.constant 0 : index
    %c3_134 = arith.constant 3 : index
    %c4_135 = arith.constant 4 : index
    %c0_136 = arith.constant 0 : index
    %134 = vector.load %arg1[%c0_133, %c3_134, %c4_135, %c0_136] : memref<1x12x12x48xbf16, #tpu.memory_space<vmem>>, vector<1x8x8x48xbf16>
    %135 = vector.shape_cast %134 : vector<1x8x8x48xbf16> to vector<8x8x48xbf16>
    %136 = vector.shape_cast %135 : vector<8x8x48xbf16> to vector<64x48xbf16>
    %c19 = arith.constant 19 : index
    %c0_137 = arith.constant 0 : index
    %c0_138 = arith.constant 0 : index
    %137 = vector.load %arg2[%c19, %c0_137, %c0_138] : memref<25x48x64xbf16, #tpu.memory_space<vmem>>, vector<1x48x64xbf16>
    %138 = vector.shape_cast %137 : vector<1x48x64xbf16> to vector<48x64xbf16>
    %cst_139 = arith.constant dense<0.000000e+00> : vector<64x64xf32>
    %139 = tpu.matmul %136, %138, %cst_139 {dimension_numbers = #tpu.dot_dimension_numbers<[1], [0], [0], [1], [0, 0, 1, 1], [], []>} : vector<64x48xbf16>, vector<48x64xbf16>, vector<64x64xf32> -> vector<64x64xf32>
    %140 = arith.addf %133, %139 : vector<64x64xf32>
    %c0_140 = arith.constant 0 : index
    %c4_141 = arith.constant 4 : index
    %c0_142 = arith.constant 0 : index
    %c0_143 = arith.constant 0 : index
    %141 = vector.load %arg1[%c0_140, %c4_141, %c0_142, %c0_143] : memref<1x12x12x48xbf16, #tpu.memory_space<vmem>>, vector<1x8x8x48xbf16>
    %142 = vector.shape_cast %141 : vector<1x8x8x48xbf16> to vector<8x8x48xbf16>
    %143 = vector.shape_cast %142 : vector<8x8x48xbf16> to vector<64x48xbf16>
    %c20 = arith.constant 20 : index
    %c0_144 = arith.constant 0 : index
    %c0_145 = arith.constant 0 : index
    %144 = vector.load %arg2[%c20, %c0_144, %c0_145] : memref<25x48x64xbf16, #tpu.memory_space<vmem>>, vector<1x48x64xbf16>
    %145 = vector.shape_cast %144 : vector<1x48x64xbf16> to vector<48x64xbf16>
    %cst_146 = arith.constant dense<0.000000e+00> : vector<64x64xf32>
    %146 = tpu.matmul %143, %145, %cst_146 {dimension_numbers = #tpu.dot_dimension_numbers<[1], [0], [0], [1], [0, 0, 1, 1], [], []>} : vector<64x48xbf16>, vector<48x64xbf16>, vector<64x64xf32> -> vector<64x64xf32>
    %147 = arith.addf %140, %146 : vector<64x64xf32>
    %c0_147 = arith.constant 0 : index
    %c4_148 = arith.constant 4 : index
    %c1_149 = arith.constant 1 : index
    %c0_150 = arith.constant 0 : index
    %148 = vector.load %arg1[%c0_147, %c4_148, %c1_149, %c0_150] : memref<1x12x12x48xbf16, #tpu.memory_space<vmem>>, vector<1x8x8x48xbf16>
    %149 = vector.shape_cast %148 : vector<1x8x8x48xbf16> to vector<8x8x48xbf16>
    %150 = vector.shape_cast %149 : vector<8x8x48xbf16> to vector<64x48xbf16>
    %c21 = arith.constant 21 : index
    %c0_151 = arith.constant 0 : index
    %c0_152 = arith.constant 0 : index
    %151 = vector.load %arg2[%c21, %c0_151, %c0_152] : memref<25x48x64xbf16, #tpu.memory_space<vmem>>, vector<1x48x64xbf16>
    %152 = vector.shape_cast %151 : vector<1x48x64xbf16> to vector<48x64xbf16>
    %cst_153 = arith.constant dense<0.000000e+00> : vector<64x64xf32>
    %153 = tpu.matmul %150, %152, %cst_153 {dimension_numbers = #tpu.dot_dimension_numbers<[1], [0], [0], [1], [0, 0, 1, 1], [], []>} : vector<64x48xbf16>, vector<48x64xbf16>, vector<64x64xf32> -> vector<64x64xf32>
    %154 = arith.addf %147, %153 : vector<64x64xf32>
    %c0_154 = arith.constant 0 : index
    %c4_155 = arith.constant 4 : index
    %c2_156 = arith.constant 2 : index
    %c0_157 = arith.constant 0 : index
    %155 = vector.load %arg1[%c0_154, %c4_155, %c2_156, %c0_157] : memref<1x12x12x48xbf16, #tpu.memory_space<vmem>>, vector<1x8x8x48xbf16>
    %156 = vector.shape_cast %155 : vector<1x8x8x48xbf16> to vector<8x8x48xbf16>
    %157 = vector.shape_cast %156 : vector<8x8x48xbf16> to vector<64x48xbf16>
    %c22 = arith.constant 22 : index
    %c0_158 = arith.constant 0 : index
    %c0_159 = arith.constant 0 : index
    %158 = vector.load %arg2[%c22, %c0_158, %c0_159] : memref<25x48x64xbf16, #tpu.memory_space<vmem>>, vector<1x48x64xbf16>
    %159 = vector.shape_cast %158 : vector<1x48x64xbf16> to vector<48x64xbf16>
    %cst_160 = arith.constant dense<0.000000e+00> : vector<64x64xf32>
    %160 = tpu.matmul %157, %159, %cst_160 {dimension_numbers = #tpu.dot_dimension_numbers<[1], [0], [0], [1], [0, 0, 1, 1], [], []>} : vector<64x48xbf16>, vector<48x64xbf16>, vector<64x64xf32> -> vector<64x64xf32>
    %161 = arith.addf %154, %160 : vector<64x64xf32>
    %c0_161 = arith.constant 0 : index
    %c4_162 = arith.constant 4 : index
    %c3_163 = arith.constant 3 : index
    %c0_164 = arith.constant 0 : index
    %162 = vector.load %arg1[%c0_161, %c4_162, %c3_163, %c0_164] : memref<1x12x12x48xbf16, #tpu.memory_space<vmem>>, vector<1x8x8x48xbf16>
    %163 = vector.shape_cast %162 : vector<1x8x8x48xbf16> to vector<8x8x48xbf16>
    %164 = vector.shape_cast %163 : vector<8x8x48xbf16> to vector<64x48xbf16>
    %c23 = arith.constant 23 : index
    %c0_165 = arith.constant 0 : index
    %c0_166 = arith.constant 0 : index
    %165 = vector.load %arg2[%c23, %c0_165, %c0_166] : memref<25x48x64xbf16, #tpu.memory_space<vmem>>, vector<1x48x64xbf16>
    %166 = vector.shape_cast %165 : vector<1x48x64xbf16> to vector<48x64xbf16>
    %cst_167 = arith.constant dense<0.000000e+00> : vector<64x64xf32>
    %167 = tpu.matmul %164, %166, %cst_167 {dimension_numbers = #tpu.dot_dimension_numbers<[1], [0], [0], [1], [0, 0, 1, 1], [], []>} : vector<64x48xbf16>, vector<48x64xbf16>, vector<64x64xf32> -> vector<64x64xf32>
    %168 = arith.addf %161, %167 : vector<64x64xf32>
    %c0_168 = arith.constant 0 : index
    %c4_169 = arith.constant 4 : index
    %c4_170 = arith.constant 4 : index
    %c0_171 = arith.constant 0 : index
    %169 = vector.load %arg1[%c0_168, %c4_169, %c4_170, %c0_171] : memref<1x12x12x48xbf16, #tpu.memory_space<vmem>>, vector<1x8x8x48xbf16>
    %170 = vector.shape_cast %169 : vector<1x8x8x48xbf16> to vector<8x8x48xbf16>
    %171 = vector.shape_cast %170 : vector<8x8x48xbf16> to vector<64x48xbf16>
    %c24 = arith.constant 24 : index
    %c0_172 = arith.constant 0 : index
    %c0_173 = arith.constant 0 : index
    %172 = vector.load %arg2[%c24, %c0_172, %c0_173] : memref<25x48x64xbf16, #tpu.memory_space<vmem>>, vector<1x48x64xbf16>
    %173 = vector.shape_cast %172 : vector<1x48x64xbf16> to vector<48x64xbf16>
    %cst_174 = arith.constant dense<0.000000e+00> : vector<64x64xf32>
    %174 = tpu.matmul %171, %173, %cst_174 {dimension_numbers = #tpu.dot_dimension_numbers<[1], [0], [0], [1], [0, 0, 1, 1], [], []>} : vector<64x48xbf16>, vector<48x64xbf16>, vector<64x64xf32> -> vector<64x64xf32>
    %175 = arith.addf %168, %174 : vector<64x64xf32>
    %c0_175 = arith.constant 0 : index
    %c0_176 = arith.constant 0 : index
    %176 = vector.load %arg3[%c0_175, %c0_176] : memref<1x64xf32, #tpu.memory_space<vmem>>, vector<1x64xf32>
    %177 = vector.broadcast %176 : vector<1x64xf32> to vector<64x64xf32>
    %178 = arith.mulf %175, %177 : vector<64x64xf32>
    %c0_177 = arith.constant 0 : index
    %c0_178 = arith.constant 0 : index
    %179 = vector.load %arg4[%c0_177, %c0_178] : memref<1x64xf32, #tpu.memory_space<vmem>>, vector<1x64xf32>
    %180 = vector.broadcast %179 : vector<1x64xf32> to vector<64x64xf32>
    %181 = arith.addf %178, %180 : vector<64x64xf32>
    %cst_179 = arith.constant 0.000000e+00 : f32
    %182 = vector.broadcast %cst_179 : f32 to vector<64x64xf32>
    %183 = arith.maximumf %181, %182 : vector<64x64xf32>
    %184 = vector.shape_cast %183 : vector<64x64xf32> to vector<8x8x64xf32>
    %c0_180 = arith.constant 0 : index
    %c0_181 = arith.constant 0 : index
    %c0_182 = arith.constant 0 : index
    %c0_183 = arith.constant 0 : index
    %185 = vector.load %arg5[%c0_180, %c0_181, %c0_182, %c0_183] : memref<1x8x8x64xf32, #tpu.memory_space<vmem>>, vector<1x8x8x64xf32>
    %186 = vector.shape_cast %185 : vector<1x8x8x64xf32> to vector<8x8x64xf32>
    %187 = vector.shape_cast %184 : vector<8x8x64xf32> to vector<1x8x8x64xf32>
    tpu.vector_store %arg5[%c0_180, %c0_181, %c0_182, %c0_183], %187 {strides = array<i32>} : memref<1x8x8x64xf32, #tpu.memory_space<vmem>>, vector<1x8x8x64xf32>,
    return
  }
  func.func @transform_0(%arg0: i32) -> (i32, i32, i32, i32) {
    %c0_i32 = arith.constant 0 : i32
    %c0_i32_0 = arith.constant 0 : i32
    %c0_i32_1 = arith.constant 0 : i32
    %c0_i32_2 = arith.constant 0 : i32
    return %arg0, %c0_i32, %c0_i32_0, %c0_i32_1 : i32, i32, i32, i32
  }
  func.func @transform_1(%arg0: i32) -> (i32, i32, i32) {
    %c0_i32 = arith.constant 0 : i32
    %c0_i32_0 = arith.constant 0 : i32
    %c0_i32_1 = arith.constant 0 : i32
    %c0_i32_2 = arith.constant 0 : i32
    return %c0_i32, %c0_i32_0, %c0_i32_1 : i32, i32, i32
  }
  func.func @transform_2(%arg0: i32) -> (i32, i32) {
    %c0_i32 = arith.constant 0 : i32
    %c0_i32_0 = arith.constant 0 : i32
    %c0_i32_1 = arith.constant 0 : i32
    return %c0_i32, %c0_i32_0 : i32, i32
  }
  func.func @transform_3(%arg0: i32) -> (i32, i32) {
    %c0_i32 = arith.constant 0 : i32
    %c0_i32_0 = arith.constant 0 : i32
    %c0_i32_1 = arith.constant 0 : i32
    return %c0_i32, %c0_i32_0 : i32, i32
  }
  func.func @transform_4(%arg0: i32) -> (i32, i32, i32, i32) {
    %c0_i32 = arith.constant 0 : i32
    %c0_i32_0 = arith.constant 0 : i32
    %c0_i32_1 = arith.constant 0 : i32
    %c0_i32_2 = arith.constant 0 : i32
    return %arg0, %c0_i32, %c0_i32_0, %c0_i32_1 : i32, i32, i32, i32
  }
}

</mosaic_0001>

<llo_original>
// kernel: inception_a_unit.5
$region0: #{inception_a_unit.5}
  #allocation0 [shape = 'u32[]', space=smem, size = 0x4, offset = 0x4, fixed_abs, tag = 'smem constant byte address 0x4 - core index']
  #allocation1 [shape = 'u32[72,128]{1,0:T(1,128)}', space=vmem, size = 0x9000, scoped, tag = 'internal scratch']
  %s0 = inlined_call_operand.vmem [shape: bf16[2,8,8,64], index: 0, kind: input, shape index: {}]
  %s1 = inlined_call_operand.vmem [shape: bf16[1,64,176], index: 1, kind: input, shape index: {}]
  %s2 = inlined_call_operand.vmem [shape: f32[1,176], index: 2, kind: input, shape index: {}]
  %s3 = inlined_call_operand.vmem [shape: f32[1,176], index: 3, kind: input, shape index: {}]
  %s4 = inlined_call_operand.vmem [shape: f32[2,8,8,176], index: 4, kind: output, shape index: {}]
  %s5 = sld [smem:[#allocation0]]
  $region49: #{inception_a_unit.5} parent=0
    _
  %s7 = ssub.s32 1, %s5
  %s8 = scalar_select 0, %s7, %s5
  loop: start=0, step=1, limit=4
  $region2: #{inception_a_unit.5} parent=0 // loop_pre_header
    _
  $region3: #{inception_a_unit.5} parent=0 // loop_header
    %s10 = sphi 0, %s14
    %p11 = scmp.ge.s32.totalorder %s10, 4
    %s20 = sphi 0, %s22
    %s23 = sphi 0, %s20
    %s24 = sphi 0, %s23
    %s40 = sphi 0, %s24
    %s44 = sphi 0, %s44
    %s46 = sphi 0, %s44
    %s47 = sphi 0, %s46
    %s61 = sphi 0, %s47
    %s65 = sphi 0, %s65
    %s67 = sphi 0, %s65
    %s68 = sphi 0, %s67
    %s82 = sphi 0, %s68
    %s86 = sphi 0, %s86
    %s88 = sphi 0, %s86
    %s89 = sphi 0, %s88
    %s103 = sphi 0, %s89
    %s109 = sphi 0, %s111
    %s112 = sphi 0, %s109
    %s113 = sphi 0, %s112
    %s129 = sphi 0, %s113
  $region4: #{inception_a_unit.5} parent=0 // loop_header_branch
    %13 = sbr.rel (%p11) target = $region8
  $region5: #{inception_a_unit.5} parent=0 // loop_body
    %s15 = ssub.s32 %s10, 1
    %s16 = ssub.s32 %s10, 2
    %s17 = sadd.s32 %s10, 1
    %s18 = ssub.s32 %s10, %s17
    %p19 = scmp.eq.s32.totalorder %s18, 0
    %s21 = sadd.s32 %s20, 1
    %s22 = scalar_select %p19, %s20, %s21
    %p25 = pneg %p19
    %p26 = scmp.eq.s32.totalorder %s10, 1
    %p27 = por %p25, %p26
    %p28 = scmp.ne.s32.totalorder %s20, %s23
    %p29 = scmp.eq.s32.totalorder %s10, 0
    %p30 = por %p28, %p29
    %p31 = scmp.ne.s32.totalorder %s20, %s23
    %p32 = scmp.eq.s32.totalorder %s15, 1
    %p33 = por %p31, %p32
    %p34 = scmp.ne.s32.totalorder %s23, %s24
    %p35 = scmp.eq.s32.totalorder %s15, 0
    %p36 = por %p34, %p35
    %p37 = scmp.ne.s32.totalorder %s23, %s24
    %p38 = scmp.eq.s32.totalorder %s16, 1
    %p39 = por %p37, %p38
    %p41 = scmp.ne.s32.totalorder %s24, %s40
    %p42 = scmp.eq.s32.totalorder %s16, 0
    %p43 = por %p41, %p42
    %s45 = sadd.s32 %s44, 1
    %p48 = scmp.eq.s32.totalorder %s10, 1
    %p49 = scmp.ne.s32.totalorder %s44, %s46
    %p50 = scmp.eq.s32.totalorder %s10, 0
    %p51 = por %p49, %p50
    %p52 = scmp.ne.s32.totalorder %s44, %s46
    %p53 = scmp.eq.s32.totalorder %s15, 1
    %p54 = por %p52, %p53
    %p55 = scmp.ne.s32.totalorder %s46, %s47
    %p56 = scmp.eq.s32.totalorder %s15, 0
    %p57 = por %p55, %p56
    %p58 = scmp.ne.s32.totalorder %s46, %s47
    %p59 = scmp.eq.s32.totalorder %s16, 1
    %p60 = por %p58, %p59
    %p62 = scmp.ne.s32.totalorder %s47, %s61
    %p63 = scmp.eq.s32.totalorder %s16, 0
    %p64 = por %p62, %p63
    %s66 = sadd.s32 %s65, 1
    %p69 = scmp.eq.s32.totalorder %s10, 1
    %p70 = scmp.ne.s32.totalorder %s65, %s67
    %p71 = scmp.eq.s32.totalorder %s10, 0
    %p72 = por %p70, %p71
    %p73 = scmp.ne.s32.totalorder %s65, %s67
    %p74 = scmp.eq.s32.totalorder %s15, 1
    %p75 = por %p73, %p74
    %p76 = scmp.ne.s32.totalorder %s67, %s68
    %p77 = scmp.eq.s32.totalorder %s15, 0
    %p78 = por %p76, %p77
    %p79 = scmp.ne.s32.totalorder %s67, %s68
    %p80 = scmp.eq.s32.totalorder %s16, 1
    %p81 = por %p79, %p80
    %p83 = scmp.ne.s32.totalorder %s68, %s82
    %p84 = scmp.eq.s32.totalorder %s16, 0
    %p85 = por %p83, %p84
    %s87 = sadd.s32 %s86, 1
    %p90 = scmp.eq.s32.totalorder %s10, 1
    %p91 = scmp.ne.s32.totalorder %s86, %s88
    %p92 = scmp.eq.s32.totalorder %s10, 0
    %p93 = por %p91, %p92
    %p94 = scmp.ne.s32.totalorder %s86, %s88
    %p95 = scmp.eq.s32.totalorder %s15, 1
    %p96 = por %p94, %p95
    %p97 = scmp.ne.s32.totalorder %s88, %s89
    %p98 = scmp.eq.s32.totalorder %s15, 0
    %p99 = por %p97, %p98
    %p100 = scmp.ne.s32.totalorder %s88, %s89
    %p101 = scmp.eq.s32.totalorder %s16, 1
    %p102 = por %p100, %p101
    %p104 = scmp.ne.s32.totalorder %s89, %s103
    %p105 = scmp.eq.s32.totalorder %s16, 0
    %p106 = por %p104, %p105
    %s107 = ssub.s32 %s10, %s17
    %p108 = scmp.eq.s32.totalorder %s107, 0
    %s110 = sadd.s32 %s109, 1
    %s111 = scalar_select %p108, %s109, %s110
    %p114 = pneg %p108
    %p115 = scmp.eq.s32.totalorder %s10, 1
    %p116 = por %p114, %p115
    %p117 = scmp.ne.s32.totalorder %s109, %s112
    %p118 = scmp.eq.s32.totalorder %s10, 0
    %p119 = por %p117, %p118
    %p120 = scmp.ne.s32.totalorder %s109, %s112
    %p121 = scmp.eq.s32.totalorder %s15, 1
    %p122 = por %p120, %p121
    %p123 = scmp.ne.s32.totalorder %s112, %s113
    %p124 = scmp.eq.s32.totalorder %s15, 0
    %p125 = por %p123, %p124
    %p126 = scmp.ne.s32.totalorder %s112, %s113
    %p127 = scmp.eq.s32.totalorder %s16, 1
    %p128 = por %p126, %p127
    %p130 = scmp.ne.s32.totalorder %s113, %s129
    %p131 = scmp.eq.s32.totalorder %s16, 0
    %p132 = por %p130, %p131
    %p133 = scmp.le.s32.totalorder 1, %s10
    %p134 = scmp.lt.s32.totalorder %s10, 3
    %p135 = pnand %p133, %p134
    %p136 = pneg %p135
    // Predicated region
    $region9: #{inception_a_unit.5} parent=5 // pred_check
      _
    $region10: #{inception_a_unit.5} parent=5 // pred_check_branch
      %138 = sbr.rel (%p135) target = $region12
    $region11: #{inception_a_unit.5} parent=5 // pred_region
      %s139 = ssub.s32 %s10, 1
      // Predicated region
      $region13: #{inception_a_unit.5} parent=11 // pred_check
        %p140 = pneg %p57
      $region14: #{inception_a_unit.5} parent=11 // pred_check_branch
        %142 = sbr.rel (%p140) target = $region16
      $region15: #{inception_a_unit.5} parent=11 // pred_region
        _
      $region16: #{inception_a_unit.5} parent=11 // pred_fallthru
        _
      // Predicated region
      $region17: #{inception_a_unit.5} parent=11 // pred_check
        %p143 = pneg %p78
      $region18: #{inception_a_unit.5} parent=11 // pred_check_branch
        %145 = sbr.rel (%p143) target = $region20
      $region19: #{inception_a_unit.5} parent=11 // pred_region
        _
      $region20: #{inception_a_unit.5} parent=11 // pred_fallthru
        _
      // Predicated region
      $region21: #{inception_a_unit.5} parent=11 // pred_check
        %p146 = pneg %p99
      $region22: #{inception_a_unit.5} parent=11 // pred_check_branch
        %148 = sbr.rel (%p146) target = $region24
      $region23: #{inception_a_unit.5} parent=11 // pred_region
        _
      $region24: #{inception_a_unit.5} parent=11 // pred_fallthru
        _
    $region12: #{inception_a_unit.5} parent=5 // pred_fallthru
      _
    %p149 = scmp.lt.s32.totalorder %s10, 2
    // Predicated region
    $region25: #{inception_a_unit.5} parent=5 // pred_check
      %p150 = pneg %p149
    $region26: #{inception_a_unit.5} parent=5 // pred_check_branch
      %152 = sbr.rel (%p150) target = $region28
    $region27: #{inception_a_unit.5} parent=5 // pred_region
      // Predicated region
      $region29: #{inception_a_unit.5} parent=27 // pred_check
        %p153 = pneg %p30
      $region30: #{inception_a_unit.5} parent=27 // pred_check_branch
        %155 = sbr.rel (%p153) target = $region32
      $region31: #{inception_a_unit.5} parent=27 // pred_region
        %p156 = scmp.lt.s32.totalorder %s10, 1
        %s157 = scalar_select %p156, %s10, 1
        %s158 = smul.addr %s157, 8
        %s159 = smul.addr %s158, 4
        %s160 = scalar_lea.vmem %s0, %s159
      $region32: #{inception_a_unit.5} parent=27 // pred_fallthru
        _
    $region28: #{inception_a_unit.5} parent=5 // pred_fallthru
      _
    %p161 = scmp.le.s32.totalorder 1, %s10
    %p162 = scmp.lt.s32.totalorder %s10, 3
    %p163 = pnand %p161, %p162
    %p164 = pneg %p163
    // Predicated region
    $region33: #{inception_a_unit.5} parent=5 // pred_check
      _
    $region34: #{inception_a_unit.5} parent=5 // pred_check_branch
      %166 = sbr.rel (%p163) target = $region36
    $region35: #{inception_a_unit.5} parent=5 // pred_region
      %s167 = ssub.s32 %s10, 1
      %p168 = scmp.lt.s32.totalorder %s15, 1
      %s169 = scalar_select %p168, %s15, 1
      %s170 = smul.addr %s169, 8
      %s171 = smul.addr %s170, 4
      %s172 = scalar_lea.vmem %s0, %s171
      %p173 = pneg %p36
      %p174 = pneg %p33
      %p175 = pneg %p57
      %p176 = pneg %p54
      %p177 = pneg %p78
      %p178 = pneg %p75
      %p179 = pneg %p99
      %p180 = pneg %p96
      %p181 = pneg %p125
      %p182 = pneg %p122
      %p183 = scmp.lt.s32.totalorder %s15, 1
      %s184 = scalar_select %p183, %s15, 1
      %s185 = smul.addr %s184, 16
      %s186 = smul.addr %s185, 8
      %s187 = scalar_lea.vmem %s4, %s186
      %p188 = scmp.lt.s32.totalorder %s15, 1
      %s189 = scalar_select %p188, %s15, 1
      %s190 = smul.addr %s189, 8
      %s191 = smul.addr %s190, 4
      %s192 = scalar_lea.vmem %s0, %s191
      %p193 = scmp.lt.s32.totalorder %s15, 1
      %s194 = scalar_select %p193, %s15, 1
      %s195 = smul.addr %s194, 16
      %s196 = smul.addr %s195, 8
      %s197 = scalar_lea.vmem %s4, %s196
      %v199 = vld [vmem:[%s192] sm:$0xf]
      %v200 = vld [vmem:[%s192 + $0x4] sm:$0xf]
      %v201 = vld [vmem:[%s192 + $0x8] sm:$0xf]
      %v202 = vld [vmem:[%s192 + $0xc] sm:$0xf]
      %v203 = vld [vmem:[%s192 + $0x10] sm:$0xf]
      %v204 = vld [vmem:[%s192 + $0x14] sm:$0xf]
      %v205 = vld [vmem:[%s192 + $0x18] sm:$0xf]
      %v206 = vld [vmem:[%s192 + $0x1c] sm:$0xf]
      %v207 = vld [vmem:[%s1] sm:$0xff]
      %v208 = vld [vmem:[%s1 + $0x8] sm:$0xff]
      %v209 = vld [vmem:[%s1 + $0x10] sm:$0xff]
      %v210 = vld [vmem:[%s1 + $0x18] sm:$0xff]
      %v211 = vld [vmem:[%s1 + $0x20] sm:$0xff]
      %v212 = vld [vmem:[%s1 + $0x28] sm:$0xff]
      %v213 = vld [vmem:[%s1 + $0x30] sm:$0xff]
      %v214 = vld [vmem:[%s1 + $0x38] sm:$0xff]
      %v223 = vunpack.c.l.b16 %v199
      %v224 = vunpack.c.l.b16 %v200
      %v225 = vunpack.c.l.b16 %v201
      %v226 = vunpack.c.l.b16 %v202
      %v227 = vunpack.c.l.b16 %v203
      %v228 = vunpack.c.l.b16 %v204
      %v229 = vunpack.c.l.b16 %v205
      %v230 = vunpack.c.l.b16 %v206
      %v231 = vpack.c.b16 %v224, %v223
      %v232 = vpack.c.b16 %v226, %v225
      %v233 = vpack.c.b16 %v228, %v227
      %v234 = vpack.c.b16 %v230, %v229
      %v243 = vunpack.c.l.b16 %v207
      %v244 = vunpack.c.h.b16 %v207
      %v245 = vunpack.c.l.b16 %v208
      %v246 = vunpack.c.h.b16 %v208
      %v247 = vunpack.c.l.b16 %v209
      %v248 = vunpack.c.h.b16 %v209
      %v249 = vunpack.c.l.b16 %v210
      %v250 = vunpack.c.h.b16 %v210
      %v251 = vunpack.c.l.b16 %v211
      %v252 = vunpack.c.h.b16 %v211
      %v253 = vunpack.c.l.b16 %v212
      %v254 = vunpack.c.h.b16 %v212
      %v255 = vunpack.c.l.b16 %v213
      %v256 = vunpack.c.h.b16 %v213
      %v257 = vunpack.c.l.b16 %v214
      %v258 = vunpack.c.h.b16 %v214
      %v259 = vpack.c.b16 %v245, %v243
      %v260 = vpack.c.b16 %v246, %v244
      %v261 = vpack.c.b16 %v249, %v247
      %v262 = vpack.c.b16 %v250, %v248
      %v263 = vpack.c.b16 %v253, %v251
      %v264 = vpack.c.b16 %v254, %v252
      %v265 = vpack.c.b16 %v257, %v255
      %v266 = vpack.c.b16 %v258, %v256
      %vm275 = vcmask 523264
      %v277 = vsel %vm275, %v231, 0
      %v280 = vsel %vm275, %v232, 0
      %v283 = vsel %vm275, %v233, 0
      %v286 = vsel %vm275, %v234, 0
      %288 = vmatpush.bf16.msra.mxu0 0
      %289 = vmatpush.bf16.msra.mxu0 0
      %290 = vmatpush.bf16.msra.mxu0 0
      %291 = vmatpush.bf16.msra.mxu0 0
      %292 = vmatpush.bf16.msra.mxu0 %v265
      %293 = vmatpush.bf16.msra.mxu0 %v263
      %294 = vmatpush.bf16.msra.mxu0 %v261
      %295 = vmatpush.bf16.msra.mxu0 %v259
      %296 = vmatmul.bf16.gmra.mxu0 %v277
      %v297 = vpop.f32.mrf.mxu0
      %v298 = vadd.f32 0.0, %v297
      %v299 = vpop.f32.mrf.mxu0
      %v300 = vadd.f32 0.0, %v299
      %301 = vmatmul.bf16.gmra.mxu0 %v280
      %v302 = vpop.f32.mrf.mxu0
      %v303 = vadd.f32 0.0, %v302
      %v304 = vpop.f32.mrf.mxu0
      %v305 = vadd.f32 0.0, %v304
      %306 = vmatmul.bf16.gmra.mxu0 %v283
      %v307 = vpop.f32.mrf.mxu0
      %v308 = vadd.f32 0.0, %v307
      %v309 = vpop.f32.mrf.mxu0
      %v310 = vadd.f32 0.0, %v309
      %311 = vmatmul.bf16.gmra.mxu0 %v286
      %v312 = vpop.f32.mrf.mxu0
      %v313 = vadd.f32 0.0, %v312
      %v314 = vpop.f32.mrf.mxu0
      %v315 = vadd.f32 0.0, %v314
      %316 = vdwg.mxu0
      %317 = vmatpush.bf16.msra.mxu0 0
      %318 = vmatpush.bf16.msra.mxu0 0
      %319 = vmatpush.bf16.msra.mxu0 0
      %320 = vmatpush.bf16.msra.mxu0 0
      %321 = vmatpush.bf16.msra.mxu0 %v266
      %322 = vmatpush.bf16.msra.mxu0 %v264
      %323 = vmatpush.bf16.msra.mxu0 %v262
      %324 = vmatpush.bf16.msra.mxu0 %v260
      %325 = vmatmul.bf16.gmra.mxu0 %v277
      %v326 = vpop.f32.mrf.mxu0
      %v327 = vadd.f32 0.0, %v326
      %v328 = vpop.f32.mrf.mxu0
      %v329 = vadd.f32 0.0, %v328
      %330 = vmatmul.bf16.gmra.mxu0 %v280
      %v331 = vpop.f32.mrf.mxu0
      %v332 = vadd.f32 0.0, %v331
      %v333 = vpop.f32.mrf.mxu0
      %v334 = vadd.f32 0.0, %v333
      %335 = vmatmul.bf16.gmra.mxu0 %v283
      %v336 = vpop.f32.mrf.mxu0
      %v337 = vadd.f32 0.0, %v336
      %v338 = vpop.f32.mrf.mxu0
      %v339 = vadd.f32 0.0, %v338
      %340 = vmatmul.bf16.gmra.mxu0 %v286
      %v341 = vpop.f32.mrf.mxu0
      %v342 = vadd.f32 0.0, %v341
      %v343 = vpop.f32.mrf.mxu0
      %v344 = vadd.f32 0.0, %v343
      %345 = vdwg.mxu0
      %v346 = vld [vmem:[%s2] sm:$0x3]
      %v348 = vperm.slane %v346, 0
      %v349 = vperm.slane %v346, 1
      %v352 = vmul.f32 %v298, %v348
      %v353 = vmul.f32 %v327, %v349
      %v354 = vmul.f32 %v300, %v348
      %v355 = vmul.f32 %v329, %v349
      %v356 = vmul.f32 %v303, %v348
      %v357 = vmul.f32 %v332, %v349
      %v358 = vmul.f32 %v305, %v348
      %v359 = vmul.f32 %v334, %v349
      %v360 = vmul.f32 %v308, %v348
      %v361 = vmul.f32 %v337, %v349
      %v362 = vmul.f32 %v310, %v348
      %v363 = vmul.f32 %v339, %v349
      %v364 = vmul.f32 %v313, %v348
      %v365 = vmul.f32 %v342, %v349
      %v366 = vmul.f32 %v315, %v348
      %v367 = vmul.f32 %v344, %v349
      %v368 = vld [vmem:[%s3] sm:$0x3]
      %v370 = vperm.slane %v368, 0
      %v371 = vperm.slane %v368, 1
      %v374 = vadd.f32 %v352, %v370
      %v375 = vadd.f32 %v353, %v371
      %v376 = vadd.f32 %v354, %v370
      %v377 = vadd.f32 %v355, %v371
      %v378 = vadd.f32 %v356, %v370
      %v379 = vadd.f32 %v357, %v371
      %v380 = vadd.f32 %v358, %v370
      %v381 = vadd.f32 %v359, %v371
      %v382 = vadd.f32 %v360, %v370
      %v383 = vadd.f32 %v361, %v371
      %v384 = vadd.f32 %v362, %v370
      %v385 = vadd.f32 %v363, %v371
      %v386 = vadd.f32 %v364, %v370
      %v387 = vadd.f32 %v365, %v371
      %v388 = vadd.f32 %v366, %v370
      %v389 = vadd.f32 %v367, %v371
      %v390 = vmax.f32 %v374, 0.0
      %v391 = vmax.f32 %v375, 0.0
      %v392 = vmax.f32 %v376, 0.0
      %v393 = vmax.f32 %v377, 0.0
      %v394 = vmax.f32 %v378, 0.0
      %v395 = vmax.f32 %v379, 0.0
      %v396 = vmax.f32 %v380, 0.0
      %v397 = vmax.f32 %v381, 0.0
      %v398 = vmax.f32 %v382, 0.0
      %v399 = vmax.f32 %v383, 0.0
      %v400 = vmax.f32 %v384, 0.0
      %v401 = vmax.f32 %v385, 0.0
      %v402 = vmax.f32 %v386, 0.0
      %v403 = vmax.f32 %v387, 0.0
      %v404 = vmax.f32 %v388, 0.0
      %v405 = vmax.f32 %v389, 0.0
      %406 = vst [vmem:[%s197] sm:$0xff] %v390
      %vm407 = vcmask 392192
      %408 = vst.msk [vmem:[%s197 + $0x8] sm:$0xff] %vm407, %v391
      %409 = vst [vmem:[%s197 + $0x10] sm:$0xff] %v392
      %410 = vst.msk [vmem:[%s197 + $0x18] sm:$0xff] %vm407, %v393
      %411 = vst [vmem:[%s197 + $0x20] sm:$0xff] %v394
      %412 = vst.msk [vmem:[%s197 + $0x28] sm:$0xff] %vm407, %v395
      %413 = vst [vmem:[%s197 + $0x30] sm:$0xff] %v396
      %414 = vst.msk [vmem:[%s197 + $0x38] sm:$0xff] %vm407, %v397
      %415 = vst [vmem:[%s197 + $0x40] sm:$0xff] %v398
      %416 = vst.msk [vmem:[%s197 + $0x48] sm:$0xff] %vm407, %v399
      %417 = vst [vmem:[%s197 + $0x50] sm:$0xff] %v400
      %418 = vst.msk [vmem:[%s197 + $0x58] sm:$0xff] %vm407, %v401
      %419 = vst [vmem:[%s197 + $0x60] sm:$0xff] %v402
      %420 = vst.msk [vmem:[%s197 + $0x68] sm:$0xff] %vm407, %v403
      %421 = vst [vmem:[%s197 + $0x70] sm:$0xff] %v404
      %422 = vst.msk [vmem:[%s197 + $0x78] sm:$0xff] %vm407, %v405
      %p423 = scmp.lt.s32.totalorder %s15, 1
      %s424 = scalar_select %p423, %s15, 1
      %s425 = smul.addr %s424, 16
      %s426 = smul.addr %s425, 8
      %s427 = scalar_lea.vmem %s4, %s426
      // Predicated region
      $region37: #{inception_a_unit.5} parent=35 // pred_check
        %p428 = pneg %p122
      $region38: #{inception_a_unit.5} parent=35 // pred_check_branch
        %430 = sbr.rel (%p428) target = $region40
      $region39: #{inception_a_unit.5} parent=35 // pred_region
        _
      $region40: #{inception_a_unit.5} parent=35 // pred_fallthru
        _
    $region36: #{inception_a_unit.5} parent=5 // pred_fallthru
      _
    %p431 = scmp.le.s32.totalorder 2, %s10
    // Predicated region
    $region41: #{inception_a_unit.5} parent=5 // pred_check
      %p432 = pneg %p431
    $region42: #{inception_a_unit.5} parent=5 // pred_check_branch
      %434 = sbr.rel (%p432) target = $region44
    $region43: #{inception_a_unit.5} parent=5 // pred_region
      %s435 = ssub.s32 %s10, 2
      // Predicated region
      $region45: #{inception_a_unit.5} parent=43 // pred_check
        %p436 = pneg %p128
      $region46: #{inception_a_unit.5} parent=43 // pred_check_branch
        %438 = sbr.rel (%p436) target = $region48
      $region47: #{inception_a_unit.5} parent=43 // pred_region
        %p439 = scmp.lt.s32.totalorder %s16, 1
        %s440 = scalar_select %p439, %s16, 1
        %s441 = smul.addr %s440, 16
        %s442 = smul.addr %s441, 8
        %s443 = scalar_lea.vmem %s4, %s442
      $region48: #{inception_a_unit.5} parent=43 // pred_fallthru
        _
    $region44: #{inception_a_unit.5} parent=5 // pred_fallthru
      _
  $region6: #{inception_a_unit.5} parent=0 // loop_footer
    %s14 = sadd.s32 1, %s10
  $region7: #{inception_a_unit.5} parent=0 // loop_footer_branch
    %9 = sbr.rel target = $region3
  $region8: #{inception_a_unit.5} parent=0 // loop_exit
    _

// kernel: inception_a_unit.7
$region0: #{inception_a_unit.7}
  #allocation0 [shape = 'u32[]', space=smem, size = 0x4, offset = 0x4, fixed_abs, tag = 'smem constant byte address 0x4 - core index']
  #allocation1 [shape = 'u32[72,128]{1,0:T(1,128)}', space=vmem, size = 0x9000, scoped, tag = 'internal scratch']
  %s0 = inlined_call_operand.vmem [shape: bf16[2,10,10,64], index: 0, kind: input, shape index: {}]
  %s1 = inlined_call_operand.vmem [shape: bf16[9,64,96], index: 1, kind: input, shape index: {}]
  %s2 = inlined_call_operand.vmem [shape: f32[1,96], index: 2, kind: input, shape index: {}]
  %s3 = inlined_call_operand.vmem [shape: f32[1,96], index: 3, kind: input, shape index: {}]
  %s4 = inlined_call_operand.vmem [shape: f32[2,8,8,96], index: 4, kind: output, shape index: {}]
  %s5 = sld [smem:[#allocation0]]
  $region49: #{inception_a_unit.7} parent=0
    _
  %s7 = ssub.s32 1, %s5
  %s8 = scalar_select 0, %s7, %s5
  loop: start=0, step=1, limit=4
  $region2: #{inception_a_unit.7} parent=0 // loop_pre_header
    _
  $region3: #{inception_a_unit.7} parent=0 // loop_header
    %s10 = sphi 0, %s14
    %p11 = scmp.ge.s32.totalorder %s10, 4
    %s20 = sphi 0, %s22
    %s23 = sphi 0, %s20
    %s24 = sphi 0, %s23
    %s40 = sphi 0, %s24
    %s44 = sphi 0, %s44
    %s46 = sphi 0, %s44
    %s47 = sphi 0, %s46
    %s61 = sphi 0, %s47
    %s65 = sphi 0, %s65
    %s67 = sphi 0, %s65
    %s68 = sphi 0, %s67
    %s82 = sphi 0, %s68
    %s86 = sphi 0, %s86
    %s88 = sphi 0, %s86
    %s89 = sphi 0, %s88
    %s103 = sphi 0, %s89
    %s109 = sphi 0, %s111
    %s112 = sphi 0, %s109
    %s113 = sphi 0, %s112
    %s129 = sphi 0, %s113
  $region4: #{inception_a_unit.7} parent=0 // loop_header_branch
    %13 = sbr.rel (%p11) target = $region8
  $region5: #{inception_a_unit.7} parent=0 // loop_body
    %s15 = ssub.s32 %s10, 1
    %s16 = ssub.s32 %s10, 2
    %s17 = sadd.s32 %s10, 1
    %s18 = ssub.s32 %s10, %s17
    %p19 = scmp.eq.s32.totalorder %s18, 0
    %s21 = sadd.s32 %s20, 1
    %s22 = scalar_select %p19, %s20, %s21
    %p25 = pneg %p19
    %p26 = scmp.eq.s32.totalorder %s10, 1
    %p27 = por %p25, %p26
    %p28 = scmp.ne.s32.totalorder %s20, %s23
    %p29 = scmp.eq.s32.totalorder %s10, 0
    %p30 = por %p28, %p29
    %p31 = scmp.ne.s32.totalorder %s20, %s23
    %p32 = scmp.eq.s32.totalorder %s15, 1
    %p33 = por %p31, %p32
    %p34 = scmp.ne.s32.totalorder %s23, %s24
    %p35 = scmp.eq.s32.totalorder %s15, 0
    %p36 = por %p34, %p35
    %p37 = scmp.ne.s32.totalorder %s23, %s24
    %p38 = scmp.eq.s32.totalorder %s16, 1
    %p39 = por %p37, %p38
    %p41 = scmp.ne.s32.totalorder %s24, %s40
    %p42 = scmp.eq.s32.totalorder %s16, 0
    %p43 = por %p41, %p42
    %s45 = sadd.s32 %s44, 1
    %p48 = scmp.eq.s32.totalorder %s10, 1
    %p49 = scmp.ne.s32.totalorder %s44, %s46
    %p50 = scmp.eq.s32.totalorder %s10, 0
    %p51 = por %p49, %p50
    %p52 = scmp.ne.s32.totalorder %s44, %s46
    %p53 = scmp.eq.s32.totalorder %s15, 1
    %p54 = por %p52, %p53
    %p55 = scmp.ne.s32.totalorder %s46, %s47
    %p56 = scmp.eq.s32.totalorder %s15, 0
    %p57 = por %p55, %p56
    %p58 = scmp.ne.s32.totalorder %s46, %s47
    %p59 = scmp.eq.s32.totalorder %s16, 1
    %p60 = por %p58, %p59
    %p62 = scmp.ne.s32.totalorder %s47, %s61
    %p63 = scmp.eq.s32.totalorder %s16, 0
    %p64 = por %p62, %p63
    %s66 = sadd.s32 %s65, 1
    %p69 = scmp.eq.s32.totalorder %s10, 1
    %p70 = scmp.ne.s32.totalorder %s65, %s67
    %p71 = scmp.eq.s32.totalorder %s10, 0
    %p72 = por %p70, %p71
    %p73 = scmp.ne.s32.totalorder %s65, %s67
    %p74 = scmp.eq.s32.totalorder %s15, 1
    %p75 = por %p73, %p74
    %p76 = scmp.ne.s32.totalorder %s67, %s68
    %p77 = scmp.eq.s32.totalorder %s15, 0
    %p78 = por %p76, %p77
    %p79 = scmp.ne.s32.totalorder %s67, %s68
    %p80 = scmp.eq.s32.totalorder %s16, 1
    %p81 = por %p79, %p80
    %p83 = scmp.ne.s32.totalorder %s68, %s82
    %p84 = scmp.eq.s32.totalorder %s16, 0
    %p85 = por %p83, %p84
    %s87 = sadd.s32 %s86, 1
    %p90 = scmp.eq.s32.totalorder %s10, 1
    %p91 = scmp.ne.s32.totalorder %s86, %s88
    %p92 = scmp.eq.s32.totalorder %s10, 0
    %p93 = por %p91, %p92
    %p94 = scmp.ne.s32.totalorder %s86, %s88
    %p95 = scmp.eq.s32.totalorder %s15, 1
    %p96 = por %p94, %p95
    %p97 = scmp.ne.s32.totalorder %s88, %s89
    %p98 = scmp.eq.s32.totalorder %s15, 0
    %p99 = por %p97, %p98
    %p100 = scmp.ne.s32.totalorder %s88, %s89
    %p101 = scmp.eq.s32.totalorder %s16, 1
    %p102 = por %p100, %p101
    %p104 = scmp.ne.s32.totalorder %s89, %s103
    %p105 = scmp.eq.s32.totalorder %s16, 0
    %p106 = por %p104, %p105
    %s107 = ssub.s32 %s10, %s17
    %p108 = scmp.eq.s32.totalorder %s107, 0
    %s110 = sadd.s32 %s109, 1
    %s111 = scalar_select %p108, %s109, %s110
    %p114 = pneg %p108
    %p115 = scmp.eq.s32.totalorder %s10, 1
    %p116 = por %p114, %p115
    %p117 = scmp.ne.s32.totalorder %s109, %s112
    %p118 = scmp.eq.s32.totalorder %s10, 0
    %p119 = por %p117, %p118
    %p120 = scmp.ne.s32.totalorder %s109, %s112
    %p121 = scmp.eq.s32.totalorder %s15, 1
    %p122 = por %p120, %p121
    %p123 = scmp.ne.s32.totalorder %s112, %s113
    %p124 = scmp.eq.s32.totalorder %s15, 0
    %p125 = por %p123, %p124
    %p126 = scmp.ne.s32.totalorder %s112, %s113
    %p127 = scmp.eq.s32.totalorder %s16, 1
    %p128 = por %p126, %p127
    %p130 = scmp.ne.s32.totalorder %s113, %s129
    %p131 = scmp.eq.s32.totalorder %s16, 0
    %p132 = por %p130, %p131
    %p133 = scmp.le.s32.totalorder 1, %s10
    %p134 = scmp.lt.s32.totalorder %s10, 3
    %p135 = pnand %p133, %p134
    %p136 = pneg %p135
    // Predicated region
    $region9: #{inception_a_unit.7} parent=5 // pred_check
      _
    $region10: #{inception_a_unit.7} parent=5 // pred_check_branch
      %138 = sbr.rel (%p135) target = $region12
    $region11: #{inception_a_unit.7} parent=5 // pred_region
      %s139 = ssub.s32 %s10, 1
      // Predicated region
      $region13: #{inception_a_unit.7} parent=11 // pred_check
        %p140 = pneg %p57
      $region14: #{inception_a_unit.7} parent=11 // pred_check_branch
        %142 = sbr.rel (%p140) target = $region16
      $region15: #{inception_a_unit.7} parent=11 // pred_region
        _
      $region16: #{inception_a_unit.7} parent=11 // pred_fallthru
        _
      // Predicated region
      $region17: #{inception_a_unit.7} parent=11 // pred_check
        %p143 = pneg %p78
      $region18: #{inception_a_unit.7} parent=11 // pred_check_branch
        %145 = sbr.rel (%p143) target = $region20
      $region19: #{inception_a_unit.7} parent=11 // pred_region
        _
      $region20: #{inception_a_unit.7} parent=11 // pred_fallthru
        _
      // Predicated region
      $region21: #{inception_a_unit.7} parent=11 // pred_check
        %p146 = pneg %p99
      $region22: #{inception_a_unit.7} parent=11 // pred_check_branch
        %148 = sbr.rel (%p146) target = $region24
      $region23: #{inception_a_unit.7} parent=11 // pred_region
        _
      $region24: #{inception_a_unit.7} parent=11 // pred_fallthru
        _
    $region12: #{inception_a_unit.7} parent=5 // pred_fallthru
      _
    %p149 = scmp.lt.s32.totalorder %s10, 2
    // Predicated region
    $region25: #{inception_a_unit.7} parent=5 // pred_check
      %p150 = pneg %p149
    $region26: #{inception_a_unit.7} parent=5 // pred_check_branch
      %152 = sbr.rel (%p150) target = $region28
    $region27: #{inception_a_unit.7} parent=5 // pred_region
      // Predicated region
      $region29: #{inception_a_unit.7} parent=27 // pred_check
        %p153 = pneg %p30
      $region30: #{inception_a_unit.7} parent=27 // pred_check_branch
        %155 = sbr.rel (%p153) target = $region32
      $region31: #{inception_a_unit.7} parent=27 // pred_region
        %p156 = scmp.lt.s32.totalorder %s10, 1
        %s157 = scalar_select %p156, %s10, 1
        %s158 = smul.addr %s157, 20
        %s159 = smul.addr %s158, 4
        %s160 = scalar_lea.vmem %s0, %s159
      $region32: #{inception_a_unit.7} parent=27 // pred_fallthru
        _
    $region28: #{inception_a_unit.7} parent=5 // pred_fallthru
      _
    %p161 = scmp.le.s32.totalorder 1, %s10
    %p162 = scmp.lt.s32.totalorder %s10, 3
    %p163 = pnand %p161, %p162
    %p164 = pneg %p163
    // Predicated region
    $region33: #{inception_a_unit.7} parent=5 // pred_check
      _
    $region34: #{inception_a_unit.7} parent=5 // pred_check_branch
      %166 = sbr.rel (%p163) target = $region36
    $region35: #{inception_a_unit.7} parent=5 // pred_region
      %s167 = ssub.s32 %s10, 1
      %p168 = scmp.lt.s32.totalorder %s15, 1
      %s169 = scalar_select %p168, %s15, 1
      %s170 = smul.addr %s169, 20
      %s171 = smul.addr %s170, 4
      %s172 = scalar_lea.vmem %s0, %s171
      %p173 = pneg %p36
      %p174 = pneg %p33
      %p175 = pneg %p57
      %p176 = pneg %p54
      %p177 = pneg %p78
      %p178 = pneg %p75
      %p179 = pneg %p99
      %p180 = pneg %p96
      %p181 = pneg %p125
      %p182 = pneg %p122
      %p183 = scmp.lt.s32.totalorder %s15, 1
      %s184 = scalar_select %p183, %s15, 1
      %s185 = smul.addr %s184, 8
      %s186 = smul.addr %s185, 8
      %s187 = scalar_lea.vmem %s4, %s186
      %p188 = scmp.lt.s32.totalorder %s15, 1
      %s189 = scalar_select %p188, %s15, 1
      %s190 = smul.addr %s189, 20
      %s191 = smul.addr %s190, 4
      %s192 = scalar_lea.vmem %s0, %s191
      %p193 = scmp.lt.s32.totalorder %s15, 1
      %s194 = scalar_select %p193, %s15, 1
      %s195 = smul.addr %s194, 8
      %s196 = smul.addr %s195, 8
      %s197 = scalar_lea.vmem %s4, %s196
      %v199 = vld [vmem:[%s192] sm:$0xf]
      %v200 = vld [vmem:[%s192 + $0x8] sm:$0xf]
      %v201 = vld [vmem:[%s192 + $0x10] sm:$0xf]
      %v202 = vld [vmem:[%s192 + $0x18] sm:$0xf]
      %v203 = vld [vmem:[%s192 + $0x20] sm:$0xf]
      %v204 = vld [vmem:[%s192 + $0x28] sm:$0xf]
      %v205 = vld [vmem:[%s192 + $0x30] sm:$0xf]
      %v206 = vld [vmem:[%s192 + $0x38] sm:$0xf]
      %v207 = vld [vmem:[%s1] sm:$0xf]
      %v208 = vld [vmem:[%s1 + $0x4] sm:$0xf]
      %v209 = vld [vmem:[%s1 + $0x8] sm:$0xf]
      %v210 = vld [vmem:[%s1 + $0xc] sm:$0xf]
      %v211 = vld [vmem:[%s1 + $0x10] sm:$0xf]
      %v212 = vld [vmem:[%s1 + $0x14] sm:$0xf]
      %v213 = vld [vmem:[%s1 + $0x18] sm:$0xf]
      %v214 = vld [vmem:[%s1 + $0x1c] sm:$0xf]
      %v215 = vld [vmem:[%s192 + $0x4] sm:$0x1]
      %v216 = vld [vmem:[%s192 + $0xc] sm:$0x1]
      %v217 = vld [vmem:[%s192 + $0x14] sm:$0x1]
      %v218 = vld [vmem:[%s192 + $0x1c] sm:$0x1]
      %v219 = vld [vmem:[%s192 + $0x24] sm:$0x1]
      %v220 = vld [vmem:[%s192 + $0x2c] sm:$0x1]
      %v221 = vld [vmem:[%s192 + $0x34] sm:$0x1]
      %v222 = vld [vmem:[%s192 + $0x3c] sm:$0x1]
      %vm223 = vsmask.f32 3328
      %vm224 = vsmask.f32 7440
      %vm225 = vmor %vm223, %vm224
      %v227 = vshrl.u32 %v199, 16
      %v229 = vrot.slane %v227, 4
      %v230 = vshll.u32 %v199, 16
      %v232 = vrot.slane %v230, 5
      %v233 = vor.u32 %v229, %v232
      %v234 = vrot.slane %v233, 4
      %v236 = vshll.u32 %v215, 16
      %v238 = vrot.slane %v236, 5
      %v239 = vsel %vm225, %v234, %v238
      %v241 = vshrl.u32 %v200, 16
      %v243 = vrot.slane %v241, 4
      %v244 = vshll.u32 %v200, 16
      %v246 = vrot.slane %v244, 5
      %v247 = vor.u32 %v243, %v246
      %v248 = vrot.slane %v247, 4
      %v250 = vshll.u32 %v216, 16
      %v252 = vrot.slane %v250, 5
      %v253 = vsel %vm225, %v248, %v252
      %v255 = vshrl.u32 %v201, 16
      %v257 = vrot.slane %v255, 4
      %v258 = vshll.u32 %v201, 16
      %v260 = vrot.slane %v258, 5
      %v261 = vor.u32 %v257, %v260
      %v262 = vrot.slane %v261, 4
      %v264 = vshll.u32 %v217, 16
      %v266 = vrot.slane %v264, 5
      %v267 = vsel %vm225, %v262, %v266
      %v269 = vshrl.u32 %v202, 16
      %v271 = vrot.slane %v269, 4
      %v272 = vshll.u32 %v202, 16
      %v274 = vrot.slane %v272, 5
      %v275 = vor.u32 %v271, %v274
      %v276 = vrot.slane %v275, 4
      %v278 = vshll.u32 %v218, 16
      %v280 = vrot.slane %v278, 5
      %v281 = vsel %vm225, %v276, %v280
      %v283 = vshrl.u32 %v203, 16
      %v285 = vrot.slane %v283, 4
      %v286 = vshll.u32 %v203, 16
      %v288 = vrot.slane %v286, 5
      %v289 = vor.u32 %v285, %v288
      %v290 = vrot.slane %v289, 4
      %v292 = vshll.u32 %v219, 16
      %v294 = vrot.slane %v292, 5
      %v295 = vsel %vm225, %v290, %v294
      %v297 = vshrl.u32 %v204, 16
      %v299 = vrot.slane %v297, 4
      %v300 = vshll.u32 %v204, 16
      %v302 = vrot.slane %v300, 5
      %v303 = vor.u32 %v299, %v302
      %v304 = vrot.slane %v303, 4
      %v306 = vshll.u32 %v220, 16
      %v308 = vrot.slane %v306, 5
      %v309 = vsel %vm225, %v304, %v308
      %v311 = vshrl.u32 %v205, 16
      %v313 = vrot.slane %v311, 4
      %v314 = vshll.u32 %v205, 16
      %v316 = vrot.slane %v314, 5
      %v317 = vor.u32 %v313, %v316
      %v318 = vrot.slane %v317, 4
      %v320 = vshll.u32 %v221, 16
      %v322 = vrot.slane %v320, 5
      %v323 = vsel %vm225, %v318, %v322
      %v325 = vshrl.u32 %v206, 16
      %v327 = vrot.slane %v325, 4
      %v328 = vshll.u32 %v206, 16
      %v330 = vrot.slane %v328, 5
      %v331 = vor.u32 %v327, %v330
      %v332 = vrot.slane %v331, 4
      %v334 = vshll.u32 %v222, 16
      %v336 = vrot.slane %v334, 5
      %v337 = vsel %vm225, %v332, %v336
      %s338 = scalar_lea.vmem %s1, 32
      %v339 = vld [vmem:[%s338] sm:$0xf]
      %v340 = vld [vmem:[%s338 + $0x4] sm:$0xf]
      %v341 = vld [vmem:[%s338 + $0x8] sm:$0xf]
      %v342 = vld [vmem:[%s338 + $0xc] sm:$0xf]
      %v343 = vld [vmem:[%s338 + $0x10] sm:$0xf]
      %v344 = vld [vmem:[%s338 + $0x14] sm:$0xf]
      %v345 = vld [vmem:[%s338 + $0x18] sm:$0xf]
      %v346 = vld [vmem:[%s338 + $0x1c] sm:$0xf]
      %v347 = vunpack.c.l.b16 %v239
      %v348 = vunpack.c.l.b16 %v253
      %v349 = vunpack.c.l.b16 %v267
      %v350 = vunpack.c.l.b16 %v281
      %v351 = vunpack.c.l.b16 %v295
      %v352 = vunpack.c.l.b16 %v309
      %v353 = vunpack.c.l.b16 %v323
      %v354 = vunpack.c.l.b16 %v337
      %v355 = vpack.c.b16 %v348, %v347
      %v356 = vpack.c.b16 %v350, %v349
      %v357 = vpack.c.b16 %v352, %v351
      %v358 = vpack.c.b16 %v354, %v353
      %v367 = vunpack.c.l.b16 %v339
      %v368 = vunpack.c.l.b16 %v340
      %v369 = vunpack.c.l.b16 %v341
      %v370 = vunpack.c.l.b16 %v342
      %v371 = vunpack.c.l.b16 %v343
      %v372 = vunpack.c.l.b16 %v344
      %v373 = vunpack.c.l.b16 %v345
      %v374 = vunpack.c.l.b16 %v346
      %v375 = vpack.c.b16 %v368, %v367
      %v376 = vpack.c.b16 %v370, %v369
      %v377 = vpack.c.b16 %v372, %v371
      %v378 = vpack.c.b16 %v374, %v373
      %vm383 = vcmask 523264
      %v385 = vsel %vm383, %v355, 0
      %v388 = vsel %vm383, %v356, 0
      %v391 = vsel %vm383, %v357, 0
      %v394 = vsel %vm383, %v358, 0
      %396 = vmatpush.bf16.msra.mxu0 0
      %397 = vmatpush.bf16.msra.mxu0 0
      %398 = vmatpush.bf16.msra.mxu0 0
      %399 = vmatpush.bf16.msra.mxu0 0
      %400 = vmatpush.bf16.msra.mxu0 %v378
      %401 = vmatpush.bf16.msra.mxu0 %v377
      %402 = vmatpush.bf16.msra.mxu0 %v376
      %403 = vmatpush.bf16.msra.mxu0 %v375
      %404 = vmatmul.bf16.gmra.mxu0 %v385
      %v405 = vpop.f32.mrf.mxu0
      %v406 = vadd.f32 0.0, %v405
      %v407 = vpop.f32.mrf.mxu0
      %v408 = vadd.f32 0.0, %v407
      %409 = vmatmul.bf16.gmra.mxu0 %v388
      %v410 = vpop.f32.mrf.mxu0
      %v411 = vadd.f32 0.0, %v410
      %v412 = vpop.f32.mrf.mxu0
      %v413 = vadd.f32 0.0, %v412
      %414 = vmatmul.bf16.gmra.mxu0 %v391
      %v415 = vpop.f32.mrf.mxu0
      %v416 = vadd.f32 0.0, %v415
      %v417 = vpop.f32.mrf.mxu0
      %v418 = vadd.f32 0.0, %v417
      %419 = vmatmul.bf16.gmra.mxu0 %v394
      %v420 = vpop.f32.mrf.mxu0
      %v421 = vadd.f32 0.0, %v420
      %v422 = vpop.f32.mrf.mxu0
      %v423 = vadd.f32 0.0, %v422
      %424 = vdwg.mxu0
      %v433 = vunpack.c.l.b16 %v199
      %v434 = vunpack.c.l.b16 %v200
      %v435 = vunpack.c.l.b16 %v201
      %v436 = vunpack.c.l.b16 %v202
      %v437 = vunpack.c.l.b16 %v203
      %v438 = vunpack.c.l.b16 %v204
      %v439 = vunpack.c.l.b16 %v205
      %v440 = vunpack.c.l.b16 %v206
      %v441 = vpack.c.b16 %v434, %v433
      %v442 = vpack.c.b16 %v436, %v435
      %v443 = vpack.c.b16 %v438, %v437
      %v444 = vpack.c.b16 %v440, %v439
      %v453 = vunpack.c.l.b16 %v207
      %v454 = vunpack.c.l.b16 %v208
      %v455 = vunpack.c.l.b16 %v209
      %v456 = vunpack.c.l.b16 %v210
      %v457 = vunpack.c.l.b16 %v211
      %v458 = vunpack.c.l.b16 %v212
      %v459 = vunpack.c.l.b16 %v213
      %v460 = vunpack.c.l.b16 %v214
      %v461 = vpack.c.b16 %v454, %v453
      %v462 = vpack.c.b16 %v456, %v455
      %v463 = vpack.c.b16 %v458, %v457
      %v464 = vpack.c.b16 %v460, %v459
      %v470 = vsel %vm383, %v441, 0
      %v473 = vsel %vm383, %v442, 0
      %v476 = vsel %vm383, %v443, 0
      %v479 = vsel %vm383, %v444, 0
      %481 = vmatpush.bf16.msra.mxu0 0
      %482 = vmatpush.bf16.msra.mxu0 0
      %483 = vmatpush.bf16.msra.mxu0 0
      %484 = vmatpush.bf16.msra.mxu0 0
      %485 = vmatpush.bf16.msra.mxu0 %v464
      %486 = vmatpush.bf16.msra.mxu0 %v463
      %487 = vmatpush.bf16.msra.mxu0 %v462
      %488 = vmatpush.bf16.msra.mxu0 %v461
      %489 = vmatmul.bf16.gmra.mxu0 %v470
      %v490 = vpop.f32.mrf.mxu0
      %v491 = vadd.f32 %v406, %v490
      %v492 = vpop.f32.mrf.mxu0
      %v493 = vadd.f32 %v408, %v492
      %494 = vmatmul.bf16.gmra.mxu0 %v473
      %v495 = vpop.f32.mrf.mxu0
      %v496 = vadd.f32 %v411, %v495
      %v497 = vpop.f32.mrf.mxu0
      %v498 = vadd.f32 %v413, %v497
      %499 = vmatmul.bf16.gmra.mxu0 %v476
      %v500 = vpop.f32.mrf.mxu0
      %v501 = vadd.f32 %v416, %v500
      %v502 = vpop.f32.mrf.mxu0
      %v503 = vadd.f32 %v418, %v502
      %504 = vmatmul.bf16.gmra.mxu0 %v479
      %v505 = vpop.f32.mrf.mxu0
      %v506 = vadd.f32 %v421, %v505
      %v507 = vpop.f32.mrf.mxu0
      %v508 = vadd.f32 %v423, %v507
      %509 = vdwg.mxu0
      %v510 = vld [vmem:[%s192] sm:$0xe]
      %v511 = vld [vmem:[%s192 + $0x8] sm:$0xe]
      %v512 = vld [vmem:[%s192 + $0x10] sm:$0xe]
      %v513 = vld [vmem:[%s192 + $0x18] sm:$0xe]
      %v514 = vld [vmem:[%s192 + $0x20] sm:$0xe]
      %v515 = vld [vmem:[%s192 + $0x28] sm:$0xe]
      %v516 = vld [vmem:[%s192 + $0x30] sm:$0xe]
      %v517 = vld [vmem:[%s192 + $0x38] sm:$0xe]
      %vm534 = vcmask 1042432
      %vm535 = vcmask 1046532
      %vm536 = vmor %vm534, %vm535
      %v537 = vrot.slane %v510, 5
      %v538 = vrot.slane %v537, 4
      %v539 = vrot.slane %v215, 5
      %v540 = vsel %vm536, %v538, %v539
      %v541 = vrot.slane %v511, 5
      %v542 = vrot.slane %v541, 4
      %v543 = vrot.slane %v216, 5
      %v544 = vsel %vm536, %v542, %v543
      %v545 = vrot.slane %v512, 5
      %v546 = vrot.slane %v545, 4
      %v547 = vrot.slane %v217, 5
      %v548 = vsel %vm536, %v546, %v547
      %v549 = vrot.slane %v513, 5
      %v550 = vrot.slane %v549, 4
      %v551 = vrot.slane %v218, 5
      %v552 = vsel %vm536, %v550, %v551
      %v553 = vrot.slane %v514, 5
      %v554 = vrot.slane %v553, 4
      %v555 = vrot.slane %v219, 5
      %v556 = vsel %vm536, %v554, %v555
      %v557 = vrot.slane %v515, 5
      %v558 = vrot.slane %v557, 4
      %v559 = vrot.slane %v220, 5
      %v560 = vsel %vm536, %v558, %v559
      %v561 = vrot.slane %v516, 5
      %v562 = vrot.slane %v561, 4
      %v563 = vrot.slane %v221, 5
      %v564 = vsel %vm536, %v562, %v563
      %v565 = vrot.slane %v517, 5
      %v566 = vrot.slane %v565, 4
      %v567 = vrot.slane %v222, 5
      %v568 = vsel %vm536, %v566, %v567
      %s569 = scalar_lea.vmem %s1, 64
      %v570 = vld [vmem:[%s569] sm:$0xf]
      %v571 = vld [vmem:[%s569 + $0x4] sm:$0xf]
      %v572 = vld [vmem:[%s569 + $0x8] sm:$0xf]
      %v573 = vld [vmem:[%s569 + $0xc] sm:$0xf]
      %v574 = vld [vmem:[%s569 + $0x10] sm:$0xf]
      %v575 = vld [vmem:[%s569 + $0x14] sm:$0xf]
      %v576 = vld [vmem:[%s569 + $0x18] sm:$0xf]
      %v577 = vld [vmem:[%s569 + $0x1c] sm:$0xf]
      %v578 = vunpack.c.l.b16 %v540
      %v579 = vunpack.c.l.b16 %v544
      %v580 = vunpack.c.l.b16 %v548
      %v581 = vunpack.c.l.b16 %v552
      %v582 = vunpack.c.l.b16 %v556
      %v583 = vunpack.c.l.b16 %v560
      %v584 = vunpack.c.l.b16 %v564
      %v585 = vunpack.c.l.b16 %v568
      %v586 = vpack.c.b16 %v579, %v578
      %v587 = vpack.c.b16 %v581, %v580
      %v588 = vpack.c.b16 %v583, %v582
      %v589 = vpack.c.b16 %v585, %v584
      %v598 = vunpack.c.l.b16 %v570
      %v599 = vunpack.c.l.b16 %v571
      %v600 = vunpack.c.l.b16 %v572
      %v601 = vunpack.c.l.b16 %v573
      %v602 = vunpack.c.l.b16 %v574
      %v603 = vunpack.c.l.b16 %v575
      %v604 = vunpack.c.l.b16 %v576
      %v605 = vunpack.c.l.b16 %v577
      %v606 = vpack.c.b16 %v599, %v598
      %v607 = vpack.c.b16 %v601, %v600
      %v608 = vpack.c.b16 %v603, %v602
      %v609 = vpack.c.b16 %v605, %v604
      %v615 = vsel %vm383, %v586, 0
      %v618 = vsel %vm383, %v587, 0
      %v621 = vsel %vm383, %v588, 0
      %v624 = vsel %vm383, %v589, 0
      %626 = vmatpush.bf16.msra.mxu0 0
      %627 = vmatpush.bf16.msra.mxu0 0
      %628 = vmatpush.bf16.msra.mxu0 0
      %629 = vmatpush.bf16.msra.mxu0 0
      %630 = vmatpush.bf16.msra.mxu0 %v609
      %631 = vmatpush.bf16.msra.mxu0 %v608
      %632 = vmatpush.bf16.msra.mxu0 %v607
      %633 = vmatpush.bf16.msra.mxu0 %v606
      %634 = vmatmul.bf16.gmra.mxu0 %v615
      %v635 = vpop.f32.mrf.mxu0
      %v636 = vadd.f32 0.0, %v635
      %v637 = vpop.f32.mrf.mxu0
      %v638 = vadd.f32 0.0, %v637
      %639 = vmatmul.bf16.gmra.mxu0 %v618
      %v640 = vpop.f32.mrf.mxu0
      %v641 = vadd.f32 0.0, %v640
      %v642 = vpop.f32.mrf.mxu0
      %v643 = vadd.f32 0.0, %v642
      %644 = vmatmul.bf16.gmra.mxu0 %v621
      %v645 = vpop.f32.mrf.mxu0
      %v646 = vadd.f32 0.0, %v645
      %v647 = vpop.f32.mrf.mxu0
      %v648 = vadd.f32 0.0, %v647
      %649 = vmatmul.bf16.gmra.mxu0 %v624
      %v650 = vpop.f32.mrf.mxu0
      %v651 = vadd.f32 0.0, %v650
      %v652 = vpop.f32.mrf.mxu0
      %v653 = vadd.f32 0.0, %v652
      %654 = vdwg.mxu0
      %v655 = vadd.f32 %v491, %v636
      %v656 = vadd.f32 %v493, %v638
      %v657 = vadd.f32 %v496, %v641
      %v658 = vadd.f32 %v498, %v643
      %v659 = vadd.f32 %v501, %v646
      %v660 = vadd.f32 %v503, %v648
      %v661 = vadd.f32 %v506, %v651
      %v662 = vadd.f32 %v508, %v653
      %s663 = scalar_lea.vmem %s192, 8
      %v664 = vld [vmem:[%s663] sm:$0xf]
      %v665 = vld [vmem:[%s663 + $0x8] sm:$0xf]
      %v666 = vld [vmem:[%s663 + $0x10] sm:$0xf]
      %v667 = vld [vmem:[%s663 + $0x18] sm:$0xf]
      %v668 = vld [vmem:[%s663 + $0x20] sm:$0xf]
      %v669 = vld [vmem:[%s663 + $0x28] sm:$0xf]
      %v670 = vld [vmem:[%s663 + $0x30] sm:$0xf]
      %v671 = vld [vmem:[%s663 + $0x38] sm:$0xf]
      %s672 = scalar_lea.vmem %s1, 96
      %v673 = vld [vmem:[%s672] sm:$0xf]
      %v674 = vld [vmem:[%s672 + $0x4] sm:$0xf]
      %v675 = vld [vmem:[%s672 + $0x8] sm:$0xf]
      %v676 = vld [vmem:[%s672 + $0xc] sm:$0xf]
      %v677 = vld [vmem:[%s672 + $0x10] sm:$0xf]
      %v678 = vld [vmem:[%s672 + $0x14] sm:$0xf]
      %v679 = vld [vmem:[%s672 + $0x18] sm:$0xf]
      %v680 = vld [vmem:[%s672 + $0x1c] sm:$0xf]
      %v689 = vunpack.c.l.b16 %v664
      %v690 = vunpack.c.l.b16 %v665
      %v691 = vunpack.c.l.b16 %v666
      %v692 = vunpack.c.l.b16 %v667
      %v693 = vunpack.c.l.b16 %v668
      %v694 = vunpack.c.l.b16 %v669
      %v695 = vunpack.c.l.b16 %v670
      %v696 = vunpack.c.l.b16 %v671
      %v697 = vpack.c.b16 %v690, %v689
      %v698 = vpack.c.b16 %v692, %v691
      %v699 = vpack.c.b16 %v694, %v693
      %v700 = vpack.c.b16 %v696, %v695
      %v709 = vunpack.c.l.b16 %v673
      %v710 = vunpack.c.l.b16 %v674
      %v711 = vunpack.c.l.b16 %v675
      %v712 = vunpack.c.l.b16 %v676
      %v713 = vunpack.c.l.b16 %v677
      %v714 = vunpack.c.l.b16 %v678
      %v715 = vunpack.c.l.b16 %v679
      %v716 = vunpack.c.l.b16 %v680
      %v717 = vpack.c.b16 %v710, %v709
      %v718 = vpack.c.b16 %v712, %v711
      %v719 = vpack.c.b16 %v714, %v713
      %v720 = vpack.c.b16 %v716, %v715
      %v726 = vsel %vm383, %v697, 0
      %v729 = vsel %vm383, %v698, 0
      %v732 = vsel %vm383, %v699, 0
      %v735 = vsel %vm383, %v700, 0
      %737 = vmatpush.bf16.msra.mxu0 0
      %738 = vmatpush.bf16.msra.mxu0 0
      %739 = vmatpush.bf16.msra.mxu0 0
      %740 = vmatpush.bf16.msra.mxu0 0
      %741 = vmatpush.bf16.msra.mxu0 %v720
      %742 = vmatpush.bf16.msra.mxu0 %v719
      %743 = vmatpush.bf16.msra.mxu0 %v718
      %744 = vmatpush.bf16.msra.mxu0 %v717
      %745 = vmatmul.bf16.gmra.mxu0 %v726
      %v746 = vpop.f32.mrf.mxu0
      %v747 = vadd.f32 0.0, %v746
      %v748 = vpop.f32.mrf.mxu0
      %v749 = vadd.f32 0.0, %v748
      %750 = vmatmul.bf16.gmra.mxu0 %v729
      %v751 = vpop.f32.mrf.mxu0
      %v752 = vadd.f32 0.0, %v751
      %v753 = vpop.f32.mrf.mxu0
      %v754 = vadd.f32 0.0, %v753
      %755 = vmatmul.bf16.gmra.mxu0 %v732
      %v756 = vpop.f32.mrf.mxu0
      %v757 = vadd.f32 0.0, %v756
      %v758 = vpop.f32.mrf.mxu0
      %v759 = vadd.f32 0.0, %v758
      %760 = vmatmul.bf16.gmra.mxu0 %v735
      %v761 = vpop.f32.mrf.mxu0
      %v762 = vadd.f32 0.0, %v761
      %v763 = vpop.f32.mrf.mxu0
      %v764 = vadd.f32 0.0, %v763
      %765 = vdwg.mxu0
      %v766 = vadd.f32 %v655, %v747
      %v767 = vadd.f32 %v656, %v749
      %v768 = vadd.f32 %v657, %v752
      %v769 = vadd.f32 %v658, %v754
      %v770 = vadd.f32 %v659, %v757
      %v771 = vadd.f32 %v660, %v759
      %v772 = vadd.f32 %v661, %v762
      %v773 = vadd.f32 %v662, %v764
      %v774 = vld [vmem:[%s663] sm:$0xf]
      %v775 = vld [vmem:[%s663 + $0x4] sm:$0x1]
      %v776 = vld [vmem:[%s663 + $0x8] sm:$0xf]
      %v777 = vld [vmem:[%s663 + $0xc] sm:$0x1]
      %v778 = vld [vmem:[%s663 + $0x10] sm:$0xf]
      %v779 = vld [vmem:[%s663 + $0x14] sm:$0x1]
      %v780 = vld [vmem:[%s663 + $0x18] sm:$0xf]
      %v781 = vld [vmem:[%s663 + $0x1c] sm:$0x1]
      %v782 = vld [vmem:[%s663 + $0x20] sm:$0xf]
      %v783 = vld [vmem:[%s663 + $0x24] sm:$0x1]
      %v784 = vld [vmem:[%s663 + $0x28] sm:$0xf]
      %v785 = vld [vmem:[%s663 + $0x2c] sm:$0x1]
      %v786 = vld [vmem:[%s663 + $0x30] sm:$0xf]
      %v787 = vld [vmem:[%s663 + $0x34] sm:$0x1]
      %v788 = vld [vmem:[%s663 + $0x38] sm:$0xf]
      %v789 = vld [vmem:[%s663 + $0x3c] sm:$0x1]
      %v791 = vshrl.u32 %v774, 16
      %v793 = vrot.slane %v791, 4
      %v794 = vshll.u32 %v774, 16
      %v796 = vrot.slane %v794, 5
      %v797 = vor.u32 %v793, %v796
      %v798 = vrot.slane %v797, 4
      %v800 = vshll.u32 %v775, 16
      %v802 = vrot.slane %v800, 5
      %v803 = vsel %vm225, %v798, %v802
      %v805 = vshrl.u32 %v776, 16
      %v807 = vrot.slane %v805, 4
      %v808 = vshll.u32 %v776, 16
      %v810 = vrot.slane %v808, 5
      %v811 = vor.u32 %v807, %v810
      %v812 = vrot.slane %v811, 4
      %v814 = vshll.u32 %v777, 16
      %v816 = vrot.slane %v814, 5
      %v817 = vsel %vm225, %v812, %v816
      %v819 = vshrl.u32 %v778, 16
      %v821 = vrot.slane %v819, 4
      %v822 = vshll.u32 %v778, 16
      %v824 = vrot.slane %v822, 5
      %v825 = vor.u32 %v821, %v824
      %v826 = vrot.slane %v825, 4
      %v828 = vshll.u32 %v779, 16
      %v830 = vrot.slane %v828, 5
      %v831 = vsel %vm225, %v826, %v830
      %v833 = vshrl.u32 %v780, 16
      %v835 = vrot.slane %v833, 4
      %v836 = vshll.u32 %v780, 16
      %v838 = vrot.slane %v836, 5
      %v839 = vor.u32 %v835, %v838
      %v840 = vrot.slane %v839, 4
      %v842 = vshll.u32 %v781, 16
      %v844 = vrot.slane %v842, 5
      %v845 = vsel %vm225, %v840, %v844
      %v847 = vshrl.u32 %v782, 16
      %v849 = vrot.slane %v847, 4
      %v850 = vshll.u32 %v782, 16
      %v852 = vrot.slane %v850, 5
      %v853 = vor.u32 %v849, %v852
      %v854 = vrot.slane %v853, 4
      %v856 = vshll.u32 %v783, 16
      %v858 = vrot.slane %v856, 5
      %v859 = vsel %vm225, %v854, %v858
      %v861 = vshrl.u32 %v784, 16
      %v863 = vrot.slane %v861, 4
      %v864 = vshll.u32 %v784, 16
      %v866 = vrot.slane %v864, 5
      %v867 = vor.u32 %v863, %v866
      %v868 = vrot.slane %v867, 4
      %v870 = vshll.u32 %v785, 16
      %v872 = vrot.slane %v870, 5
      %v873 = vsel %vm225, %v868, %v872
      %v875 = vshrl.u32 %v786, 16
      %v877 = vrot.slane %v875, 4
      %v878 = vshll.u32 %v786, 16
      %v880 = vrot.slane %v878, 5
      %v881 = vor.u32 %v877, %v880
      %v882 = vrot.slane %v881, 4
      %v884 = vshll.u32 %v787, 16
      %v886 = vrot.slane %v884, 5
      %v887 = vsel %vm225, %v882, %v886
      %v889 = vshrl.u32 %v788, 16
      %v891 = vrot.slane %v889, 4
      %v892 = vshll.u32 %v788, 16
      %v894 = vrot.slane %v892, 5
      %v895 = vor.u32 %v891, %v894
      %v896 = vrot.slane %v895, 4
      %v898 = vshll.u32 %v789, 16
      %v900 = vrot.slane %v898, 5
      %v901 = vsel %vm225, %v896, %v900
      %s902 = scalar_lea.vmem %s1, 128
      %v903 = vld [vmem:[%s902] sm:$0xf]
      %v904 = vld [vmem:[%s902 + $0x4] sm:$0xf]
      %v905 = vld [vmem:[%s902 + $0x8] sm:$0xf]
      %v906 = vld [vmem:[%s902 + $0xc] sm:$0xf]
      %v907 = vld [vmem:[%s902 + $0x10] sm:$0xf]
      %v908 = vld [vmem:[%s902 + $0x14] sm:$0xf]
      %v909 = vld [vmem:[%s902 + $0x18] sm:$0xf]
      %v910 = vld [vmem:[%s902 + $0x1c] sm:$0xf]
      %v911 = vunpack.c.l.b16 %v803
      %v912 = vunpack.c.l.b16 %v817
      %v913 = vunpack.c.l.b16 %v831
      %v914 = vunpack.c.l.b16 %v845
      %v915 = vunpack.c.l.b16 %v859
      %v916 = vunpack.c.l.b16 %v873
      %v917 = vunpack.c.l.b16 %v887
      %v918 = vunpack.c.l.b16 %v901
      %v919 = vpack.c.b16 %v912, %v911
      %v920 = vpack.c.b16 %v914, %v913
      %v921 = vpack.c.b16 %v916, %v915
      %v922 = vpack.c.b16 %v918, %v917
      %v931 = vunpack.c.l.b16 %v903
      %v932 = vunpack.c.l.b16 %v904
      %v933 = vunpack.c.l.b16 %v905
      %v934 = vunpack.c.l.b16 %v906
      %v935 = vunpack.c.l.b16 %v907
      %v936 = vunpack.c.l.b16 %v908
      %v937 = vunpack.c.l.b16 %v909
      %v938 = vunpack.c.l.b16 %v910
      %v939 = vpack.c.b16 %v932, %v931
      %v940 = vpack.c.b16 %v934, %v933
      %v941 = vpack.c.b16 %v936, %v935
      %v942 = vpack.c.b16 %v938, %v937
      %v948 = vsel %vm383, %v919, 0
      %v951 = vsel %vm383, %v920, 0
      %v954 = vsel %vm383, %v921, 0
      %v957 = vsel %vm383, %v922, 0
      %959 = vmatpush.bf16.msra.mxu0 0
      %960 = vmatpush.bf16.msra.mxu0 0
      %961 = vmatpush.bf16.msra.mxu0 0
      %962 = vmatpush.bf16.msra.mxu0 0
      %963 = vmatpush.bf16.msra.mxu0 %v942
      %964 = vmatpush.bf16.msra.mxu0 %v941
      %965 = vmatpush.bf16.msra.mxu0 %v940
      %966 = vmatpush.bf16.msra.mxu0 %v939
      %967 = vmatmul.bf16.gmra.mxu0 %v948
      %v968 = vpop.f32.mrf.mxu0
      %v969 = vadd.f32 0.0, %v968
      %v970 = vpop.f32.mrf.mxu0
      %v971 = vadd.f32 0.0, %v970
      %972 = vmatmul.bf16.gmra.mxu0 %v951
      %v973 = vpop.f32.mrf.mxu0
      %v974 = vadd.f32 0.0, %v973
      %v975 = vpop.f32.mrf.mxu0
      %v976 = vadd.f32 0.0, %v975
      %977 = vmatmul.bf16.gmra.mxu0 %v954
      %v978 = vpop.f32.mrf.mxu0
      %v979 = vadd.f32 0.0, %v978
      %v980 = vpop.f32.mrf.mxu0
      %v981 = vadd.f32 0.0, %v980
      %982 = vmatmul.bf16.gmra.mxu0 %v957
      %v983 = vpop.f32.mrf.mxu0
      %v984 = vadd.f32 0.0, %v983
      %v985 = vpop.f32.mrf.mxu0
      %v986 = vadd.f32 0.0, %v985
      %987 = vdwg.mxu0
      %v988 = vadd.f32 %v766, %v969
      %v989 = vadd.f32 %v767, %v971
      %v990 = vadd.f32 %v768, %v974
      %v991 = vadd.f32 %v769, %v976
      %v992 = vadd.f32 %v770, %v979
      %v993 = vadd.f32 %v771, %v981
      %v994 = vadd.f32 %v772, %v984
      %v995 = vadd.f32 %v773, %v986
      %v996 = vld [vmem:[%s663] sm:$0xe]
      %v997 = vld [vmem:[%s663 + $0x8] sm:$0xe]
      %v998 = vld [vmem:[%s663 + $0x10] sm:$0xe]
      %v999 = vld [vmem:[%s663 + $0x18] sm:$0xe]
      %v1000 = vld [vmem:[%s663 + $0x20] sm:$0xe]
      %v1001 = vld [vmem:[%s663 + $0x28] sm:$0xe]
      %v1002 = vld [vmem:[%s663 + $0x30] sm:$0xe]
      %v1003 = vld [vmem:[%s663 + $0x38] sm:$0xe]
      %v1020 = vrot.slane %v996, 5
      %v1021 = vrot.slane %v1020, 4
      %v1022 = vrot.slane %v775, 5
      %v1023 = vsel %vm536, %v1021, %v1022
      %v1024 = vrot.slane %v997, 5
      %v1025 = vrot.slane %v1024, 4
      %v1026 = vrot.slane %v777, 5
      %v1027 = vsel %vm536, %v1025, %v1026
      %v1028 = vrot.slane %v998, 5
      %v1029 = vrot.slane %v1028, 4
      %v1030 = vrot.slane %v779, 5
      %v1031 = vsel %vm536, %v1029, %v1030
      %v1032 = vrot.slane %v999, 5
      %v1033 = vrot.slane %v1032, 4
      %v1034 = vrot.slane %v781, 5
      %v1035 = vsel %vm536, %v1033, %v1034
      %v1036 = vrot.slane %v1000, 5
      %v1037 = vrot.slane %v1036, 4
      %v1038 = vrot.slane %v783, 5
      %v1039 = vsel %vm536, %v1037, %v1038
      %v1040 = vrot.slane %v1001, 5
      %v1041 = vrot.slane %v1040, 4
      %v1042 = vrot.slane %v785, 5
      %v1043 = vsel %vm536, %v1041, %v1042
      %v1044 = vrot.slane %v1002, 5
      %v1045 = vrot.slane %v1044, 4
      %v1046 = vrot.slane %v787, 5
      %v1047 = vsel %vm536, %v1045, %v1046
      %v1048 = vrot.slane %v1003, 5
      %v1049 = vrot.slane %v1048, 4
      %v1050 = vrot.slane %v789, 5
      %v1051 = vsel %vm536, %v1049, %v1050
      %s1052 = scalar_lea.vmem %s1, 160
      %v1053 = vld [vmem:[%s1052] sm:$0xf]
      %v1054 = vld [vmem:[%s1052 + $0x4] sm:$0xf]
      %v1055 = vld [vmem:[%s1052 + $0x8] sm:$0xf]
      %v1056 = vld [vmem:[%s1052 + $0xc] sm:$0xf]
      %v1057 = vld [vmem:[%s1052 + $0x10] sm:$0xf]
      %v1058 = vld [vmem:[%s1052 + $0x14] sm:$0xf]
      %v1059 = vld [vmem:[%s1052 + $0x18] sm:$0xf]
      %v1060 = vld [vmem:[%s1052 + $0x1c] sm:$0xf]
      %v1061 = vunpack.c.l.b16 %v1023
      %v1062 = vunpack.c.l.b16 %v1027
      %v1063 = vunpack.c.l.b16 %v1031
      %v1064 = vunpack.c.l.b16 %v1035
      %v1065 = vunpack.c.l.b16 %v1039
      %v1066 = vunpack.c.l.b16 %v1043
      %v1067 = vunpack.c.l.b16 %v1047
      %v1068 = vunpack.c.l.b16 %v1051
      %v1069 = vpack.c.b16 %v1062, %v1061
      %v1070 = vpack.c.b16 %v1064, %v1063
      %v1071 = vpack.c.b16 %v1066, %v1065
      %v1072 = vpack.c.b16 %v1068, %v1067
      %v1081 = vunpack.c.l.b16 %v1053
      %v1082 = vunpack.c.l.b16 %v1054
      %v1083 = vunpack.c.l.b16 %v1055
      %v1084 = vunpack.c.l.b16 %v1056
      %v1085 = vunpack.c.l.b16 %v1057
      %v1086 = vunpack.c.l.b16 %v1058
      %v1087 = vunpack.c.l.b16 %v1059
      %v1088 = vunpack.c.l.b16 %v1060
      %v1089 = vpack.c.b16 %v1082, %v1081
      %v1090 = vpack.c.b16 %v1084, %v1083
      %v1091 = vpack.c.b16 %v1086, %v1085
      %v1092 = vpack.c.b16 %v1088, %v1087
      %v1098 = vsel %vm383, %v1069, 0
      %v1101 = vsel %vm383, %v1070, 0
      %v1104 = vsel %vm383, %v1071, 0
      %v1107 = vsel %vm383, %v1072, 0
      %1109 = vmatpush.bf16.msra.mxu0 0
      %1110 = vmatpush.bf16.msra.mxu0 0
      %1111 = vmatpush.bf16.msra.mxu0 0
      %1112 = vmatpush.bf16.msra.mxu0 0
      %1113 = vmatpush.bf16.msra.mxu0 %v1092
      %1114 = vmatpush.bf16.msra.mxu0 %v1091
      %1115 = vmatpush.bf16.msra.mxu0 %v1090
      %1116 = vmatpush.bf16.msra.mxu0 %v1089
      %1117 = vmatmul.bf16.gmra.mxu0 %v1098
      %v1118 = vpop.f32.mrf.mxu0
      %v1119 = vadd.f32 0.0, %v1118
      %v1120 = vpop.f32.mrf.mxu0
      %v1121 = vadd.f32 0.0, %v1120
      %1122 = vmatmul.bf16.gmra.mxu0 %v1101
      %v1123 = vpop.f32.mrf.mxu0
      %v1124 = vadd.f32 0.0, %v1123
      %v1125 = vpop.f32.mrf.mxu0
      %v1126 = vadd.f32 0.0, %v1125
      %1127 = vmatmul.bf16.gmra.mxu0 %v1104
      %v1128 = vpop.f32.mrf.mxu0
      %v1129 = vadd.f32 0.0, %v1128
      %v1130 = vpop.f32.mrf.mxu0
      %v1131 = vadd.f32 0.0, %v1130
      %1132 = vmatmul.bf16.gmra.mxu0 %v1107
      %v1133 = vpop.f32.mrf.mxu0
      %v1134 = vadd.f32 0.0, %v1133
      %v1135 = vpop.f32.mrf.mxu0
      %v1136 = vadd.f32 0.0, %v1135
      %1137 = vdwg.mxu0
      %v1138 = vadd.f32 %v988, %v1119
      %v1139 = vadd.f32 %v989, %v1121
      %v1140 = vadd.f32 %v990, %v1124
      %v1141 = vadd.f32 %v991, %v1126
      %v1142 = vadd.f32 %v992, %v1129
      %v1143 = vadd.f32 %v993, %v1131
      %v1144 = vadd.f32 %v994, %v1134
      %v1145 = vadd.f32 %v995, %v1136
      %s1146 = scalar_lea.vmem %s192, 16
      %v1147 = vld [vmem:[%s1146] sm:$0xf]
      %v1148 = vld [vmem:[%s1146 + $0x8] sm:$0xf]
      %v1149 = vld [vmem:[%s1146 + $0x10] sm:$0xf]
      %v1150 = vld [vmem:[%s1146 + $0x18] sm:$0xf]
      %v1151 = vld [vmem:[%s1146 + $0x20] sm:$0xf]
      %v1152 = vld [vmem:[%s1146 + $0x28] sm:$0xf]
      %v1153 = vld [vmem:[%s1146 + $0x30] sm:$0xf]
      %v1154 = vld [vmem:[%s1146 + $0x38] sm:$0xf]
      %s1155 = scalar_lea.vmem %s1, 192
      %v1156 = vld [vmem:[%s1155] sm:$0xf]
      %v1157 = vld [vmem:[%s1155 + $0x4] sm:$0xf]
      %v1158 = vld [vmem:[%s1155 + $0x8] sm:$0xf]
      %v1159 = vld [vmem:[%s1155 + $0xc] sm:$0xf]
      %v1160 = vld [vmem:[%s1155 + $0x10] sm:$0xf]
      %v1161 = vld [vmem:[%s1155 + $0x14] sm:$0xf]
      %v1162 = vld [vmem:[%s1155 + $0x18] sm:$0xf]
      %v1163 = vld [vmem:[%s1155 + $0x1c] sm:$0xf]
      %v1172 = vunpack.c.l.b16 %v1147
      %v1173 = vunpack.c.l.b16 %v1148
      %v1174 = vunpack.c.l.b16 %v1149
      %v1175 = vunpack.c.l.b16 %v1150
      %v1176 = vunpack.c.l.b16 %v1151
      %v1177 = vunpack.c.l.b16 %v1152
      %v1178 = vunpack.c.l.b16 %v1153
      %v1179 = vunpack.c.l.b16 %v1154
      %v1180 = vpack.c.b16 %v1173, %v1172
      %v1181 = vpack.c.b16 %v1175, %v1174
      %v1182 = vpack.c.b16 %v1177, %v1176
      %v1183 = vpack.c.b16 %v1179, %v1178
      %v1192 = vunpack.c.l.b16 %v1156
      %v1193 = vunpack.c.l.b16 %v1157
      %v1194 = vunpack.c.l.b16 %v1158
      %v1195 = vunpack.c.l.b16 %v1159
      %v1196 = vunpack.c.l.b16 %v1160
      %v1197 = vunpack.c.l.b16 %v1161
      %v1198 = vunpack.c.l.b16 %v1162
      %v1199 = vunpack.c.l.b16 %v1163
      %v1200 = vpack.c.b16 %v1193, %v1192
      %v1201 = vpack.c.b16 %v1195, %v1194
      %v1202 = vpack.c.b16 %v1197, %v1196
      %v1203 = vpack.c.b16 %v1199, %v1198
      %v1209 = vsel %vm383, %v1180, 0
      %v1212 = vsel %vm383, %v1181, 0
      %v1215 = vsel %vm383, %v1182, 0
      %v1218 = vsel %vm383, %v1183, 0
      %1220 = vmatpush.bf16.msra.mxu0 0
      %1221 = vmatpush.bf16.msra.mxu0 0
      %1222 = vmatpush.bf16.msra.mxu0 0
      %1223 = vmatpush.bf16.msra.mxu0 0
      %1224 = vmatpush.bf16.msra.mxu0 %v1203
      %1225 = vmatpush.bf16.msra.mxu0 %v1202
      %1226 = vmatpush.bf16.msra.mxu0 %v1201
      %1227 = vmatpush.bf16.msra.mxu0 %v1200
      %1228 = vmatmul.bf16.gmra.mxu0 %v1209
      %v1229 = vpop.f32.mrf.mxu0
      %v1230 = vadd.f32 0.0, %v1229
      %v1231 = vpop.f32.mrf.mxu0
      %v1232 = vadd.f32 0.0, %v1231
      %1233 = vmatmul.bf16.gmra.mxu0 %v1212
      %v1234 = vpop.f32.mrf.mxu0
      %v1235 = vadd.f32 0.0, %v1234
      %v1236 = vpop.f32.mrf.mxu0
      %v1237 = vadd.f32 0.0, %v1236
      %1238 = vmatmul.bf16.gmra.mxu0 %v1215
      %v1239 = vpop.f32.mrf.mxu0
      %v1240 = vadd.f32 0.0, %v1239
      %v1241 = vpop.f32.mrf.mxu0
      %v1242 = vadd.f32 0.0, %v1241
      %1243 = vmatmul.bf16.gmra.mxu0 %v1218
      %v1244 = vpop.f32.mrf.mxu0
      %v1245 = vadd.f32 0.0, %v1244
      %v1246 = vpop.f32.mrf.mxu0
      %v1247 = vadd.f32 0.0, %v1246
      %1248 = vdwg.mxu0
      %v1249 = vadd.f32 %v1138, %v1230
      %v1250 = vadd.f32 %v1139, %v1232
      %v1251 = vadd.f32 %v1140, %v1235
      %v1252 = vadd.f32 %v1141, %v1237
      %v1253 = vadd.f32 %v1142, %v1240
      %v1254 = vadd.f32 %v1143, %v1242
      %v1255 = vadd.f32 %v1144, %v1245
      %v1256 = vadd.f32 %v1145, %v1247
      %v1257 = vld [vmem:[%s1146] sm:$0xf]
      %v1258 = vld [vmem:[%s1146 + $0x4] sm:$0x1]
      %v1259 = vld [vmem:[%s1146 + $0x8] sm:$0xf]
      %v1260 = vld [vmem:[%s1146 + $0xc] sm:$0x1]
      %v1261 = vld [vmem:[%s1146 + $0x10] sm:$0xf]
      %v1262 = vld [vmem:[%s1146 + $0x14] sm:$0x1]
      %v1263 = vld [vmem:[%s1146 + $0x18] sm:$0xf]
      %v1264 = vld [vmem:[%s1146 + $0x1c] sm:$0x1]
      %v1265 = vld [vmem:[%s1146 + $0x20] sm:$0xf]
      %v1266 = vld [vmem:[%s1146 + $0x24] sm:$0x1]
      %v1267 = vld [vmem:[%s1146 + $0x28] sm:$0xf]
      %v1268 = vld [vmem:[%s1146 + $0x2c] sm:$0x1]
      %v1269 = vld [vmem:[%s1146 + $0x30] sm:$0xf]
      %v1270 = vld [vmem:[%s1146 + $0x34] sm:$0x1]
      %v1271 = vld [vmem:[%s1146 + $0x38] sm:$0xf]
      %v1272 = vld [vmem:[%s1146 + $0x3c] sm:$0x1]
      %v1274 = vshrl.u32 %v1257, 16
      %v1276 = vrot.slane %v1274, 4
      %v1277 = vshll.u32 %v1257, 16
      %v1279 = vrot.slane %v1277, 5
      %v1280 = vor.u32 %v1276, %v1279
      %v1281 = vrot.slane %v1280, 4
      %v1283 = vshll.u32 %v1258, 16
      %v1285 = vrot.slane %v1283, 5
      %v1286 = vsel %vm225, %v1281, %v1285
      %v1288 = vshrl.u32 %v1259, 16
      %v1290 = vrot.slane %v1288, 4
      %v1291 = vshll.u32 %v1259, 16
      %v1293 = vrot.slane %v1291, 5
      %v1294 = vor.u32 %v1290, %v1293
      %v1295 = vrot.slane %v1294, 4
      %v1297 = vshll.u32 %v1260, 16
      %v1299 = vrot.slane %v1297, 5
      %v1300 = vsel %vm225, %v1295, %v1299
      %v1302 = vshrl.u32 %v1261, 16
      %v1304 = vrot.slane %v1302, 4
      %v1305 = vshll.u32 %v1261, 16
      %v1307 = vrot.slane %v1305, 5
      %v1308 = vor.u32 %v1304, %v1307
      %v1309 = vrot.slane %v1308, 4
      %v1311 = vshll.u32 %v1262, 16
      %v1313 = vrot.slane %v1311, 5
      %v1314 = vsel %vm225, %v1309, %v1313
      %v1316 = vshrl.u32 %v1263, 16
      %v1318 = vrot.slane %v1316, 4
      %v1319 = vshll.u32 %v1263, 16
      %v1321 = vrot.slane %v1319, 5
      %v1322 = vor.u32 %v1318, %v1321
      %v1323 = vrot.slane %v1322, 4
      %v1325 = vshll.u32 %v1264, 16
      %v1327 = vrot.slane %v1325, 5
      %v1328 = vsel %vm225, %v1323, %v1327
      %v1330 = vshrl.u32 %v1265, 16
      %v1332 = vrot.slane %v1330, 4
      %v1333 = vshll.u32 %v1265, 16
      %v1335 = vrot.slane %v1333, 5
      %v1336 = vor.u32 %v1332, %v1335
      %v1337 = vrot.slane %v1336, 4
      %v1339 = vshll.u32 %v1266, 16
      %v1341 = vrot.slane %v1339, 5
      %v1342 = vsel %vm225, %v1337, %v1341
      %v1344 = vshrl.u32 %v1267, 16
      %v1346 = vrot.slane %v1344, 4
      %v1347 = vshll.u32 %v1267, 16
      %v1349 = vrot.slane %v1347, 5
      %v1350 = vor.u32 %v1346, %v1349
      %v1351 = vrot.slane %v1350, 4
      %v1353 = vshll.u32 %v1268, 16
      %v1355 = vrot.slane %v1353, 5
      %v1356 = vsel %vm225, %v1351, %v1355
      %v1358 = vshrl.u32 %v1269, 16
      %v1360 = vrot.slane %v1358, 4
      %v1361 = vshll.u32 %v1269, 16
      %v1363 = vrot.slane %v1361, 5
      %v1364 = vor.u32 %v1360, %v1363
      %v1365 = vrot.slane %v1364, 4
      %v1367 = vshll.u32 %v1270, 16
      %v1369 = vrot.slane %v1367, 5
      %v1370 = vsel %vm225, %v1365, %v1369
      %v1372 = vshrl.u32 %v1271, 16
      %v1374 = vrot.slane %v1372, 4
      %v1375 = vshll.u32 %v1271, 16
      %v1377 = vrot.slane %v1375, 5
      %v1378 = vor.u32 %v1374, %v1377
      %v1379 = vrot.slane %v1378, 4
      %v1381 = vshll.u32 %v1272, 16
      %v1383 = vrot.slane %v1381, 5
      %v1384 = vsel %vm225, %v1379, %v1383
      %s1385 = scalar_lea.vmem %s1, 224
      %v1386 = vld [vmem:[%s1385] sm:$0xf]
      %v1387 = vld [vmem:[%s1385 + $0x4] sm:$0xf]
      %v1388 = vld [vmem:[%s1385 + $0x8] sm:$0xf]
      %v1389 = vld [vmem:[%s1385 + $0xc] sm:$0xf]
      %v1390 = vld [vmem:[%s1385 + $0x10] sm:$0xf]
      %v1391 = vld [vmem:[%s1385 + $0x14] sm:$0xf]
      %v1392 = vld [vmem:[%s1385 + $0x18] sm:$0xf]
      %v1393 = vld [vmem:[%s1385 + $0x1c] sm:$0xf]
      %v1394 = vunpack.c.l.b16 %v1286
      %v1395 = vunpack.c.l.b16 %v1300
      %v1396 = vunpack.c.l.b16 %v1314
      %v1397 = vunpack.c.l.b16 %v1328
      %v1398 = vunpack.c.l.b16 %v1342
      %v1399 = vunpack.c.l.b16 %v1356
      %v1400 = vunpack.c.l.b16 %v1370
      %v1401 = vunpack.c.l.b16 %v1384
      %v1402 = vpack.c.b16 %v1395, %v1394
      %v1403 = vpack.c.b16 %v1397, %v1396
      %v1404 = vpack.c.b16 %v1399, %v1398
      %v1405 = vpack.c.b16 %v1401, %v1400
      %v1414 = vunpack.c.l.b16 %v1386
      %v1415 = vunpack.c.l.b16 %v1387
      %v1416 = vunpack.c.l.b16 %v1388
      %v1417 = vunpack.c.l.b16 %v1389
      %v1418 = vunpack.c.l.b16 %v1390
      %v1419 = vunpack.c.l.b16 %v1391
      %v1420 = vunpack.c.l.b16 %v1392
      %v1421 = vunpack.c.l.b16 %v1393
      %v1422 = vpack.c.b16 %v1415, %v1414
      %v1423 = vpack.c.b16 %v1417, %v1416
      %v1424 = vpack.c.b16 %v1419, %v1418
      %v1425 = vpack.c.b16 %v1421, %v1420
      %v1431 = vsel %vm383, %v1402, 0
      %v1434 = vsel %vm383, %v1403, 0
      %v1437 = vsel %vm383, %v1404, 0
      %v1440 = vsel %vm383, %v1405, 0
      %1442 = vmatpush.bf16.msra.mxu0 0
      %1443 = vmatpush.bf16.msra.mxu0 0
      %1444 = vmatpush.bf16.msra.mxu0 0
      %1445 = vmatpush.bf16.msra.mxu0 0
      %1446 = vmatpush.bf16.msra.mxu0 %v1425
      %1447 = vmatpush.bf16.msra.mxu0 %v1424
      %1448 = vmatpush.bf16.msra.mxu0 %v1423
      %1449 = vmatpush.bf16.msra.mxu0 %v1422
      %1450 = vmatmul.bf16.gmra.mxu0 %v1431
      %v1451 = vpop.f32.mrf.mxu0
      %v1452 = vadd.f32 0.0, %v1451
      %v1453 = vpop.f32.mrf.mxu0
      %v1454 = vadd.f32 0.0, %v1453
      %1455 = vmatmul.bf16.gmra.mxu0 %v1434
      %v1456 = vpop.f32.mrf.mxu0
      %v1457 = vadd.f32 0.0, %v1456
      %v1458 = vpop.f32.mrf.mxu0
      %v1459 = vadd.f32 0.0, %v1458
      %1460 = vmatmul.bf16.gmra.mxu0 %v1437
      %v1461 = vpop.f32.mrf.mxu0
      %v1462 = vadd.f32 0.0, %v1461
      %v1463 = vpop.f32.mrf.mxu0
      %v1464 = vadd.f32 0.0, %v1463
      %1465 = vmatmul.bf16.gmra.mxu0 %v1440
      %v1466 = vpop.f32.mrf.mxu0
      %v1467 = vadd.f32 0.0, %v1466
      %v1468 = vpop.f32.mrf.mxu0
      %v1469 = vadd.f32 0.0, %v1468
      %1470 = vdwg.mxu0
      %v1471 = vadd.f32 %v1249, %v1452
      %v1472 = vadd.f32 %v1250, %v1454
      %v1473 = vadd.f32 %v1251, %v1457
      %v1474 = vadd.f32 %v1252, %v1459
      %v1475 = vadd.f32 %v1253, %v1462
      %v1476 = vadd.f32 %v1254, %v1464
      %v1477 = vadd.f32 %v1255, %v1467
      %v1478 = vadd.f32 %v1256, %v1469
      %v1479 = vld [vmem:[%s1146] sm:$0xe]
      %v1480 = vld [vmem:[%s1146 + $0x8] sm:$0xe]
      %v1481 = vld [vmem:[%s1146 + $0x10] sm:$0xe]
      %v1482 = vld [vmem:[%s1146 + $0x18] sm:$0xe]
      %v1483 = vld [vmem:[%s1146 + $0x20] sm:$0xe]
      %v1484 = vld [vmem:[%s1146 + $0x28] sm:$0xe]
      %v1485 = vld [vmem:[%s1146 + $0x30] sm:$0xe]
      %v1486 = vld [vmem:[%s1146 + $0x38] sm:$0xe]
      %v1503 = vrot.slane %v1479, 5
      %v1504 = vrot.slane %v1503, 4
      %v1505 = vrot.slane %v1258, 5
      %v1506 = vsel %vm536, %v1504, %v1505
      %v1507 = vrot.slane %v1480, 5
      %v1508 = vrot.slane %v1507, 4
      %v1509 = vrot.slane %v1260, 5
      %v1510 = vsel %vm536, %v1508, %v1509
      %v1511 = vrot.slane %v1481, 5
      %v1512 = vrot.slane %v1511, 4
      %v1513 = vrot.slane %v1262, 5
      %v1514 = vsel %vm536, %v1512, %v1513
      %v1515 = vrot.slane %v1482, 5
      %v1516 = vrot.slane %v1515, 4
      %v1517 = vrot.slane %v1264, 5
      %v1518 = vsel %vm536, %v1516, %v1517
      %v1519 = vrot.slane %v1483, 5
      %v1520 = vrot.slane %v1519, 4
      %v1521 = vrot.slane %v1266, 5
      %v1522 = vsel %vm536, %v1520, %v1521
      %v1523 = vrot.slane %v1484, 5
      %v1524 = vrot.slane %v1523, 4
      %v1525 = vrot.slane %v1268, 5
      %v1526 = vsel %vm536, %v1524, %v1525
      %v1527 = vrot.slane %v1485, 5
      %v1528 = vrot.slane %v1527, 4
      %v1529 = vrot.slane %v1270, 5
      %v1530 = vsel %vm536, %v1528, %v1529
      %v1531 = vrot.slane %v1486, 5
      %v1532 = vrot.slane %v1531, 4
      %v1533 = vrot.slane %v1272, 5
      %v1534 = vsel %vm536, %v1532, %v1533
      %s1535 = scalar_lea.vmem %s1, 256
      %v1536 = vld [vmem:[%s1535] sm:$0xf]
      %v1537 = vld [vmem:[%s1535 + $0x4] sm:$0xf]
      %v1538 = vld [vmem:[%s1535 + $0x8] sm:$0xf]
      %v1539 = vld [vmem:[%s1535 + $0xc] sm:$0xf]
      %v1540 = vld [vmem:[%s1535 + $0x10] sm:$0xf]
      %v1541 = vld [vmem:[%s1535 + $0x14] sm:$0xf]
      %v1542 = vld [vmem:[%s1535 + $0x18] sm:$0xf]
      %v1543 = vld [vmem:[%s1535 + $0x1c] sm:$0xf]
      %v1544 = vunpack.c.l.b16 %v1506
      %v1545 = vunpack.c.l.b16 %v1510
      %v1546 = vunpack.c.l.b16 %v1514
      %v1547 = vunpack.c.l.b16 %v1518
      %v1548 = vunpack.c.l.b16 %v1522
      %v1549 = vunpack.c.l.b16 %v1526
      %v1550 = vunpack.c.l.b16 %v1530
      %v1551 = vunpack.c.l.b16 %v1534
      %v1552 = vpack.c.b16 %v1545, %v1544
      %v1553 = vpack.c.b16 %v1547, %v1546
      %v1554 = vpack.c.b16 %v1549, %v1548
      %v1555 = vpack.c.b16 %v1551, %v1550
      %v1564 = vunpack.c.l.b16 %v1536
      %v1565 = vunpack.c.l.b16 %v1537
      %v1566 = vunpack.c.l.b16 %v1538
      %v1567 = vunpack.c.l.b16 %v1539
      %v1568 = vunpack.c.l.b16 %v1540
      %v1569 = vunpack.c.l.b16 %v1541
      %v1570 = vunpack.c.l.b16 %v1542
      %v1571 = vunpack.c.l.b16 %v1543
      %v1572 = vpack.c.b16 %v1565, %v1564
      %v1573 = vpack.c.b16 %v1567, %v1566
      %v1574 = vpack.c.b16 %v1569, %v1568
      %v1575 = vpack.c.b16 %v1571, %v1570
      %v1581 = vsel %vm383, %v1552, 0
      %v1584 = vsel %vm383, %v1553, 0
      %v1587 = vsel %vm383, %v1554, 0
      %v1590 = vsel %vm383, %v1555, 0
      %1592 = vmatpush.bf16.msra.mxu0 0
      %1593 = vmatpush.bf16.msra.mxu0 0
      %1594 = vmatpush.bf16.msra.mxu0 0
      %1595 = vmatpush.bf16.msra.mxu0 0
      %1596 = vmatpush.bf16.msra.mxu0 %v1575
      %1597 = vmatpush.bf16.msra.mxu0 %v1574
      %1598 = vmatpush.bf16.msra.mxu0 %v1573
      %1599 = vmatpush.bf16.msra.mxu0 %v1572
      %1600 = vmatmul.bf16.gmra.mxu0 %v1581
      %v1601 = vpop.f32.mrf.mxu0
      %v1602 = vadd.f32 0.0, %v1601
      %v1603 = vpop.f32.mrf.mxu0
      %v1604 = vadd.f32 0.0, %v1603
      %1605 = vmatmul.bf16.gmra.mxu0 %v1584
      %v1606 = vpop.f32.mrf.mxu0
      %v1607 = vadd.f32 0.0, %v1606
      %v1608 = vpop.f32.mrf.mxu0
      %v1609 = vadd.f32 0.0, %v1608
      %1610 = vmatmul.bf16.gmra.mxu0 %v1587
      %v1611 = vpop.f32.mrf.mxu0
      %v1612 = vadd.f32 0.0, %v1611
      %v1613 = vpop.f32.mrf.mxu0
      %v1614 = vadd.f32 0.0, %v1613
      %1615 = vmatmul.bf16.gmra.mxu0 %v1590
      %v1616 = vpop.f32.mrf.mxu0
      %v1617 = vadd.f32 0.0, %v1616
      %v1618 = vpop.f32.mrf.mxu0
      %v1619 = vadd.f32 0.0, %v1618
      %1620 = vdwg.mxu0
      %v1621 = vadd.f32 %v1471, %v1602
      %v1622 = vadd.f32 %v1472, %v1604
      %v1623 = vadd.f32 %v1473, %v1607
      %v1624 = vadd.f32 %v1474, %v1609
      %v1625 = vadd.f32 %v1475, %v1612
      %v1626 = vadd.f32 %v1476, %v1614
      %v1627 = vadd.f32 %v1477, %v1617
      %v1628 = vadd.f32 %v1478, %v1619
      %v1629 = vld [vmem:[%s2] sm:$0x1]
      %v1631 = vperm.slane %v1629, 0
      %v1633 = vmul.f32 %v1621, %v1631
      %v1634 = vmul.f32 %v1622, %v1631
      %v1635 = vmul.f32 %v1623, %v1631
      %v1636 = vmul.f32 %v1624, %v1631
      %v1637 = vmul.f32 %v1625, %v1631
      %v1638 = vmul.f32 %v1626, %v1631
      %v1639 = vmul.f32 %v1627, %v1631
      %v1640 = vmul.f32 %v1628, %v1631
      %v1641 = vld [vmem:[%s3] sm:$0x1]
      %v1643 = vperm.slane %v1641, 0
      %v1645 = vadd.f32 %v1633, %v1643
      %v1646 = vadd.f32 %v1634, %v1643
      %v1647 = vadd.f32 %v1635, %v1643
      %v1648 = vadd.f32 %v1636, %v1643
      %v1649 = vadd.f32 %v1637, %v1643
      %v1650 = vadd.f32 %v1638, %v1643
      %v1651 = vadd.f32 %v1639, %v1643
      %v1652 = vadd.f32 %v1640, %v1643
      %v1653 = vmax.f32 %v1645, 0.0
      %v1654 = vmax.f32 %v1646, 0.0
      %v1655 = vmax.f32 %v1647, 0.0
      %v1656 = vmax.f32 %v1648, 0.0
      %v1657 = vmax.f32 %v1649, 0.0
      %v1658 = vmax.f32 %v1650, 0.0
      %v1659 = vmax.f32 %v1651, 0.0
      %v1660 = vmax.f32 %v1652, 0.0
      %vm1661 = vcmask 785408
      %1662 = vst.msk [vmem:[%s197] sm:$0xff] %vm1661, %v1653
      %1663 = vst.msk [vmem:[%s197 + $0x8] sm:$0xff] %vm1661, %v1654
      %1664 = vst.msk [vmem:[%s197 + $0x10] sm:$0xff] %vm1661, %v1655
      %1665 = vst.msk [vmem:[%s197 + $0x18] sm:$0xff] %vm1661, %v1656
      %1666 = vst.msk [vmem:[%s197 + $0x20] sm:$0xff] %vm1661, %v1657
      %1667 = vst.msk [vmem:[%s197 + $0x28] sm:$0xff] %vm1661, %v1658
      %1668 = vst.msk [vmem:[%s197 + $0x30] sm:$0xff] %vm1661, %v1659
      %1669 = vst.msk [vmem:[%s197 + $0x38] sm:$0xff] %vm1661, %v1660
      %p1670 = scmp.lt.s32.totalorder %s15, 1
      %s1671 = scalar_select %p1670, %s15, 1
      %s1672 = smul.addr %s1671, 8
      %s1673 = smul.addr %s1672, 8
      %s1674 = scalar_lea.vmem %s4, %s1673
      // Predicated region
      $region37: #{inception_a_unit.7} parent=35 // pred_check
        %p1675 = pneg %p122
      $region38: #{inception_a_unit.7} parent=35 // pred_check_branch
        %1677 = sbr.rel (%p1675) target = $region40
      $region39: #{inception_a_unit.7} parent=35 // pred_region
        _
      $region40: #{inception_a_unit.7} parent=35 // pred_fallthru
        _
    $region36: #{inception_a_unit.7} parent=5 // pred_fallthru
      _
    %p1678 = scmp.le.s32.totalorder 2, %s10
    // Predicated region
    $region41: #{inception_a_unit.7} parent=5 // pred_check
      %p1679 = pneg %p1678
    $region42: #{inception_a_unit.7} parent=5 // pred_check_branch
      %1681 = sbr.rel (%p1679) target = $region44
    $region43: #{inception_a_unit.7} parent=5 // pred_region
      %s1682 = ssub.s32 %s10, 2
      // Predicated region
      $region45: #{inception_a_unit.7} parent=43 // pred_check
        %p1683 = pneg %p128
      $region46: #{inception_a_unit.7} parent=43 // pred_check_branch
        %1685 = sbr.rel (%p1683) target = $region48
      $region47: #{inception_a_unit.7} parent=43 // pred_region
        %p1686 = scmp.lt.s32.totalorder %s16, 1
        %s1687 = scalar_select %p1686, %s16, 1
        %s1688 = smul.addr %s1687, 8
        %s1689 = smul.addr %s1688, 8
        %s1690 = scalar_lea.vmem %s4, %s1689
      $region48: #{inception_a_unit.7} parent=43 // pred_fallthru
        _
    $region44: #{inception_a_unit.7} parent=5 // pred_fallthru
      _
  $region6: #{inception_a_unit.7} parent=0 // loop_footer
    %s14 = sadd.s32 1, %s10
  $region7: #{inception_a_unit.7} parent=0 // loop_footer_branch
    %9 = sbr.rel target = $region3
  $region8: #{inception_a_unit.7} parent=0 // loop_exit
    _

// kernel: inception_a_unit.9
$region0: #{inception_a_unit.9}
  #allocation0 [shape = 'u32[]', space=smem, size = 0x4, offset = 0x4, fixed_abs, tag = 'smem constant byte address 0x4 - core index']
  #allocation1 [shape = 'u32[72,128]{1,0:T(1,128)}', space=vmem, size = 0x9000, scoped, tag = 'internal scratch']
  %s0 = inlined_call_operand.vmem [shape: bf16[2,10,10,64], index: 0, kind: input, shape index: {}]
  %s1 = inlined_call_operand.vmem [shape: bf16[9,64,32], index: 1, kind: input, shape index: {}]
  %s2 = inlined_call_operand.vmem [shape: f32[1,32], index: 2, kind: input, shape index: {}]
  %s3 = inlined_call_operand.vmem [shape: f32[1,32], index: 3, kind: input, shape index: {}]
  %s4 = inlined_call_operand.vmem [shape: f32[2,8,8,32], index: 4, kind: output, shape index: {}]
  %s5 = sld [smem:[#allocation0]]
  $region49: #{inception_a_unit.9} parent=0
    _
  %s7 = ssub.s32 1, %s5
  %s8 = scalar_select 0, %s7, %s5
  loop: start=0, step=1, limit=4
  $region2: #{inception_a_unit.9} parent=0 // loop_pre_header
    _
  $region3: #{inception_a_unit.9} parent=0 // loop_header
    %s10 = sphi 0, %s14
    %p11 = scmp.ge.s32.totalorder %s10, 4
    %s20 = sphi 0, %s22
    %s23 = sphi 0, %s20
    %s24 = sphi 0, %s23
    %s40 = sphi 0, %s24
    %s44 = sphi 0, %s44
    %s46 = sphi 0, %s44
    %s47 = sphi 0, %s46
    %s61 = sphi 0, %s47
    %s65 = sphi 0, %s65
    %s67 = sphi 0, %s65
    %s68 = sphi 0, %s67
    %s82 = sphi 0, %s68
    %s86 = sphi 0, %s86
    %s88 = sphi 0, %s86
    %s89 = sphi 0, %s88
    %s103 = sphi 0, %s89
    %s109 = sphi 0, %s111
    %s112 = sphi 0, %s109
    %s113 = sphi 0, %s112
    %s129 = sphi 0, %s113
  $region4: #{inception_a_unit.9} parent=0 // loop_header_branch
    %13 = sbr.rel (%p11) target = $region8
  $region5: #{inception_a_unit.9} parent=0 // loop_body
    %s15 = ssub.s32 %s10, 1
    %s16 = ssub.s32 %s10, 2
    %s17 = sadd.s32 %s10, 1
    %s18 = ssub.s32 %s10, %s17
    %p19 = scmp.eq.s32.totalorder %s18, 0
    %s21 = sadd.s32 %s20, 1
    %s22 = scalar_select %p19, %s20, %s21
    %p25 = pneg %p19
    %p26 = scmp.eq.s32.totalorder %s10, 1
    %p27 = por %p25, %p26
    %p28 = scmp.ne.s32.totalorder %s20, %s23
    %p29 = scmp.eq.s32.totalorder %s10, 0
    %p30 = por %p28, %p29
    %p31 = scmp.ne.s32.totalorder %s20, %s23
    %p32 = scmp.eq.s32.totalorder %s15, 1
    %p33 = por %p31, %p32
    %p34 = scmp.ne.s32.totalorder %s23, %s24
    %p35 = scmp.eq.s32.totalorder %s15, 0
    %p36 = por %p34, %p35
    %p37 = scmp.ne.s32.totalorder %s23, %s24
    %p38 = scmp.eq.s32.totalorder %s16, 1
    %p39 = por %p37, %p38
    %p41 = scmp.ne.s32.totalorder %s24, %s40
    %p42 = scmp.eq.s32.totalorder %s16, 0
    %p43 = por %p41, %p42
    %s45 = sadd.s32 %s44, 1
    %p48 = scmp.eq.s32.totalorder %s10, 1
    %p49 = scmp.ne.s32.totalorder %s44, %s46
    %p50 = scmp.eq.s32.totalorder %s10, 0
    %p51 = por %p49, %p50
    %p52 = scmp.ne.s32.totalorder %s44, %s46
    %p53 = scmp.eq.s32.totalorder %s15, 1
    %p54 = por %p52, %p53
    %p55 = scmp.ne.s32.totalorder %s46, %s47
    %p56 = scmp.eq.s32.totalorder %s15, 0
    %p57 = por %p55, %p56
    %p58 = scmp.ne.s32.totalorder %s46, %s47
    %p59 = scmp.eq.s32.totalorder %s16, 1
    %p60 = por %p58, %p59
    %p62 = scmp.ne.s32.totalorder %s47, %s61
    %p63 = scmp.eq.s32.totalorder %s16, 0
    %p64 = por %p62, %p63
    %s66 = sadd.s32 %s65, 1
    %p69 = scmp.eq.s32.totalorder %s10, 1
    %p70 = scmp.ne.s32.totalorder %s65, %s67
    %p71 = scmp.eq.s32.totalorder %s10, 0
    %p72 = por %p70, %p71
    %p73 = scmp.ne.s32.totalorder %s65, %s67
    %p74 = scmp.eq.s32.totalorder %s15, 1
    %p75 = por %p73, %p74
    %p76 = scmp.ne.s32.totalorder %s67, %s68
    %p77 = scmp.eq.s32.totalorder %s15, 0
    %p78 = por %p76, %p77
    %p79 = scmp.ne.s32.totalorder %s67, %s68
    %p80 = scmp.eq.s32.totalorder %s16, 1
    %p81 = por %p79, %p80
    %p83 = scmp.ne.s32.totalorder %s68, %s82
    %p84 = scmp.eq.s32.totalorder %s16, 0
    %p85 = por %p83, %p84
    %s87 = sadd.s32 %s86, 1
    %p90 = scmp.eq.s32.totalorder %s10, 1
    %p91 = scmp.ne.s32.totalorder %s86, %s88
    %p92 = scmp.eq.s32.totalorder %s10, 0
    %p93 = por %p91, %p92
    %p94 = scmp.ne.s32.totalorder %s86, %s88
    %p95 = scmp.eq.s32.totalorder %s15, 1
    %p96 = por %p94, %p95
    %p97 = scmp.ne.s32.totalorder %s88, %s89
    %p98 = scmp.eq.s32.totalorder %s15, 0
    %p99 = por %p97, %p98
    %p100 = scmp.ne.s32.totalorder %s88, %s89
    %p101 = scmp.eq.s32.totalorder %s16, 1
    %p102 = por %p100, %p101
    %p104 = scmp.ne.s32.totalorder %s89, %s103
    %p105 = scmp.eq.s32.totalorder %s16, 0
    %p106 = por %p104, %p105
    %s107 = ssub.s32 %s10, %s17
    %p108 = scmp.eq.s32.totalorder %s107, 0
    %s110 = sadd.s32 %s109, 1
    %s111 = scalar_select %p108, %s109, %s110
    %p114 = pneg %p108
    %p115 = scmp.eq.s32.totalorder %s10, 1
    %p116 = por %p114, %p115
    %p117 = scmp.ne.s32.totalorder %s109, %s112
    %p118 = scmp.eq.s32.totalorder %s10, 0
    %p119 = por %p117, %p118
    %p120 = scmp.ne.s32.totalorder %s109, %s112
    %p121 = scmp.eq.s32.totalorder %s15, 1
    %p122 = por %p120, %p121
    %p123 = scmp.ne.s32.totalorder %s112, %s113
    %p124 = scmp.eq.s32.totalorder %s15, 0
    %p125 = por %p123, %p124
    %p126 = scmp.ne.s32.totalorder %s112, %s113
    %p127 = scmp.eq.s32.totalorder %s16, 1
    %p128 = por %p126, %p127
    %p130 = scmp.ne.s32.totalorder %s113, %s129
    %p131 = scmp.eq.s32.totalorder %s16, 0
    %p132 = por %p130, %p131
    %p133 = scmp.le.s32.totalorder 1, %s10
    %p134 = scmp.lt.s32.totalorder %s10, 3
    %p135 = pnand %p133, %p134
    %p136 = pneg %p135
    // Predicated region
    $region9: #{inception_a_unit.9} parent=5 // pred_check
      _
    $region10: #{inception_a_unit.9} parent=5 // pred_check_branch
      %138 = sbr.rel (%p135) target = $region12
    $region11: #{inception_a_unit.9} parent=5 // pred_region
      %s139 = ssub.s32 %s10, 1
      // Predicated region
      $region13: #{inception_a_unit.9} parent=11 // pred_check
        %p140 = pneg %p57
      $region14: #{inception_a_unit.9} parent=11 // pred_check_branch
        %142 = sbr.rel (%p140) target = $region16
      $region15: #{inception_a_unit.9} parent=11 // pred_region
        _
      $region16: #{inception_a_unit.9} parent=11 // pred_fallthru
        _
      // Predicated region
      $region17: #{inception_a_unit.9} parent=11 // pred_check
        %p143 = pneg %p78
      $region18: #{inception_a_unit.9} parent=11 // pred_check_branch
        %145 = sbr.rel (%p143) target = $region20
      $region19: #{inception_a_unit.9} parent=11 // pred_region
        _
      $region20: #{inception_a_unit.9} parent=11 // pred_fallthru
        _
      // Predicated region
      $region21: #{inception_a_unit.9} parent=11 // pred_check
        %p146 = pneg %p99
      $region22: #{inception_a_unit.9} parent=11 // pred_check_branch
        %148 = sbr.rel (%p146) target = $region24
      $region23: #{inception_a_unit.9} parent=11 // pred_region
        _
      $region24: #{inception_a_unit.9} parent=11 // pred_fallthru
        _
    $region12: #{inception_a_unit.9} parent=5 // pred_fallthru
      _
    %p149 = scmp.lt.s32.totalorder %s10, 2
    // Predicated region
    $region25: #{inception_a_unit.9} parent=5 // pred_check
      %p150 = pneg %p149
    $region26: #{inception_a_unit.9} parent=5 // pred_check_branch
      %152 = sbr.rel (%p150) target = $region28
    $region27: #{inception_a_unit.9} parent=5 // pred_region
      // Predicated region
      $region29: #{inception_a_unit.9} parent=27 // pred_check
        %p153 = pneg %p30
      $region30: #{inception_a_unit.9} parent=27 // pred_check_branch
        %155 = sbr.rel (%p153) target = $region32
      $region31: #{inception_a_unit.9} parent=27 // pred_region
        %p156 = scmp.lt.s32.totalorder %s10, 1
        %s157 = scalar_select %p156, %s10, 1
        %s158 = smul.addr %s157, 20
        %s159 = smul.addr %s158, 4
        %s160 = scalar_lea.vmem %s0, %s159
      $region32: #{inception_a_unit.9} parent=27 // pred_fallthru
        _
    $region28: #{inception_a_unit.9} parent=5 // pred_fallthru
      _
    %p161 = scmp.le.s32.totalorder 1, %s10
    %p162 = scmp.lt.s32.totalorder %s10, 3
    %p163 = pnand %p161, %p162
    %p164 = pneg %p163
    // Predicated region
    $region33: #{inception_a_unit.9} parent=5 // pred_check
      _
    $region34: #{inception_a_unit.9} parent=5 // pred_check_branch
      %166 = sbr.rel (%p163) target = $region36
    $region35: #{inception_a_unit.9} parent=5 // pred_region
      %s167 = ssub.s32 %s10, 1
      %p168 = scmp.lt.s32.totalorder %s15, 1
      %s169 = scalar_select %p168, %s15, 1
      %s170 = smul.addr %s169, 20
      %s171 = smul.addr %s170, 4
      %s172 = scalar_lea.vmem %s0, %s171
      %p173 = pneg %p36
      %p174 = pneg %p33
      %p175 = pneg %p57
      %p176 = pneg %p54
      %p177 = pneg %p78
      %p178 = pneg %p75
      %p179 = pneg %p99
      %p180 = pneg %p96
      %p181 = pneg %p125
      %p182 = pneg %p122
      %p183 = scmp.lt.s32.totalorder %s15, 1
      %s184 = scalar_select %p183, %s15, 1
      %s185 = smul.addr %s184, 8
      %s186 = smul.addr %s185, 8
      %s187 = scalar_lea.vmem %s4, %s186
      %p188 = scmp.lt.s32.totalorder %s15, 1
      %s189 = scalar_select %p188, %s15, 1
      %s190 = smul.addr %s189, 20
      %s191 = smul.addr %s190, 4
      %s192 = scalar_lea.vmem %s0, %s191
      %p193 = scmp.lt.s32.totalorder %s15, 1
      %s194 = scalar_select %p193, %s15, 1
      %s195 = smul.addr %s194, 8
      %s196 = smul.addr %s195, 8
      %s197 = scalar_lea.vmem %s4, %s196
      %v199 = vld [vmem:[%s192] sm:$0xf]
      %v200 = vld [vmem:[%s192 + $0x8] sm:$0xf]
      %v201 = vld [vmem:[%s192 + $0x10] sm:$0xf]
      %v202 = vld [vmem:[%s192 + $0x18] sm:$0xf]
      %v203 = vld [vmem:[%s192 + $0x20] sm:$0xf]
      %v204 = vld [vmem:[%s192 + $0x28] sm:$0xf]
      %v205 = vld [vmem:[%s192 + $0x30] sm:$0xf]
      %v206 = vld [vmem:[%s192 + $0x38] sm:$0xf]
      %v207 = vld [vmem:[%s1] sm:$0xf]
      %v208 = vld [vmem:[%s1 + $0x4] sm:$0xf]
      %v209 = vld [vmem:[%s1 + $0x8] sm:$0xf]
      %v210 = vld [vmem:[%s1 + $0xc] sm:$0xf]
      %v211 = vld [vmem:[%s1 + $0x10] sm:$0xf]
      %v212 = vld [vmem:[%s1 + $0x14] sm:$0xf]
      %v213 = vld [vmem:[%s1 + $0x18] sm:$0xf]
      %v214 = vld [vmem:[%s1 + $0x1c] sm:$0xf]
      %v215 = vld [vmem:[%s192 + $0x4] sm:$0x1]
      %v216 = vld [vmem:[%s192 + $0xc] sm:$0x1]
      %v217 = vld [vmem:[%s192 + $0x14] sm:$0x1]
      %v218 = vld [vmem:[%s192 + $0x1c] sm:$0x1]
      %v219 = vld [vmem:[%s192 + $0x24] sm:$0x1]
      %v220 = vld [vmem:[%s192 + $0x2c] sm:$0x1]
      %v221 = vld [vmem:[%s192 + $0x34] sm:$0x1]
      %v222 = vld [vmem:[%s192 + $0x3c] sm:$0x1]
      %vm223 = vsmask.f32 3328
      %vm224 = vsmask.f32 7440
      %vm225 = vmor %vm223, %vm224
      %v227 = vshrl.u32 %v199, 16
      %v229 = vrot.slane %v227, 4
      %v230 = vshll.u32 %v199, 16
      %v232 = vrot.slane %v230, 5
      %v233 = vor.u32 %v229, %v232
      %v234 = vrot.slane %v233, 4
      %v236 = vshll.u32 %v215, 16
      %v238 = vrot.slane %v236, 5
      %v239 = vsel %vm225, %v234, %v238
      %v241 = vshrl.u32 %v200, 16
      %v243 = vrot.slane %v241, 4
      %v244 = vshll.u32 %v200, 16
      %v246 = vrot.slane %v244, 5
      %v247 = vor.u32 %v243, %v246
      %v248 = vrot.slane %v247, 4
      %v250 = vshll.u32 %v216, 16
      %v252 = vrot.slane %v250, 5
      %v253 = vsel %vm225, %v248, %v252
      %v255 = vshrl.u32 %v201, 16
      %v257 = vrot.slane %v255, 4
      %v258 = vshll.u32 %v201, 16
      %v260 = vrot.slane %v258, 5
      %v261 = vor.u32 %v257, %v260
      %v262 = vrot.slane %v261, 4
      %v264 = vshll.u32 %v217, 16
      %v266 = vrot.slane %v264, 5
      %v267 = vsel %vm225, %v262, %v266
      %v269 = vshrl.u32 %v202, 16
      %v271 = vrot.slane %v269, 4
      %v272 = vshll.u32 %v202, 16
      %v274 = vrot.slane %v272, 5
      %v275 = vor.u32 %v271, %v274
      %v276 = vrot.slane %v275, 4
      %v278 = vshll.u32 %v218, 16
      %v280 = vrot.slane %v278, 5
      %v281 = vsel %vm225, %v276, %v280
      %v283 = vshrl.u32 %v203, 16
      %v285 = vrot.slane %v283, 4
      %v286 = vshll.u32 %v203, 16
      %v288 = vrot.slane %v286, 5
      %v289 = vor.u32 %v285, %v288
      %v290 = vrot.slane %v289, 4
      %v292 = vshll.u32 %v219, 16
      %v294 = vrot.slane %v292, 5
      %v295 = vsel %vm225, %v290, %v294
      %v297 = vshrl.u32 %v204, 16
      %v299 = vrot.slane %v297, 4
      %v300 = vshll.u32 %v204, 16
      %v302 = vrot.slane %v300, 5
      %v303 = vor.u32 %v299, %v302
      %v304 = vrot.slane %v303, 4
      %v306 = vshll.u32 %v220, 16
      %v308 = vrot.slane %v306, 5
      %v309 = vsel %vm225, %v304, %v308
      %v311 = vshrl.u32 %v205, 16
      %v313 = vrot.slane %v311, 4
      %v314 = vshll.u32 %v205, 16
      %v316 = vrot.slane %v314, 5
      %v317 = vor.u32 %v313, %v316
      %v318 = vrot.slane %v317, 4
      %v320 = vshll.u32 %v221, 16
      %v322 = vrot.slane %v320, 5
      %v323 = vsel %vm225, %v318, %v322
      %v325 = vshrl.u32 %v206, 16
      %v327 = vrot.slane %v325, 4
      %v328 = vshll.u32 %v206, 16
      %v330 = vrot.slane %v328, 5
      %v331 = vor.u32 %v327, %v330
      %v332 = vrot.slane %v331, 4
      %v334 = vshll.u32 %v222, 16
      %v336 = vrot.slane %v334, 5
      %v337 = vsel %vm225, %v332, %v336
      %s338 = scalar_lea.vmem %s1, 32
      %v339 = vld [vmem:[%s338] sm:$0xf]
      %v340 = vld [vmem:[%s338 + $0x4] sm:$0xf]
      %v341 = vld [vmem:[%s338 + $0x8] sm:$0xf]
      %v342 = vld [vmem:[%s338 + $0xc] sm:$0xf]
      %v343 = vld [vmem:[%s338 + $0x10] sm:$0xf]
      %v344 = vld [vmem:[%s338 + $0x14] sm:$0xf]
      %v345 = vld [vmem:[%s338 + $0x18] sm:$0xf]
      %v346 = vld [vmem:[%s338 + $0x1c] sm:$0xf]
      %v347 = vunpack.c.l.b16 %v239
      %v348 = vunpack.c.l.b16 %v253
      %v349 = vunpack.c.l.b16 %v267
      %v350 = vunpack.c.l.b16 %v281
      %v351 = vunpack.c.l.b16 %v295
      %v352 = vunpack.c.l.b16 %v309
      %v353 = vunpack.c.l.b16 %v323
      %v354 = vunpack.c.l.b16 %v337
      %v355 = vpack.c.b16 %v348, %v347
      %v356 = vpack.c.b16 %v350, %v349
      %v357 = vpack.c.b16 %v352, %v351
      %v358 = vpack.c.b16 %v354, %v353
      %v367 = vunpack.c.l.b16 %v339
      %v368 = vunpack.c.l.b16 %v340
      %v369 = vunpack.c.l.b16 %v341
      %v370 = vunpack.c.l.b16 %v342
      %v371 = vunpack.c.l.b16 %v343
      %v372 = vunpack.c.l.b16 %v344
      %v373 = vunpack.c.l.b16 %v345
      %v374 = vunpack.c.l.b16 %v346
      %v375 = vpack.c.b16 %v368, %v367
      %v376 = vpack.c.b16 %v370, %v369
      %v377 = vpack.c.b16 %v372, %v371
      %v378 = vpack.c.b16 %v374, %v373
      %vm383 = vcmask 523264
      %v385 = vsel %vm383, %v355, 0
      %v388 = vsel %vm383, %v356, 0
      %v391 = vsel %vm383, %v357, 0
      %v394 = vsel %vm383, %v358, 0
      %396 = vmatpush.bf16.msra.mxu0 0
      %397 = vmatpush.bf16.msra.mxu0 0
      %398 = vmatpush.bf16.msra.mxu0 0
      %399 = vmatpush.bf16.msra.mxu0 0
      %400 = vmatpush.bf16.msra.mxu0 %v378
      %401 = vmatpush.bf16.msra.mxu0 %v377
      %402 = vmatpush.bf16.msra.mxu0 %v376
      %403 = vmatpush.bf16.msra.mxu0 %v375
      %404 = vmatmul.bf16.gmra.mxu0 %v385
      %v405 = vpop.f32.mrf.mxu0
      %v406 = vadd.f32 0.0, %v405
      %v407 = vpop.f32.mrf.mxu0
      %v408 = vadd.f32 0.0, %v407
      %409 = vmatmul.bf16.gmra.mxu0 %v388
      %v410 = vpop.f32.mrf.mxu0
      %v411 = vadd.f32 0.0, %v410
      %v412 = vpop.f32.mrf.mxu0
      %v413 = vadd.f32 0.0, %v412
      %414 = vmatmul.bf16.gmra.mxu0 %v391
      %v415 = vpop.f32.mrf.mxu0
      %v416 = vadd.f32 0.0, %v415
      %v417 = vpop.f32.mrf.mxu0
      %v418 = vadd.f32 0.0, %v417
      %419 = vmatmul.bf16.gmra.mxu0 %v394
      %v420 = vpop.f32.mrf.mxu0
      %v421 = vadd.f32 0.0, %v420
      %v422 = vpop.f32.mrf.mxu0
      %v423 = vadd.f32 0.0, %v422
      %424 = vdwg.mxu0
      %v433 = vunpack.c.l.b16 %v199
      %v434 = vunpack.c.l.b16 %v200
      %v435 = vunpack.c.l.b16 %v201
      %v436 = vunpack.c.l.b16 %v202
      %v437 = vunpack.c.l.b16 %v203
      %v438 = vunpack.c.l.b16 %v204
      %v439 = vunpack.c.l.b16 %v205
      %v440 = vunpack.c.l.b16 %v206
      %v441 = vpack.c.b16 %v434, %v433
      %v442 = vpack.c.b16 %v436, %v435
      %v443 = vpack.c.b16 %v438, %v437
      %v444 = vpack.c.b16 %v440, %v439
      %v453 = vunpack.c.l.b16 %v207
      %v454 = vunpack.c.l.b16 %v208
      %v455 = vunpack.c.l.b16 %v209
      %v456 = vunpack.c.l.b16 %v210
      %v457 = vunpack.c.l.b16 %v211
      %v458 = vunpack.c.l.b16 %v212
      %v459 = vunpack.c.l.b16 %v213
      %v460 = vunpack.c.l.b16 %v214
      %v461 = vpack.c.b16 %v454, %v453
      %v462 = vpack.c.b16 %v456, %v455
      %v463 = vpack.c.b16 %v458, %v457
      %v464 = vpack.c.b16 %v460, %v459
      %v470 = vsel %vm383, %v441, 0
      %v473 = vsel %vm383, %v442, 0
      %v476 = vsel %vm383, %v443, 0
      %v479 = vsel %vm383, %v444, 0
      %481 = vmatpush.bf16.msra.mxu0 0
      %482 = vmatpush.bf16.msra.mxu0 0
      %483 = vmatpush.bf16.msra.mxu0 0
      %484 = vmatpush.bf16.msra.mxu0 0
      %485 = vmatpush.bf16.msra.mxu0 %v464
      %486 = vmatpush.bf16.msra.mxu0 %v463
      %487 = vmatpush.bf16.msra.mxu0 %v462
      %488 = vmatpush.bf16.msra.mxu0 %v461
      %489 = vmatmul.bf16.gmra.mxu0 %v470
      %v490 = vpop.f32.mrf.mxu0
      %v491 = vadd.f32 %v406, %v490
      %v492 = vpop.f32.mrf.mxu0
      %v493 = vadd.f32 %v408, %v492
      %494 = vmatmul.bf16.gmra.mxu0 %v473
      %v495 = vpop.f32.mrf.mxu0
      %v496 = vadd.f32 %v411, %v495
      %v497 = vpop.f32.mrf.mxu0
      %v498 = vadd.f32 %v413, %v497
      %499 = vmatmul.bf16.gmra.mxu0 %v476
      %v500 = vpop.f32.mrf.mxu0
      %v501 = vadd.f32 %v416, %v500
      %v502 = vpop.f32.mrf.mxu0
      %v503 = vadd.f32 %v418, %v502
      %504 = vmatmul.bf16.gmra.mxu0 %v479
      %v505 = vpop.f32.mrf.mxu0
      %v506 = vadd.f32 %v421, %v505
      %v507 = vpop.f32.mrf.mxu0
      %v508 = vadd.f32 %v423, %v507
      %509 = vdwg.mxu0
      %v510 = vld [vmem:[%s192] sm:$0xe]
      %v511 = vld [vmem:[%s192 + $0x8] sm:$0xe]
      %v512 = vld [vmem:[%s192 + $0x10] sm:$0xe]
      %v513 = vld [vmem:[%s192 + $0x18] sm:$0xe]
      %v514 = vld [vmem:[%s192 + $0x20] sm:$0xe]
      %v515 = vld [vmem:[%s192 + $0x28] sm:$0xe]
      %v516 = vld [vmem:[%s192 + $0x30] sm:$0xe]
      %v517 = vld [vmem:[%s192 + $0x38] sm:$0xe]
      %vm534 = vcmask 1042432
      %vm535 = vcmask 1046532
      %vm536 = vmor %vm534, %vm535
      %v537 = vrot.slane %v510, 5
      %v538 = vrot.slane %v537, 4
      %v539 = vrot.slane %v215, 5
      %v540 = vsel %vm536, %v538, %v539
      %v541 = vrot.slane %v511, 5
      %v542 = vrot.slane %v541, 4
      %v543 = vrot.slane %v216, 5
      %v544 = vsel %vm536, %v542, %v543
      %v545 = vrot.slane %v512, 5
      %v546 = vrot.slane %v545, 4
      %v547 = vrot.slane %v217, 5
      %v548 = vsel %vm536, %v546, %v547
      %v549 = vrot.slane %v513, 5
      %v550 = vrot.slane %v549, 4
      %v551 = vrot.slane %v218, 5
      %v552 = vsel %vm536, %v550, %v551
      %v553 = vrot.slane %v514, 5
      %v554 = vrot.slane %v553, 4
      %v555 = vrot.slane %v219, 5
      %v556 = vsel %vm536, %v554, %v555
      %v557 = vrot.slane %v515, 5
      %v558 = vrot.slane %v557, 4
      %v559 = vrot.slane %v220, 5
      %v560 = vsel %vm536, %v558, %v559
      %v561 = vrot.slane %v516, 5
      %v562 = vrot.slane %v561, 4
      %v563 = vrot.slane %v221, 5
      %v564 = vsel %vm536, %v562, %v563
      %v565 = vrot.slane %v517, 5
      %v566 = vrot.slane %v565, 4
      %v567 = vrot.slane %v222, 5
      %v568 = vsel %vm536, %v566, %v567
      %s569 = scalar_lea.vmem %s1, 64
      %v570 = vld [vmem:[%s569] sm:$0xf]
      %v571 = vld [vmem:[%s569 + $0x4] sm:$0xf]
      %v572 = vld [vmem:[%s569 + $0x8] sm:$0xf]
      %v573 = vld [vmem:[%s569 + $0xc] sm:$0xf]
      %v574 = vld [vmem:[%s569 + $0x10] sm:$0xf]
      %v575 = vld [vmem:[%s569 + $0x14] sm:$0xf]
      %v576 = vld [vmem:[%s569 + $0x18] sm:$0xf]
      %v577 = vld [vmem:[%s569 + $0x1c] sm:$0xf]
      %v578 = vunpack.c.l.b16 %v540
      %v579 = vunpack.c.l.b16 %v544
      %v580 = vunpack.c.l.b16 %v548
      %v581 = vunpack.c.l.b16 %v552
      %v582 = vunpack.c.l.b16 %v556
      %v583 = vunpack.c.l.b16 %v560
      %v584 = vunpack.c.l.b16 %v564
      %v585 = vunpack.c.l.b16 %v568
      %v586 = vpack.c.b16 %v579, %v578
      %v587 = vpack.c.b16 %v581, %v580
      %v588 = vpack.c.b16 %v583, %v582
      %v589 = vpack.c.b16 %v585, %v584
      %v598 = vunpack.c.l.b16 %v570
      %v599 = vunpack.c.l.b16 %v571
      %v600 = vunpack.c.l.b16 %v572
      %v601 = vunpack.c.l.b16 %v573
      %v602 = vunpack.c.l.b16 %v574
      %v603 = vunpack.c.l.b16 %v575
      %v604 = vunpack.c.l.b16 %v576
      %v605 = vunpack.c.l.b16 %v577
      %v606 = vpack.c.b16 %v599, %v598
      %v607 = vpack.c.b16 %v601, %v600
      %v608 = vpack.c.b16 %v603, %v602
      %v609 = vpack.c.b16 %v605, %v604
      %v615 = vsel %vm383, %v586, 0
      %v618 = vsel %vm383, %v587, 0
      %v621 = vsel %vm383, %v588, 0
      %v624 = vsel %vm383, %v589, 0
      %626 = vmatpush.bf16.msra.mxu0 0
      %627 = vmatpush.bf16.msra.mxu0 0
      %628 = vmatpush.bf16.msra.mxu0 0
      %629 = vmatpush.bf16.msra.mxu0 0
      %630 = vmatpush.bf16.msra.mxu0 %v609
      %631 = vmatpush.bf16.msra.mxu0 %v608
      %632 = vmatpush.bf16.msra.mxu0 %v607
      %633 = vmatpush.bf16.msra.mxu0 %v606
      %634 = vmatmul.bf16.gmra.mxu0 %v615
      %v635 = vpop.f32.mrf.mxu0
      %v636 = vadd.f32 0.0, %v635
      %v637 = vpop.f32.mrf.mxu0
      %v638 = vadd.f32 0.0, %v637
      %639 = vmatmul.bf16.gmra.mxu0 %v618
      %v640 = vpop.f32.mrf.mxu0
      %v641 = vadd.f32 0.0, %v640
      %v642 = vpop.f32.mrf.mxu0
      %v643 = vadd.f32 0.0, %v642
      %644 = vmatmul.bf16.gmra.mxu0 %v621
      %v645 = vpop.f32.mrf.mxu0
      %v646 = vadd.f32 0.0, %v645
      %v647 = vpop.f32.mrf.mxu0
      %v648 = vadd.f32 0.0, %v647
      %649 = vmatmul.bf16.gmra.mxu0 %v624
      %v650 = vpop.f32.mrf.mxu0
      %v651 = vadd.f32 0.0, %v650
      %v652 = vpop.f32.mrf.mxu0
      %v653 = vadd.f32 0.0, %v652
      %654 = vdwg.mxu0
      %v655 = vadd.f32 %v491, %v636
      %v656 = vadd.f32 %v493, %v638
      %v657 = vadd.f32 %v496, %v641
      %v658 = vadd.f32 %v498, %v643
      %v659 = vadd.f32 %v501, %v646
      %v660 = vadd.f32 %v503, %v648
      %v661 = vadd.f32 %v506, %v651
      %v662 = vadd.f32 %v508, %v653
      %s663 = scalar_lea.vmem %s192, 8
      %v664 = vld [vmem:[%s663] sm:$0xf]
      %v665 = vld [vmem:[%s663 + $0x8] sm:$0xf]
      %v666 = vld [vmem:[%s663 + $0x10] sm:$0xf]
      %v667 = vld [vmem:[%s663 + $0x18] sm:$0xf]
      %v668 = vld [vmem:[%s663 + $0x20] sm:$0xf]
      %v669 = vld [vmem:[%s663 + $0x28] sm:$0xf]
      %v670 = vld [vmem:[%s663 + $0x30] sm:$0xf]
      %v671 = vld [vmem:[%s663 + $0x38] sm:$0xf]
      %s672 = scalar_lea.vmem %s1, 96
      %v673 = vld [vmem:[%s672] sm:$0xf]
      %v674 = vld [vmem:[%s672 + $0x4] sm:$0xf]
      %v675 = vld [vmem:[%s672 + $0x8] sm:$0xf]
      %v676 = vld [vmem:[%s672 + $0xc] sm:$0xf]
      %v677 = vld [vmem:[%s672 + $0x10] sm:$0xf]
      %v678 = vld [vmem:[%s672 + $0x14] sm:$0xf]
      %v679 = vld [vmem:[%s672 + $0x18] sm:$0xf]
      %v680 = vld [vmem:[%s672 + $0x1c] sm:$0xf]
      %v689 = vunpack.c.l.b16 %v664
      %v690 = vunpack.c.l.b16 %v665
      %v691 = vunpack.c.l.b16 %v666
      %v692 = vunpack.c.l.b16 %v667
      %v693 = vunpack.c.l.b16 %v668
      %v694 = vunpack.c.l.b16 %v669
      %v695 = vunpack.c.l.b16 %v670
      %v696 = vunpack.c.l.b16 %v671
      %v697 = vpack.c.b16 %v690, %v689
      %v698 = vpack.c.b16 %v692, %v691
      %v699 = vpack.c.b16 %v694, %v693
      %v700 = vpack.c.b16 %v696, %v695
      %v709 = vunpack.c.l.b16 %v673
      %v710 = vunpack.c.l.b16 %v674
      %v711 = vunpack.c.l.b16 %v675
      %v712 = vunpack.c.l.b16 %v676
      %v713 = vunpack.c.l.b16 %v677
      %v714 = vunpack.c.l.b16 %v678
      %v715 = vunpack.c.l.b16 %v679
      %v716 = vunpack.c.l.b16 %v680
      %v717 = vpack.c.b16 %v710, %v709
      %v718 = vpack.c.b16 %v712, %v711
      %v719 = vpack.c.b16 %v714, %v713
      %v720 = vpack.c.b16 %v716, %v715
      %v726 = vsel %vm383, %v697, 0
      %v729 = vsel %vm383, %v698, 0
      %v732 = vsel %vm383, %v699, 0
      %v735 = vsel %vm383, %v700, 0
      %737 = vmatpush.bf16.msra.mxu0 0
      %738 = vmatpush.bf16.msra.mxu0 0
      %739 = vmatpush.bf16.msra.mxu0 0
      %740 = vmatpush.bf16.msra.mxu0 0
      %741 = vmatpush.bf16.msra.mxu0 %v720
      %742 = vmatpush.bf16.msra.mxu0 %v719
      %743 = vmatpush.bf16.msra.mxu0 %v718
      %744 = vmatpush.bf16.msra.mxu0 %v717
      %745 = vmatmul.bf16.gmra.mxu0 %v726
      %v746 = vpop.f32.mrf.mxu0
      %v747 = vadd.f32 0.0, %v746
      %v748 = vpop.f32.mrf.mxu0
      %v749 = vadd.f32 0.0, %v748
      %750 = vmatmul.bf16.gmra.mxu0 %v729
      %v751 = vpop.f32.mrf.mxu0
      %v752 = vadd.f32 0.0, %v751
      %v753 = vpop.f32.mrf.mxu0
      %v754 = vadd.f32 0.0, %v753
      %755 = vmatmul.bf16.gmra.mxu0 %v732
      %v756 = vpop.f32.mrf.mxu0
      %v757 = vadd.f32 0.0, %v756
      %v758 = vpop.f32.mrf.mxu0
      %v759 = vadd.f32 0.0, %v758
      %760 = vmatmul.bf16.gmra.mxu0 %v735
      %v761 = vpop.f32.mrf.mxu0
      %v762 = vadd.f32 0.0, %v761
      %v763 = vpop.f32.mrf.mxu0
      %v764 = vadd.f32 0.0, %v763
      %765 = vdwg.mxu0
      %v766 = vadd.f32 %v655, %v747
      %v767 = vadd.f32 %v656, %v749
      %v768 = vadd.f32 %v657, %v752
      %v769 = vadd.f32 %v658, %v754
      %v770 = vadd.f32 %v659, %v757
      %v771 = vadd.f32 %v660, %v759
      %v772 = vadd.f32 %v661, %v762
      %v773 = vadd.f32 %v662, %v764
      %v774 = vld [vmem:[%s663] sm:$0xf]
      %v775 = vld [vmem:[%s663 + $0x4] sm:$0x1]
      %v776 = vld [vmem:[%s663 + $0x8] sm:$0xf]
      %v777 = vld [vmem:[%s663 + $0xc] sm:$0x1]
      %v778 = vld [vmem:[%s663 + $0x10] sm:$0xf]
      %v779 = vld [vmem:[%s663 + $0x14] sm:$0x1]
      %v780 = vld [vmem:[%s663 + $0x18] sm:$0xf]
      %v781 = vld [vmem:[%s663 + $0x1c] sm:$0x1]
      %v782 = vld [vmem:[%s663 + $0x20] sm:$0xf]
      %v783 = vld [vmem:[%s663 + $0x24] sm:$0x1]
      %v784 = vld [vmem:[%s663 + $0x28] sm:$0xf]
      %v785 = vld [vmem:[%s663 + $0x2c] sm:$0x1]
      %v786 = vld [vmem:[%s663 + $0x30] sm:$0xf]
      %v787 = vld [vmem:[%s663 + $0x34] sm:$0x1]
      %v788 = vld [vmem:[%s663 + $0x38] sm:$0xf]
      %v789 = vld [vmem:[%s663 + $0x3c] sm:$0x1]
      %v791 = vshrl.u32 %v774, 16
      %v793 = vrot.slane %v791, 4
      %v794 = vshll.u32 %v774, 16
      %v796 = vrot.slane %v794, 5
      %v797 = vor.u32 %v793, %v796
      %v798 = vrot.slane %v797, 4
      %v800 = vshll.u32 %v775, 16
      %v802 = vrot.slane %v800, 5
      %v803 = vsel %vm225, %v798, %v802
      %v805 = vshrl.u32 %v776, 16
      %v807 = vrot.slane %v805, 4
      %v808 = vshll.u32 %v776, 16
      %v810 = vrot.slane %v808, 5
      %v811 = vor.u32 %v807, %v810
      %v812 = vrot.slane %v811, 4
      %v814 = vshll.u32 %v777, 16
      %v816 = vrot.slane %v814, 5
      %v817 = vsel %vm225, %v812, %v816
      %v819 = vshrl.u32 %v778, 16
      %v821 = vrot.slane %v819, 4
      %v822 = vshll.u32 %v778, 16
      %v824 = vrot.slane %v822, 5
      %v825 = vor.u32 %v821, %v824
      %v826 = vrot.slane %v825, 4
      %v828 = vshll.u32 %v779, 16
      %v830 = vrot.slane %v828, 5
      %v831 = vsel %vm225, %v826, %v830
      %v833 = vshrl.u32 %v780, 16
      %v835 = vrot.slane %v833, 4
      %v836 = vshll.u32 %v780, 16
      %v838 = vrot.slane %v836, 5
      %v839 = vor.u32 %v835, %v838
      %v840 = vrot.slane %v839, 4
      %v842 = vshll.u32 %v781, 16
      %v844 = vrot.slane %v842, 5
      %v845 = vsel %vm225, %v840, %v844
      %v847 = vshrl.u32 %v782, 16
      %v849 = vrot.slane %v847, 4
      %v850 = vshll.u32 %v782, 16
      %v852 = vrot.slane %v850, 5
      %v853 = vor.u32 %v849, %v852
      %v854 = vrot.slane %v853, 4
      %v856 = vshll.u32 %v783, 16
      %v858 = vrot.slane %v856, 5
      %v859 = vsel %vm225, %v854, %v858
      %v861 = vshrl.u32 %v784, 16
      %v863 = vrot.slane %v861, 4
      %v864 = vshll.u32 %v784, 16
      %v866 = vrot.slane %v864, 5
      %v867 = vor.u32 %v863, %v866
      %v868 = vrot.slane %v867, 4
      %v870 = vshll.u32 %v785, 16
      %v872 = vrot.slane %v870, 5
      %v873 = vsel %vm225, %v868, %v872
      %v875 = vshrl.u32 %v786, 16
      %v877 = vrot.slane %v875, 4
      %v878 = vshll.u32 %v786, 16
      %v880 = vrot.slane %v878, 5
      %v881 = vor.u32 %v877, %v880
      %v882 = vrot.slane %v881, 4
      %v884 = vshll.u32 %v787, 16
      %v886 = vrot.slane %v884, 5
      %v887 = vsel %vm225, %v882, %v886
      %v889 = vshrl.u32 %v788, 16
      %v891 = vrot.slane %v889, 4
      %v892 = vshll.u32 %v788, 16
      %v894 = vrot.slane %v892, 5
      %v895 = vor.u32 %v891, %v894
      %v896 = vrot.slane %v895, 4
      %v898 = vshll.u32 %v789, 16
      %v900 = vrot.slane %v898, 5
      %v901 = vsel %vm225, %v896, %v900
      %s902 = scalar_lea.vmem %s1, 128
      %v903 = vld [vmem:[%s902] sm:$0xf]
      %v904 = vld [vmem:[%s902 + $0x4] sm:$0xf]
      %v905 = vld [vmem:[%s902 + $0x8] sm:$0xf]
      %v906 = vld [vmem:[%s902 + $0xc] sm:$0xf]
      %v907 = vld [vmem:[%s902 + $0x10] sm:$0xf]
      %v908 = vld [vmem:[%s902 + $0x14] sm:$0xf]
      %v909 = vld [vmem:[%s902 + $0x18] sm:$0xf]
      %v910 = vld [vmem:[%s902 + $0x1c] sm:$0xf]
      %v911 = vunpack.c.l.b16 %v803
      %v912 = vunpack.c.l.b16 %v817
      %v913 = vunpack.c.l.b16 %v831
      %v914 = vunpack.c.l.b16 %v845
      %v915 = vunpack.c.l.b16 %v859
      %v916 = vunpack.c.l.b16 %v873
      %v917 = vunpack.c.l.b16 %v887
      %v918 = vunpack.c.l.b16 %v901
      %v919 = vpack.c.b16 %v912, %v911
      %v920 = vpack.c.b16 %v914, %v913
      %v921 = vpack.c.b16 %v916, %v915
      %v922 = vpack.c.b16 %v918, %v917
      %v931 = vunpack.c.l.b16 %v903
      %v932 = vunpack.c.l.b16 %v904
      %v933 = vunpack.c.l.b16 %v905
      %v934 = vunpack.c.l.b16 %v906
      %v935 = vunpack.c.l.b16 %v907
      %v936 = vunpack.c.l.b16 %v908
      %v937 = vunpack.c.l.b16 %v909
      %v938 = vunpack.c.l.b16 %v910
      %v939 = vpack.c.b16 %v932, %v931
      %v940 = vpack.c.b16 %v934, %v933
      %v941 = vpack.c.b16 %v936, %v935
      %v942 = vpack.c.b16 %v938, %v937
      %v948 = vsel %vm383, %v919, 0
      %v951 = vsel %vm383, %v920, 0
      %v954 = vsel %vm383, %v921, 0
      %v957 = vsel %vm383, %v922, 0
      %959 = vmatpush.bf16.msra.mxu0 0
      %960 = vmatpush.bf16.msra.mxu0 0
      %961 = vmatpush.bf16.msra.mxu0 0
      %962 = vmatpush.bf16.msra.mxu0 0
      %963 = vmatpush.bf16.msra.mxu0 %v942
      %964 = vmatpush.bf16.msra.mxu0 %v941
      %965 = vmatpush.bf16.msra.mxu0 %v940
      %966 = vmatpush.bf16.msra.mxu0 %v939
      %967 = vmatmul.bf16.gmra.mxu0 %v948
      %v968 = vpop.f32.mrf.mxu0
      %v969 = vadd.f32 0.0, %v968
      %v970 = vpop.f32.mrf.mxu0
      %v971 = vadd.f32 0.0, %v970
      %972 = vmatmul.bf16.gmra.mxu0 %v951
      %v973 = vpop.f32.mrf.mxu0
      %v974 = vadd.f32 0.0, %v973
      %v975 = vpop.f32.mrf.mxu0
      %v976 = vadd.f32 0.0, %v975
      %977 = vmatmul.bf16.gmra.mxu0 %v954
      %v978 = vpop.f32.mrf.mxu0
      %v979 = vadd.f32 0.0, %v978
      %v980 = vpop.f32.mrf.mxu0
      %v981 = vadd.f32 0.0, %v980
      %982 = vmatmul.bf16.gmra.mxu0 %v957
      %v983 = vpop.f32.mrf.mxu0
      %v984 = vadd.f32 0.0, %v983
      %v985 = vpop.f32.mrf.mxu0
      %v986 = vadd.f32 0.0, %v985
      %987 = vdwg.mxu0
      %v988 = vadd.f32 %v766, %v969
      %v989 = vadd.f32 %v767, %v971
      %v990 = vadd.f32 %v768, %v974
      %v991 = vadd.f32 %v769, %v976
      %v992 = vadd.f32 %v770, %v979
      %v993 = vadd.f32 %v771, %v981
      %v994 = vadd.f32 %v772, %v984
      %v995 = vadd.f32 %v773, %v986
      %v996 = vld [vmem:[%s663] sm:$0xe]
      %v997 = vld [vmem:[%s663 + $0x8] sm:$0xe]
      %v998 = vld [vmem:[%s663 + $0x10] sm:$0xe]
      %v999 = vld [vmem:[%s663 + $0x18] sm:$0xe]
      %v1000 = vld [vmem:[%s663 + $0x20] sm:$0xe]
      %v1001 = vld [vmem:[%s663 + $0x28] sm:$0xe]
      %v1002 = vld [vmem:[%s663 + $0x30] sm:$0xe]
      %v1003 = vld [vmem:[%s663 + $0x38] sm:$0xe]
      %v1020 = vrot.slane %v996, 5
      %v1021 = vrot.slane %v1020, 4
      %v1022 = vrot.slane %v775, 5
      %v1023 = vsel %vm536, %v1021, %v1022
      %v1024 = vrot.slane %v997, 5
      %v1025 = vrot.slane %v1024, 4
      %v1026 = vrot.slane %v777, 5
      %v1027 = vsel %vm536, %v1025, %v1026
      %v1028 = vrot.slane %v998, 5
      %v1029 = vrot.slane %v1028, 4
      %v1030 = vrot.slane %v779, 5
      %v1031 = vsel %vm536, %v1029, %v1030
      %v1032 = vrot.slane %v999, 5
      %v1033 = vrot.slane %v1032, 4
      %v1034 = vrot.slane %v781, 5
      %v1035 = vsel %vm536, %v1033, %v1034
      %v1036 = vrot.slane %v1000, 5
      %v1037 = vrot.slane %v1036, 4
      %v1038 = vrot.slane %v783, 5
      %v1039 = vsel %vm536, %v1037, %v1038
      %v1040 = vrot.slane %v1001, 5
      %v1041 = vrot.slane %v1040, 4
      %v1042 = vrot.slane %v785, 5
      %v1043 = vsel %vm536, %v1041, %v1042
      %v1044 = vrot.slane %v1002, 5
      %v1045 = vrot.slane %v1044, 4
      %v1046 = vrot.slane %v787, 5
      %v1047 = vsel %vm536, %v1045, %v1046
      %v1048 = vrot.slane %v1003, 5
      %v1049 = vrot.slane %v1048, 4
      %v1050 = vrot.slane %v789, 5
      %v1051 = vsel %vm536, %v1049, %v1050
      %s1052 = scalar_lea.vmem %s1, 160
      %v1053 = vld [vmem:[%s1052] sm:$0xf]
      %v1054 = vld [vmem:[%s1052 + $0x4] sm:$0xf]
      %v1055 = vld [vmem:[%s1052 + $0x8] sm:$0xf]
      %v1056 = vld [vmem:[%s1052 + $0xc] sm:$0xf]
      %v1057 = vld [vmem:[%s1052 + $0x10] sm:$0xf]
      %v1058 = vld [vmem:[%s1052 + $0x14] sm:$0xf]
      %v1059 = vld [vmem:[%s1052 + $0x18] sm:$0xf]
      %v1060 = vld [vmem:[%s1052 + $0x1c] sm:$0xf]
      %v1061 = vunpack.c.l.b16 %v1023
      %v1062 = vunpack.c.l.b16 %v1027
      %v1063 = vunpack.c.l.b16 %v1031
      %v1064 = vunpack.c.l.b16 %v1035
      %v1065 = vunpack.c.l.b16 %v1039
      %v1066 = vunpack.c.l.b16 %v1043
      %v1067 = vunpack.c.l.b16 %v1047
      %v1068 = vunpack.c.l.b16 %v1051
      %v1069 = vpack.c.b16 %v1062, %v1061
      %v1070 = vpack.c.b16 %v1064, %v1063
      %v1071 = vpack.c.b16 %v1066, %v1065
      %v1072 = vpack.c.b16 %v1068, %v1067
      %v1081 = vunpack.c.l.b16 %v1053
      %v1082 = vunpack.c.l.b16 %v1054
      %v1083 = vunpack.c.l.b16 %v1055
      %v1084 = vunpack.c.l.b16 %v1056
      %v1085 = vunpack.c.l.b16 %v1057
      %v1086 = vunpack.c.l.b16 %v1058
      %v1087 = vunpack.c.l.b16 %v1059
      %v1088 = vunpack.c.l.b16 %v1060
      %v1089 = vpack.c.b16 %v1082, %v1081
      %v1090 = vpack.c.b16 %v1084, %v1083
      %v1091 = vpack.c.b16 %v1086, %v1085
      %v1092 = vpack.c.b16 %v1088, %v1087
      %v1098 = vsel %vm383, %v1069, 0
      %v1101 = vsel %vm383, %v1070, 0
      %v1104 = vsel %vm383, %v1071, 0
      %v1107 = vsel %vm383, %v1072, 0
      %1109 = vmatpush.bf16.msra.mxu0 0
      %1110 = vmatpush.bf16.msra.mxu0 0
      %1111 = vmatpush.bf16.msra.mxu0 0
      %1112 = vmatpush.bf16.msra.mxu0 0
      %1113 = vmatpush.bf16.msra.mxu0 %v1092
      %1114 = vmatpush.bf16.msra.mxu0 %v1091
      %1115 = vmatpush.bf16.msra.mxu0 %v1090
      %1116 = vmatpush.bf16.msra.mxu0 %v1089
      %1117 = vmatmul.bf16.gmra.mxu0 %v1098
      %v1118 = vpop.f32.mrf.mxu0
      %v1119 = vadd.f32 0.0, %v1118
      %v1120 = vpop.f32.mrf.mxu0
      %v1121 = vadd.f32 0.0, %v1120
      %1122 = vmatmul.bf16.gmra.mxu0 %v1101
      %v1123 = vpop.f32.mrf.mxu0
      %v1124 = vadd.f32 0.0, %v1123
      %v1125 = vpop.f32.mrf.mxu0
      %v1126 = vadd.f32 0.0, %v1125
      %1127 = vmatmul.bf16.gmra.mxu0 %v1104
      %v1128 = vpop.f32.mrf.mxu0
      %v1129 = vadd.f32 0.0, %v1128
      %v1130 = vpop.f32.mrf.mxu0
      %v1131 = vadd.f32 0.0, %v1130
      %1132 = vmatmul.bf16.gmra.mxu0 %v1107
      %v1133 = vpop.f32.mrf.mxu0
      %v1134 = vadd.f32 0.0, %v1133
      %v1135 = vpop.f32.mrf.mxu0
      %v1136 = vadd.f32 0.0, %v1135
      %1137 = vdwg.mxu0
      %v1138 = vadd.f32 %v988, %v1119
      %v1139 = vadd.f32 %v989, %v1121
      %v1140 = vadd.f32 %v990, %v1124
      %v1141 = vadd.f32 %v991, %v1126
      %v1142 = vadd.f32 %v992, %v1129
      %v1143 = vadd.f32 %v993, %v1131
      %v1144 = vadd.f32 %v994, %v1134
      %v1145 = vadd.f32 %v995, %v1136
      %s1146 = scalar_lea.vmem %s192, 16
      %v1147 = vld [vmem:[%s1146] sm:$0xf]
      %v1148 = vld [vmem:[%s1146 + $0x8] sm:$0xf]
      %v1149 = vld [vmem:[%s1146 + $0x10] sm:$0xf]
      %v1150 = vld [vmem:[%s1146 + $0x18] sm:$0xf]
      %v1151 = vld [vmem:[%s1146 + $0x20] sm:$0xf]
      %v1152 = vld [vmem:[%s1146 + $0x28] sm:$0xf]
      %v1153 = vld [vmem:[%s1146 + $0x30] sm:$0xf]
      %v1154 = vld [vmem:[%s1146 + $0x38] sm:$0xf]
      %s1155 = scalar_lea.vmem %s1, 192
      %v1156 = vld [vmem:[%s1155] sm:$0xf]
      %v1157 = vld [vmem:[%s1155 + $0x4] sm:$0xf]
      %v1158 = vld [vmem:[%s1155 + $0x8] sm:$0xf]
      %v1159 = vld [vmem:[%s1155 + $0xc] sm:$0xf]
      %v1160 = vld [vmem:[%s1155 + $0x10] sm:$0xf]
      %v1161 = vld [vmem:[%s1155 + $0x14] sm:$0xf]
      %v1162 = vld [vmem:[%s1155 + $0x18] sm:$0xf]
      %v1163 = vld [vmem:[%s1155 + $0x1c] sm:$0xf]
      %v1172 = vunpack.c.l.b16 %v1147
      %v1173 = vunpack.c.l.b16 %v1148
      %v1174 = vunpack.c.l.b16 %v1149
      %v1175 = vunpack.c.l.b16 %v1150
      %v1176 = vunpack.c.l.b16 %v1151
      %v1177 = vunpack.c.l.b16 %v1152
      %v1178 = vunpack.c.l.b16 %v1153
      %v1179 = vunpack.c.l.b16 %v1154
      %v1180 = vpack.c.b16 %v1173, %v1172
      %v1181 = vpack.c.b16 %v1175, %v1174
      %v1182 = vpack.c.b16 %v1177, %v1176
      %v1183 = vpack.c.b16 %v1179, %v1178
      %v1192 = vunpack.c.l.b16 %v1156
      %v1193 = vunpack.c.l.b16 %v1157
      %v1194 = vunpack.c.l.b16 %v1158
      %v1195 = vunpack.c.l.b16 %v1159
      %v1196 = vunpack.c.l.b16 %v1160
      %v1197 = vunpack.c.l.b16 %v1161
      %v1198 = vunpack.c.l.b16 %v1162
      %v1199 = vunpack.c.l.b16 %v1163
      %v1200 = vpack.c.b16 %v1193, %v1192
      %v1201 = vpack.c.b16 %v1195, %v1194
      %v1202 = vpack.c.b16 %v1197, %v1196
      %v1203 = vpack.c.b16 %v1199, %v1198
      %v1209 = vsel %vm383, %v1180, 0
      %v1212 = vsel %vm383, %v1181, 0
      %v1215 = vsel %vm383, %v1182, 0
      %v1218 = vsel %vm383, %v1183, 0
      %1220 = vmatpush.bf16.msra.mxu0 0
      %1221 = vmatpush.bf16.msra.mxu0 0
      %1222 = vmatpush.bf16.msra.mxu0 0
      %1223 = vmatpush.bf16.msra.mxu0 0
      %1224 = vmatpush.bf16.msra.mxu0 %v1203
      %1225 = vmatpush.bf16.msra.mxu0 %v1202
      %1226 = vmatpush.bf16.msra.mxu0 %v1201
      %1227 = vmatpush.bf16.msra.mxu0 %v1200
      %1228 = vmatmul.bf16.gmra.mxu0 %v1209
      %v1229 = vpop.f32.mrf.mxu0
      %v1230 = vadd.f32 0.0, %v1229
      %v1231 = vpop.f32.mrf.mxu0
      %v1232 = vadd.f32 0.0, %v1231
      %1233 = vmatmul.bf16.gmra.mxu0 %v1212
      %v1234 = vpop.f32.mrf.mxu0
      %v1235 = vadd.f32 0.0, %v1234
      %v1236 = vpop.f32.mrf.mxu0
      %v1237 = vadd.f32 0.0, %v1236
      %1238 = vmatmul.bf16.gmra.mxu0 %v1215
      %v1239 = vpop.f32.mrf.mxu0
      %v1240 = vadd.f32 0.0, %v1239
      %v1241 = vpop.f32.mrf.mxu0
      %v1242 = vadd.f32 0.0, %v1241
      %1243 = vmatmul.bf16.gmra.mxu0 %v1218
      %v1244 = vpop.f32.mrf.mxu0
      %v1245 = vadd.f32 0.0, %v1244
      %v1246 = vpop.f32.mrf.mxu0
      %v1247 = vadd.f32 0.0, %v1246
      %1248 = vdwg.mxu0
      %v1249 = vadd.f32 %v1138, %v1230
      %v1250 = vadd.f32 %v1139, %v1232
      %v1251 = vadd.f32 %v1140, %v1235
      %v1252 = vadd.f32 %v1141, %v1237
      %v1253 = vadd.f32 %v1142, %v1240
      %v1254 = vadd.f32 %v1143, %v1242
      %v1255 = vadd.f32 %v1144, %v1245
      %v1256 = vadd.f32 %v1145, %v1247
      %v1257 = vld [vmem:[%s1146] sm:$0xf]
      %v1258 = vld [vmem:[%s1146 + $0x4] sm:$0x1]
      %v1259 = vld [vmem:[%s1146 + $0x8] sm:$0xf]
      %v1260 = vld [vmem:[%s1146 + $0xc] sm:$0x1]
      %v1261 = vld [vmem:[%s1146 + $0x10] sm:$0xf]
      %v1262 = vld [vmem:[%s1146 + $0x14] sm:$0x1]
      %v1263 = vld [vmem:[%s1146 + $0x18] sm:$0xf]
      %v1264 = vld [vmem:[%s1146 + $0x1c] sm:$0x1]
      %v1265 = vld [vmem:[%s1146 + $0x20] sm:$0xf]
      %v1266 = vld [vmem:[%s1146 + $0x24] sm:$0x1]
      %v1267 = vld [vmem:[%s1146 + $0x28] sm:$0xf]
      %v1268 = vld [vmem:[%s1146 + $0x2c] sm:$0x1]
      %v1269 = vld [vmem:[%s1146 + $0x30] sm:$0xf]
      %v1270 = vld [vmem:[%s1146 + $0x34] sm:$0x1]
      %v1271 = vld [vmem:[%s1146 + $0x38] sm:$0xf]
      %v1272 = vld [vmem:[%s1146 + $0x3c] sm:$0x1]
      %v1274 = vshrl.u32 %v1257, 16
      %v1276 = vrot.slane %v1274, 4
      %v1277 = vshll.u32 %v1257, 16
      %v1279 = vrot.slane %v1277, 5
      %v1280 = vor.u32 %v1276, %v1279
      %v1281 = vrot.slane %v1280, 4
      %v1283 = vshll.u32 %v1258, 16
      %v1285 = vrot.slane %v1283, 5
      %v1286 = vsel %vm225, %v1281, %v1285
      %v1288 = vshrl.u32 %v1259, 16
      %v1290 = vrot.slane %v1288, 4
      %v1291 = vshll.u32 %v1259, 16
      %v1293 = vrot.slane %v1291, 5
      %v1294 = vor.u32 %v1290, %v1293
      %v1295 = vrot.slane %v1294, 4
      %v1297 = vshll.u32 %v1260, 16
      %v1299 = vrot.slane %v1297, 5
      %v1300 = vsel %vm225, %v1295, %v1299
      %v1302 = vshrl.u32 %v1261, 16
      %v1304 = vrot.slane %v1302, 4
      %v1305 = vshll.u32 %v1261, 16
      %v1307 = vrot.slane %v1305, 5
      %v1308 = vor.u32 %v1304, %v1307
      %v1309 = vrot.slane %v1308, 4
      %v1311 = vshll.u32 %v1262, 16
      %v1313 = vrot.slane %v1311, 5
      %v1314 = vsel %vm225, %v1309, %v1313
      %v1316 = vshrl.u32 %v1263, 16
      %v1318 = vrot.slane %v1316, 4
      %v1319 = vshll.u32 %v1263, 16
      %v1321 = vrot.slane %v1319, 5
      %v1322 = vor.u32 %v1318, %v1321
      %v1323 = vrot.slane %v1322, 4
      %v1325 = vshll.u32 %v1264, 16
      %v1327 = vrot.slane %v1325, 5
      %v1328 = vsel %vm225, %v1323, %v1327
      %v1330 = vshrl.u32 %v1265, 16
      %v1332 = vrot.slane %v1330, 4
      %v1333 = vshll.u32 %v1265, 16
      %v1335 = vrot.slane %v1333, 5
      %v1336 = vor.u32 %v1332, %v1335
      %v1337 = vrot.slane %v1336, 4
      %v1339 = vshll.u32 %v1266, 16
      %v1341 = vrot.slane %v1339, 5
      %v1342 = vsel %vm225, %v1337, %v1341
      %v1344 = vshrl.u32 %v1267, 16
      %v1346 = vrot.slane %v1344, 4
      %v1347 = vshll.u32 %v1267, 16
      %v1349 = vrot.slane %v1347, 5
      %v1350 = vor.u32 %v1346, %v1349
      %v1351 = vrot.slane %v1350, 4
      %v1353 = vshll.u32 %v1268, 16
      %v1355 = vrot.slane %v1353, 5
      %v1356 = vsel %vm225, %v1351, %v1355
      %v1358 = vshrl.u32 %v1269, 16
      %v1360 = vrot.slane %v1358, 4
      %v1361 = vshll.u32 %v1269, 16
      %v1363 = vrot.slane %v1361, 5
      %v1364 = vor.u32 %v1360, %v1363
      %v1365 = vrot.slane %v1364, 4
      %v1367 = vshll.u32 %v1270, 16
      %v1369 = vrot.slane %v1367, 5
      %v1370 = vsel %vm225, %v1365, %v1369
      %v1372 = vshrl.u32 %v1271, 16
      %v1374 = vrot.slane %v1372, 4
      %v1375 = vshll.u32 %v1271, 16
      %v1377 = vrot.slane %v1375, 5
      %v1378 = vor.u32 %v1374, %v1377
      %v1379 = vrot.slane %v1378, 4
      %v1381 = vshll.u32 %v1272, 16
      %v1383 = vrot.slane %v1381, 5
      %v1384 = vsel %vm225, %v1379, %v1383
      %s1385 = scalar_lea.vmem %s1, 224
      %v1386 = vld [vmem:[%s1385] sm:$0xf]
      %v1387 = vld [vmem:[%s1385 + $0x4] sm:$0xf]
      %v1388 = vld [vmem:[%s1385 + $0x8] sm:$0xf]
      %v1389 = vld [vmem:[%s1385 + $0xc] sm:$0xf]
      %v1390 = vld [vmem:[%s1385 + $0x10] sm:$0xf]
      %v1391 = vld [vmem:[%s1385 + $0x14] sm:$0xf]
      %v1392 = vld [vmem:[%s1385 + $0x18] sm:$0xf]
      %v1393 = vld [vmem:[%s1385 + $0x1c] sm:$0xf]
      %v1394 = vunpack.c.l.b16 %v1286
      %v1395 = vunpack.c.l.b16 %v1300
      %v1396 = vunpack.c.l.b16 %v1314
      %v1397 = vunpack.c.l.b16 %v1328
      %v1398 = vunpack.c.l.b16 %v1342
      %v1399 = vunpack.c.l.b16 %v1356
      %v1400 = vunpack.c.l.b16 %v1370
      %v1401 = vunpack.c.l.b16 %v1384
      %v1402 = vpack.c.b16 %v1395, %v1394
      %v1403 = vpack.c.b16 %v1397, %v1396
      %v1404 = vpack.c.b16 %v1399, %v1398
      %v1405 = vpack.c.b16 %v1401, %v1400
      %v1414 = vunpack.c.l.b16 %v1386
      %v1415 = vunpack.c.l.b16 %v1387
      %v1416 = vunpack.c.l.b16 %v1388
      %v1417 = vunpack.c.l.b16 %v1389
      %v1418 = vunpack.c.l.b16 %v1390
      %v1419 = vunpack.c.l.b16 %v1391
      %v1420 = vunpack.c.l.b16 %v1392
      %v1421 = vunpack.c.l.b16 %v1393
      %v1422 = vpack.c.b16 %v1415, %v1414
      %v1423 = vpack.c.b16 %v1417, %v1416
      %v1424 = vpack.c.b16 %v1419, %v1418
      %v1425 = vpack.c.b16 %v1421, %v1420
      %v1431 = vsel %vm383, %v1402, 0
      %v1434 = vsel %vm383, %v1403, 0
      %v1437 = vsel %vm383, %v1404, 0
      %v1440 = vsel %vm383, %v1405, 0
      %1442 = vmatpush.bf16.msra.mxu0 0
      %1443 = vmatpush.bf16.msra.mxu0 0
      %1444 = vmatpush.bf16.msra.mxu0 0
      %1445 = vmatpush.bf16.msra.mxu0 0
      %1446 = vmatpush.bf16.msra.mxu0 %v1425
      %1447 = vmatpush.bf16.msra.mxu0 %v1424
      %1448 = vmatpush.bf16.msra.mxu0 %v1423
      %1449 = vmatpush.bf16.msra.mxu0 %v1422
      %1450 = vmatmul.bf16.gmra.mxu0 %v1431
      %v1451 = vpop.f32.mrf.mxu0
      %v1452 = vadd.f32 0.0, %v1451
      %v1453 = vpop.f32.mrf.mxu0
      %v1454 = vadd.f32 0.0, %v1453
      %1455 = vmatmul.bf16.gmra.mxu0 %v1434
      %v1456 = vpop.f32.mrf.mxu0
      %v1457 = vadd.f32 0.0, %v1456
      %v1458 = vpop.f32.mrf.mxu0
      %v1459 = vadd.f32 0.0, %v1458
      %1460 = vmatmul.bf16.gmra.mxu0 %v1437
      %v1461 = vpop.f32.mrf.mxu0
      %v1462 = vadd.f32 0.0, %v1461
      %v1463 = vpop.f32.mrf.mxu0
      %v1464 = vadd.f32 0.0, %v1463
      %1465 = vmatmul.bf16.gmra.mxu0 %v1440
      %v1466 = vpop.f32.mrf.mxu0
      %v1467 = vadd.f32 0.0, %v1466
      %v1468 = vpop.f32.mrf.mxu0
      %v1469 = vadd.f32 0.0, %v1468
      %1470 = vdwg.mxu0
      %v1471 = vadd.f32 %v1249, %v1452
      %v1472 = vadd.f32 %v1250, %v1454
      %v1473 = vadd.f32 %v1251, %v1457
      %v1474 = vadd.f32 %v1252, %v1459
      %v1475 = vadd.f32 %v1253, %v1462
      %v1476 = vadd.f32 %v1254, %v1464
      %v1477 = vadd.f32 %v1255, %v1467
      %v1478 = vadd.f32 %v1256, %v1469
      %v1479 = vld [vmem:[%s1146] sm:$0xe]
      %v1480 = vld [vmem:[%s1146 + $0x8] sm:$0xe]
      %v1481 = vld [vmem:[%s1146 + $0x10] sm:$0xe]
      %v1482 = vld [vmem:[%s1146 + $0x18] sm:$0xe]
      %v1483 = vld [vmem:[%s1146 + $0x20] sm:$0xe]
      %v1484 = vld [vmem:[%s1146 + $0x28] sm:$0xe]
      %v1485 = vld [vmem:[%s1146 + $0x30] sm:$0xe]
      %v1486 = vld [vmem:[%s1146 + $0x38] sm:$0xe]
      %v1503 = vrot.slane %v1479, 5
      %v1504 = vrot.slane %v1503, 4
      %v1505 = vrot.slane %v1258, 5
      %v1506 = vsel %vm536, %v1504, %v1505
      %v1507 = vrot.slane %v1480, 5
      %v1508 = vrot.slane %v1507, 4
      %v1509 = vrot.slane %v1260, 5
      %v1510 = vsel %vm536, %v1508, %v1509
      %v1511 = vrot.slane %v1481, 5
      %v1512 = vrot.slane %v1511, 4
      %v1513 = vrot.slane %v1262, 5
      %v1514 = vsel %vm536, %v1512, %v1513
      %v1515 = vrot.slane %v1482, 5
      %v1516 = vrot.slane %v1515, 4
      %v1517 = vrot.slane %v1264, 5
      %v1518 = vsel %vm536, %v1516, %v1517
      %v1519 = vrot.slane %v1483, 5
      %v1520 = vrot.slane %v1519, 4
      %v1521 = vrot.slane %v1266, 5
      %v1522 = vsel %vm536, %v1520, %v1521
      %v1523 = vrot.slane %v1484, 5
      %v1524 = vrot.slane %v1523, 4
      %v1525 = vrot.slane %v1268, 5
      %v1526 = vsel %vm536, %v1524, %v1525
      %v1527 = vrot.slane %v1485, 5
      %v1528 = vrot.slane %v1527, 4
      %v1529 = vrot.slane %v1270, 5
      %v1530 = vsel %vm536, %v1528, %v1529
      %v1531 = vrot.slane %v1486, 5
      %v1532 = vrot.slane %v1531, 4
      %v1533 = vrot.slane %v1272, 5
      %v1534 = vsel %vm536, %v1532, %v1533
      %s1535 = scalar_lea.vmem %s1, 256
      %v1536 = vld [vmem:[%s1535] sm:$0xf]
      %v1537 = vld [vmem:[%s1535 + $0x4] sm:$0xf]
      %v1538 = vld [vmem:[%s1535 + $0x8] sm:$0xf]
      %v1539 = vld [vmem:[%s1535 + $0xc] sm:$0xf]
      %v1540 = vld [vmem:[%s1535 + $0x10] sm:$0xf]
      %v1541 = vld [vmem:[%s1535 + $0x14] sm:$0xf]
      %v1542 = vld [vmem:[%s1535 + $0x18] sm:$0xf]
      %v1543 = vld [vmem:[%s1535 + $0x1c] sm:$0xf]
      %v1544 = vunpack.c.l.b16 %v1506
      %v1545 = vunpack.c.l.b16 %v1510
      %v1546 = vunpack.c.l.b16 %v1514
      %v1547 = vunpack.c.l.b16 %v1518
      %v1548 = vunpack.c.l.b16 %v1522
      %v1549 = vunpack.c.l.b16 %v1526
      %v1550 = vunpack.c.l.b16 %v1530
      %v1551 = vunpack.c.l.b16 %v1534
      %v1552 = vpack.c.b16 %v1545, %v1544
      %v1553 = vpack.c.b16 %v1547, %v1546
      %v1554 = vpack.c.b16 %v1549, %v1548
      %v1555 = vpack.c.b16 %v1551, %v1550
      %v1564 = vunpack.c.l.b16 %v1536
      %v1565 = vunpack.c.l.b16 %v1537
      %v1566 = vunpack.c.l.b16 %v1538
      %v1567 = vunpack.c.l.b16 %v1539
      %v1568 = vunpack.c.l.b16 %v1540
      %v1569 = vunpack.c.l.b16 %v1541
      %v1570 = vunpack.c.l.b16 %v1542
      %v1571 = vunpack.c.l.b16 %v1543
      %v1572 = vpack.c.b16 %v1565, %v1564
      %v1573 = vpack.c.b16 %v1567, %v1566
      %v1574 = vpack.c.b16 %v1569, %v1568
      %v1575 = vpack.c.b16 %v1571, %v1570
      %v1581 = vsel %vm383, %v1552, 0
      %v1584 = vsel %vm383, %v1553, 0
      %v1587 = vsel %vm383, %v1554, 0
      %v1590 = vsel %vm383, %v1555, 0
      %1592 = vmatpush.bf16.msra.mxu0 0
      %1593 = vmatpush.bf16.msra.mxu0 0
      %1594 = vmatpush.bf16.msra.mxu0 0
      %1595 = vmatpush.bf16.msra.mxu0 0
      %1596 = vmatpush.bf16.msra.mxu0 %v1575
      %1597 = vmatpush.bf16.msra.mxu0 %v1574
      %1598 = vmatpush.bf16.msra.mxu0 %v1573
      %1599 = vmatpush.bf16.msra.mxu0 %v1572
      %1600 = vmatmul.bf16.gmra.mxu0 %v1581
      %v1601 = vpop.f32.mrf.mxu0
      %v1602 = vadd.f32 0.0, %v1601
      %v1603 = vpop.f32.mrf.mxu0
      %v1604 = vadd.f32 0.0, %v1603
      %1605 = vmatmul.bf16.gmra.mxu0 %v1584
      %v1606 = vpop.f32.mrf.mxu0
      %v1607 = vadd.f32 0.0, %v1606
      %v1608 = vpop.f32.mrf.mxu0
      %v1609 = vadd.f32 0.0, %v1608
      %1610 = vmatmul.bf16.gmra.mxu0 %v1587
      %v1611 = vpop.f32.mrf.mxu0
      %v1612 = vadd.f32 0.0, %v1611
      %v1613 = vpop.f32.mrf.mxu0
      %v1614 = vadd.f32 0.0, %v1613
      %1615 = vmatmul.bf16.gmra.mxu0 %v1590
      %v1616 = vpop.f32.mrf.mxu0
      %v1617 = vadd.f32 0.0, %v1616
      %v1618 = vpop.f32.mrf.mxu0
      %v1619 = vadd.f32 0.0, %v1618
      %1620 = vdwg.mxu0
      %v1621 = vadd.f32 %v1471, %v1602
      %v1622 = vadd.f32 %v1472, %v1604
      %v1623 = vadd.f32 %v1473, %v1607
      %v1624 = vadd.f32 %v1474, %v1609
      %v1625 = vadd.f32 %v1475, %v1612
      %v1626 = vadd.f32 %v1476, %v1614
      %v1627 = vadd.f32 %v1477, %v1617
      %v1628 = vadd.f32 %v1478, %v1619
      %v1629 = vld [vmem:[%s2] sm:$0x1]
      %v1631 = vperm.slane %v1629, 0
      %v1633 = vmul.f32 %v1621, %v1631
      %v1634 = vmul.f32 %v1622, %v1631
      %v1635 = vmul.f32 %v1623, %v1631
      %v1636 = vmul.f32 %v1624, %v1631
      %v1637 = vmul.f32 %v1625, %v1631
      %v1638 = vmul.f32 %v1626, %v1631
      %v1639 = vmul.f32 %v1627, %v1631
      %v1640 = vmul.f32 %v1628, %v1631
      %v1641 = vld [vmem:[%s3] sm:$0x1]
      %v1643 = vperm.slane %v1641, 0
      %v1645 = vadd.f32 %v1633, %v1643
      %v1646 = vadd.f32 %v1634, %v1643
      %v1647 = vadd.f32 %v1635, %v1643
      %v1648 = vadd.f32 %v1636, %v1643
      %v1649 = vadd.f32 %v1637, %v1643
      %v1650 = vadd.f32 %v1638, %v1643
      %v1651 = vadd.f32 %v1639, %v1643
      %v1652 = vadd.f32 %v1640, %v1643
      %v1653 = vmax.f32 %v1645, 0.0
      %v1654 = vmax.f32 %v1646, 0.0
      %v1655 = vmax.f32 %v1647, 0.0
      %v1656 = vmax.f32 %v1648, 0.0
      %v1657 = vmax.f32 %v1649, 0.0
      %v1658 = vmax.f32 %v1650, 0.0
      %v1659 = vmax.f32 %v1651, 0.0
      %v1660 = vmax.f32 %v1652, 0.0
      %vm1661 = vcmask 261120
      %1662 = vst.msk [vmem:[%s197] sm:$0xff] %vm1661, %v1653
      %1663 = vst.msk [vmem:[%s197 + $0x8] sm:$0xff] %vm1661, %v1654
      %1664 = vst.msk [vmem:[%s197 + $0x10] sm:$0xff] %vm1661, %v1655
      %1665 = vst.msk [vmem:[%s197 + $0x18] sm:$0xff] %vm1661, %v1656
      %1666 = vst.msk [vmem:[%s197 + $0x20] sm:$0xff] %vm1661, %v1657
      %1667 = vst.msk [vmem:[%s197 + $0x28] sm:$0xff] %vm1661, %v1658
      %1668 = vst.msk [vmem:[%s197 + $0x30] sm:$0xff] %vm1661, %v1659
      %1669 = vst.msk [vmem:[%s197 + $0x38] sm:$0xff] %vm1661, %v1660
      %p1670 = scmp.lt.s32.totalorder %s15, 1
      %s1671 = scalar_select %p1670, %s15, 1
      %s1672 = smul.addr %s1671, 8
      %s1673 = smul.addr %s1672, 8
      %s1674 = scalar_lea.vmem %s4, %s1673
      // Predicated region
      $region37: #{inception_a_unit.9} parent=35 // pred_check
        %p1675 = pneg %p122
      $region38: #{inception_a_unit.9} parent=35 // pred_check_branch
        %1677 = sbr.rel (%p1675) target = $region40
      $region39: #{inception_a_unit.9} parent=35 // pred_region
        _
      $region40: #{inception_a_unit.9} parent=35 // pred_fallthru
        _
    $region36: #{inception_a_unit.9} parent=5 // pred_fallthru
      _
    %p1678 = scmp.le.s32.totalorder 2, %s10
    // Predicated region
    $region41: #{inception_a_unit.9} parent=5 // pred_check
      %p1679 = pneg %p1678
    $region42: #{inception_a_unit.9} parent=5 // pred_check_branch
      %1681 = sbr.rel (%p1679) target = $region44
    $region43: #{inception_a_unit.9} parent=5 // pred_region
      %s1682 = ssub.s32 %s10, 2
      // Predicated region
      $region45: #{inception_a_unit.9} parent=43 // pred_check
        %p1683 = pneg %p128
      $region46: #{inception_a_unit.9} parent=43 // pred_check_branch
        %1685 = sbr.rel (%p1683) target = $region48
      $region47: #{inception_a_unit.9} parent=43 // pred_region
        %p1686 = scmp.lt.s32.totalorder %s16, 1
        %s1687 = scalar_select %p1686, %s16, 1
        %s1688 = smul.addr %s1687, 8
        %s1689 = smul.addr %s1688, 8
        %s1690 = scalar_lea.vmem %s4, %s1689
      $region48: #{inception_a_unit.9} parent=43 // pred_fallthru
        _
    $region44: #{inception_a_unit.9} parent=5 // pred_fallthru
      _
  $region6: #{inception_a_unit.9} parent=0 // loop_footer
    %s14 = sadd.s32 1, %s10
  $region7: #{inception_a_unit.9} parent=0 // loop_footer_branch
    %9 = sbr.rel target = $region3
  $region8: #{inception_a_unit.9} parent=0 // loop_exit
    _

// kernel: inception_a_unit.8
$region0: #{inception_a_unit.8}
  #allocation0 [shape = 'u32[]', space=smem, size = 0x4, offset = 0x4, fixed_abs, tag = 'smem constant byte address 0x4 - core index']
  #allocation1 [shape = 'u32[72,128]{1,0:T(1,128)}', space=vmem, size = 0x9000, scoped, tag = 'internal scratch']
  %s0 = inlined_call_operand.vmem [shape: bf16[2,10,10,96], index: 0, kind: input, shape index: {}]
  %s1 = inlined_call_operand.vmem [shape: bf16[9,96,96], index: 1, kind: input, shape index: {}]
  %s2 = inlined_call_operand.vmem [shape: f32[1,96], index: 2, kind: input, shape index: {}]
  %s3 = inlined_call_operand.vmem [shape: f32[1,96], index: 3, kind: input, shape index: {}]
  %s4 = inlined_call_operand.vmem [shape: f32[2,8,8,96], index: 4, kind: output, shape index: {}]
  %s5 = sld [smem:[#allocation0]]
  $region49: #{inception_a_unit.8} parent=0
    _
  %s7 = ssub.s32 1, %s5
  %s8 = scalar_select 0, %s7, %s5
  loop: start=0, step=1, limit=4
  $region2: #{inception_a_unit.8} parent=0 // loop_pre_header
    _
  $region3: #{inception_a_unit.8} parent=0 // loop_header
    %s10 = sphi 0, %s14
    %p11 = scmp.ge.s32.totalorder %s10, 4
    %s20 = sphi 0, %s22
    %s23 = sphi 0, %s20
    %s24 = sphi 0, %s23
    %s40 = sphi 0, %s24
    %s44 = sphi 0, %s44
    %s46 = sphi 0, %s44
    %s47 = sphi 0, %s46
    %s61 = sphi 0, %s47
    %s65 = sphi 0, %s65
    %s67 = sphi 0, %s65
    %s68 = sphi 0, %s67
    %s82 = sphi 0, %s68
    %s86 = sphi 0, %s86
    %s88 = sphi 0, %s86
    %s89 = sphi 0, %s88
    %s103 = sphi 0, %s89
    %s109 = sphi 0, %s111
    %s112 = sphi 0, %s109
    %s113 = sphi 0, %s112
    %s129 = sphi 0, %s113
  $region4: #{inception_a_unit.8} parent=0 // loop_header_branch
    %13 = sbr.rel (%p11) target = $region8
  $region5: #{inception_a_unit.8} parent=0 // loop_body
    %s15 = ssub.s32 %s10, 1
    %s16 = ssub.s32 %s10, 2
    %s17 = sadd.s32 %s10, 1
    %s18 = ssub.s32 %s10, %s17
    %p19 = scmp.eq.s32.totalorder %s18, 0
    %s21 = sadd.s32 %s20, 1
    %s22 = scalar_select %p19, %s20, %s21
    %p25 = pneg %p19
    %p26 = scmp.eq.s32.totalorder %s10, 1
    %p27 = por %p25, %p26
    %p28 = scmp.ne.s32.totalorder %s20, %s23
    %p29 = scmp.eq.s32.totalorder %s10, 0
    %p30 = por %p28, %p29
    %p31 = scmp.ne.s32.totalorder %s20, %s23
    %p32 = scmp.eq.s32.totalorder %s15, 1
    %p33 = por %p31, %p32
    %p34 = scmp.ne.s32.totalorder %s23, %s24
    %p35 = scmp.eq.s32.totalorder %s15, 0
    %p36 = por %p34, %p35
    %p37 = scmp.ne.s32.totalorder %s23, %s24
    %p38 = scmp.eq.s32.totalorder %s16, 1
    %p39 = por %p37, %p38
    %p41 = scmp.ne.s32.totalorder %s24, %s40
    %p42 = scmp.eq.s32.totalorder %s16, 0
    %p43 = por %p41, %p42
    %s45 = sadd.s32 %s44, 1
    %p48 = scmp.eq.s32.totalorder %s10, 1
    %p49 = scmp.ne.s32.totalorder %s44, %s46
    %p50 = scmp.eq.s32.totalorder %s10, 0
    %p51 = por %p49, %p50
    %p52 = scmp.ne.s32.totalorder %s44, %s46
    %p53 = scmp.eq.s32.totalorder %s15, 1
    %p54 = por %p52, %p53
    %p55 = scmp.ne.s32.totalorder %s46, %s47
    %p56 = scmp.eq.s32.totalorder %s15, 0
    %p57 = por %p55, %p56
    %p58 = scmp.ne.s32.totalorder %s46, %s47
    %p59 = scmp.eq.s32.totalorder %s16, 1
    %p60 = por %p58, %p59
    %p62 = scmp.ne.s32.totalorder %s47, %s61
    %p63 = scmp.eq.s32.totalorder %s16, 0
    %p64 = por %p62, %p63
    %s66 = sadd.s32 %s65, 1
    %p69 = scmp.eq.s32.totalorder %s10, 1
    %p70 = scmp.ne.s32.totalorder %s65, %s67
    %p71 = scmp.eq.s32.totalorder %s10, 0
    %p72 = por %p70, %p71
    %p73 = scmp.ne.s32.totalorder %s65, %s67
    %p74 = scmp.eq.s32.totalorder %s15, 1
    %p75 = por %p73, %p74
    %p76 = scmp.ne.s32.totalorder %s67, %s68
    %p77 = scmp.eq.s32.totalorder %s15, 0
    %p78 = por %p76, %p77
    %p79 = scmp.ne.s32.totalorder %s67, %s68
    %p80 = scmp.eq.s32.totalorder %s16, 1
    %p81 = por %p79, %p80
    %p83 = scmp.ne.s32.totalorder %s68, %s82
    %p84 = scmp.eq.s32.totalorder %s16, 0
    %p85 = por %p83, %p84
    %s87 = sadd.s32 %s86, 1
    %p90 = scmp.eq.s32.totalorder %s10, 1
    %p91 = scmp.ne.s32.totalorder %s86, %s88
    %p92 = scmp.eq.s32.totalorder %s10, 0
    %p93 = por %p91, %p92
    %p94 = scmp.ne.s32.totalorder %s86, %s88
    %p95 = scmp.eq.s32.totalorder %s15, 1
    %p96 = por %p94, %p95
    %p97 = scmp.ne.s32.totalorder %s88, %s89
    %p98 = scmp.eq.s32.totalorder %s15, 0
    %p99 = por %p97, %p98
    %p100 = scmp.ne.s32.totalorder %s88, %s89
    %p101 = scmp.eq.s32.totalorder %s16, 1
    %p102 = por %p100, %p101
    %p104 = scmp.ne.s32.totalorder %s89, %s103
    %p105 = scmp.eq.s32.totalorder %s16, 0
    %p106 = por %p104, %p105
    %s107 = ssub.s32 %s10, %s17
    %p108 = scmp.eq.s32.totalorder %s107, 0
    %s110 = sadd.s32 %s109, 1
    %s111 = scalar_select %p108, %s109, %s110
    %p114 = pneg %p108
    %p115 = scmp.eq.s32.totalorder %s10, 1
    %p116 = por %p114, %p115
    %p117 = scmp.ne.s32.totalorder %s109, %s112
    %p118 = scmp.eq.s32.totalorder %s10, 0
    %p119 = por %p117, %p118
    %p120 = scmp.ne.s32.totalorder %s109, %s112
    %p121 = scmp.eq.s32.totalorder %s15, 1
    %p122 = por %p120, %p121
    %p123 = scmp.ne.s32.totalorder %s112, %s113
    %p124 = scmp.eq.s32.totalorder %s15, 0
    %p125 = por %p123, %p124
    %p126 = scmp.ne.s32.totalorder %s112, %s113
    %p127 = scmp.eq.s32.totalorder %s16, 1
    %p128 = por %p126, %p127
    %p130 = scmp.ne.s32.totalorder %s113, %s129
    %p131 = scmp.eq.s32.totalorder %s16, 0
    %p132 = por %p130, %p131
    %p133 = scmp.le.s32.totalorder 1, %s10
    %p134 = scmp.lt.s32.totalorder %s10, 3
    %p135 = pnand %p133, %p134
    %p136 = pneg %p135
    // Predicated region
    $region9: #{inception_a_unit.8} parent=5 // pred_check
      _
    $region10: #{inception_a_unit.8} parent=5 // pred_check_branch
      %138 = sbr.rel (%p135) target = $region12
    $region11: #{inception_a_unit.8} parent=5 // pred_region
      %s139 = ssub.s32 %s10, 1
      // Predicated region
      $region13: #{inception_a_unit.8} parent=11 // pred_check
        %p140 = pneg %p57
      $region14: #{inception_a_unit.8} parent=11 // pred_check_branch
        %142 = sbr.rel (%p140) target = $region16
      $region15: #{inception_a_unit.8} parent=11 // pred_region
        _
      $region16: #{inception_a_unit.8} parent=11 // pred_fallthru
        _
      // Predicated region
      $region17: #{inception_a_unit.8} parent=11 // pred_check
        %p143 = pneg %p78
      $region18: #{inception_a_unit.8} parent=11 // pred_check_branch
        %145 = sbr.rel (%p143) target = $region20
      $region19: #{inception_a_unit.8} parent=11 // pred_region
        _
      $region20: #{inception_a_unit.8} parent=11 // pred_fallthru
        _
      // Predicated region
      $region21: #{inception_a_unit.8} parent=11 // pred_check
        %p146 = pneg %p99
      $region22: #{inception_a_unit.8} parent=11 // pred_check_branch
        %148 = sbr.rel (%p146) target = $region24
      $region23: #{inception_a_unit.8} parent=11 // pred_region
        _
      $region24: #{inception_a_unit.8} parent=11 // pred_fallthru
        _
    $region12: #{inception_a_unit.8} parent=5 // pred_fallthru
      _
    %p149 = scmp.lt.s32.totalorder %s10, 2
    // Predicated region
    $region25: #{inception_a_unit.8} parent=5 // pred_check
      %p150 = pneg %p149
    $region26: #{inception_a_unit.8} parent=5 // pred_check_branch
      %152 = sbr.rel (%p150) target = $region28
    $region27: #{inception_a_unit.8} parent=5 // pred_region
      // Predicated region
      $region29: #{inception_a_unit.8} parent=27 // pred_check
        %p153 = pneg %p30
      $region30: #{inception_a_unit.8} parent=27 // pred_check_branch
        %155 = sbr.rel (%p153) target = $region32
      $region31: #{inception_a_unit.8} parent=27 // pred_region
        %p156 = scmp.lt.s32.totalorder %s10, 1
        %s157 = scalar_select %p156, %s10, 1
        %s158 = smul.addr %s157, 20
        %s159 = smul.addr %s158, 4
        %s160 = scalar_lea.vmem %s0, %s159
      $region32: #{inception_a_unit.8} parent=27 // pred_fallthru
        _
    $region28: #{inception_a_unit.8} parent=5 // pred_fallthru
      _
    %p161 = scmp.le.s32.totalorder 1, %s10
    %p162 = scmp.lt.s32.totalorder %s10, 3
    %p163 = pnand %p161, %p162
    %p164 = pneg %p163
    // Predicated region
    $region33: #{inception_a_unit.8} parent=5 // pred_check
      _
    $region34: #{inception_a_unit.8} parent=5 // pred_check_branch
      %166 = sbr.rel (%p163) target = $region36
    $region35: #{inception_a_unit.8} parent=5 // pred_region
      %s167 = ssub.s32 %s10, 1
      %p168 = scmp.lt.s32.totalorder %s15, 1
      %s169 = scalar_select %p168, %s15, 1
      %s170 = smul.addr %s169, 20
      %s171 = smul.addr %s170, 4
      %s172 = scalar_lea.vmem %s0, %s171
      %p173 = pneg %p36
      %p174 = pneg %p33
      %p175 = pneg %p57
      %p176 = pneg %p54
      %p177 = pneg %p78
      %p178 = pneg %p75
      %p179 = pneg %p99
      %p180 = pneg %p96
      %p181 = pneg %p125
      %p182 = pneg %p122
      %p183 = scmp.lt.s32.totalorder %s15, 1
      %s184 = scalar_select %p183, %s15, 1
      %s185 = smul.addr %s184, 8
      %s186 = smul.addr %s185, 8
      %s187 = scalar_lea.vmem %s4, %s186
      %p188 = scmp.lt.s32.totalorder %s15, 1
      %s189 = scalar_select %p188, %s15, 1
      %s190 = smul.addr %s189, 20
      %s191 = smul.addr %s190, 4
      %s192 = scalar_lea.vmem %s0, %s191
      %p193 = scmp.lt.s32.totalorder %s15, 1
      %s194 = scalar_select %p193, %s15, 1
      %s195 = smul.addr %s194, 8
      %s196 = smul.addr %s195, 8
      %s197 = scalar_lea.vmem %s4, %s196
      %v199 = vld [vmem:[%s192] sm:$0xf]
      %v200 = vld [vmem:[%s192 + $0x8] sm:$0xf]
      %v201 = vld [vmem:[%s192 + $0x10] sm:$0xf]
      %v202 = vld [vmem:[%s192 + $0x18] sm:$0xf]
      %v203 = vld [vmem:[%s192 + $0x20] sm:$0xf]
      %v204 = vld [vmem:[%s192 + $0x28] sm:$0xf]
      %v205 = vld [vmem:[%s192 + $0x30] sm:$0xf]
      %v206 = vld [vmem:[%s192 + $0x38] sm:$0xf]
      %v207 = vld [vmem:[%s1] sm:$0xf]
      %v208 = vld [vmem:[%s1 + $0x4] sm:$0xf]
      %v209 = vld [vmem:[%s1 + $0x8] sm:$0xf]
      %v210 = vld [vmem:[%s1 + $0xc] sm:$0xf]
      %v211 = vld [vmem:[%s1 + $0x10] sm:$0xf]
      %v212 = vld [vmem:[%s1 + $0x14] sm:$0xf]
      %v213 = vld [vmem:[%s1 + $0x18] sm:$0xf]
      %v214 = vld [vmem:[%s1 + $0x1c] sm:$0xf]
      %v215 = vld [vmem:[%s1 + $0x20] sm:$0xf]
      %v216 = vld [vmem:[%s1 + $0x24] sm:$0xf]
      %v217 = vld [vmem:[%s1 + $0x28] sm:$0xf]
      %v218 = vld [vmem:[%s1 + $0x2c] sm:$0xf]
      %v219 = vld [vmem:[%s192 + $0x4] sm:$0x1]
      %v220 = vld [vmem:[%s192 + $0xc] sm:$0x1]
      %v221 = vld [vmem:[%s192 + $0x14] sm:$0x1]
      %v222 = vld [vmem:[%s192 + $0x1c] sm:$0x1]
      %v223 = vld [vmem:[%s192 + $0x24] sm:$0x1]
      %v224 = vld [vmem:[%s192 + $0x2c] sm:$0x1]
      %v225 = vld [vmem:[%s192 + $0x34] sm:$0x1]
      %v226 = vld [vmem:[%s192 + $0x3c] sm:$0x1]
      %vm227 = vsmask.f32 3328
      %vm228 = vsmask.f32 7440
      %vm229 = vmor %vm227, %vm228
      %v231 = vshrl.u32 %v199, 16
      %v233 = vrot.slane %v231, 4
      %v234 = vshll.u32 %v199, 16
      %v236 = vrot.slane %v234, 5
      %v237 = vor.u32 %v233, %v236
      %v238 = vrot.slane %v237, 4
      %v240 = vshll.u32 %v219, 16
      %v242 = vrot.slane %v240, 5
      %v243 = vsel %vm229, %v238, %v242
      %v245 = vshrl.u32 %v200, 16
      %v247 = vrot.slane %v245, 4
      %v248 = vshll.u32 %v200, 16
      %v250 = vrot.slane %v248, 5
      %v251 = vor.u32 %v247, %v250
      %v252 = vrot.slane %v251, 4
      %v254 = vshll.u32 %v220, 16
      %v256 = vrot.slane %v254, 5
      %v257 = vsel %vm229, %v252, %v256
      %v259 = vshrl.u32 %v201, 16
      %v261 = vrot.slane %v259, 4
      %v262 = vshll.u32 %v201, 16
      %v264 = vrot.slane %v262, 5
      %v265 = vor.u32 %v261, %v264
      %v266 = vrot.slane %v265, 4
      %v268 = vshll.u32 %v221, 16
      %v270 = vrot.slane %v268, 5
      %v271 = vsel %vm229, %v266, %v270
      %v273 = vshrl.u32 %v202, 16
      %v275 = vrot.slane %v273, 4
      %v276 = vshll.u32 %v202, 16
      %v278 = vrot.slane %v276, 5
      %v279 = vor.u32 %v275, %v278
      %v280 = vrot.slane %v279, 4
      %v282 = vshll.u32 %v222, 16
      %v284 = vrot.slane %v282, 5
      %v285 = vsel %vm229, %v280, %v284
      %v287 = vshrl.u32 %v203, 16
      %v289 = vrot.slane %v287, 4
      %v290 = vshll.u32 %v203, 16
      %v292 = vrot.slane %v290, 5
      %v293 = vor.u32 %v289, %v292
      %v294 = vrot.slane %v293, 4
      %v296 = vshll.u32 %v223, 16
      %v298 = vrot.slane %v296, 5
      %v299 = vsel %vm229, %v294, %v298
      %v301 = vshrl.u32 %v204, 16
      %v303 = vrot.slane %v301, 4
      %v304 = vshll.u32 %v204, 16
      %v306 = vrot.slane %v304, 5
      %v307 = vor.u32 %v303, %v306
      %v308 = vrot.slane %v307, 4
      %v310 = vshll.u32 %v224, 16
      %v312 = vrot.slane %v310, 5
      %v313 = vsel %vm229, %v308, %v312
      %v315 = vshrl.u32 %v205, 16
      %v317 = vrot.slane %v315, 4
      %v318 = vshll.u32 %v205, 16
      %v320 = vrot.slane %v318, 5
      %v321 = vor.u32 %v317, %v320
      %v322 = vrot.slane %v321, 4
      %v324 = vshll.u32 %v225, 16
      %v326 = vrot.slane %v324, 5
      %v327 = vsel %vm229, %v322, %v326
      %v329 = vshrl.u32 %v206, 16
      %v331 = vrot.slane %v329, 4
      %v332 = vshll.u32 %v206, 16
      %v334 = vrot.slane %v332, 5
      %v335 = vor.u32 %v331, %v334
      %v336 = vrot.slane %v335, 4
      %v338 = vshll.u32 %v226, 16
      %v340 = vrot.slane %v338, 5
      %v341 = vsel %vm229, %v336, %v340
      %s342 = scalar_lea.vmem %s1, 48
      %v343 = vld [vmem:[%s342] sm:$0xf]
      %v344 = vld [vmem:[%s342 + $0x4] sm:$0xf]
      %v345 = vld [vmem:[%s342 + $0x8] sm:$0xf]
      %v346 = vld [vmem:[%s342 + $0xc] sm:$0xf]
      %v347 = vld [vmem:[%s342 + $0x10] sm:$0xf]
      %v348 = vld [vmem:[%s342 + $0x14] sm:$0xf]
      %v349 = vld [vmem:[%s342 + $0x18] sm:$0xf]
      %v350 = vld [vmem:[%s342 + $0x1c] sm:$0xf]
      %v351 = vld [vmem:[%s342 + $0x20] sm:$0xf]
      %v352 = vld [vmem:[%s342 + $0x24] sm:$0xf]
      %v353 = vld [vmem:[%s342 + $0x28] sm:$0xf]
      %v354 = vld [vmem:[%s342 + $0x2c] sm:$0xf]
      %v355 = vunpack.c.l.b16 %v243
      %v356 = vunpack.c.l.b16 %v257
      %v357 = vunpack.c.l.b16 %v271
      %v358 = vunpack.c.l.b16 %v285
      %v359 = vunpack.c.l.b16 %v299
      %v360 = vunpack.c.l.b16 %v313
      %v361 = vunpack.c.l.b16 %v327
      %v362 = vunpack.c.l.b16 %v341
      %v363 = vpack.c.b16 %v356, %v355
      %v364 = vpack.c.b16 %v358, %v357
      %v365 = vpack.c.b16 %v360, %v359
      %v366 = vpack.c.b16 %v362, %v361
      %v379 = vunpack.c.l.b16 %v343
      %v380 = vunpack.c.l.b16 %v344
      %v381 = vunpack.c.l.b16 %v345
      %v382 = vunpack.c.l.b16 %v346
      %v383 = vunpack.c.l.b16 %v347
      %v384 = vunpack.c.l.b16 %v348
      %v385 = vunpack.c.l.b16 %v349
      %v386 = vunpack.c.l.b16 %v350
      %v387 = vunpack.c.l.b16 %v351
      %v388 = vunpack.c.l.b16 %v352
      %v389 = vunpack.c.l.b16 %v353
      %v390 = vunpack.c.l.b16 %v354
      %v391 = vpack.c.b16 %v380, %v379
      %v392 = vpack.c.b16 %v382, %v381
      %v393 = vpack.c.b16 %v384, %v383
      %v394 = vpack.c.b16 %v386, %v385
      %v395 = vpack.c.b16 %v388, %v387
      %v396 = vpack.c.b16 %v390, %v389
      %vm403 = vcmask 785408
      %v405 = vsel %vm403, %v363, 0
      %v408 = vsel %vm403, %v364, 0
      %v411 = vsel %vm403, %v365, 0
      %v414 = vsel %vm403, %v366, 0
      %416 = vmatpush.bf16.msra.mxu0 0
      %417 = vmatpush.bf16.msra.mxu0 0
      %418 = vmatpush.bf16.msra.mxu0 %v396
      %419 = vmatpush.bf16.msra.mxu0 %v395
      %420 = vmatpush.bf16.msra.mxu0 %v394
      %421 = vmatpush.bf16.msra.mxu0 %v393
      %422 = vmatpush.bf16.msra.mxu0 %v392
      %423 = vmatpush.bf16.msra.mxu0 %v391
      %424 = vmatmul.bf16.gmra.mxu0 %v405
      %v425 = vpop.f32.mrf.mxu0
      %v426 = vadd.f32 0.0, %v425
      %v427 = vpop.f32.mrf.mxu0
      %v428 = vadd.f32 0.0, %v427
      %429 = vmatmul.bf16.gmra.mxu0 %v408
      %v430 = vpop.f32.mrf.mxu0
      %v431 = vadd.f32 0.0, %v430
      %v432 = vpop.f32.mrf.mxu0
      %v433 = vadd.f32 0.0, %v432
      %434 = vmatmul.bf16.gmra.mxu0 %v411
      %v435 = vpop.f32.mrf.mxu0
      %v436 = vadd.f32 0.0, %v435
      %v437 = vpop.f32.mrf.mxu0
      %v438 = vadd.f32 0.0, %v437
      %439 = vmatmul.bf16.gmra.mxu0 %v414
      %v440 = vpop.f32.mrf.mxu0
      %v441 = vadd.f32 0.0, %v440
      %v442 = vpop.f32.mrf.mxu0
      %v443 = vadd.f32 0.0, %v442
      %444 = vdwg.mxu0
      %v453 = vunpack.c.l.b16 %v199
      %v454 = vunpack.c.l.b16 %v200
      %v455 = vunpack.c.l.b16 %v201
      %v456 = vunpack.c.l.b16 %v202
      %v457 = vunpack.c.l.b16 %v203
      %v458 = vunpack.c.l.b16 %v204
      %v459 = vunpack.c.l.b16 %v205
      %v460 = vunpack.c.l.b16 %v206
      %v461 = vpack.c.b16 %v454, %v453
      %v462 = vpack.c.b16 %v456, %v455
      %v463 = vpack.c.b16 %v458, %v457
      %v464 = vpack.c.b16 %v460, %v459
      %v477 = vunpack.c.l.b16 %v207
      %v478 = vunpack.c.l.b16 %v208
      %v479 = vunpack.c.l.b16 %v209
      %v480 = vunpack.c.l.b16 %v210
      %v481 = vunpack.c.l.b16 %v211
      %v482 = vunpack.c.l.b16 %v212
      %v483 = vunpack.c.l.b16 %v213
      %v484 = vunpack.c.l.b16 %v214
      %v485 = vunpack.c.l.b16 %v215
      %v486 = vunpack.c.l.b16 %v216
      %v487 = vunpack.c.l.b16 %v217
      %v488 = vunpack.c.l.b16 %v218
      %v489 = vpack.c.b16 %v478, %v477
      %v490 = vpack.c.b16 %v480, %v479
      %v491 = vpack.c.b16 %v482, %v481
      %v492 = vpack.c.b16 %v484, %v483
      %v493 = vpack.c.b16 %v486, %v485
      %v494 = vpack.c.b16 %v488, %v487
      %v502 = vsel %vm403, %v461, 0
      %v505 = vsel %vm403, %v462, 0
      %v508 = vsel %vm403, %v463, 0
      %v511 = vsel %vm403, %v464, 0
      %513 = vmatpush.bf16.msra.mxu0 0
      %514 = vmatpush.bf16.msra.mxu0 0
      %515 = vmatpush.bf16.msra.mxu0 %v494
      %516 = vmatpush.bf16.msra.mxu0 %v493
      %517 = vmatpush.bf16.msra.mxu0 %v492
      %518 = vmatpush.bf16.msra.mxu0 %v491
      %519 = vmatpush.bf16.msra.mxu0 %v490
      %520 = vmatpush.bf16.msra.mxu0 %v489
      %521 = vmatmul.bf16.gmra.mxu0 %v502
      %v522 = vpop.f32.mrf.mxu0
      %v523 = vadd.f32 %v426, %v522
      %v524 = vpop.f32.mrf.mxu0
      %v525 = vadd.f32 %v428, %v524
      %526 = vmatmul.bf16.gmra.mxu0 %v505
      %v527 = vpop.f32.mrf.mxu0
      %v528 = vadd.f32 %v431, %v527
      %v529 = vpop.f32.mrf.mxu0
      %v530 = vadd.f32 %v433, %v529
      %531 = vmatmul.bf16.gmra.mxu0 %v508
      %v532 = vpop.f32.mrf.mxu0
      %v533 = vadd.f32 %v436, %v532
      %v534 = vpop.f32.mrf.mxu0
      %v535 = vadd.f32 %v438, %v534
      %536 = vmatmul.bf16.gmra.mxu0 %v511
      %v537 = vpop.f32.mrf.mxu0
      %v538 = vadd.f32 %v441, %v537
      %v539 = vpop.f32.mrf.mxu0
      %v540 = vadd.f32 %v443, %v539
      %541 = vdwg.mxu0
      %v542 = vld [vmem:[%s192] sm:$0xe]
      %v543 = vld [vmem:[%s192 + $0x8] sm:$0xe]
      %v544 = vld [vmem:[%s192 + $0x10] sm:$0xe]
      %v545 = vld [vmem:[%s192 + $0x18] sm:$0xe]
      %v546 = vld [vmem:[%s192 + $0x20] sm:$0xe]
      %v547 = vld [vmem:[%s192 + $0x28] sm:$0xe]
      %v548 = vld [vmem:[%s192 + $0x30] sm:$0xe]
      %v549 = vld [vmem:[%s192 + $0x38] sm:$0xe]
      %vm566 = vcmask 1042432
      %vm567 = vcmask 1046532
      %vm568 = vmor %vm566, %vm567
      %v569 = vrot.slane %v542, 5
      %v570 = vrot.slane %v569, 4
      %v571 = vrot.slane %v219, 5
      %v572 = vsel %vm568, %v570, %v571
      %v573 = vrot.slane %v543, 5
      %v574 = vrot.slane %v573, 4
      %v575 = vrot.slane %v220, 5
      %v576 = vsel %vm568, %v574, %v575
      %v577 = vrot.slane %v544, 5
      %v578 = vrot.slane %v577, 4
      %v579 = vrot.slane %v221, 5
      %v580 = vsel %vm568, %v578, %v579
      %v581 = vrot.slane %v545, 5
      %v582 = vrot.slane %v581, 4
      %v583 = vrot.slane %v222, 5
      %v584 = vsel %vm568, %v582, %v583
      %v585 = vrot.slane %v546, 5
      %v586 = vrot.slane %v585, 4
      %v587 = vrot.slane %v223, 5
      %v588 = vsel %vm568, %v586, %v587
      %v589 = vrot.slane %v547, 5
      %v590 = vrot.slane %v589, 4
      %v591 = vrot.slane %v224, 5
      %v592 = vsel %vm568, %v590, %v591
      %v593 = vrot.slane %v548, 5
      %v594 = vrot.slane %v593, 4
      %v595 = vrot.slane %v225, 5
      %v596 = vsel %vm568, %v594, %v595
      %v597 = vrot.slane %v549, 5
      %v598 = vrot.slane %v597, 4
      %v599 = vrot.slane %v226, 5
      %v600 = vsel %vm568, %v598, %v599
      %s601 = scalar_lea.vmem %s1, 96
      %v602 = vld [vmem:[%s601] sm:$0xf]
      %v603 = vld [vmem:[%s601 + $0x4] sm:$0xf]
      %v604 = vld [vmem:[%s601 + $0x8] sm:$0xf]
      %v605 = vld [vmem:[%s601 + $0xc] sm:$0xf]
      %v606 = vld [vmem:[%s601 + $0x10] sm:$0xf]
      %v607 = vld [vmem:[%s601 + $0x14] sm:$0xf]
      %v608 = vld [vmem:[%s601 + $0x18] sm:$0xf]
      %v609 = vld [vmem:[%s601 + $0x1c] sm:$0xf]
      %v610 = vld [vmem:[%s601 + $0x20] sm:$0xf]
      %v611 = vld [vmem:[%s601 + $0x24] sm:$0xf]
      %v612 = vld [vmem:[%s601 + $0x28] sm:$0xf]
      %v613 = vld [vmem:[%s601 + $0x2c] sm:$0xf]
      %v614 = vunpack.c.l.b16 %v572
      %v615 = vunpack.c.l.b16 %v576
      %v616 = vunpack.c.l.b16 %v580
      %v617 = vunpack.c.l.b16 %v584
      %v618 = vunpack.c.l.b16 %v588
      %v619 = vunpack.c.l.b16 %v592
      %v620 = vunpack.c.l.b16 %v596
      %v621 = vunpack.c.l.b16 %v600
      %v622 = vpack.c.b16 %v615, %v614
      %v623 = vpack.c.b16 %v617, %v616
      %v624 = vpack.c.b16 %v619, %v618
      %v625 = vpack.c.b16 %v621, %v620
      %v638 = vunpack.c.l.b16 %v602
      %v639 = vunpack.c.l.b16 %v603
      %v640 = vunpack.c.l.b16 %v604
      %v641 = vunpack.c.l.b16 %v605
      %v642 = vunpack.c.l.b16 %v606
      %v643 = vunpack.c.l.b16 %v607
      %v644 = vunpack.c.l.b16 %v608
      %v645 = vunpack.c.l.b16 %v609
      %v646 = vunpack.c.l.b16 %v610
      %v647 = vunpack.c.l.b16 %v611
      %v648 = vunpack.c.l.b16 %v612
      %v649 = vunpack.c.l.b16 %v613
      %v650 = vpack.c.b16 %v639, %v638
      %v651 = vpack.c.b16 %v641, %v640
      %v652 = vpack.c.b16 %v643, %v642
      %v653 = vpack.c.b16 %v645, %v644
      %v654 = vpack.c.b16 %v647, %v646
      %v655 = vpack.c.b16 %v649, %v648
      %v663 = vsel %vm403, %v622, 0
      %v666 = vsel %vm403, %v623, 0
      %v669 = vsel %vm403, %v624, 0
      %v672 = vsel %vm403, %v625, 0
      %674 = vmatpush.bf16.msra.mxu0 0
      %675 = vmatpush.bf16.msra.mxu0 0
      %676 = vmatpush.bf16.msra.mxu0 %v655
      %677 = vmatpush.bf16.msra.mxu0 %v654
      %678 = vmatpush.bf16.msra.mxu0 %v653
      %679 = vmatpush.bf16.msra.mxu0 %v652
      %680 = vmatpush.bf16.msra.mxu0 %v651
      %681 = vmatpush.bf16.msra.mxu0 %v650
      %682 = vmatmul.bf16.gmra.mxu0 %v663
      %v683 = vpop.f32.mrf.mxu0
      %v684 = vadd.f32 0.0, %v683
      %v685 = vpop.f32.mrf.mxu0
      %v686 = vadd.f32 0.0, %v685
      %687 = vmatmul.bf16.gmra.mxu0 %v666
      %v688 = vpop.f32.mrf.mxu0
      %v689 = vadd.f32 0.0, %v688
      %v690 = vpop.f32.mrf.mxu0
      %v691 = vadd.f32 0.0, %v690
      %692 = vmatmul.bf16.gmra.mxu0 %v669
      %v693 = vpop.f32.mrf.mxu0
      %v694 = vadd.f32 0.0, %v693
      %v695 = vpop.f32.mrf.mxu0
      %v696 = vadd.f32 0.0, %v695
      %697 = vmatmul.bf16.gmra.mxu0 %v672
      %v698 = vpop.f32.mrf.mxu0
      %v699 = vadd.f32 0.0, %v698
      %v700 = vpop.f32.mrf.mxu0
      %v701 = vadd.f32 0.0, %v700
      %702 = vdwg.mxu0
      %v703 = vadd.f32 %v523, %v684
      %v704 = vadd.f32 %v525, %v686
      %v705 = vadd.f32 %v528, %v689
      %v706 = vadd.f32 %v530, %v691
      %v707 = vadd.f32 %v533, %v694
      %v708 = vadd.f32 %v535, %v696
      %v709 = vadd.f32 %v538, %v699
      %v710 = vadd.f32 %v540, %v701
      %s711 = scalar_lea.vmem %s192, 8
      %v712 = vld [vmem:[%s711] sm:$0xf]
      %v713 = vld [vmem:[%s711 + $0x8] sm:$0xf]
      %v714 = vld [vmem:[%s711 + $0x10] sm:$0xf]
      %v715 = vld [vmem:[%s711 + $0x18] sm:$0xf]
      %v716 = vld [vmem:[%s711 + $0x20] sm:$0xf]
      %v717 = vld [vmem:[%s711 + $0x28] sm:$0xf]
      %v718 = vld [vmem:[%s711 + $0x30] sm:$0xf]
      %v719 = vld [vmem:[%s711 + $0x38] sm:$0xf]
      %s720 = scalar_lea.vmem %s1, 144
      %v721 = vld [vmem:[%s720] sm:$0xf]
      %v722 = vld [vmem:[%s720 + $0x4] sm:$0xf]
      %v723 = vld [vmem:[%s720 + $0x8] sm:$0xf]
      %v724 = vld [vmem:[%s720 + $0xc] sm:$0xf]
      %v725 = vld [vmem:[%s720 + $0x10] sm:$0xf]
      %v726 = vld [vmem:[%s720 + $0x14] sm:$0xf]
      %v727 = vld [vmem:[%s720 + $0x18] sm:$0xf]
      %v728 = vld [vmem:[%s720 + $0x1c] sm:$0xf]
      %v729 = vld [vmem:[%s720 + $0x20] sm:$0xf]
      %v730 = vld [vmem:[%s720 + $0x24] sm:$0xf]
      %v731 = vld [vmem:[%s720 + $0x28] sm:$0xf]
      %v732 = vld [vmem:[%s720 + $0x2c] sm:$0xf]
      %v741 = vunpack.c.l.b16 %v712
      %v742 = vunpack.c.l.b16 %v713
      %v743 = vunpack.c.l.b16 %v714
      %v744 = vunpack.c.l.b16 %v715
      %v745 = vunpack.c.l.b16 %v716
      %v746 = vunpack.c.l.b16 %v717
      %v747 = vunpack.c.l.b16 %v718
      %v748 = vunpack.c.l.b16 %v719
      %v749 = vpack.c.b16 %v742, %v741
      %v750 = vpack.c.b16 %v744, %v743
      %v751 = vpack.c.b16 %v746, %v745
      %v752 = vpack.c.b16 %v748, %v747
      %v765 = vunpack.c.l.b16 %v721
      %v766 = vunpack.c.l.b16 %v722
      %v767 = vunpack.c.l.b16 %v723
      %v768 = vunpack.c.l.b16 %v724
      %v769 = vunpack.c.l.b16 %v725
      %v770 = vunpack.c.l.b16 %v726
      %v771 = vunpack.c.l.b16 %v727
      %v772 = vunpack.c.l.b16 %v728
      %v773 = vunpack.c.l.b16 %v729
      %v774 = vunpack.c.l.b16 %v730
      %v775 = vunpack.c.l.b16 %v731
      %v776 = vunpack.c.l.b16 %v732
      %v777 = vpack.c.b16 %v766, %v765
      %v778 = vpack.c.b16 %v768, %v767
      %v779 = vpack.c.b16 %v770, %v769
      %v780 = vpack.c.b16 %v772, %v771
      %v781 = vpack.c.b16 %v774, %v773
      %v782 = vpack.c.b16 %v776, %v775
      %v790 = vsel %vm403, %v749, 0
      %v793 = vsel %vm403, %v750, 0
      %v796 = vsel %vm403, %v751, 0
      %v799 = vsel %vm403, %v752, 0
      %801 = vmatpush.bf16.msra.mxu0 0
      %802 = vmatpush.bf16.msra.mxu0 0
      %803 = vmatpush.bf16.msra.mxu0 %v782
      %804 = vmatpush.bf16.msra.mxu0 %v781
      %805 = vmatpush.bf16.msra.mxu0 %v780
      %806 = vmatpush.bf16.msra.mxu0 %v779
      %807 = vmatpush.bf16.msra.mxu0 %v778
      %808 = vmatpush.bf16.msra.mxu0 %v777
      %809 = vmatmul.bf16.gmra.mxu0 %v790
      %v810 = vpop.f32.mrf.mxu0
      %v811 = vadd.f32 0.0, %v810
      %v812 = vpop.f32.mrf.mxu0
      %v813 = vadd.f32 0.0, %v812
      %814 = vmatmul.bf16.gmra.mxu0 %v793
      %v815 = vpop.f32.mrf.mxu0
      %v816 = vadd.f32 0.0, %v815
      %v817 = vpop.f32.mrf.mxu0
      %v818 = vadd.f32 0.0, %v817
      %819 = vmatmul.bf16.gmra.mxu0 %v796
      %v820 = vpop.f32.mrf.mxu0
      %v821 = vadd.f32 0.0, %v820
      %v822 = vpop.f32.mrf.mxu0
      %v823 = vadd.f32 0.0, %v822
      %824 = vmatmul.bf16.gmra.mxu0 %v799
      %v825 = vpop.f32.mrf.mxu0
      %v826 = vadd.f32 0.0, %v825
      %v827 = vpop.f32.mrf.mxu0
      %v828 = vadd.f32 0.0, %v827
      %829 = vdwg.mxu0
      %v830 = vadd.f32 %v703, %v811
      %v831 = vadd.f32 %v704, %v813
      %v832 = vadd.f32 %v705, %v816
      %v833 = vadd.f32 %v706, %v818
      %v834 = vadd.f32 %v707, %v821
      %v835 = vadd.f32 %v708, %v823
      %v836 = vadd.f32 %v709, %v826
      %v837 = vadd.f32 %v710, %v828
      %v838 = vld [vmem:[%s711] sm:$0xf]
      %v839 = vld [vmem:[%s711 + $0x4] sm:$0x1]
      %v840 = vld [vmem:[%s711 + $0x8] sm:$0xf]
      %v841 = vld [vmem:[%s711 + $0xc] sm:$0x1]
      %v842 = vld [vmem:[%s711 + $0x10] sm:$0xf]
      %v843 = vld [vmem:[%s711 + $0x14] sm:$0x1]
      %v844 = vld [vmem:[%s711 + $0x18] sm:$0xf]
      %v845 = vld [vmem:[%s711 + $0x1c] sm:$0x1]
      %v846 = vld [vmem:[%s711 + $0x20] sm:$0xf]
      %v847 = vld [vmem:[%s711 + $0x24] sm:$0x1]
      %v848 = vld [vmem:[%s711 + $0x28] sm:$0xf]
      %v849 = vld [vmem:[%s711 + $0x2c] sm:$0x1]
      %v850 = vld [vmem:[%s711 + $0x30] sm:$0xf]
      %v851 = vld [vmem:[%s711 + $0x34] sm:$0x1]
      %v852 = vld [vmem:[%s711 + $0x38] sm:$0xf]
      %v853 = vld [vmem:[%s711 + $0x3c] sm:$0x1]
      %v855 = vshrl.u32 %v838, 16
      %v857 = vrot.slane %v855, 4
      %v858 = vshll.u32 %v838, 16
      %v860 = vrot.slane %v858, 5
      %v861 = vor.u32 %v857, %v860
      %v862 = vrot.slane %v861, 4
      %v864 = vshll.u32 %v839, 16
      %v866 = vrot.slane %v864, 5
      %v867 = vsel %vm229, %v862, %v866
      %v869 = vshrl.u32 %v840, 16
      %v871 = vrot.slane %v869, 4
      %v872 = vshll.u32 %v840, 16
      %v874 = vrot.slane %v872, 5
      %v875 = vor.u32 %v871, %v874
      %v876 = vrot.slane %v875, 4
      %v878 = vshll.u32 %v841, 16
      %v880 = vrot.slane %v878, 5
      %v881 = vsel %vm229, %v876, %v880
      %v883 = vshrl.u32 %v842, 16
      %v885 = vrot.slane %v883, 4
      %v886 = vshll.u32 %v842, 16
      %v888 = vrot.slane %v886, 5
      %v889 = vor.u32 %v885, %v888
      %v890 = vrot.slane %v889, 4
      %v892 = vshll.u32 %v843, 16
      %v894 = vrot.slane %v892, 5
      %v895 = vsel %vm229, %v890, %v894
      %v897 = vshrl.u32 %v844, 16
      %v899 = vrot.slane %v897, 4
      %v900 = vshll.u32 %v844, 16
      %v902 = vrot.slane %v900, 5
      %v903 = vor.u32 %v899, %v902
      %v904 = vrot.slane %v903, 4
      %v906 = vshll.u32 %v845, 16
      %v908 = vrot.slane %v906, 5
      %v909 = vsel %vm229, %v904, %v908
      %v911 = vshrl.u32 %v846, 16
      %v913 = vrot.slane %v911, 4
      %v914 = vshll.u32 %v846, 16
      %v916 = vrot.slane %v914, 5
      %v917 = vor.u32 %v913, %v916
      %v918 = vrot.slane %v917, 4
      %v920 = vshll.u32 %v847, 16
      %v922 = vrot.slane %v920, 5
      %v923 = vsel %vm229, %v918, %v922
      %v925 = vshrl.u32 %v848, 16
      %v927 = vrot.slane %v925, 4
      %v928 = vshll.u32 %v848, 16
      %v930 = vrot.slane %v928, 5
      %v931 = vor.u32 %v927, %v930
      %v932 = vrot.slane %v931, 4
      %v934 = vshll.u32 %v849, 16
      %v936 = vrot.slane %v934, 5
      %v937 = vsel %vm229, %v932, %v936
      %v939 = vshrl.u32 %v850, 16
      %v941 = vrot.slane %v939, 4
      %v942 = vshll.u32 %v850, 16
      %v944 = vrot.slane %v942, 5
      %v945 = vor.u32 %v941, %v944
      %v946 = vrot.slane %v945, 4
      %v948 = vshll.u32 %v851, 16
      %v950 = vrot.slane %v948, 5
      %v951 = vsel %vm229, %v946, %v950
      %v953 = vshrl.u32 %v852, 16
      %v955 = vrot.slane %v953, 4
      %v956 = vshll.u32 %v852, 16
      %v958 = vrot.slane %v956, 5
      %v959 = vor.u32 %v955, %v958
      %v960 = vrot.slane %v959, 4
      %v962 = vshll.u32 %v853, 16
      %v964 = vrot.slane %v962, 5
      %v965 = vsel %vm229, %v960, %v964
      %s966 = scalar_lea.vmem %s1, 192
      %v967 = vld [vmem:[%s966] sm:$0xf]
      %v968 = vld [vmem:[%s966 + $0x4] sm:$0xf]
      %v969 = vld [vmem:[%s966 + $0x8] sm:$0xf]
      %v970 = vld [vmem:[%s966 + $0xc] sm:$0xf]
      %v971 = vld [vmem:[%s966 + $0x10] sm:$0xf]
      %v972 = vld [vmem:[%s966 + $0x14] sm:$0xf]
      %v973 = vld [vmem:[%s966 + $0x18] sm:$0xf]
      %v974 = vld [vmem:[%s966 + $0x1c] sm:$0xf]
      %v975 = vld [vmem:[%s966 + $0x20] sm:$0xf]
      %v976 = vld [vmem:[%s966 + $0x24] sm:$0xf]
      %v977 = vld [vmem:[%s966 + $0x28] sm:$0xf]
      %v978 = vld [vmem:[%s966 + $0x2c] sm:$0xf]
      %v979 = vunpack.c.l.b16 %v867
      %v980 = vunpack.c.l.b16 %v881
      %v981 = vunpack.c.l.b16 %v895
      %v982 = vunpack.c.l.b16 %v909
      %v983 = vunpack.c.l.b16 %v923
      %v984 = vunpack.c.l.b16 %v937
      %v985 = vunpack.c.l.b16 %v951
      %v986 = vunpack.c.l.b16 %v965
      %v987 = vpack.c.b16 %v980, %v979
      %v988 = vpack.c.b16 %v982, %v981
      %v989 = vpack.c.b16 %v984, %v983
      %v990 = vpack.c.b16 %v986, %v985
      %v1003 = vunpack.c.l.b16 %v967
      %v1004 = vunpack.c.l.b16 %v968
      %v1005 = vunpack.c.l.b16 %v969
      %v1006 = vunpack.c.l.b16 %v970
      %v1007 = vunpack.c.l.b16 %v971
      %v1008 = vunpack.c.l.b16 %v972
      %v1009 = vunpack.c.l.b16 %v973
      %v1010 = vunpack.c.l.b16 %v974
      %v1011 = vunpack.c.l.b16 %v975
      %v1012 = vunpack.c.l.b16 %v976
      %v1013 = vunpack.c.l.b16 %v977
      %v1014 = vunpack.c.l.b16 %v978
      %v1015 = vpack.c.b16 %v1004, %v1003
      %v1016 = vpack.c.b16 %v1006, %v1005
      %v1017 = vpack.c.b16 %v1008, %v1007
      %v1018 = vpack.c.b16 %v1010, %v1009
      %v1019 = vpack.c.b16 %v1012, %v1011
      %v1020 = vpack.c.b16 %v1014, %v1013
      %v1028 = vsel %vm403, %v987, 0
      %v1031 = vsel %vm403, %v988, 0
      %v1034 = vsel %vm403, %v989, 0
      %v1037 = vsel %vm403, %v990, 0
      %1039 = vmatpush.bf16.msra.mxu0 0
      %1040 = vmatpush.bf16.msra.mxu0 0
      %1041 = vmatpush.bf16.msra.mxu0 %v1020
      %1042 = vmatpush.bf16.msra.mxu0 %v1019
      %1043 = vmatpush.bf16.msra.mxu0 %v1018
      %1044 = vmatpush.bf16.msra.mxu0 %v1017
      %1045 = vmatpush.bf16.msra.mxu0 %v1016
      %1046 = vmatpush.bf16.msra.mxu0 %v1015
      %1047 = vmatmul.bf16.gmra.mxu0 %v1028
      %v1048 = vpop.f32.mrf.mxu0
      %v1049 = vadd.f32 0.0, %v1048
      %v1050 = vpop.f32.mrf.mxu0
      %v1051 = vadd.f32 0.0, %v1050
      %1052 = vmatmul.bf16.gmra.mxu0 %v1031
      %v1053 = vpop.f32.mrf.mxu0
      %v1054 = vadd.f32 0.0, %v1053
      %v1055 = vpop.f32.mrf.mxu0
      %v1056 = vadd.f32 0.0, %v1055
      %1057 = vmatmul.bf16.gmra.mxu0 %v1034
      %v1058 = vpop.f32.mrf.mxu0
      %v1059 = vadd.f32 0.0, %v1058
      %v1060 = vpop.f32.mrf.mxu0
      %v1061 = vadd.f32 0.0, %v1060
      %1062 = vmatmul.bf16.gmra.mxu0 %v1037
      %v1063 = vpop.f32.mrf.mxu0
      %v1064 = vadd.f32 0.0, %v1063
      %v1065 = vpop.f32.mrf.mxu0
      %v1066 = vadd.f32 0.0, %v1065
      %1067 = vdwg.mxu0
      %v1068 = vadd.f32 %v830, %v1049
      %v1069 = vadd.f32 %v831, %v1051
      %v1070 = vadd.f32 %v832, %v1054
      %v1071 = vadd.f32 %v833, %v1056
      %v1072 = vadd.f32 %v834, %v1059
      %v1073 = vadd.f32 %v835, %v1061
      %v1074 = vadd.f32 %v836, %v1064
      %v1075 = vadd.f32 %v837, %v1066
      %v1076 = vld [vmem:[%s711] sm:$0xe]
      %v1077 = vld [vmem:[%s711 + $0x8] sm:$0xe]
      %v1078 = vld [vmem:[%s711 + $0x10] sm:$0xe]
      %v1079 = vld [vmem:[%s711 + $0x18] sm:$0xe]
      %v1080 = vld [vmem:[%s711 + $0x20] sm:$0xe]
      %v1081 = vld [vmem:[%s711 + $0x28] sm:$0xe]
      %v1082 = vld [vmem:[%s711 + $0x30] sm:$0xe]
      %v1083 = vld [vmem:[%s711 + $0x38] sm:$0xe]
      %v1100 = vrot.slane %v1076, 5
      %v1101 = vrot.slane %v1100, 4
      %v1102 = vrot.slane %v839, 5
      %v1103 = vsel %vm568, %v1101, %v1102
      %v1104 = vrot.slane %v1077, 5
      %v1105 = vrot.slane %v1104, 4
      %v1106 = vrot.slane %v841, 5
      %v1107 = vsel %vm568, %v1105, %v1106
      %v1108 = vrot.slane %v1078, 5
      %v1109 = vrot.slane %v1108, 4
      %v1110 = vrot.slane %v843, 5
      %v1111 = vsel %vm568, %v1109, %v1110
      %v1112 = vrot.slane %v1079, 5
      %v1113 = vrot.slane %v1112, 4
      %v1114 = vrot.slane %v845, 5
      %v1115 = vsel %vm568, %v1113, %v1114
      %v1116 = vrot.slane %v1080, 5
      %v1117 = vrot.slane %v1116, 4
      %v1118 = vrot.slane %v847, 5
      %v1119 = vsel %vm568, %v1117, %v1118
      %v1120 = vrot.slane %v1081, 5
      %v1121 = vrot.slane %v1120, 4
      %v1122 = vrot.slane %v849, 5
      %v1123 = vsel %vm568, %v1121, %v1122
      %v1124 = vrot.slane %v1082, 5
      %v1125 = vrot.slane %v1124, 4
      %v1126 = vrot.slane %v851, 5
      %v1127 = vsel %vm568, %v1125, %v1126
      %v1128 = vrot.slane %v1083, 5
      %v1129 = vrot.slane %v1128, 4
      %v1130 = vrot.slane %v853, 5
      %v1131 = vsel %vm568, %v1129, %v1130
      %s1132 = scalar_lea.vmem %s1, 240
      %v1133 = vld [vmem:[%s1132] sm:$0xf]
      %v1134 = vld [vmem:[%s1132 + $0x4] sm:$0xf]
      %v1135 = vld [vmem:[%s1132 + $0x8] sm:$0xf]
      %v1136 = vld [vmem:[%s1132 + $0xc] sm:$0xf]
      %v1137 = vld [vmem:[%s1132 + $0x10] sm:$0xf]
      %v1138 = vld [vmem:[%s1132 + $0x14] sm:$0xf]
      %v1139 = vld [vmem:[%s1132 + $0x18] sm:$0xf]
      %v1140 = vld [vmem:[%s1132 + $0x1c] sm:$0xf]
      %v1141 = vld [vmem:[%s1132 + $0x20] sm:$0xf]
      %v1142 = vld [vmem:[%s1132 + $0x24] sm:$0xf]
      %v1143 = vld [vmem:[%s1132 + $0x28] sm:$0xf]
      %v1144 = vld [vmem:[%s1132 + $0x2c] sm:$0xf]
      %v1145 = vunpack.c.l.b16 %v1103
      %v1146 = vunpack.c.l.b16 %v1107
      %v1147 = vunpack.c.l.b16 %v1111
      %v1148 = vunpack.c.l.b16 %v1115
      %v1149 = vunpack.c.l.b16 %v1119
      %v1150 = vunpack.c.l.b16 %v1123
      %v1151 = vunpack.c.l.b16 %v1127
      %v1152 = vunpack.c.l.b16 %v1131
      %v1153 = vpack.c.b16 %v1146, %v1145
      %v1154 = vpack.c.b16 %v1148, %v1147
      %v1155 = vpack.c.b16 %v1150, %v1149
      %v1156 = vpack.c.b16 %v1152, %v1151
      %v1169 = vunpack.c.l.b16 %v1133
      %v1170 = vunpack.c.l.b16 %v1134
      %v1171 = vunpack.c.l.b16 %v1135
      %v1172 = vunpack.c.l.b16 %v1136
      %v1173 = vunpack.c.l.b16 %v1137
      %v1174 = vunpack.c.l.b16 %v1138
      %v1175 = vunpack.c.l.b16 %v1139
      %v1176 = vunpack.c.l.b16 %v1140
      %v1177 = vunpack.c.l.b16 %v1141
      %v1178 = vunpack.c.l.b16 %v1142
      %v1179 = vunpack.c.l.b16 %v1143
      %v1180 = vunpack.c.l.b16 %v1144
      %v1181 = vpack.c.b16 %v1170, %v1169
      %v1182 = vpack.c.b16 %v1172, %v1171
      %v1183 = vpack.c.b16 %v1174, %v1173
      %v1184 = vpack.c.b16 %v1176, %v1175
      %v1185 = vpack.c.b16 %v1178, %v1177
      %v1186 = vpack.c.b16 %v1180, %v1179
      %v1194 = vsel %vm403, %v1153, 0
      %v1197 = vsel %vm403, %v1154, 0
      %v1200 = vsel %vm403, %v1155, 0
      %v1203 = vsel %vm403, %v1156, 0
      %1205 = vmatpush.bf16.msra.mxu0 0
      %1206 = vmatpush.bf16.msra.mxu0 0
      %1207 = vmatpush.bf16.msra.mxu0 %v1186
      %1208 = vmatpush.bf16.msra.mxu0 %v1185
      %1209 = vmatpush.bf16.msra.mxu0 %v1184
      %1210 = vmatpush.bf16.msra.mxu0 %v1183
      %1211 = vmatpush.bf16.msra.mxu0 %v1182
      %1212 = vmatpush.bf16.msra.mxu0 %v1181
      %1213 = vmatmul.bf16.gmra.mxu0 %v1194
      %v1214 = vpop.f32.mrf.mxu0
      %v1215 = vadd.f32 0.0, %v1214
      %v1216 = vpop.f32.mrf.mxu0
      %v1217 = vadd.f32 0.0, %v1216
      %1218 = vmatmul.bf16.gmra.mxu0 %v1197
      %v1219 = vpop.f32.mrf.mxu0
      %v1220 = vadd.f32 0.0, %v1219
      %v1221 = vpop.f32.mrf.mxu0
      %v1222 = vadd.f32 0.0, %v1221
      %1223 = vmatmul.bf16.gmra.mxu0 %v1200
      %v1224 = vpop.f32.mrf.mxu0
      %v1225 = vadd.f32 0.0, %v1224
      %v1226 = vpop.f32.mrf.mxu0
      %v1227 = vadd.f32 0.0, %v1226
      %1228 = vmatmul.bf16.gmra.mxu0 %v1203
      %v1229 = vpop.f32.mrf.mxu0
      %v1230 = vadd.f32 0.0, %v1229
      %v1231 = vpop.f32.mrf.mxu0
      %v1232 = vadd.f32 0.0, %v1231
      %1233 = vdwg.mxu0
      %v1234 = vadd.f32 %v1068, %v1215
      %v1235 = vadd.f32 %v1069, %v1217
      %v1236 = vadd.f32 %v1070, %v1220
      %v1237 = vadd.f32 %v1071, %v1222
      %v1238 = vadd.f32 %v1072, %v1225
      %v1239 = vadd.f32 %v1073, %v1227
      %v1240 = vadd.f32 %v1074, %v1230
      %v1241 = vadd.f32 %v1075, %v1232
      %s1242 = scalar_lea.vmem %s192, 16
      %v1243 = vld [vmem:[%s1242] sm:$0xf]
      %v1244 = vld [vmem:[%s1242 + $0x8] sm:$0xf]
      %v1245 = vld [vmem:[%s1242 + $0x10] sm:$0xf]
      %v1246 = vld [vmem:[%s1242 + $0x18] sm:$0xf]
      %v1247 = vld [vmem:[%s1242 + $0x20] sm:$0xf]
      %v1248 = vld [vmem:[%s1242 + $0x28] sm:$0xf]
      %v1249 = vld [vmem:[%s1242 + $0x30] sm:$0xf]
      %v1250 = vld [vmem:[%s1242 + $0x38] sm:$0xf]
      %s1251 = scalar_lea.vmem %s1, 288
      %v1252 = vld [vmem:[%s1251] sm:$0xf]
      %v1253 = vld [vmem:[%s1251 + $0x4] sm:$0xf]
      %v1254 = vld [vmem:[%s1251 + $0x8] sm:$0xf]
      %v1255 = vld [vmem:[%s1251 + $0xc] sm:$0xf]
      %v1256 = vld [vmem:[%s1251 + $0x10] sm:$0xf]
      %v1257 = vld [vmem:[%s1251 + $0x14] sm:$0xf]
      %v1258 = vld [vmem:[%s1251 + $0x18] sm:$0xf]
      %v1259 = vld [vmem:[%s1251 + $0x1c] sm:$0xf]
      %v1260 = vld [vmem:[%s1251 + $0x20] sm:$0xf]
      %v1261 = vld [vmem:[%s1251 + $0x24] sm:$0xf]
      %v1262 = vld [vmem:[%s1251 + $0x28] sm:$0xf]
      %v1263 = vld [vmem:[%s1251 + $0x2c] sm:$0xf]
      %v1272 = vunpack.c.l.b16 %v1243
      %v1273 = vunpack.c.l.b16 %v1244
      %v1274 = vunpack.c.l.b16 %v1245
      %v1275 = vunpack.c.l.b16 %v1246
      %v1276 = vunpack.c.l.b16 %v1247
      %v1277 = vunpack.c.l.b16 %v1248
      %v1278 = vunpack.c.l.b16 %v1249
      %v1279 = vunpack.c.l.b16 %v1250
      %v1280 = vpack.c.b16 %v1273, %v1272
      %v1281 = vpack.c.b16 %v1275, %v1274
      %v1282 = vpack.c.b16 %v1277, %v1276
      %v1283 = vpack.c.b16 %v1279, %v1278
      %v1296 = vunpack.c.l.b16 %v1252
      %v1297 = vunpack.c.l.b16 %v1253
      %v1298 = vunpack.c.l.b16 %v1254
      %v1299 = vunpack.c.l.b16 %v1255
      %v1300 = vunpack.c.l.b16 %v1256
      %v1301 = vunpack.c.l.b16 %v1257
      %v1302 = vunpack.c.l.b16 %v1258
      %v1303 = vunpack.c.l.b16 %v1259
      %v1304 = vunpack.c.l.b16 %v1260
      %v1305 = vunpack.c.l.b16 %v1261
      %v1306 = vunpack.c.l.b16 %v1262
      %v1307 = vunpack.c.l.b16 %v1263
      %v1308 = vpack.c.b16 %v1297, %v1296
      %v1309 = vpack.c.b16 %v1299, %v1298
      %v1310 = vpack.c.b16 %v1301, %v1300
      %v1311 = vpack.c.b16 %v1303, %v1302
      %v1312 = vpack.c.b16 %v1305, %v1304
      %v1313 = vpack.c.b16 %v1307, %v1306
      %v1321 = vsel %vm403, %v1280, 0
      %v1324 = vsel %vm403, %v1281, 0
      %v1327 = vsel %vm403, %v1282, 0
      %v1330 = vsel %vm403, %v1283, 0
      %1332 = vmatpush.bf16.msra.mxu0 0
      %1333 = vmatpush.bf16.msra.mxu0 0
      %1334 = vmatpush.bf16.msra.mxu0 %v1313
      %1335 = vmatpush.bf16.msra.mxu0 %v1312
      %1336 = vmatpush.bf16.msra.mxu0 %v1311
      %1337 = vmatpush.bf16.msra.mxu0 %v1310
      %1338 = vmatpush.bf16.msra.mxu0 %v1309
      %1339 = vmatpush.bf16.msra.mxu0 %v1308
      %1340 = vmatmul.bf16.gmra.mxu0 %v1321
      %v1341 = vpop.f32.mrf.mxu0
      %v1342 = vadd.f32 0.0, %v1341
      %v1343 = vpop.f32.mrf.mxu0
      %v1344 = vadd.f32 0.0, %v1343
      %1345 = vmatmul.bf16.gmra.mxu0 %v1324
      %v1346 = vpop.f32.mrf.mxu0
      %v1347 = vadd.f32 0.0, %v1346
      %v1348 = vpop.f32.mrf.mxu0
      %v1349 = vadd.f32 0.0, %v1348
      %1350 = vmatmul.bf16.gmra.mxu0 %v1327
      %v1351 = vpop.f32.mrf.mxu0
      %v1352 = vadd.f32 0.0, %v1351
      %v1353 = vpop.f32.mrf.mxu0
      %v1354 = vadd.f32 0.0, %v1353
      %1355 = vmatmul.bf16.gmra.mxu0 %v1330
      %v1356 = vpop.f32.mrf.mxu0
      %v1357 = vadd.f32 0.0, %v1356
      %v1358 = vpop.f32.mrf.mxu0
      %v1359 = vadd.f32 0.0, %v1358
      %1360 = vdwg.mxu0
      %v1361 = vadd.f32 %v1234, %v1342
      %v1362 = vadd.f32 %v1235, %v1344
      %v1363 = vadd.f32 %v1236, %v1347
      %v1364 = vadd.f32 %v1237, %v1349
      %v1365 = vadd.f32 %v1238, %v1352
      %v1366 = vadd.f32 %v1239, %v1354
      %v1367 = vadd.f32 %v1240, %v1357
      %v1368 = vadd.f32 %v1241, %v1359
      %v1369 = vld [vmem:[%s1242] sm:$0xf]
      %v1370 = vld [vmem:[%s1242 + $0x4] sm:$0x1]
      %v1371 = vld [vmem:[%s1242 + $0x8] sm:$0xf]
      %v1372 = vld [vmem:[%s1242 + $0xc] sm:$0x1]
      %v1373 = vld [vmem:[%s1242 + $0x10] sm:$0xf]
      %v1374 = vld [vmem:[%s1242 + $0x14] sm:$0x1]
      %v1375 = vld [vmem:[%s1242 + $0x18] sm:$0xf]
      %v1376 = vld [vmem:[%s1242 + $0x1c] sm:$0x1]
      %v1377 = vld [vmem:[%s1242 + $0x20] sm:$0xf]
      %v1378 = vld [vmem:[%s1242 + $0x24] sm:$0x1]
      %v1379 = vld [vmem:[%s1242 + $0x28] sm:$0xf]
      %v1380 = vld [vmem:[%s1242 + $0x2c] sm:$0x1]
      %v1381 = vld [vmem:[%s1242 + $0x30] sm:$0xf]
      %v1382 = vld [vmem:[%s1242 + $0x34] sm:$0x1]
      %v1383 = vld [vmem:[%s1242 + $0x38] sm:$0xf]
      %v1384 = vld [vmem:[%s1242 + $0x3c] sm:$0x1]
      %v1386 = vshrl.u32 %v1369, 16
      %v1388 = vrot.slane %v1386, 4
      %v1389 = vshll.u32 %v1369, 16
      %v1391 = vrot.slane %v1389, 5
      %v1392 = vor.u32 %v1388, %v1391
      %v1393 = vrot.slane %v1392, 4
      %v1395 = vshll.u32 %v1370, 16
      %v1397 = vrot.slane %v1395, 5
      %v1398 = vsel %vm229, %v1393, %v1397
      %v1400 = vshrl.u32 %v1371, 16
      %v1402 = vrot.slane %v1400, 4
      %v1403 = vshll.u32 %v1371, 16
      %v1405 = vrot.slane %v1403, 5
      %v1406 = vor.u32 %v1402, %v1405
      %v1407 = vrot.slane %v1406, 4
      %v1409 = vshll.u32 %v1372, 16
      %v1411 = vrot.slane %v1409, 5
      %v1412 = vsel %vm229, %v1407, %v1411
      %v1414 = vshrl.u32 %v1373, 16
      %v1416 = vrot.slane %v1414, 4
      %v1417 = vshll.u32 %v1373, 16
      %v1419 = vrot.slane %v1417, 5
      %v1420 = vor.u32 %v1416, %v1419
      %v1421 = vrot.slane %v1420, 4
      %v1423 = vshll.u32 %v1374, 16
      %v1425 = vrot.slane %v1423, 5
      %v1426 = vsel %vm229, %v1421, %v1425
      %v1428 = vshrl.u32 %v1375, 16
      %v1430 = vrot.slane %v1428, 4
      %v1431 = vshll.u32 %v1375, 16
      %v1433 = vrot.slane %v1431, 5
      %v1434 = vor.u32 %v1430, %v1433
      %v1435 = vrot.slane %v1434, 4
      %v1437 = vshll.u32 %v1376, 16
      %v1439 = vrot.slane %v1437, 5
      %v1440 = vsel %vm229, %v1435, %v1439
      %v1442 = vshrl.u32 %v1377, 16
      %v1444 = vrot.slane %v1442, 4
      %v1445 = vshll.u32 %v1377, 16
      %v1447 = vrot.slane %v1445, 5
      %v1448 = vor.u32 %v1444, %v1447
      %v1449 = vrot.slane %v1448, 4
      %v1451 = vshll.u32 %v1378, 16
      %v1453 = vrot.slane %v1451, 5
      %v1454 = vsel %vm229, %v1449, %v1453
      %v1456 = vshrl.u32 %v1379, 16
      %v1458 = vrot.slane %v1456, 4
      %v1459 = vshll.u32 %v1379, 16
      %v1461 = vrot.slane %v1459, 5
      %v1462 = vor.u32 %v1458, %v1461
      %v1463 = vrot.slane %v1462, 4
      %v1465 = vshll.u32 %v1380, 16
      %v1467 = vrot.slane %v1465, 5
      %v1468 = vsel %vm229, %v1463, %v1467
      %v1470 = vshrl.u32 %v1381, 16
      %v1472 = vrot.slane %v1470, 4
      %v1473 = vshll.u32 %v1381, 16
      %v1475 = vrot.slane %v1473, 5
      %v1476 = vor.u32 %v1472, %v1475
      %v1477 = vrot.slane %v1476, 4
      %v1479 = vshll.u32 %v1382, 16
      %v1481 = vrot.slane %v1479, 5
      %v1482 = vsel %vm229, %v1477, %v1481
      %v1484 = vshrl.u32 %v1383, 16
      %v1486 = vrot.slane %v1484, 4
      %v1487 = vshll.u32 %v1383, 16
      %v1489 = vrot.slane %v1487, 5
      %v1490 = vor.u32 %v1486, %v1489
      %v1491 = vrot.slane %v1490, 4
      %v1493 = vshll.u32 %v1384, 16
      %v1495 = vrot.slane %v1493, 5
      %v1496 = vsel %vm229, %v1491, %v1495
      %s1497 = scalar_lea.vmem %s1, 336
      %v1498 = vld [vmem:[%s1497] sm:$0xf]
      %v1499 = vld [vmem:[%s1497 + $0x4] sm:$0xf]
      %v1500 = vld [vmem:[%s1497 + $0x8] sm:$0xf]
      %v1501 = vld [vmem:[%s1497 + $0xc] sm:$0xf]
      %v1502 = vld [vmem:[%s1497 + $0x10] sm:$0xf]
      %v1503 = vld [vmem:[%s1497 + $0x14] sm:$0xf]
      %v1504 = vld [vmem:[%s1497 + $0x18] sm:$0xf]
      %v1505 = vld [vmem:[%s1497 + $0x1c] sm:$0xf]
      %v1506 = vld [vmem:[%s1497 + $0x20] sm:$0xf]
      %v1507 = vld [vmem:[%s1497 + $0x24] sm:$0xf]
      %v1508 = vld [vmem:[%s1497 + $0x28] sm:$0xf]
      %v1509 = vld [vmem:[%s1497 + $0x2c] sm:$0xf]
      %v1510 = vunpack.c.l.b16 %v1398
      %v1511 = vunpack.c.l.b16 %v1412
      %v1512 = vunpack.c.l.b16 %v1426
      %v1513 = vunpack.c.l.b16 %v1440
      %v1514 = vunpack.c.l.b16 %v1454
      %v1515 = vunpack.c.l.b16 %v1468
      %v1516 = vunpack.c.l.b16 %v1482
      %v1517 = vunpack.c.l.b16 %v1496
      %v1518 = vpack.c.b16 %v1511, %v1510
      %v1519 = vpack.c.b16 %v1513, %v1512
      %v1520 = vpack.c.b16 %v1515, %v1514
      %v1521 = vpack.c.b16 %v1517, %v1516
      %v1534 = vunpack.c.l.b16 %v1498
      %v1535 = vunpack.c.l.b16 %v1499
      %v1536 = vunpack.c.l.b16 %v1500
      %v1537 = vunpack.c.l.b16 %v1501
      %v1538 = vunpack.c.l.b16 %v1502
      %v1539 = vunpack.c.l.b16 %v1503
      %v1540 = vunpack.c.l.b16 %v1504
      %v1541 = vunpack.c.l.b16 %v1505
      %v1542 = vunpack.c.l.b16 %v1506
      %v1543 = vunpack.c.l.b16 %v1507
      %v1544 = vunpack.c.l.b16 %v1508
      %v1545 = vunpack.c.l.b16 %v1509
      %v1546 = vpack.c.b16 %v1535, %v1534
      %v1547 = vpack.c.b16 %v1537, %v1536
      %v1548 = vpack.c.b16 %v1539, %v1538
      %v1549 = vpack.c.b16 %v1541, %v1540
      %v1550 = vpack.c.b16 %v1543, %v1542
      %v1551 = vpack.c.b16 %v1545, %v1544
      %v1559 = vsel %vm403, %v1518, 0
      %v1562 = vsel %vm403, %v1519, 0
      %v1565 = vsel %vm403, %v1520, 0
      %v1568 = vsel %vm403, %v1521, 0
      %1570 = vmatpush.bf16.msra.mxu0 0
      %1571 = vmatpush.bf16.msra.mxu0 0
      %1572 = vmatpush.bf16.msra.mxu0 %v1551
      %1573 = vmatpush.bf16.msra.mxu0 %v1550
      %1574 = vmatpush.bf16.msra.mxu0 %v1549
      %1575 = vmatpush.bf16.msra.mxu0 %v1548
      %1576 = vmatpush.bf16.msra.mxu0 %v1547
      %1577 = vmatpush.bf16.msra.mxu0 %v1546
      %1578 = vmatmul.bf16.gmra.mxu0 %v1559
      %v1579 = vpop.f32.mrf.mxu0
      %v1580 = vadd.f32 0.0, %v1579
      %v1581 = vpop.f32.mrf.mxu0
      %v1582 = vadd.f32 0.0, %v1581
      %1583 = vmatmul.bf16.gmra.mxu0 %v1562
      %v1584 = vpop.f32.mrf.mxu0
      %v1585 = vadd.f32 0.0, %v1584
      %v1586 = vpop.f32.mrf.mxu0
      %v1587 = vadd.f32 0.0, %v1586
      %1588 = vmatmul.bf16.gmra.mxu0 %v1565
      %v1589 = vpop.f32.mrf.mxu0
      %v1590 = vadd.f32 0.0, %v1589
      %v1591 = vpop.f32.mrf.mxu0
      %v1592 = vadd.f32 0.0, %v1591
      %1593 = vmatmul.bf16.gmra.mxu0 %v1568
      %v1594 = vpop.f32.mrf.mxu0
      %v1595 = vadd.f32 0.0, %v1594
      %v1596 = vpop.f32.mrf.mxu0
      %v1597 = vadd.f32 0.0, %v1596
      %1598 = vdwg.mxu0
      %v1599 = vadd.f32 %v1361, %v1580
      %v1600 = vadd.f32 %v1362, %v1582
      %v1601 = vadd.f32 %v1363, %v1585
      %v1602 = vadd.f32 %v1364, %v1587
      %v1603 = vadd.f32 %v1365, %v1590
      %v1604 = vadd.f32 %v1366, %v1592
      %v1605 = vadd.f32 %v1367, %v1595
      %v1606 = vadd.f32 %v1368, %v1597
      %v1607 = vld [vmem:[%s1242] sm:$0xe]
      %v1608 = vld [vmem:[%s1242 + $0x8] sm:$0xe]
      %v1609 = vld [vmem:[%s1242 + $0x10] sm:$0xe]
      %v1610 = vld [vmem:[%s1242 + $0x18] sm:$0xe]
      %v1611 = vld [vmem:[%s1242 + $0x20] sm:$0xe]
      %v1612 = vld [vmem:[%s1242 + $0x28] sm:$0xe]
      %v1613 = vld [vmem:[%s1242 + $0x30] sm:$0xe]
      %v1614 = vld [vmem:[%s1242 + $0x38] sm:$0xe]
      %v1631 = vrot.slane %v1607, 5
      %v1632 = vrot.slane %v1631, 4
      %v1633 = vrot.slane %v1370, 5
      %v1634 = vsel %vm568, %v1632, %v1633
      %v1635 = vrot.slane %v1608, 5
      %v1636 = vrot.slane %v1635, 4
      %v1637 = vrot.slane %v1372, 5
      %v1638 = vsel %vm568, %v1636, %v1637
      %v1639 = vrot.slane %v1609, 5
      %v1640 = vrot.slane %v1639, 4
      %v1641 = vrot.slane %v1374, 5
      %v1642 = vsel %vm568, %v1640, %v1641
      %v1643 = vrot.slane %v1610, 5
      %v1644 = vrot.slane %v1643, 4
      %v1645 = vrot.slane %v1376, 5
      %v1646 = vsel %vm568, %v1644, %v1645
      %v1647 = vrot.slane %v1611, 5
      %v1648 = vrot.slane %v1647, 4
      %v1649 = vrot.slane %v1378, 5
      %v1650 = vsel %vm568, %v1648, %v1649
      %v1651 = vrot.slane %v1612, 5
      %v1652 = vrot.slane %v1651, 4
      %v1653 = vrot.slane %v1380, 5
      %v1654 = vsel %vm568, %v1652, %v1653
      %v1655 = vrot.slane %v1613, 5
      %v1656 = vrot.slane %v1655, 4
      %v1657 = vrot.slane %v1382, 5
      %v1658 = vsel %vm568, %v1656, %v1657
      %v1659 = vrot.slane %v1614, 5
      %v1660 = vrot.slane %v1659, 4
      %v1661 = vrot.slane %v1384, 5
      %v1662 = vsel %vm568, %v1660, %v1661
      %s1663 = scalar_lea.vmem %s1, 384
      %v1664 = vld [vmem:[%s1663] sm:$0xf]
      %v1665 = vld [vmem:[%s1663 + $0x4] sm:$0xf]
      %v1666 = vld [vmem:[%s1663 + $0x8] sm:$0xf]
      %v1667 = vld [vmem:[%s1663 + $0xc] sm:$0xf]
      %v1668 = vld [vmem:[%s1663 + $0x10] sm:$0xf]
      %v1669 = vld [vmem:[%s1663 + $0x14] sm:$0xf]
      %v1670 = vld [vmem:[%s1663 + $0x18] sm:$0xf]
      %v1671 = vld [vmem:[%s1663 + $0x1c] sm:$0xf]
      %v1672 = vld [vmem:[%s1663 + $0x20] sm:$0xf]
      %v1673 = vld [vmem:[%s1663 + $0x24] sm:$0xf]
      %v1674 = vld [vmem:[%s1663 + $0x28] sm:$0xf]
      %v1675 = vld [vmem:[%s1663 + $0x2c] sm:$0xf]
      %v1676 = vunpack.c.l.b16 %v1634
      %v1677 = vunpack.c.l.b16 %v1638
      %v1678 = vunpack.c.l.b16 %v1642
      %v1679 = vunpack.c.l.b16 %v1646
      %v1680 = vunpack.c.l.b16 %v1650
      %v1681 = vunpack.c.l.b16 %v1654
      %v1682 = vunpack.c.l.b16 %v1658
      %v1683 = vunpack.c.l.b16 %v1662
      %v1684 = vpack.c.b16 %v1677, %v1676
      %v1685 = vpack.c.b16 %v1679, %v1678
      %v1686 = vpack.c.b16 %v1681, %v1680
      %v1687 = vpack.c.b16 %v1683, %v1682
      %v1700 = vunpack.c.l.b16 %v1664
      %v1701 = vunpack.c.l.b16 %v1665
      %v1702 = vunpack.c.l.b16 %v1666
      %v1703 = vunpack.c.l.b16 %v1667
      %v1704 = vunpack.c.l.b16 %v1668
      %v1705 = vunpack.c.l.b16 %v1669
      %v1706 = vunpack.c.l.b16 %v1670
      %v1707 = vunpack.c.l.b16 %v1671
      %v1708 = vunpack.c.l.b16 %v1672
      %v1709 = vunpack.c.l.b16 %v1673
      %v1710 = vunpack.c.l.b16 %v1674
      %v1711 = vunpack.c.l.b16 %v1675
      %v1712 = vpack.c.b16 %v1701, %v1700
      %v1713 = vpack.c.b16 %v1703, %v1702
      %v1714 = vpack.c.b16 %v1705, %v1704
      %v1715 = vpack.c.b16 %v1707, %v1706
      %v1716 = vpack.c.b16 %v1709, %v1708
      %v1717 = vpack.c.b16 %v1711, %v1710
      %v1725 = vsel %vm403, %v1684, 0
      %v1728 = vsel %vm403, %v1685, 0
      %v1731 = vsel %vm403, %v1686, 0
      %v1734 = vsel %vm403, %v1687, 0
      %1736 = vmatpush.bf16.msra.mxu0 0
      %1737 = vmatpush.bf16.msra.mxu0 0
      %1738 = vmatpush.bf16.msra.mxu0 %v1717
      %1739 = vmatpush.bf16.msra.mxu0 %v1716
      %1740 = vmatpush.bf16.msra.mxu0 %v1715
      %1741 = vmatpush.bf16.msra.mxu0 %v1714
      %1742 = vmatpush.bf16.msra.mxu0 %v1713
      %1743 = vmatpush.bf16.msra.mxu0 %v1712
      %1744 = vmatmul.bf16.gmra.mxu0 %v1725
      %v1745 = vpop.f32.mrf.mxu0
      %v1746 = vadd.f32 0.0, %v1745
      %v1747 = vpop.f32.mrf.mxu0
      %v1748 = vadd.f32 0.0, %v1747
      %1749 = vmatmul.bf16.gmra.mxu0 %v1728
      %v1750 = vpop.f32.mrf.mxu0
      %v1751 = vadd.f32 0.0, %v1750
      %v1752 = vpop.f32.mrf.mxu0
      %v1753 = vadd.f32 0.0, %v1752
      %1754 = vmatmul.bf16.gmra.mxu0 %v1731
      %v1755 = vpop.f32.mrf.mxu0
      %v1756 = vadd.f32 0.0, %v1755
      %v1757 = vpop.f32.mrf.mxu0
      %v1758 = vadd.f32 0.0, %v1757
      %1759 = vmatmul.bf16.gmra.mxu0 %v1734
      %v1760 = vpop.f32.mrf.mxu0
      %v1761 = vadd.f32 0.0, %v1760
      %v1762 = vpop.f32.mrf.mxu0
      %v1763 = vadd.f32 0.0, %v1762
      %1764 = vdwg.mxu0
      %v1765 = vadd.f32 %v1599, %v1746
      %v1766 = vadd.f32 %v1600, %v1748
      %v1767 = vadd.f32 %v1601, %v1751
      %v1768 = vadd.f32 %v1602, %v1753
      %v1769 = vadd.f32 %v1603, %v1756
      %v1770 = vadd.f32 %v1604, %v1758
      %v1771 = vadd.f32 %v1605, %v1761
      %v1772 = vadd.f32 %v1606, %v1763
      %v1773 = vld [vmem:[%s2] sm:$0x1]
      %v1775 = vperm.slane %v1773, 0
      %v1777 = vmul.f32 %v1765, %v1775
      %v1778 = vmul.f32 %v1766, %v1775
      %v1779 = vmul.f32 %v1767, %v1775
      %v1780 = vmul.f32 %v1768, %v1775
      %v1781 = vmul.f32 %v1769, %v1775
      %v1782 = vmul.f32 %v1770, %v1775
      %v1783 = vmul.f32 %v1771, %v1775
      %v1784 = vmul.f32 %v1772, %v1775
      %v1785 = vld [vmem:[%s3] sm:$0x1]
      %v1787 = vperm.slane %v1785, 0
      %v1789 = vadd.f32 %v1777, %v1787
      %v1790 = vadd.f32 %v1778, %v1787
      %v1791 = vadd.f32 %v1779, %v1787
      %v1792 = vadd.f32 %v1780, %v1787
      %v1793 = vadd.f32 %v1781, %v1787
      %v1794 = vadd.f32 %v1782, %v1787
      %v1795 = vadd.f32 %v1783, %v1787
      %v1796 = vadd.f32 %v1784, %v1787
      %v1797 = vmax.f32 %v1789, 0.0
      %v1798 = vmax.f32 %v1790, 0.0
      %v1799 = vmax.f32 %v1791, 0.0
      %v1800 = vmax.f32 %v1792, 0.0
      %v1801 = vmax.f32 %v1793, 0.0
      %v1802 = vmax.f32 %v1794, 0.0
      %v1803 = vmax.f32 %v1795, 0.0
      %v1804 = vmax.f32 %v1796, 0.0
      %1805 = vst.msk [vmem:[%s197] sm:$0xff] %vm403, %v1797
      %1806 = vst.msk [vmem:[%s197 + $0x8] sm:$0xff] %vm403, %v1798
      %1807 = vst.msk [vmem:[%s197 + $0x10] sm:$0xff] %vm403, %v1799
      %1808 = vst.msk [vmem:[%s197 + $0x18] sm:$0xff] %vm403, %v1800
      %1809 = vst.msk [vmem:[%s197 + $0x20] sm:$0xff] %vm403, %v1801
      %1810 = vst.msk [vmem:[%s197 + $0x28] sm:$0xff] %vm403, %v1802
      %1811 = vst.msk [vmem:[%s197 + $0x30] sm:$0xff] %vm403, %v1803
      %1812 = vst.msk [vmem:[%s197 + $0x38] sm:$0xff] %vm403, %v1804
      %p1813 = scmp.lt.s32.totalorder %s15, 1
      %s1814 = scalar_select %p1813, %s15, 1
      %s1815 = smul.addr %s1814, 8
      %s1816 = smul.addr %s1815, 8
      %s1817 = scalar_lea.vmem %s4, %s1816
      // Predicated region
      $region37: #{inception_a_unit.8} parent=35 // pred_check
        %p1818 = pneg %p122
      $region38: #{inception_a_unit.8} parent=35 // pred_check_branch
        %1820 = sbr.rel (%p1818) target = $region40
      $region39: #{inception_a_unit.8} parent=35 // pred_region
        _
      $region40: #{inception_a_unit.8} parent=35 // pred_fallthru
        _
    $region36: #{inception_a_unit.8} parent=5 // pred_fallthru
      _
    %p1821 = scmp.le.s32.totalorder 2, %s10
    // Predicated region
    $region41: #{inception_a_unit.8} parent=5 // pred_check
      %p1822 = pneg %p1821
    $region42: #{inception_a_unit.8} parent=5 // pred_check_branch
      %1824 = sbr.rel (%p1822) target = $region44
    $region43: #{inception_a_unit.8} parent=5 // pred_region
      %s1825 = ssub.s32 %s10, 2
      // Predicated region
      $region45: #{inception_a_unit.8} parent=43 // pred_check
        %p1826 = pneg %p128
      $region46: #{inception_a_unit.8} parent=43 // pred_check_branch
        %1828 = sbr.rel (%p1826) target = $region48
      $region47: #{inception_a_unit.8} parent=43 // pred_region
        %p1829 = scmp.lt.s32.totalorder %s16, 1
        %s1830 = scalar_select %p1829, %s16, 1
        %s1831 = smul.addr %s1830, 8
        %s1832 = smul.addr %s1831, 8
        %s1833 = scalar_lea.vmem %s4, %s1832
      $region48: #{inception_a_unit.8} parent=43 // pred_fallthru
        _
    $region44: #{inception_a_unit.8} parent=5 // pred_fallthru
      _
  $region6: #{inception_a_unit.8} parent=0 // loop_footer
    %s14 = sadd.s32 1, %s10
  $region7: #{inception_a_unit.8} parent=0 // loop_footer_branch
    %9 = sbr.rel target = $region3
  $region8: #{inception_a_unit.8} parent=0 // loop_exit
    _

// kernel: inception_a_unit.6
$region0: #{inception_a_unit.6}
  #allocation0 [shape = 'u32[]', space=smem, size = 0x4, offset = 0x4, fixed_abs, tag = 'smem constant byte address 0x4 - core index']
  #allocation1 [shape = 'u32[72,128]{1,0:T(1,128)}', space=vmem, size = 0x9000, scoped, tag = 'internal scratch']
  %s0 = inlined_call_operand.vmem [shape: bf16[2,12,12,48], index: 0, kind: input, shape index: {}]
  %s1 = inlined_call_operand.vmem [shape: bf16[25,48,64], index: 1, kind: input, shape index: {}]
  %s2 = inlined_call_operand.vmem [shape: f32[1,64], index: 2, kind: input, shape index: {}]
  %s3 = inlined_call_operand.vmem [shape: f32[1,64], index: 3, kind: input, shape index: {}]
  %s4 = inlined_call_operand.vmem [shape: f32[2,8,8,64], index: 4, kind: output, shape index: {}]
  %s5 = sld [smem:[#allocation0]]
  $region49: #{inception_a_unit.6} parent=0
    _
  %s7 = ssub.s32 1, %s5
  %s8 = scalar_select 0, %s7, %s5
  loop: start=0, step=1, limit=4
  $region2: #{inception_a_unit.6} parent=0 // loop_pre_header
    _
  $region3: #{inception_a_unit.6} parent=0 // loop_header
    %s10 = sphi 0, %s14
    %p11 = scmp.ge.s32.totalorder %s10, 4
    %s20 = sphi 0, %s22
    %s23 = sphi 0, %s20
    %s24 = sphi 0, %s23
    %s40 = sphi 0, %s24
    %s44 = sphi 0, %s44
    %s46 = sphi 0, %s44
    %s47 = sphi 0, %s46
    %s61 = sphi 0, %s47
    %s65 = sphi 0, %s65
    %s67 = sphi 0, %s65
    %s68 = sphi 0, %s67
    %s82 = sphi 0, %s68
    %s86 = sphi 0, %s86
    %s88 = sphi 0, %s86
    %s89 = sphi 0, %s88
    %s103 = sphi 0, %s89
    %s109 = sphi 0, %s111
    %s112 = sphi 0, %s109
    %s113 = sphi 0, %s112
    %s129 = sphi 0, %s113
  $region4: #{inception_a_unit.6} parent=0 // loop_header_branch
    %13 = sbr.rel (%p11) target = $region8
  $region5: #{inception_a_unit.6} parent=0 // loop_body
    %s15 = ssub.s32 %s10, 1
    %s16 = ssub.s32 %s10, 2
    %s17 = sadd.s32 %s10, 1
    %s18 = ssub.s32 %s10, %s17
    %p19 = scmp.eq.s32.totalorder %s18, 0
    %s21 = sadd.s32 %s20, 1
    %s22 = scalar_select %p19, %s20, %s21
    %p25 = pneg %p19
    %p26 = scmp.eq.s32.totalorder %s10, 1
    %p27 = por %p25, %p26
    %p28 = scmp.ne.s32.totalorder %s20, %s23
    %p29 = scmp.eq.s32.totalorder %s10, 0
    %p30 = por %p28, %p29
    %p31 = scmp.ne.s32.totalorder %s20, %s23
    %p32 = scmp.eq.s32.totalorder %s15, 1
    %p33 = por %p31, %p32
    %p34 = scmp.ne.s32.totalorder %s23, %s24
    %p35 = scmp.eq.s32.totalorder %s15, 0
    %p36 = por %p34, %p35
    %p37 = scmp.ne.s32.totalorder %s23, %s24
    %p38 = scmp.eq.s32.totalorder %s16, 1
    %p39 = por %p37, %p38
    %p41 = scmp.ne.s32.totalorder %s24, %s40
    %p42 = scmp.eq.s32.totalorder %s16, 0
    %p43 = por %p41, %p42
    %s45 = sadd.s32 %s44, 1
    %p48 = scmp.eq.s32.totalorder %s10, 1
    %p49 = scmp.ne.s32.totalorder %s44, %s46
    %p50 = scmp.eq.s32.totalorder %s10, 0
    %p51 = por %p49, %p50
    %p52 = scmp.ne.s32.totalorder %s44, %s46
    %p53 = scmp.eq.s32.totalorder %s15, 1
    %p54 = por %p52, %p53
    %p55 = scmp.ne.s32.totalorder %s46, %s47
    %p56 = scmp.eq.s32.totalorder %s15, 0
    %p57 = por %p55, %p56
    %p58 = scmp.ne.s32.totalorder %s46, %s47
    %p59 = scmp.eq.s32.totalorder %s16, 1
    %p60 = por %p58, %p59
    %p62 = scmp.ne.s32.totalorder %s47, %s61
    %p63 = scmp.eq.s32.totalorder %s16, 0
    %p64 = por %p62, %p63
    %s66 = sadd.s32 %s65, 1
    %p69 = scmp.eq.s32.totalorder %s10, 1
    %p70 = scmp.ne.s32.totalorder %s65, %s67
    %p71 = scmp.eq.s32.totalorder %s10, 0
    %p72 = por %p70, %p71
    %p73 = scmp.ne.s32.totalorder %s65, %s67
    %p74 = scmp.eq.s32.totalorder %s15, 1
    %p75 = por %p73, %p74
    %p76 = scmp.ne.s32.totalorder %s67, %s68
    %p77 = scmp.eq.s32.totalorder %s15, 0
    %p78 = por %p76, %p77
    %p79 = scmp.ne.s32.totalorder %s67, %s68
    %p80 = scmp.eq.s32.totalorder %s16, 1
    %p81 = por %p79, %p80
    %p83 = scmp.ne.s32.totalorder %s68, %s82
    %p84 = scmp.eq.s32.totalorder %s16, 0
    %p85 = por %p83, %p84
    %s87 = sadd.s32 %s86, 1
    %p90 = scmp.eq.s32.totalorder %s10, 1
    %p91 = scmp.ne.s32.totalorder %s86, %s88
    %p92 = scmp.eq.s32.totalorder %s10, 0
    %p93 = por %p91, %p92
    %p94 = scmp.ne.s32.totalorder %s86, %s88
    %p95 = scmp.eq.s32.totalorder %s15, 1
    %p96 = por %p94, %p95
    %p97 = scmp.ne.s32.totalorder %s88, %s89
    %p98 = scmp.eq.s32.totalorder %s15, 0
    %p99 = por %p97, %p98
    %p100 = scmp.ne.s32.totalorder %s88, %s89
    %p101 = scmp.eq.s32.totalorder %s16, 1
    %p102 = por %p100, %p101
    %p104 = scmp.ne.s32.totalorder %s89, %s103
    %p105 = scmp.eq.s32.totalorder %s16, 0
    %p106 = por %p104, %p105
    %s107 = ssub.s32 %s10, %s17
    %p108 = scmp.eq.s32.totalorder %s107, 0
    %s110 = sadd.s32 %s109, 1
    %s111 = scalar_select %p108, %s109, %s110
    %p114 = pneg %p108
    %p115 = scmp.eq.s32.totalorder %s10, 1
    %p116 = por %p114, %p115
    %p117 = scmp.ne.s32.totalorder %s109, %s112
    %p118 = scmp.eq.s32.totalorder %s10, 0
    %p119 = por %p117, %p118
    %p120 = scmp.ne.s32.totalorder %s109, %s112
    %p121 = scmp.eq.s32.totalorder %s15, 1
    %p122 = por %p120, %p121
    %p123 = scmp.ne.s32.totalorder %s112, %s113
    %p124 = scmp.eq.s32.totalorder %s15, 0
    %p125 = por %p123, %p124
    %p126 = scmp.ne.s32.totalorder %s112, %s113
    %p127 = scmp.eq.s32.totalorder %s16, 1
    %p128 = por %p126, %p127
    %p130 = scmp.ne.s32.totalorder %s113, %s129
    %p131 = scmp.eq.s32.totalorder %s16, 0
    %p132 = por %p130, %p131
    %p133 = scmp.le.s32.totalorder 1, %s10
    %p134 = scmp.lt.s32.totalorder %s10, 3
    %p135 = pnand %p133, %p134
    %p136 = pneg %p135
    // Predicated region
    $region9: #{inception_a_unit.6} parent=5 // pred_check
      _
    $region10: #{inception_a_unit.6} parent=5 // pred_check_branch
      %138 = sbr.rel (%p135) target = $region12
    $region11: #{inception_a_unit.6} parent=5 // pred_region
      %s139 = ssub.s32 %s10, 1
      // Predicated region
      $region13: #{inception_a_unit.6} parent=11 // pred_check
        %p140 = pneg %p57
      $region14: #{inception_a_unit.6} parent=11 // pred_check_branch
        %142 = sbr.rel (%p140) target = $region16
      $region15: #{inception_a_unit.6} parent=11 // pred_region
        _
      $region16: #{inception_a_unit.6} parent=11 // pred_fallthru
        _
      // Predicated region
      $region17: #{inception_a_unit.6} parent=11 // pred_check
        %p143 = pneg %p78
      $region18: #{inception_a_unit.6} parent=11 // pred_check_branch
        %145 = sbr.rel (%p143) target = $region20
      $region19: #{inception_a_unit.6} parent=11 // pred_region
        _
      $region20: #{inception_a_unit.6} parent=11 // pred_fallthru
        _
      // Predicated region
      $region21: #{inception_a_unit.6} parent=11 // pred_check
        %p146 = pneg %p99
      $region22: #{inception_a_unit.6} parent=11 // pred_check_branch
        %148 = sbr.rel (%p146) target = $region24
      $region23: #{inception_a_unit.6} parent=11 // pred_region
        _
      $region24: #{inception_a_unit.6} parent=11 // pred_fallthru
        _
    $region12: #{inception_a_unit.6} parent=5 // pred_fallthru
      _
    %p149 = scmp.lt.s32.totalorder %s10, 2
    // Predicated region
    $region25: #{inception_a_unit.6} parent=5 // pred_check
      %p150 = pneg %p149
    $region26: #{inception_a_unit.6} parent=5 // pred_check_branch
      %152 = sbr.rel (%p150) target = $region28
    $region27: #{inception_a_unit.6} parent=5 // pred_region
      // Predicated region
      $region29: #{inception_a_unit.6} parent=27 // pred_check
        %p153 = pneg %p30
      $region30: #{inception_a_unit.6} parent=27 // pred_check_branch
        %155 = sbr.rel (%p153) target = $region32
      $region31: #{inception_a_unit.6} parent=27 // pred_region
        %p156 = scmp.lt.s32.totalorder %s10, 1
        %s157 = scalar_select %p156, %s10, 1
        %s158 = smul.addr %s157, 24
        %s159 = smul.addr %s158, 4
        %s160 = scalar_lea.vmem %s0, %s159
      $region32: #{inception_a_unit.6} parent=27 // pred_fallthru
        _
    $region28: #{inception_a_unit.6} parent=5 // pred_fallthru
      _
    %p161 = scmp.le.s32.totalorder 1, %s10
    %p162 = scmp.lt.s32.totalorder %s10, 3
    %p163 = pnand %p161, %p162
    %p164 = pneg %p163
    // Predicated region
    $region33: #{inception_a_unit.6} parent=5 // pred_check
      _
    $region34: #{inception_a_unit.6} parent=5 // pred_check_branch
      %166 = sbr.rel (%p163) target = $region36
    $region35: #{inception_a_unit.6} parent=5 // pred_region
      %s167 = ssub.s32 %s10, 1
      %p168 = scmp.lt.s32.totalorder %s15, 1
      %s169 = scalar_select %p168, %s15, 1
      %s170 = smul.addr %s169, 24
      %s171 = smul.addr %s170, 4
      %s172 = scalar_lea.vmem %s0, %s171
      %p173 = pneg %p36
      %p174 = pneg %p33
      %p175 = pneg %p57
      %p176 = pneg %p54
      %p177 = pneg %p78
      %p178 = pneg %p75
      %p179 = pneg %p99
      %p180 = pneg %p96
      %p181 = pneg %p125
      %p182 = pneg %p122
      %p183 = scmp.lt.s32.totalorder %s15, 1
      %s184 = scalar_select %p183, %s15, 1
      %s185 = smul.addr %s184, 8
      %s186 = smul.addr %s185, 8
      %s187 = scalar_lea.vmem %s4, %s186
      %p188 = scmp.lt.s32.totalorder %s15, 1
      %s189 = scalar_select %p188, %s15, 1
      %s190 = smul.addr %s189, 24
      %s191 = smul.addr %s190, 4
      %s192 = scalar_lea.vmem %s0, %s191
      %p193 = scmp.lt.s32.totalorder %s15, 1
      %s194 = scalar_select %p193, %s15, 1
      %s195 = smul.addr %s194, 8
      %s196 = smul.addr %s195, 8
      %s197 = scalar_lea.vmem %s4, %s196
      %v199 = vld [vmem:[%s192] sm:$0xf]
      %v200 = vld [vmem:[%s192 + $0x8] sm:$0xf]
      %v201 = vld [vmem:[%s192 + $0x10] sm:$0xf]
      %v202 = vld [vmem:[%s192 + $0x18] sm:$0xf]
      %v203 = vld [vmem:[%s192 + $0x20] sm:$0xf]
      %v204 = vld [vmem:[%s192 + $0x28] sm:$0xf]
      %v205 = vld [vmem:[%s192 + $0x30] sm:$0xf]
      %v206 = vld [vmem:[%s192 + $0x38] sm:$0xf]
      %v207 = vld [vmem:[%s1] sm:$0xf]
      %v208 = vld [vmem:[%s1 + $0x4] sm:$0xf]
      %v209 = vld [vmem:[%s1 + $0x8] sm:$0xf]
      %v210 = vld [vmem:[%s1 + $0xc] sm:$0xf]
      %v211 = vld [vmem:[%s1 + $0x10] sm:$0xf]
      %v212 = vld [vmem:[%s1 + $0x14] sm:$0xf]
      %v213 = vld [vmem:[%s192 + $0x4] sm:$0x1]
      %v214 = vld [vmem:[%s192 + $0xc] sm:$0x1]
      %v215 = vld [vmem:[%s192 + $0x14] sm:$0x1]
      %v216 = vld [vmem:[%s192 + $0x1c] sm:$0x1]
      %v217 = vld [vmem:[%s192 + $0x24] sm:$0x1]
      %v218 = vld [vmem:[%s192 + $0x2c] sm:$0x1]
      %v219 = vld [vmem:[%s192 + $0x34] sm:$0x1]
      %v220 = vld [vmem:[%s192 + $0x3c] sm:$0x1]
      %vm221 = vsmask.f32 3328
      %vm222 = vsmask.f32 7440
      %vm223 = vmor %vm221, %vm222
      %v225 = vshrl.u32 %v199, 16
      %v227 = vrot.slane %v225, 4
      %v228 = vshll.u32 %v199, 16
      %v230 = vrot.slane %v228, 5
      %v231 = vor.u32 %v227, %v230
      %v232 = vrot.slane %v231, 4
      %v234 = vshll.u32 %v213, 16
      %v236 = vrot.slane %v234, 5
      %v237 = vsel %vm223, %v232, %v236
      %v239 = vshrl.u32 %v200, 16
      %v241 = vrot.slane %v239, 4
      %v242 = vshll.u32 %v200, 16
      %v244 = vrot.slane %v242, 5
      %v245 = vor.u32 %v241, %v244
      %v246 = vrot.slane %v245, 4
      %v248 = vshll.u32 %v214, 16
      %v250 = vrot.slane %v248, 5
      %v251 = vsel %vm223, %v246, %v250
      %v253 = vshrl.u32 %v201, 16
      %v255 = vrot.slane %v253, 4
      %v256 = vshll.u32 %v201, 16
      %v258 = vrot.slane %v256, 5
      %v259 = vor.u32 %v255, %v258
      %v260 = vrot.slane %v259, 4
      %v262 = vshll.u32 %v215, 16
      %v264 = vrot.slane %v262, 5
      %v265 = vsel %vm223, %v260, %v264
      %v267 = vshrl.u32 %v202, 16
      %v269 = vrot.slane %v267, 4
      %v270 = vshll.u32 %v202, 16
      %v272 = vrot.slane %v270, 5
      %v273 = vor.u32 %v269, %v272
      %v274 = vrot.slane %v273, 4
      %v276 = vshll.u32 %v216, 16
      %v278 = vrot.slane %v276, 5
      %v279 = vsel %vm223, %v274, %v278
      %v281 = vshrl.u32 %v203, 16
      %v283 = vrot.slane %v281, 4
      %v284 = vshll.u32 %v203, 16
      %v286 = vrot.slane %v284, 5
      %v287 = vor.u32 %v283, %v286
      %v288 = vrot.slane %v287, 4
      %v290 = vshll.u32 %v217, 16
      %v292 = vrot.slane %v290, 5
      %v293 = vsel %vm223, %v288, %v292
      %v295 = vshrl.u32 %v204, 16
      %v297 = vrot.slane %v295, 4
      %v298 = vshll.u32 %v204, 16
      %v300 = vrot.slane %v298, 5
      %v301 = vor.u32 %v297, %v300
      %v302 = vrot.slane %v301, 4
      %v304 = vshll.u32 %v218, 16
      %v306 = vrot.slane %v304, 5
      %v307 = vsel %vm223, %v302, %v306
      %v309 = vshrl.u32 %v205, 16
      %v311 = vrot.slane %v309, 4
      %v312 = vshll.u32 %v205, 16
      %v314 = vrot.slane %v312, 5
      %v315 = vor.u32 %v311, %v314
      %v316 = vrot.slane %v315, 4
      %v318 = vshll.u32 %v219, 16
      %v320 = vrot.slane %v318, 5
      %v321 = vsel %vm223, %v316, %v320
      %v323 = vshrl.u32 %v206, 16
      %v325 = vrot.slane %v323, 4
      %v326 = vshll.u32 %v206, 16
      %v328 = vrot.slane %v326, 5
      %v329 = vor.u32 %v325, %v328
      %v330 = vrot.slane %v329, 4
      %v332 = vshll.u32 %v220, 16
      %v334 = vrot.slane %v332, 5
      %v335 = vsel %vm223, %v330, %v334
      %s336 = scalar_lea.vmem %s1, 24
      %v337 = vld [vmem:[%s336] sm:$0xf]
      %v338 = vld [vmem:[%s336 + $0x4] sm:$0xf]
      %v339 = vld [vmem:[%s336 + $0x8] sm:$0xf]
      %v340 = vld [vmem:[%s336 + $0xc] sm:$0xf]
      %v341 = vld [vmem:[%s336 + $0x10] sm:$0xf]
      %v342 = vld [vmem:[%s336 + $0x14] sm:$0xf]
      %v343 = vunpack.c.l.b16 %v237
      %v344 = vunpack.c.l.b16 %v251
      %v345 = vunpack.c.l.b16 %v265
      %v346 = vunpack.c.l.b16 %v279
      %v347 = vunpack.c.l.b16 %v293
      %v348 = vunpack.c.l.b16 %v307
      %v349 = vunpack.c.l.b16 %v321
      %v350 = vunpack.c.l.b16 %v335
      %v351 = vpack.c.b16 %v344, %v343
      %v352 = vpack.c.b16 %v346, %v345
      %v353 = vpack.c.b16 %v348, %v347
      %v354 = vpack.c.b16 %v350, %v349
      %v361 = vunpack.c.l.b16 %v337
      %v362 = vunpack.c.l.b16 %v338
      %v363 = vunpack.c.l.b16 %v339
      %v364 = vunpack.c.l.b16 %v340
      %v365 = vunpack.c.l.b16 %v341
      %v366 = vunpack.c.l.b16 %v342
      %v367 = vpack.c.b16 %v362, %v361
      %v368 = vpack.c.b16 %v364, %v363
      %v369 = vpack.c.b16 %v366, %v365
      %vm373 = vcmask 392192
      %v375 = vsel %vm373, %v351, 0
      %v378 = vsel %vm373, %v352, 0
      %v381 = vsel %vm373, %v353, 0
      %v384 = vsel %vm373, %v354, 0
      %386 = vmatpush.bf16.msra.mxu0 0
      %387 = vmatpush.bf16.msra.mxu0 0
      %388 = vmatpush.bf16.msra.mxu0 0
      %389 = vmatpush.bf16.msra.mxu0 0
      %390 = vmatpush.bf16.msra.mxu0 0
      %391 = vmatpush.bf16.msra.mxu0 %v369
      %392 = vmatpush.bf16.msra.mxu0 %v368
      %393 = vmatpush.bf16.msra.mxu0 %v367
      %394 = vmatmul.bf16.gmra.mxu0 %v375
      %v395 = vpop.f32.mrf.mxu0
      %v396 = vadd.f32 0.0, %v395
      %v397 = vpop.f32.mrf.mxu0
      %v398 = vadd.f32 0.0, %v397
      %399 = vmatmul.bf16.gmra.mxu0 %v378
      %v400 = vpop.f32.mrf.mxu0
      %v401 = vadd.f32 0.0, %v400
      %v402 = vpop.f32.mrf.mxu0
      %v403 = vadd.f32 0.0, %v402
      %404 = vmatmul.bf16.gmra.mxu0 %v381
      %v405 = vpop.f32.mrf.mxu0
      %v406 = vadd.f32 0.0, %v405
      %v407 = vpop.f32.mrf.mxu0
      %v408 = vadd.f32 0.0, %v407
      %409 = vmatmul.bf16.gmra.mxu0 %v384
      %v410 = vpop.f32.mrf.mxu0
      %v411 = vadd.f32 0.0, %v410
      %v412 = vpop.f32.mrf.mxu0
      %v413 = vadd.f32 0.0, %v412
      %414 = vdwg.mxu0
      %v423 = vunpack.c.l.b16 %v199
      %v424 = vunpack.c.l.b16 %v200
      %v425 = vunpack.c.l.b16 %v201
      %v426 = vunpack.c.l.b16 %v202
      %v427 = vunpack.c.l.b16 %v203
      %v428 = vunpack.c.l.b16 %v204
      %v429 = vunpack.c.l.b16 %v205
      %v430 = vunpack.c.l.b16 %v206
      %v431 = vpack.c.b16 %v424, %v423
      %v432 = vpack.c.b16 %v426, %v425
      %v433 = vpack.c.b16 %v428, %v427
      %v434 = vpack.c.b16 %v430, %v429
      %v441 = vunpack.c.l.b16 %v207
      %v442 = vunpack.c.l.b16 %v208
      %v443 = vunpack.c.l.b16 %v209
      %v444 = vunpack.c.l.b16 %v210
      %v445 = vunpack.c.l.b16 %v211
      %v446 = vunpack.c.l.b16 %v212
      %v447 = vpack.c.b16 %v442, %v441
      %v448 = vpack.c.b16 %v444, %v443
      %v449 = vpack.c.b16 %v446, %v445
      %v454 = vsel %vm373, %v431, 0
      %v457 = vsel %vm373, %v432, 0
      %v460 = vsel %vm373, %v433, 0
      %v463 = vsel %vm373, %v434, 0
      %465 = vmatpush.bf16.msra.mxu0 0
      %466 = vmatpush.bf16.msra.mxu0 0
      %467 = vmatpush.bf16.msra.mxu0 0
      %468 = vmatpush.bf16.msra.mxu0 0
      %469 = vmatpush.bf16.msra.mxu0 0
      %470 = vmatpush.bf16.msra.mxu0 %v449
      %471 = vmatpush.bf16.msra.mxu0 %v448
      %472 = vmatpush.bf16.msra.mxu0 %v447
      %473 = vmatmul.bf16.gmra.mxu0 %v454
      %v474 = vpop.f32.mrf.mxu0
      %v475 = vadd.f32 %v396, %v474
      %v476 = vpop.f32.mrf.mxu0
      %v477 = vadd.f32 %v398, %v476
      %478 = vmatmul.bf16.gmra.mxu0 %v457
      %v479 = vpop.f32.mrf.mxu0
      %v480 = vadd.f32 %v401, %v479
      %v481 = vpop.f32.mrf.mxu0
      %v482 = vadd.f32 %v403, %v481
      %483 = vmatmul.bf16.gmra.mxu0 %v460
      %v484 = vpop.f32.mrf.mxu0
      %v485 = vadd.f32 %v406, %v484
      %v486 = vpop.f32.mrf.mxu0
      %v487 = vadd.f32 %v408, %v486
      %488 = vmatmul.bf16.gmra.mxu0 %v463
      %v489 = vpop.f32.mrf.mxu0
      %v490 = vadd.f32 %v411, %v489
      %v491 = vpop.f32.mrf.mxu0
      %v492 = vadd.f32 %v413, %v491
      %493 = vdwg.mxu0
      %v494 = vld [vmem:[%s192] sm:$0xe]
      %v495 = vld [vmem:[%s192 + $0x8] sm:$0xe]
      %v496 = vld [vmem:[%s192 + $0x10] sm:$0xe]
      %v497 = vld [vmem:[%s192 + $0x18] sm:$0xe]
      %v498 = vld [vmem:[%s192 + $0x20] sm:$0xe]
      %v499 = vld [vmem:[%s192 + $0x28] sm:$0xe]
      %v500 = vld [vmem:[%s192 + $0x30] sm:$0xe]
      %v501 = vld [vmem:[%s192 + $0x38] sm:$0xe]
      %vm518 = vcmask 1042432
      %vm519 = vcmask 1046532
      %vm520 = vmor %vm518, %vm519
      %v521 = vrot.slane %v494, 5
      %v522 = vrot.slane %v521, 4
      %v523 = vrot.slane %v213, 5
      %v524 = vsel %vm520, %v522, %v523
      %v525 = vrot.slane %v495, 5
      %v526 = vrot.slane %v525, 4
      %v527 = vrot.slane %v214, 5
      %v528 = vsel %vm520, %v526, %v527
      %v529 = vrot.slane %v496, 5
      %v530 = vrot.slane %v529, 4
      %v531 = vrot.slane %v215, 5
      %v532 = vsel %vm520, %v530, %v531
      %v533 = vrot.slane %v497, 5
      %v534 = vrot.slane %v533, 4
      %v535 = vrot.slane %v216, 5
      %v536 = vsel %vm520, %v534, %v535
      %v537 = vrot.slane %v498, 5
      %v538 = vrot.slane %v537, 4
      %v539 = vrot.slane %v217, 5
      %v540 = vsel %vm520, %v538, %v539
      %v541 = vrot.slane %v499, 5
      %v542 = vrot.slane %v541, 4
      %v543 = vrot.slane %v218, 5
      %v544 = vsel %vm520, %v542, %v543
      %v545 = vrot.slane %v500, 5
      %v546 = vrot.slane %v545, 4
      %v547 = vrot.slane %v219, 5
      %v548 = vsel %vm520, %v546, %v547
      %v549 = vrot.slane %v501, 5
      %v550 = vrot.slane %v549, 4
      %v551 = vrot.slane %v220, 5
      %v552 = vsel %vm520, %v550, %v551
      %s553 = scalar_lea.vmem %s1, 48
      %v554 = vld [vmem:[%s553] sm:$0xf]
      %v555 = vld [vmem:[%s553 + $0x4] sm:$0xf]
      %v556 = vld [vmem:[%s553 + $0x8] sm:$0xf]
      %v557 = vld [vmem:[%s553 + $0xc] sm:$0xf]
      %v558 = vld [vmem:[%s553 + $0x10] sm:$0xf]
      %v559 = vld [vmem:[%s553 + $0x14] sm:$0xf]
      %v560 = vunpack.c.l.b16 %v524
      %v561 = vunpack.c.l.b16 %v528
      %v562 = vunpack.c.l.b16 %v532
      %v563 = vunpack.c.l.b16 %v536
      %v564 = vunpack.c.l.b16 %v540
      %v565 = vunpack.c.l.b16 %v544
      %v566 = vunpack.c.l.b16 %v548
      %v567 = vunpack.c.l.b16 %v552
      %v568 = vpack.c.b16 %v561, %v560
      %v569 = vpack.c.b16 %v563, %v562
      %v570 = vpack.c.b16 %v565, %v564
      %v571 = vpack.c.b16 %v567, %v566
      %v578 = vunpack.c.l.b16 %v554
      %v579 = vunpack.c.l.b16 %v555
      %v580 = vunpack.c.l.b16 %v556
      %v581 = vunpack.c.l.b16 %v557
      %v582 = vunpack.c.l.b16 %v558
      %v583 = vunpack.c.l.b16 %v559
      %v584 = vpack.c.b16 %v579, %v578
      %v585 = vpack.c.b16 %v581, %v580
      %v586 = vpack.c.b16 %v583, %v582
      %v591 = vsel %vm373, %v568, 0
      %v594 = vsel %vm373, %v569, 0
      %v597 = vsel %vm373, %v570, 0
      %v600 = vsel %vm373, %v571, 0
      %602 = vmatpush.bf16.msra.mxu0 0
      %603 = vmatpush.bf16.msra.mxu0 0
      %604 = vmatpush.bf16.msra.mxu0 0
      %605 = vmatpush.bf16.msra.mxu0 0
      %606 = vmatpush.bf16.msra.mxu0 0
      %607 = vmatpush.bf16.msra.mxu0 %v586
      %608 = vmatpush.bf16.msra.mxu0 %v585
      %609 = vmatpush.bf16.msra.mxu0 %v584
      %610 = vmatmul.bf16.gmra.mxu0 %v591
      %v611 = vpop.f32.mrf.mxu0
      %v612 = vadd.f32 0.0, %v611
      %v613 = vpop.f32.mrf.mxu0
      %v614 = vadd.f32 0.0, %v613
      %615 = vmatmul.bf16.gmra.mxu0 %v594
      %v616 = vpop.f32.mrf.mxu0
      %v617 = vadd.f32 0.0, %v616
      %v618 = vpop.f32.mrf.mxu0
      %v619 = vadd.f32 0.0, %v618
      %620 = vmatmul.bf16.gmra.mxu0 %v597
      %v621 = vpop.f32.mrf.mxu0
      %v622 = vadd.f32 0.0, %v621
      %v623 = vpop.f32.mrf.mxu0
      %v624 = vadd.f32 0.0, %v623
      %625 = vmatmul.bf16.gmra.mxu0 %v600
      %v626 = vpop.f32.mrf.mxu0
      %v627 = vadd.f32 0.0, %v626
      %v628 = vpop.f32.mrf.mxu0
      %v629 = vadd.f32 0.0, %v628
      %630 = vdwg.mxu0
      %v631 = vadd.f32 %v475, %v612
      %v632 = vadd.f32 %v477, %v614
      %v633 = vadd.f32 %v480, %v617
      %v634 = vadd.f32 %v482, %v619
      %v635 = vadd.f32 %v485, %v622
      %v636 = vadd.f32 %v487, %v624
      %v637 = vadd.f32 %v490, %v627
      %v638 = vadd.f32 %v492, %v629
      %v639 = vld [vmem:[%s192 + $0x4] sm:$0x3]
      %v640 = vld [vmem:[%s192 + $0xc] sm:$0x3]
      %v641 = vld [vmem:[%s192 + $0x14] sm:$0x3]
      %v642 = vld [vmem:[%s192 + $0x1c] sm:$0x3]
      %v643 = vld [vmem:[%s192 + $0x24] sm:$0x3]
      %v644 = vld [vmem:[%s192 + $0x2c] sm:$0x3]
      %v645 = vld [vmem:[%s192 + $0x34] sm:$0x3]
      %v646 = vld [vmem:[%s192 + $0x3c] sm:$0x3]
      %vm647 = vsmask.f32 2304
      %vm648 = vsmask.f32 6416
      %vm649 = vmor %vm647, %vm648
      %v651 = vshrl.u32 %v494, 16
      %v653 = vrot.slane %v651, 5
      %v654 = vshll.u32 %v494, 16
      %v656 = vrot.slane %v654, 6
      %v657 = vor.u32 %v653, %v656
      %v658 = vrot.slane %v657, 4
      %v660 = vshrl.u32 %v639, 16
      %v662 = vrot.slane %v660, 5
      %v663 = vshll.u32 %v639, 16
      %v665 = vrot.slane %v663, 6
      %v666 = vor.u32 %v662, %v665
      %v667 = vsel %vm649, %v658, %v666
      %v669 = vshrl.u32 %v495, 16
      %v671 = vrot.slane %v669, 5
      %v672 = vshll.u32 %v495, 16
      %v674 = vrot.slane %v672, 6
      %v675 = vor.u32 %v671, %v674
      %v676 = vrot.slane %v675, 4
      %v678 = vshrl.u32 %v640, 16
      %v680 = vrot.slane %v678, 5
      %v681 = vshll.u32 %v640, 16
      %v683 = vrot.slane %v681, 6
      %v684 = vor.u32 %v680, %v683
      %v685 = vsel %vm649, %v676, %v684
      %v687 = vshrl.u32 %v496, 16
      %v689 = vrot.slane %v687, 5
      %v690 = vshll.u32 %v496, 16
      %v692 = vrot.slane %v690, 6
      %v693 = vor.u32 %v689, %v692
      %v694 = vrot.slane %v693, 4
      %v696 = vshrl.u32 %v641, 16
      %v698 = vrot.slane %v696, 5
      %v699 = vshll.u32 %v641, 16
      %v701 = vrot.slane %v699, 6
      %v702 = vor.u32 %v698, %v701
      %v703 = vsel %vm649, %v694, %v702
      %v705 = vshrl.u32 %v497, 16
      %v707 = vrot.slane %v705, 5
      %v708 = vshll.u32 %v497, 16
      %v710 = vrot.slane %v708, 6
      %v711 = vor.u32 %v707, %v710
      %v712 = vrot.slane %v711, 4
      %v714 = vshrl.u32 %v642, 16
      %v716 = vrot.slane %v714, 5
      %v717 = vshll.u32 %v642, 16
      %v719 = vrot.slane %v717, 6
      %v720 = vor.u32 %v716, %v719
      %v721 = vsel %vm649, %v712, %v720
      %v723 = vshrl.u32 %v498, 16
      %v725 = vrot.slane %v723, 5
      %v726 = vshll.u32 %v498, 16
      %v728 = vrot.slane %v726, 6
      %v729 = vor.u32 %v725, %v728
      %v730 = vrot.slane %v729, 4
      %v732 = vshrl.u32 %v643, 16
      %v734 = vrot.slane %v732, 5
      %v735 = vshll.u32 %v643, 16
      %v737 = vrot.slane %v735, 6
      %v738 = vor.u32 %v734, %v737
      %v739 = vsel %vm649, %v730, %v738
      %v741 = vshrl.u32 %v499, 16
      %v743 = vrot.slane %v741, 5
      %v744 = vshll.u32 %v499, 16
      %v746 = vrot.slane %v744, 6
      %v747 = vor.u32 %v743, %v746
      %v748 = vrot.slane %v747, 4
      %v750 = vshrl.u32 %v644, 16
      %v752 = vrot.slane %v750, 5
      %v753 = vshll.u32 %v644, 16
      %v755 = vrot.slane %v753, 6
      %v756 = vor.u32 %v752, %v755
      %v757 = vsel %vm649, %v748, %v756
      %v759 = vshrl.u32 %v500, 16
      %v761 = vrot.slane %v759, 5
      %v762 = vshll.u32 %v500, 16
      %v764 = vrot.slane %v762, 6
      %v765 = vor.u32 %v761, %v764
      %v766 = vrot.slane %v765, 4
      %v768 = vshrl.u32 %v645, 16
      %v770 = vrot.slane %v768, 5
      %v771 = vshll.u32 %v645, 16
      %v773 = vrot.slane %v771, 6
      %v774 = vor.u32 %v770, %v773
      %v775 = vsel %vm649, %v766, %v774
      %v777 = vshrl.u32 %v501, 16
      %v779 = vrot.slane %v777, 5
      %v780 = vshll.u32 %v501, 16
      %v782 = vrot.slane %v780, 6
      %v783 = vor.u32 %v779, %v782
      %v784 = vrot.slane %v783, 4
      %v786 = vshrl.u32 %v646, 16
      %v788 = vrot.slane %v786, 5
      %v789 = vshll.u32 %v646, 16
      %v791 = vrot.slane %v789, 6
      %v792 = vor.u32 %v788, %v791
      %v793 = vsel %vm649, %v784, %v792
      %s794 = scalar_lea.vmem %s1, 72
      %v795 = vld [vmem:[%s794] sm:$0xf]
      %v796 = vld [vmem:[%s794 + $0x4] sm:$0xf]
      %v797 = vld [vmem:[%s794 + $0x8] sm:$0xf]
      %v798 = vld [vmem:[%s794 + $0xc] sm:$0xf]
      %v799 = vld [vmem:[%s794 + $0x10] sm:$0xf]
      %v800 = vld [vmem:[%s794 + $0x14] sm:$0xf]
      %v801 = vunpack.c.l.b16 %v667
      %v802 = vunpack.c.l.b16 %v685
      %v803 = vunpack.c.l.b16 %v703
      %v804 = vunpack.c.l.b16 %v721
      %v805 = vunpack.c.l.b16 %v739
      %v806 = vunpack.c.l.b16 %v757
      %v807 = vunpack.c.l.b16 %v775
      %v808 = vunpack.c.l.b16 %v793
      %v809 = vpack.c.b16 %v802, %v801
      %v810 = vpack.c.b16 %v804, %v803
      %v811 = vpack.c.b16 %v806, %v805
      %v812 = vpack.c.b16 %v808, %v807
      %v819 = vunpack.c.l.b16 %v795
      %v820 = vunpack.c.l.b16 %v796
      %v821 = vunpack.c.l.b16 %v797
      %v822 = vunpack.c.l.b16 %v798
      %v823 = vunpack.c.l.b16 %v799
      %v824 = vunpack.c.l.b16 %v800
      %v825 = vpack.c.b16 %v820, %v819
      %v826 = vpack.c.b16 %v822, %v821
      %v827 = vpack.c.b16 %v824, %v823
      %v832 = vsel %vm373, %v809, 0
      %v835 = vsel %vm373, %v810, 0
      %v838 = vsel %vm373, %v811, 0
      %v841 = vsel %vm373, %v812, 0
      %843 = vmatpush.bf16.msra.mxu0 0
      %844 = vmatpush.bf16.msra.mxu0 0
      %845 = vmatpush.bf16.msra.mxu0 0
      %846 = vmatpush.bf16.msra.mxu0 0
      %847 = vmatpush.bf16.msra.mxu0 0
      %848 = vmatpush.bf16.msra.mxu0 %v827
      %849 = vmatpush.bf16.msra.mxu0 %v826
      %850 = vmatpush.bf16.msra.mxu0 %v825
      %851 = vmatmul.bf16.gmra.mxu0 %v832
      %v852 = vpop.f32.mrf.mxu0
      %v853 = vadd.f32 0.0, %v852
      %v854 = vpop.f32.mrf.mxu0
      %v855 = vadd.f32 0.0, %v854
      %856 = vmatmul.bf16.gmra.mxu0 %v835
      %v857 = vpop.f32.mrf.mxu0
      %v858 = vadd.f32 0.0, %v857
      %v859 = vpop.f32.mrf.mxu0
      %v860 = vadd.f32 0.0, %v859
      %861 = vmatmul.bf16.gmra.mxu0 %v838
      %v862 = vpop.f32.mrf.mxu0
      %v863 = vadd.f32 0.0, %v862
      %v864 = vpop.f32.mrf.mxu0
      %v865 = vadd.f32 0.0, %v864
      %866 = vmatmul.bf16.gmra.mxu0 %v841
      %v867 = vpop.f32.mrf.mxu0
      %v868 = vadd.f32 0.0, %v867
      %v869 = vpop.f32.mrf.mxu0
      %v870 = vadd.f32 0.0, %v869
      %871 = vdwg.mxu0
      %v872 = vadd.f32 %v631, %v853
      %v873 = vadd.f32 %v632, %v855
      %v874 = vadd.f32 %v633, %v858
      %v875 = vadd.f32 %v634, %v860
      %v876 = vadd.f32 %v635, %v863
      %v877 = vadd.f32 %v636, %v865
      %v878 = vadd.f32 %v637, %v868
      %v879 = vadd.f32 %v638, %v870
      %v880 = vld [vmem:[%s192] sm:$0xc]
      %v881 = vld [vmem:[%s192 + $0x8] sm:$0xc]
      %v882 = vld [vmem:[%s192 + $0x10] sm:$0xc]
      %v883 = vld [vmem:[%s192 + $0x18] sm:$0xc]
      %v884 = vld [vmem:[%s192 + $0x20] sm:$0xc]
      %v885 = vld [vmem:[%s192 + $0x28] sm:$0xc]
      %v886 = vld [vmem:[%s192 + $0x30] sm:$0xc]
      %v887 = vld [vmem:[%s192 + $0x38] sm:$0xc]
      %vm904 = vcmask 1041408
      %vm905 = vcmask 1045508
      %vm906 = vmor %vm904, %vm905
      %v907 = vrot.slane %v880, 6
      %v908 = vrot.slane %v907, 4
      %v909 = vrot.slane %v639, 6
      %v910 = vsel %vm906, %v908, %v909
      %v911 = vrot.slane %v881, 6
      %v912 = vrot.slane %v911, 4
      %v913 = vrot.slane %v640, 6
      %v914 = vsel %vm906, %v912, %v913
      %v915 = vrot.slane %v882, 6
      %v916 = vrot.slane %v915, 4
      %v917 = vrot.slane %v641, 6
      %v918 = vsel %vm906, %v916, %v917
      %v919 = vrot.slane %v883, 6
      %v920 = vrot.slane %v919, 4
      %v921 = vrot.slane %v642, 6
      %v922 = vsel %vm906, %v920, %v921
      %v923 = vrot.slane %v884, 6
      %v924 = vrot.slane %v923, 4
      %v925 = vrot.slane %v643, 6
      %v926 = vsel %vm906, %v924, %v925
      %v927 = vrot.slane %v885, 6
      %v928 = vrot.slane %v927, 4
      %v929 = vrot.slane %v644, 6
      %v930 = vsel %vm906, %v928, %v929
      %v931 = vrot.slane %v886, 6
      %v932 = vrot.slane %v931, 4
      %v933 = vrot.slane %v645, 6
      %v934 = vsel %vm906, %v932, %v933
      %v935 = vrot.slane %v887, 6
      %v936 = vrot.slane %v935, 4
      %v937 = vrot.slane %v646, 6
      %v938 = vsel %vm906, %v936, %v937
      %s939 = scalar_lea.vmem %s1, 96
      %v940 = vld [vmem:[%s939] sm:$0xf]
      %v941 = vld [vmem:[%s939 + $0x4] sm:$0xf]
      %v942 = vld [vmem:[%s939 + $0x8] sm:$0xf]
      %v943 = vld [vmem:[%s939 + $0xc] sm:$0xf]
      %v944 = vld [vmem:[%s939 + $0x10] sm:$0xf]
      %v945 = vld [vmem:[%s939 + $0x14] sm:$0xf]
      %v946 = vunpack.c.l.b16 %v910
      %v947 = vunpack.c.l.b16 %v914
      %v948 = vunpack.c.l.b16 %v918
      %v949 = vunpack.c.l.b16 %v922
      %v950 = vunpack.c.l.b16 %v926
      %v951 = vunpack.c.l.b16 %v930
      %v952 = vunpack.c.l.b16 %v934
      %v953 = vunpack.c.l.b16 %v938
      %v954 = vpack.c.b16 %v947, %v946
      %v955 = vpack.c.b16 %v949, %v948
      %v956 = vpack.c.b16 %v951, %v950
      %v957 = vpack.c.b16 %v953, %v952
      %v964 = vunpack.c.l.b16 %v940
      %v965 = vunpack.c.l.b16 %v941
      %v966 = vunpack.c.l.b16 %v942
      %v967 = vunpack.c.l.b16 %v943
      %v968 = vunpack.c.l.b16 %v944
      %v969 = vunpack.c.l.b16 %v945
      %v970 = vpack.c.b16 %v965, %v964
      %v971 = vpack.c.b16 %v967, %v966
      %v972 = vpack.c.b16 %v969, %v968
      %v977 = vsel %vm373, %v954, 0
      %v980 = vsel %vm373, %v955, 0
      %v983 = vsel %vm373, %v956, 0
      %v986 = vsel %vm373, %v957, 0
      %988 = vmatpush.bf16.msra.mxu0 0
      %989 = vmatpush.bf16.msra.mxu0 0
      %990 = vmatpush.bf16.msra.mxu0 0
      %991 = vmatpush.bf16.msra.mxu0 0
      %992 = vmatpush.bf16.msra.mxu0 0
      %993 = vmatpush.bf16.msra.mxu0 %v972
      %994 = vmatpush.bf16.msra.mxu0 %v971
      %995 = vmatpush.bf16.msra.mxu0 %v970
      %996 = vmatmul.bf16.gmra.mxu0 %v977
      %v997 = vpop.f32.mrf.mxu0
      %v998 = vadd.f32 0.0, %v997
      %v999 = vpop.f32.mrf.mxu0
      %v1000 = vadd.f32 0.0, %v999
      %1001 = vmatmul.bf16.gmra.mxu0 %v980
      %v1002 = vpop.f32.mrf.mxu0
      %v1003 = vadd.f32 0.0, %v1002
      %v1004 = vpop.f32.mrf.mxu0
      %v1005 = vadd.f32 0.0, %v1004
      %1006 = vmatmul.bf16.gmra.mxu0 %v983
      %v1007 = vpop.f32.mrf.mxu0
      %v1008 = vadd.f32 0.0, %v1007
      %v1009 = vpop.f32.mrf.mxu0
      %v1010 = vadd.f32 0.0, %v1009
      %1011 = vmatmul.bf16.gmra.mxu0 %v986
      %v1012 = vpop.f32.mrf.mxu0
      %v1013 = vadd.f32 0.0, %v1012
      %v1014 = vpop.f32.mrf.mxu0
      %v1015 = vadd.f32 0.0, %v1014
      %1016 = vdwg.mxu0
      %v1017 = vadd.f32 %v872, %v998
      %v1018 = vadd.f32 %v873, %v1000
      %v1019 = vadd.f32 %v874, %v1003
      %v1020 = vadd.f32 %v875, %v1005
      %v1021 = vadd.f32 %v876, %v1008
      %v1022 = vadd.f32 %v877, %v1010
      %v1023 = vadd.f32 %v878, %v1013
      %v1024 = vadd.f32 %v879, %v1015
      %s1025 = scalar_lea.vmem %s192, 8
      %v1026 = vld [vmem:[%s1025] sm:$0xf]
      %v1027 = vld [vmem:[%s1025 + $0x8] sm:$0xf]
      %v1028 = vld [vmem:[%s1025 + $0x10] sm:$0xf]
      %v1029 = vld [vmem:[%s1025 + $0x18] sm:$0xf]
      %v1030 = vld [vmem:[%s1025 + $0x20] sm:$0xf]
      %v1031 = vld [vmem:[%s1025 + $0x28] sm:$0xf]
      %v1032 = vld [vmem:[%s1025 + $0x30] sm:$0xf]
      %v1033 = vld [vmem:[%s1025 + $0x38] sm:$0xf]
      %s1034 = scalar_lea.vmem %s1, 120
      %v1035 = vld [vmem:[%s1034] sm:$0xf]
      %v1036 = vld [vmem:[%s1034 + $0x4] sm:$0xf]
      %v1037 = vld [vmem:[%s1034 + $0x8] sm:$0xf]
      %v1038 = vld [vmem:[%s1034 + $0xc] sm:$0xf]
      %v1039 = vld [vmem:[%s1034 + $0x10] sm:$0xf]
      %v1040 = vld [vmem:[%s1034 + $0x14] sm:$0xf]
      %v1049 = vunpack.c.l.b16 %v1026
      %v1050 = vunpack.c.l.b16 %v1027
      %v1051 = vunpack.c.l.b16 %v1028
      %v1052 = vunpack.c.l.b16 %v1029
      %v1053 = vunpack.c.l.b16 %v1030
      %v1054 = vunpack.c.l.b16 %v1031
      %v1055 = vunpack.c.l.b16 %v1032
      %v1056 = vunpack.c.l.b16 %v1033
      %v1057 = vpack.c.b16 %v1050, %v1049
      %v1058 = vpack.c.b16 %v1052, %v1051
      %v1059 = vpack.c.b16 %v1054, %v1053
      %v1060 = vpack.c.b16 %v1056, %v1055
      %v1067 = vunpack.c.l.b16 %v1035
      %v1068 = vunpack.c.l.b16 %v1036
      %v1069 = vunpack.c.l.b16 %v1037
      %v1070 = vunpack.c.l.b16 %v1038
      %v1071 = vunpack.c.l.b16 %v1039
      %v1072 = vunpack.c.l.b16 %v1040
      %v1073 = vpack.c.b16 %v1068, %v1067
      %v1074 = vpack.c.b16 %v1070, %v1069
      %v1075 = vpack.c.b16 %v1072, %v1071
      %v1080 = vsel %vm373, %v1057, 0
      %v1083 = vsel %vm373, %v1058, 0
      %v1086 = vsel %vm373, %v1059, 0
      %v1089 = vsel %vm373, %v1060, 0
      %1091 = vmatpush.bf16.msra.mxu0 0
      %1092 = vmatpush.bf16.msra.mxu0 0
      %1093 = vmatpush.bf16.msra.mxu0 0
      %1094 = vmatpush.bf16.msra.mxu0 0
      %1095 = vmatpush.bf16.msra.mxu0 0
      %1096 = vmatpush.bf16.msra.mxu0 %v1075
      %1097 = vmatpush.bf16.msra.mxu0 %v1074
      %1098 = vmatpush.bf16.msra.mxu0 %v1073
      %1099 = vmatmul.bf16.gmra.mxu0 %v1080
      %v1100 = vpop.f32.mrf.mxu0
      %v1101 = vadd.f32 0.0, %v1100
      %v1102 = vpop.f32.mrf.mxu0
      %v1103 = vadd.f32 0.0, %v1102
      %1104 = vmatmul.bf16.gmra.mxu0 %v1083
      %v1105 = vpop.f32.mrf.mxu0
      %v1106 = vadd.f32 0.0, %v1105
      %v1107 = vpop.f32.mrf.mxu0
      %v1108 = vadd.f32 0.0, %v1107
      %1109 = vmatmul.bf16.gmra.mxu0 %v1086
      %v1110 = vpop.f32.mrf.mxu0
      %v1111 = vadd.f32 0.0, %v1110
      %v1112 = vpop.f32.mrf.mxu0
      %v1113 = vadd.f32 0.0, %v1112
      %1114 = vmatmul.bf16.gmra.mxu0 %v1089
      %v1115 = vpop.f32.mrf.mxu0
      %v1116 = vadd.f32 0.0, %v1115
      %v1117 = vpop.f32.mrf.mxu0
      %v1118 = vadd.f32 0.0, %v1117
      %1119 = vdwg.mxu0
      %v1120 = vadd.f32 %v1017, %v1101
      %v1121 = vadd.f32 %v1018, %v1103
      %v1122 = vadd.f32 %v1019, %v1106
      %v1123 = vadd.f32 %v1020, %v1108
      %v1124 = vadd.f32 %v1021, %v1111
      %v1125 = vadd.f32 %v1022, %v1113
      %v1126 = vadd.f32 %v1023, %v1116
      %v1127 = vadd.f32 %v1024, %v1118
      %v1128 = vld [vmem:[%s1025] sm:$0xf]
      %v1129 = vld [vmem:[%s1025 + $0x4] sm:$0x1]
      %v1130 = vld [vmem:[%s1025 + $0x8] sm:$0xf]
      %v1131 = vld [vmem:[%s1025 + $0xc] sm:$0x1]
      %v1132 = vld [vmem:[%s1025 + $0x10] sm:$0xf]
      %v1133 = vld [vmem:[%s1025 + $0x14] sm:$0x1]
      %v1134 = vld [vmem:[%s1025 + $0x18] sm:$0xf]
      %v1135 = vld [vmem:[%s1025 + $0x1c] sm:$0x1]
      %v1136 = vld [vmem:[%s1025 + $0x20] sm:$0xf]
      %v1137 = vld [vmem:[%s1025 + $0x24] sm:$0x1]
      %v1138 = vld [vmem:[%s1025 + $0x28] sm:$0xf]
      %v1139 = vld [vmem:[%s1025 + $0x2c] sm:$0x1]
      %v1140 = vld [vmem:[%s1025 + $0x30] sm:$0xf]
      %v1141 = vld [vmem:[%s1025 + $0x34] sm:$0x1]
      %v1142 = vld [vmem:[%s1025 + $0x38] sm:$0xf]
      %v1143 = vld [vmem:[%s1025 + $0x3c] sm:$0x1]
      %v1145 = vshrl.u32 %v1128, 16
      %v1147 = vrot.slane %v1145, 4
      %v1148 = vshll.u32 %v1128, 16
      %v1150 = vrot.slane %v1148, 5
      %v1151 = vor.u32 %v1147, %v1150
      %v1152 = vrot.slane %v1151, 4
      %v1154 = vshll.u32 %v1129, 16
      %v1156 = vrot.slane %v1154, 5
      %v1157 = vsel %vm223, %v1152, %v1156
      %v1159 = vshrl.u32 %v1130, 16
      %v1161 = vrot.slane %v1159, 4
      %v1162 = vshll.u32 %v1130, 16
      %v1164 = vrot.slane %v1162, 5
      %v1165 = vor.u32 %v1161, %v1164
      %v1166 = vrot.slane %v1165, 4
      %v1168 = vshll.u32 %v1131, 16
      %v1170 = vrot.slane %v1168, 5
      %v1171 = vsel %vm223, %v1166, %v1170
      %v1173 = vshrl.u32 %v1132, 16
      %v1175 = vrot.slane %v1173, 4
      %v1176 = vshll.u32 %v1132, 16
      %v1178 = vrot.slane %v1176, 5
      %v1179 = vor.u32 %v1175, %v1178
      %v1180 = vrot.slane %v1179, 4
      %v1182 = vshll.u32 %v1133, 16
      %v1184 = vrot.slane %v1182, 5
      %v1185 = vsel %vm223, %v1180, %v1184
      %v1187 = vshrl.u32 %v1134, 16
      %v1189 = vrot.slane %v1187, 4
      %v1190 = vshll.u32 %v1134, 16
      %v1192 = vrot.slane %v1190, 5
      %v1193 = vor.u32 %v1189, %v1192
      %v1194 = vrot.slane %v1193, 4
      %v1196 = vshll.u32 %v1135, 16
      %v1198 = vrot.slane %v1196, 5
      %v1199 = vsel %vm223, %v1194, %v1198
      %v1201 = vshrl.u32 %v1136, 16
      %v1203 = vrot.slane %v1201, 4
      %v1204 = vshll.u32 %v1136, 16
      %v1206 = vrot.slane %v1204, 5
      %v1207 = vor.u32 %v1203, %v1206
      %v1208 = vrot.slane %v1207, 4
      %v1210 = vshll.u32 %v1137, 16
      %v1212 = vrot.slane %v1210, 5
      %v1213 = vsel %vm223, %v1208, %v1212
      %v1215 = vshrl.u32 %v1138, 16
      %v1217 = vrot.slane %v1215, 4
      %v1218 = vshll.u32 %v1138, 16
      %v1220 = vrot.slane %v1218, 5
      %v1221 = vor.u32 %v1217, %v1220
      %v1222 = vrot.slane %v1221, 4
      %v1224 = vshll.u32 %v1139, 16
      %v1226 = vrot.slane %v1224, 5
      %v1227 = vsel %vm223, %v1222, %v1226
      %v1229 = vshrl.u32 %v1140, 16
      %v1231 = vrot.slane %v1229, 4
      %v1232 = vshll.u32 %v1140, 16
      %v1234 = vrot.slane %v1232, 5
      %v1235 = vor.u32 %v1231, %v1234
      %v1236 = vrot.slane %v1235, 4
      %v1238 = vshll.u32 %v1141, 16
      %v1240 = vrot.slane %v1238, 5
      %v1241 = vsel %vm223, %v1236, %v1240
      %v1243 = vshrl.u32 %v1142, 16
      %v1245 = vrot.slane %v1243, 4
      %v1246 = vshll.u32 %v1142, 16
      %v1248 = vrot.slane %v1246, 5
      %v1249 = vor.u32 %v1245, %v1248
      %v1250 = vrot.slane %v1249, 4
      %v1252 = vshll.u32 %v1143, 16
      %v1254 = vrot.slane %v1252, 5
      %v1255 = vsel %vm223, %v1250, %v1254
      %s1256 = scalar_lea.vmem %s1, 144
      %v1257 = vld [vmem:[%s1256] sm:$0xf]
      %v1258 = vld [vmem:[%s1256 + $0x4] sm:$0xf]
      %v1259 = vld [vmem:[%s1256 + $0x8] sm:$0xf]
      %v1260 = vld [vmem:[%s1256 + $0xc] sm:$0xf]
      %v1261 = vld [vmem:[%s1256 + $0x10] sm:$0xf]
      %v1262 = vld [vmem:[%s1256 + $0x14] sm:$0xf]
      %v1263 = vunpack.c.l.b16 %v1157
      %v1264 = vunpack.c.l.b16 %v1171
      %v1265 = vunpack.c.l.b16 %v1185
      %v1266 = vunpack.c.l.b16 %v1199
      %v1267 = vunpack.c.l.b16 %v1213
      %v1268 = vunpack.c.l.b16 %v1227
      %v1269 = vunpack.c.l.b16 %v1241
      %v1270 = vunpack.c.l.b16 %v1255
      %v1271 = vpack.c.b16 %v1264, %v1263
      %v1272 = vpack.c.b16 %v1266, %v1265
      %v1273 = vpack.c.b16 %v1268, %v1267
      %v1274 = vpack.c.b16 %v1270, %v1269
      %v1281 = vunpack.c.l.b16 %v1257
      %v1282 = vunpack.c.l.b16 %v1258
      %v1283 = vunpack.c.l.b16 %v1259
      %v1284 = vunpack.c.l.b16 %v1260
      %v1285 = vunpack.c.l.b16 %v1261
      %v1286 = vunpack.c.l.b16 %v1262
      %v1287 = vpack.c.b16 %v1282, %v1281
      %v1288 = vpack.c.b16 %v1284, %v1283
      %v1289 = vpack.c.b16 %v1286, %v1285
      %v1294 = vsel %vm373, %v1271, 0
      %v1297 = vsel %vm373, %v1272, 0
      %v1300 = vsel %vm373, %v1273, 0
      %v1303 = vsel %vm373, %v1274, 0
      %1305 = vmatpush.bf16.msra.mxu0 0
      %1306 = vmatpush.bf16.msra.mxu0 0
      %1307 = vmatpush.bf16.msra.mxu0 0
      %1308 = vmatpush.bf16.msra.mxu0 0
      %1309 = vmatpush.bf16.msra.mxu0 0
      %1310 = vmatpush.bf16.msra.mxu0 %v1289
      %1311 = vmatpush.bf16.msra.mxu0 %v1288
      %1312 = vmatpush.bf16.msra.mxu0 %v1287
      %1313 = vmatmul.bf16.gmra.mxu0 %v1294
      %v1314 = vpop.f32.mrf.mxu0
      %v1315 = vadd.f32 0.0, %v1314
      %v1316 = vpop.f32.mrf.mxu0
      %v1317 = vadd.f32 0.0, %v1316
      %1318 = vmatmul.bf16.gmra.mxu0 %v1297
      %v1319 = vpop.f32.mrf.mxu0
      %v1320 = vadd.f32 0.0, %v1319
      %v1321 = vpop.f32.mrf.mxu0
      %v1322 = vadd.f32 0.0, %v1321
      %1323 = vmatmul.bf16.gmra.mxu0 %v1300
      %v1324 = vpop.f32.mrf.mxu0
      %v1325 = vadd.f32 0.0, %v1324
      %v1326 = vpop.f32.mrf.mxu0
      %v1327 = vadd.f32 0.0, %v1326
      %1328 = vmatmul.bf16.gmra.mxu0 %v1303
      %v1329 = vpop.f32.mrf.mxu0
      %v1330 = vadd.f32 0.0, %v1329
      %v1331 = vpop.f32.mrf.mxu0
      %v1332 = vadd.f32 0.0, %v1331
      %1333 = vdwg.mxu0
      %v1334 = vadd.f32 %v1120, %v1315
      %v1335 = vadd.f32 %v1121, %v1317
      %v1336 = vadd.f32 %v1122, %v1320
      %v1337 = vadd.f32 %v1123, %v1322
      %v1338 = vadd.f32 %v1124, %v1325
      %v1339 = vadd.f32 %v1125, %v1327
      %v1340 = vadd.f32 %v1126, %v1330
      %v1341 = vadd.f32 %v1127, %v1332
      %v1342 = vld [vmem:[%s1025] sm:$0xe]
      %v1343 = vld [vmem:[%s1025 + $0x8] sm:$0xe]
      %v1344 = vld [vmem:[%s1025 + $0x10] sm:$0xe]
      %v1345 = vld [vmem:[%s1025 + $0x18] sm:$0xe]
      %v1346 = vld [vmem:[%s1025 + $0x20] sm:$0xe]
      %v1347 = vld [vmem:[%s1025 + $0x28] sm:$0xe]
      %v1348 = vld [vmem:[%s1025 + $0x30] sm:$0xe]
      %v1349 = vld [vmem:[%s1025 + $0x38] sm:$0xe]
      %v1366 = vrot.slane %v1342, 5
      %v1367 = vrot.slane %v1366, 4
      %v1368 = vrot.slane %v1129, 5
      %v1369 = vsel %vm520, %v1367, %v1368
      %v1370 = vrot.slane %v1343, 5
      %v1371 = vrot.slane %v1370, 4
      %v1372 = vrot.slane %v1131, 5
      %v1373 = vsel %vm520, %v1371, %v1372
      %v1374 = vrot.slane %v1344, 5
      %v1375 = vrot.slane %v1374, 4
      %v1376 = vrot.slane %v1133, 5
      %v1377 = vsel %vm520, %v1375, %v1376
      %v1378 = vrot.slane %v1345, 5
      %v1379 = vrot.slane %v1378, 4
      %v1380 = vrot.slane %v1135, 5
      %v1381 = vsel %vm520, %v1379, %v1380
      %v1382 = vrot.slane %v1346, 5
      %v1383 = vrot.slane %v1382, 4
      %v1384 = vrot.slane %v1137, 5
      %v1385 = vsel %vm520, %v1383, %v1384
      %v1386 = vrot.slane %v1347, 5
      %v1387 = vrot.slane %v1386, 4
      %v1388 = vrot.slane %v1139, 5
      %v1389 = vsel %vm520, %v1387, %v1388
      %v1390 = vrot.slane %v1348, 5
      %v1391 = vrot.slane %v1390, 4
      %v1392 = vrot.slane %v1141, 5
      %v1393 = vsel %vm520, %v1391, %v1392
      %v1394 = vrot.slane %v1349, 5
      %v1395 = vrot.slane %v1394, 4
      %v1396 = vrot.slane %v1143, 5
      %v1397 = vsel %vm520, %v1395, %v1396
      %s1398 = scalar_lea.vmem %s1, 168
      %v1399 = vld [vmem:[%s1398] sm:$0xf]
      %v1400 = vld [vmem:[%s1398 + $0x4] sm:$0xf]
      %v1401 = vld [vmem:[%s1398 + $0x8] sm:$0xf]
      %v1402 = vld [vmem:[%s1398 + $0xc] sm:$0xf]
      %v1403 = vld [vmem:[%s1398 + $0x10] sm:$0xf]
      %v1404 = vld [vmem:[%s1398 + $0x14] sm:$0xf]
      %v1405 = vunpack.c.l.b16 %v1369
      %v1406 = vunpack.c.l.b16 %v1373
      %v1407 = vunpack.c.l.b16 %v1377
      %v1408 = vunpack.c.l.b16 %v1381
      %v1409 = vunpack.c.l.b16 %v1385
      %v1410 = vunpack.c.l.b16 %v1389
      %v1411 = vunpack.c.l.b16 %v1393
      %v1412 = vunpack.c.l.b16 %v1397
      %v1413 = vpack.c.b16 %v1406, %v1405
      %v1414 = vpack.c.b16 %v1408, %v1407
      %v1415 = vpack.c.b16 %v1410, %v1409
      %v1416 = vpack.c.b16 %v1412, %v1411
      %v1423 = vunpack.c.l.b16 %v1399
      %v1424 = vunpack.c.l.b16 %v1400
      %v1425 = vunpack.c.l.b16 %v1401
      %v1426 = vunpack.c.l.b16 %v1402
      %v1427 = vunpack.c.l.b16 %v1403
      %v1428 = vunpack.c.l.b16 %v1404
      %v1429 = vpack.c.b16 %v1424, %v1423
      %v1430 = vpack.c.b16 %v1426, %v1425
      %v1431 = vpack.c.b16 %v1428, %v1427
      %v1436 = vsel %vm373, %v1413, 0
      %v1439 = vsel %vm373, %v1414, 0
      %v1442 = vsel %vm373, %v1415, 0
      %v1445 = vsel %vm373, %v1416, 0
      %1447 = vmatpush.bf16.msra.mxu0 0
      %1448 = vmatpush.bf16.msra.mxu0 0
      %1449 = vmatpush.bf16.msra.mxu0 0
      %1450 = vmatpush.bf16.msra.mxu0 0
      %1451 = vmatpush.bf16.msra.mxu0 0
      %1452 = vmatpush.bf16.msra.mxu0 %v1431
      %1453 = vmatpush.bf16.msra.mxu0 %v1430
      %1454 = vmatpush.bf16.msra.mxu0 %v1429
      %1455 = vmatmul.bf16.gmra.mxu0 %v1436
      %v1456 = vpop.f32.mrf.mxu0
      %v1457 = vadd.f32 0.0, %v1456
      %v1458 = vpop.f32.mrf.mxu0
      %v1459 = vadd.f32 0.0, %v1458
      %1460 = vmatmul.bf16.gmra.mxu0 %v1439
      %v1461 = vpop.f32.mrf.mxu0
      %v1462 = vadd.f32 0.0, %v1461
      %v1463 = vpop.f32.mrf.mxu0
      %v1464 = vadd.f32 0.0, %v1463
      %1465 = vmatmul.bf16.gmra.mxu0 %v1442
      %v1466 = vpop.f32.mrf.mxu0
      %v1467 = vadd.f32 0.0, %v1466
      %v1468 = vpop.f32.mrf.mxu0
      %v1469 = vadd.f32 0.0, %v1468
      %1470 = vmatmul.bf16.gmra.mxu0 %v1445
      %v1471 = vpop.f32.mrf.mxu0
      %v1472 = vadd.f32 0.0, %v1471
      %v1473 = vpop.f32.mrf.mxu0
      %v1474 = vadd.f32 0.0, %v1473
      %1475 = vdwg.mxu0
      %v1476 = vadd.f32 %v1334, %v1457
      %v1477 = vadd.f32 %v1335, %v1459
      %v1478 = vadd.f32 %v1336, %v1462
      %v1479 = vadd.f32 %v1337, %v1464
      %v1480 = vadd.f32 %v1338, %v1467
      %v1481 = vadd.f32 %v1339, %v1469
      %v1482 = vadd.f32 %v1340, %v1472
      %v1483 = vadd.f32 %v1341, %v1474
      %v1484 = vld [vmem:[%s1025 + $0x4] sm:$0x3]
      %v1485 = vld [vmem:[%s1025 + $0xc] sm:$0x3]
      %v1486 = vld [vmem:[%s1025 + $0x14] sm:$0x3]
      %v1487 = vld [vmem:[%s1025 + $0x1c] sm:$0x3]
      %v1488 = vld [vmem:[%s1025 + $0x24] sm:$0x3]
      %v1489 = vld [vmem:[%s1025 + $0x2c] sm:$0x3]
      %v1490 = vld [vmem:[%s1025 + $0x34] sm:$0x3]
      %v1491 = vld [vmem:[%s1025 + $0x3c] sm:$0x3]
      %v1493 = vshrl.u32 %v1342, 16
      %v1495 = vrot.slane %v1493, 5
      %v1496 = vshll.u32 %v1342, 16
      %v1498 = vrot.slane %v1496, 6
      %v1499 = vor.u32 %v1495, %v1498
      %v1500 = vrot.slane %v1499, 4
      %v1502 = vshrl.u32 %v1484, 16
      %v1504 = vrot.slane %v1502, 5
      %v1505 = vshll.u32 %v1484, 16
      %v1507 = vrot.slane %v1505, 6
      %v1508 = vor.u32 %v1504, %v1507
      %v1509 = vsel %vm649, %v1500, %v1508
      %v1511 = vshrl.u32 %v1343, 16
      %v1513 = vrot.slane %v1511, 5
      %v1514 = vshll.u32 %v1343, 16
      %v1516 = vrot.slane %v1514, 6
      %v1517 = vor.u32 %v1513, %v1516
      %v1518 = vrot.slane %v1517, 4
      %v1520 = vshrl.u32 %v1485, 16
      %v1522 = vrot.slane %v1520, 5
      %v1523 = vshll.u32 %v1485, 16
      %v1525 = vrot.slane %v1523, 6
      %v1526 = vor.u32 %v1522, %v1525
      %v1527 = vsel %vm649, %v1518, %v1526
      %v1529 = vshrl.u32 %v1344, 16
      %v1531 = vrot.slane %v1529, 5
      %v1532 = vshll.u32 %v1344, 16
      %v1534 = vrot.slane %v1532, 6
      %v1535 = vor.u32 %v1531, %v1534
      %v1536 = vrot.slane %v1535, 4
      %v1538 = vshrl.u32 %v1486, 16
      %v1540 = vrot.slane %v1538, 5
      %v1541 = vshll.u32 %v1486, 16
      %v1543 = vrot.slane %v1541, 6
      %v1544 = vor.u32 %v1540, %v1543
      %v1545 = vsel %vm649, %v1536, %v1544
      %v1547 = vshrl.u32 %v1345, 16
      %v1549 = vrot.slane %v1547, 5
      %v1550 = vshll.u32 %v1345, 16
      %v1552 = vrot.slane %v1550, 6
      %v1553 = vor.u32 %v1549, %v1552
      %v1554 = vrot.slane %v1553, 4
      %v1556 = vshrl.u32 %v1487, 16
      %v1558 = vrot.slane %v1556, 5
      %v1559 = vshll.u32 %v1487, 16
      %v1561 = vrot.slane %v1559, 6
      %v1562 = vor.u32 %v1558, %v1561
      %v1563 = vsel %vm649, %v1554, %v1562
      %v1565 = vshrl.u32 %v1346, 16
      %v1567 = vrot.slane %v1565, 5
      %v1568 = vshll.u32 %v1346, 16
      %v1570 = vrot.slane %v1568, 6
      %v1571 = vor.u32 %v1567, %v1570
      %v1572 = vrot.slane %v1571, 4
      %v1574 = vshrl.u32 %v1488, 16
      %v1576 = vrot.slane %v1574, 5
      %v1577 = vshll.u32 %v1488, 16
      %v1579 = vrot.slane %v1577, 6
      %v1580 = vor.u32 %v1576, %v1579
      %v1581 = vsel %vm649, %v1572, %v1580
      %v1583 = vshrl.u32 %v1347, 16
      %v1585 = vrot.slane %v1583, 5
      %v1586 = vshll.u32 %v1347, 16
      %v1588 = vrot.slane %v1586, 6
      %v1589 = vor.u32 %v1585, %v1588
      %v1590 = vrot.slane %v1589, 4
      %v1592 = vshrl.u32 %v1489, 16
      %v1594 = vrot.slane %v1592, 5
      %v1595 = vshll.u32 %v1489, 16
      %v1597 = vrot.slane %v1595, 6
      %v1598 = vor.u32 %v1594, %v1597
      %v1599 = vsel %vm649, %v1590, %v1598
      %v1601 = vshrl.u32 %v1348, 16
      %v1603 = vrot.slane %v1601, 5
      %v1604 = vshll.u32 %v1348, 16
      %v1606 = vrot.slane %v1604, 6
      %v1607 = vor.u32 %v1603, %v1606
      %v1608 = vrot.slane %v1607, 4
      %v1610 = vshrl.u32 %v1490, 16
      %v1612 = vrot.slane %v1610, 5
      %v1613 = vshll.u32 %v1490, 16
      %v1615 = vrot.slane %v1613, 6
      %v1616 = vor.u32 %v1612, %v1615
      %v1617 = vsel %vm649, %v1608, %v1616
      %v1619 = vshrl.u32 %v1349, 16
      %v1621 = vrot.slane %v1619, 5
      %v1622 = vshll.u32 %v1349, 16
      %v1624 = vrot.slane %v1622, 6
      %v1625 = vor.u32 %v1621, %v1624
      %v1626 = vrot.slane %v1625, 4
      %v1628 = vshrl.u32 %v1491, 16
      %v1630 = vrot.slane %v1628, 5
      %v1631 = vshll.u32 %v1491, 16
      %v1633 = vrot.slane %v1631, 6
      %v1634 = vor.u32 %v1630, %v1633
      %v1635 = vsel %vm649, %v1626, %v1634
      %s1636 = scalar_lea.vmem %s1, 192
      %v1637 = vld [vmem:[%s1636] sm:$0xf]
      %v1638 = vld [vmem:[%s1636 + $0x4] sm:$0xf]
      %v1639 = vld [vmem:[%s1636 + $0x8] sm:$0xf]
      %v1640 = vld [vmem:[%s1636 + $0xc] sm:$0xf]
      %v1641 = vld [vmem:[%s1636 + $0x10] sm:$0xf]
      %v1642 = vld [vmem:[%s1636 + $0x14] sm:$0xf]
      %v1643 = vunpack.c.l.b16 %v1509
      %v1644 = vunpack.c.l.b16 %v1527
      %v1645 = vunpack.c.l.b16 %v1545
      %v1646 = vunpack.c.l.b16 %v1563
      %v1647 = vunpack.c.l.b16 %v1581
      %v1648 = vunpack.c.l.b16 %v1599
      %v1649 = vunpack.c.l.b16 %v1617
      %v1650 = vunpack.c.l.b16 %v1635
      %v1651 = vpack.c.b16 %v1644, %v1643
      %v1652 = vpack.c.b16 %v1646, %v1645
      %v1653 = vpack.c.b16 %v1648, %v1647
      %v1654 = vpack.c.b16 %v1650, %v1649
      %v1661 = vunpack.c.l.b16 %v1637
      %v1662 = vunpack.c.l.b16 %v1638
      %v1663 = vunpack.c.l.b16 %v1639
      %v1664 = vunpack.c.l.b16 %v1640
      %v1665 = vunpack.c.l.b16 %v1641
      %v1666 = vunpack.c.l.b16 %v1642
      %v1667 = vpack.c.b16 %v1662, %v1661
      %v1668 = vpack.c.b16 %v1664, %v1663
      %v1669 = vpack.c.b16 %v1666, %v1665
      %v1674 = vsel %vm373, %v1651, 0
      %v1677 = vsel %vm373, %v1652, 0
      %v1680 = vsel %vm373, %v1653, 0
      %v1683 = vsel %vm373, %v1654, 0
      %1685 = vmatpush.bf16.msra.mxu0 0
      %1686 = vmatpush.bf16.msra.mxu0 0
      %1687 = vmatpush.bf16.msra.mxu0 0
      %1688 = vmatpush.bf16.msra.mxu0 0
      %1689 = vmatpush.bf16.msra.mxu0 0
      %1690 = vmatpush.bf16.msra.mxu0 %v1669
      %1691 = vmatpush.bf16.msra.mxu0 %v1668
      %1692 = vmatpush.bf16.msra.mxu0 %v1667
      %1693 = vmatmul.bf16.gmra.mxu0 %v1674
      %v1694 = vpop.f32.mrf.mxu0
      %v1695 = vadd.f32 0.0, %v1694
      %v1696 = vpop.f32.mrf.mxu0
      %v1697 = vadd.f32 0.0, %v1696
      %1698 = vmatmul.bf16.gmra.mxu0 %v1677
      %v1699 = vpop.f32.mrf.mxu0
      %v1700 = vadd.f32 0.0, %v1699
      %v1701 = vpop.f32.mrf.mxu0
      %v1702 = vadd.f32 0.0, %v1701
      %1703 = vmatmul.bf16.gmra.mxu0 %v1680
      %v1704 = vpop.f32.mrf.mxu0
      %v1705 = vadd.f32 0.0, %v1704
      %v1706 = vpop.f32.mrf.mxu0
      %v1707 = vadd.f32 0.0, %v1706
      %1708 = vmatmul.bf16.gmra.mxu0 %v1683
      %v1709 = vpop.f32.mrf.mxu0
      %v1710 = vadd.f32 0.0, %v1709
      %v1711 = vpop.f32.mrf.mxu0
      %v1712 = vadd.f32 0.0, %v1711
      %1713 = vdwg.mxu0
      %v1714 = vadd.f32 %v1476, %v1695
      %v1715 = vadd.f32 %v1477, %v1697
      %v1716 = vadd.f32 %v1478, %v1700
      %v1717 = vadd.f32 %v1479, %v1702
      %v1718 = vadd.f32 %v1480, %v1705
      %v1719 = vadd.f32 %v1481, %v1707
      %v1720 = vadd.f32 %v1482, %v1710
      %v1721 = vadd.f32 %v1483, %v1712
      %v1722 = vld [vmem:[%s1025] sm:$0xc]
      %v1723 = vld [vmem:[%s1025 + $0x8] sm:$0xc]
      %v1724 = vld [vmem:[%s1025 + $0x10] sm:$0xc]
      %v1725 = vld [vmem:[%s1025 + $0x18] sm:$0xc]
      %v1726 = vld [vmem:[%s1025 + $0x20] sm:$0xc]
      %v1727 = vld [vmem:[%s1025 + $0x28] sm:$0xc]
      %v1728 = vld [vmem:[%s1025 + $0x30] sm:$0xc]
      %v1729 = vld [vmem:[%s1025 + $0x38] sm:$0xc]
      %v1746 = vrot.slane %v1722, 6
      %v1747 = vrot.slane %v1746, 4
      %v1748 = vrot.slane %v1484, 6
      %v1749 = vsel %vm906, %v1747, %v1748
      %v1750 = vrot.slane %v1723, 6
      %v1751 = vrot.slane %v1750, 4
      %v1752 = vrot.slane %v1485, 6
      %v1753 = vsel %vm906, %v1751, %v1752
      %v1754 = vrot.slane %v1724, 6
      %v1755 = vrot.slane %v1754, 4
      %v1756 = vrot.slane %v1486, 6
      %v1757 = vsel %vm906, %v1755, %v1756
      %v1758 = vrot.slane %v1725, 6
      %v1759 = vrot.slane %v1758, 4
      %v1760 = vrot.slane %v1487, 6
      %v1761 = vsel %vm906, %v1759, %v1760
      %v1762 = vrot.slane %v1726, 6
      %v1763 = vrot.slane %v1762, 4
      %v1764 = vrot.slane %v1488, 6
      %v1765 = vsel %vm906, %v1763, %v1764
      %v1766 = vrot.slane %v1727, 6
      %v1767 = vrot.slane %v1766, 4
      %v1768 = vrot.slane %v1489, 6
      %v1769 = vsel %vm906, %v1767, %v1768
      %v1770 = vrot.slane %v1728, 6
      %v1771 = vrot.slane %v1770, 4
      %v1772 = vrot.slane %v1490, 6
      %v1773 = vsel %vm906, %v1771, %v1772
      %v1774 = vrot.slane %v1729, 6
      %v1775 = vrot.slane %v1774, 4
      %v1776 = vrot.slane %v1491, 6
      %v1777 = vsel %vm906, %v1775, %v1776
      %s1778 = scalar_lea.vmem %s1, 216
      %v1779 = vld [vmem:[%s1778] sm:$0xf]
      %v1780 = vld [vmem:[%s1778 + $0x4] sm:$0xf]
      %v1781 = vld [vmem:[%s1778 + $0x8] sm:$0xf]
      %v1782 = vld [vmem:[%s1778 + $0xc] sm:$0xf]
      %v1783 = vld [vmem:[%s1778 + $0x10] sm:$0xf]
      %v1784 = vld [vmem:[%s1778 + $0x14] sm:$0xf]
      %v1785 = vunpack.c.l.b16 %v1749
      %v1786 = vunpack.c.l.b16 %v1753
      %v1787 = vunpack.c.l.b16 %v1757
      %v1788 = vunpack.c.l.b16 %v1761
      %v1789 = vunpack.c.l.b16 %v1765
      %v1790 = vunpack.c.l.b16 %v1769
      %v1791 = vunpack.c.l.b16 %v1773
      %v1792 = vunpack.c.l.b16 %v1777
      %v1793 = vpack.c.b16 %v1786, %v1785
      %v1794 = vpack.c.b16 %v1788, %v1787
      %v1795 = vpack.c.b16 %v1790, %v1789
      %v1796 = vpack.c.b16 %v1792, %v1791
      %v1803 = vunpack.c.l.b16 %v1779
      %v1804 = vunpack.c.l.b16 %v1780
      %v1805 = vunpack.c.l.b16 %v1781
      %v1806 = vunpack.c.l.b16 %v1782
      %v1807 = vunpack.c.l.b16 %v1783
      %v1808 = vunpack.c.l.b16 %v1784
      %v1809 = vpack.c.b16 %v1804, %v1803
      %v1810 = vpack.c.b16 %v1806, %v1805
      %v1811 = vpack.c.b16 %v1808, %v1807
      %v1816 = vsel %vm373, %v1793, 0
      %v1819 = vsel %vm373, %v1794, 0
      %v1822 = vsel %vm373, %v1795, 0
      %v1825 = vsel %vm373, %v1796, 0
      %1827 = vmatpush.bf16.msra.mxu0 0
      %1828 = vmatpush.bf16.msra.mxu0 0
      %1829 = vmatpush.bf16.msra.mxu0 0
      %1830 = vmatpush.bf16.msra.mxu0 0
      %1831 = vmatpush.bf16.msra.mxu0 0
      %1832 = vmatpush.bf16.msra.mxu0 %v1811
      %1833 = vmatpush.bf16.msra.mxu0 %v1810
      %1834 = vmatpush.bf16.msra.mxu0 %v1809
      %1835 = vmatmul.bf16.gmra.mxu0 %v1816
      %v1836 = vpop.f32.mrf.mxu0
      %v1837 = vadd.f32 0.0, %v1836
      %v1838 = vpop.f32.mrf.mxu0
      %v1839 = vadd.f32 0.0, %v1838
      %1840 = vmatmul.bf16.gmra.mxu0 %v1819
      %v1841 = vpop.f32.mrf.mxu0
      %v1842 = vadd.f32 0.0, %v1841
      %v1843 = vpop.f32.mrf.mxu0
      %v1844 = vadd.f32 0.0, %v1843
      %1845 = vmatmul.bf16.gmra.mxu0 %v1822
      %v1846 = vpop.f32.mrf.mxu0
      %v1847 = vadd.f32 0.0, %v1846
      %v1848 = vpop.f32.mrf.mxu0
      %v1849 = vadd.f32 0.0, %v1848
      %1850 = vmatmul.bf16.gmra.mxu0 %v1825
      %v1851 = vpop.f32.mrf.mxu0
      %v1852 = vadd.f32 0.0, %v1851
      %v1853 = vpop.f32.mrf.mxu0
      %v1854 = vadd.f32 0.0, %v1853
      %1855 = vdwg.mxu0
      %v1856 = vadd.f32 %v1714, %v1837
      %v1857 = vadd.f32 %v1715, %v1839
      %v1858 = vadd.f32 %v1716, %v1842
      %v1859 = vadd.f32 %v1717, %v1844
      %v1860 = vadd.f32 %v1718, %v1847
      %v1861 = vadd.f32 %v1719, %v1849
      %v1862 = vadd.f32 %v1720, %v1852
      %v1863 = vadd.f32 %v1721, %v1854
      %s1864 = scalar_lea.vmem %s192, 16
      %v1865 = vld [vmem:[%s1864] sm:$0xf]
      %v1866 = vld [vmem:[%s1864 + $0x8] sm:$0xf]
      %v1867 = vld [vmem:[%s1864 + $0x10] sm:$0xf]
      %v1868 = vld [vmem:[%s1864 + $0x18] sm:$0xf]
      %v1869 = vld [vmem:[%s1864 + $0x20] sm:$0xf]
      %v1870 = vld [vmem:[%s1864 + $0x28] sm:$0xf]
      %v1871 = vld [vmem:[%s1864 + $0x30] sm:$0xf]
      %v1872 = vld [vmem:[%s1864 + $0x38] sm:$0xf]
      %s1873 = scalar_lea.vmem %s1, 240
      %v1874 = vld [vmem:[%s1873] sm:$0xf]
      %v1875 = vld [vmem:[%s1873 + $0x4] sm:$0xf]
      %v1876 = vld [vmem:[%s1873 + $0x8] sm:$0xf]
      %v1877 = vld [vmem:[%s1873 + $0xc] sm:$0xf]
      %v1878 = vld [vmem:[%s1873 + $0x10] sm:$0xf]
      %v1879 = vld [vmem:[%s1873 + $0x14] sm:$0xf]
      %v1888 = vunpack.c.l.b16 %v1865
      %v1889 = vunpack.c.l.b16 %v1866
      %v1890 = vunpack.c.l.b16 %v1867
      %v1891 = vunpack.c.l.b16 %v1868
      %v1892 = vunpack.c.l.b16 %v1869
      %v1893 = vunpack.c.l.b16 %v1870
      %v1894 = vunpack.c.l.b16 %v1871
      %v1895 = vunpack.c.l.b16 %v1872
      %v1896 = vpack.c.b16 %v1889, %v1888
      %v1897 = vpack.c.b16 %v1891, %v1890
      %v1898 = vpack.c.b16 %v1893, %v1892
      %v1899 = vpack.c.b16 %v1895, %v1894
      %v1906 = vunpack.c.l.b16 %v1874
      %v1907 = vunpack.c.l.b16 %v1875
      %v1908 = vunpack.c.l.b16 %v1876
      %v1909 = vunpack.c.l.b16 %v1877
      %v1910 = vunpack.c.l.b16 %v1878
      %v1911 = vunpack.c.l.b16 %v1879
      %v1912 = vpack.c.b16 %v1907, %v1906
      %v1913 = vpack.c.b16 %v1909, %v1908
      %v1914 = vpack.c.b16 %v1911, %v1910
      %v1919 = vsel %vm373, %v1896, 0
      %v1922 = vsel %vm373, %v1897, 0
      %v1925 = vsel %vm373, %v1898, 0
      %v1928 = vsel %vm373, %v1899, 0
      %1930 = vmatpush.bf16.msra.mxu0 0
      %1931 = vmatpush.bf16.msra.mxu0 0
      %1932 = vmatpush.bf16.msra.mxu0 0
      %1933 = vmatpush.bf16.msra.mxu0 0
      %1934 = vmatpush.bf16.msra.mxu0 0
      %1935 = vmatpush.bf16.msra.mxu0 %v1914
      %1936 = vmatpush.bf16.msra.mxu0 %v1913
      %1937 = vmatpush.bf16.msra.mxu0 %v1912
      %1938 = vmatmul.bf16.gmra.mxu0 %v1919
      %v1939 = vpop.f32.mrf.mxu0
      %v1940 = vadd.f32 0.0, %v1939
      %v1941 = vpop.f32.mrf.mxu0
      %v1942 = vadd.f32 0.0, %v1941
      %1943 = vmatmul.bf16.gmra.mxu0 %v1922
      %v1944 = vpop.f32.mrf.mxu0
      %v1945 = vadd.f32 0.0, %v1944
      %v1946 = vpop.f32.mrf.mxu0
      %v1947 = vadd.f32 0.0, %v1946
      %1948 = vmatmul.bf16.gmra.mxu0 %v1925
      %v1949 = vpop.f32.mrf.mxu0
      %v1950 = vadd.f32 0.0, %v1949
      %v1951 = vpop.f32.mrf.mxu0
      %v1952 = vadd.f32 0.0, %v1951
      %1953 = vmatmul.bf16.gmra.mxu0 %v1928
      %v1954 = vpop.f32.mrf.mxu0
      %v1955 = vadd.f32 0.0, %v1954
      %v1956 = vpop.f32.mrf.mxu0
      %v1957 = vadd.f32 0.0, %v1956
      %1958 = vdwg.mxu0
      %v1959 = vadd.f32 %v1856, %v1940
      %v1960 = vadd.f32 %v1857, %v1942
      %v1961 = vadd.f32 %v1858, %v1945
      %v1962 = vadd.f32 %v1859, %v1947
      %v1963 = vadd.f32 %v1860, %v1950
      %v1964 = vadd.f32 %v1861, %v1952
      %v1965 = vadd.f32 %v1862, %v1955
      %v1966 = vadd.f32 %v1863, %v1957
      %v1967 = vld [vmem:[%s1864] sm:$0xf]
      %v1968 = vld [vmem:[%s1864 + $0x4] sm:$0x1]
      %v1969 = vld [vmem:[%s1864 + $0x8] sm:$0xf]
      %v1970 = vld [vmem:[%s1864 + $0xc] sm:$0x1]
      %v1971 = vld [vmem:[%s1864 + $0x10] sm:$0xf]
      %v1972 = vld [vmem:[%s1864 + $0x14] sm:$0x1]
      %v1973 = vld [vmem:[%s1864 + $0x18] sm:$0xf]
      %v1974 = vld [vmem:[%s1864 + $0x1c] sm:$0x1]
      %v1975 = vld [vmem:[%s1864 + $0x20] sm:$0xf]
      %v1976 = vld [vmem:[%s1864 + $0x24] sm:$0x1]
      %v1977 = vld [vmem:[%s1864 + $0x28] sm:$0xf]
      %v1978 = vld [vmem:[%s1864 + $0x2c] sm:$0x1]
      %v1979 = vld [vmem:[%s1864 + $0x30] sm:$0xf]
      %v1980 = vld [vmem:[%s1864 + $0x34] sm:$0x1]
      %v1981 = vld [vmem:[%s1864 + $0x38] sm:$0xf]
      %v1982 = vld [vmem:[%s1864 + $0x3c] sm:$0x1]
      %v1984 = vshrl.u32 %v1967, 16
      %v1986 = vrot.slane %v1984, 4
      %v1987 = vshll.u32 %v1967, 16
      %v1989 = vrot.slane %v1987, 5
      %v1990 = vor.u32 %v1986, %v1989
      %v1991 = vrot.slane %v1990, 4
      %v1993 = vshll.u32 %v1968, 16
      %v1995 = vrot.slane %v1993, 5
      %v1996 = vsel %vm223, %v1991, %v1995
      %v1998 = vshrl.u32 %v1969, 16
      %v2000 = vrot.slane %v1998, 4
      %v2001 = vshll.u32 %v1969, 16
      %v2003 = vrot.slane %v2001, 5
      %v2004 = vor.u32 %v2000, %v2003
      %v2005 = vrot.slane %v2004, 4
      %v2007 = vshll.u32 %v1970, 16
      %v2009 = vrot.slane %v2007, 5
      %v2010 = vsel %vm223, %v2005, %v2009
      %v2012 = vshrl.u32 %v1971, 16
      %v2014 = vrot.slane %v2012, 4
      %v2015 = vshll.u32 %v1971, 16
      %v2017 = vrot.slane %v2015, 5
      %v2018 = vor.u32 %v2014, %v2017
      %v2019 = vrot.slane %v2018, 4
      %v2021 = vshll.u32 %v1972, 16
      %v2023 = vrot.slane %v2021, 5
      %v2024 = vsel %vm223, %v2019, %v2023
      %v2026 = vshrl.u32 %v1973, 16
      %v2028 = vrot.slane %v2026, 4
      %v2029 = vshll.u32 %v1973, 16
      %v2031 = vrot.slane %v2029, 5
      %v2032 = vor.u32 %v2028, %v2031
      %v2033 = vrot.slane %v2032, 4
      %v2035 = vshll.u32 %v1974, 16
      %v2037 = vrot.slane %v2035, 5
      %v2038 = vsel %vm223, %v2033, %v2037
      %v2040 = vshrl.u32 %v1975, 16
      %v2042 = vrot.slane %v2040, 4
      %v2043 = vshll.u32 %v1975, 16
      %v2045 = vrot.slane %v2043, 5
      %v2046 = vor.u32 %v2042, %v2045
      %v2047 = vrot.slane %v2046, 4
      %v2049 = vshll.u32 %v1976, 16
      %v2051 = vrot.slane %v2049, 5
      %v2052 = vsel %vm223, %v2047, %v2051
      %v2054 = vshrl.u32 %v1977, 16
      %v2056 = vrot.slane %v2054, 4
      %v2057 = vshll.u32 %v1977, 16
      %v2059 = vrot.slane %v2057, 5
      %v2060 = vor.u32 %v2056, %v2059
      %v2061 = vrot.slane %v2060, 4
      %v2063 = vshll.u32 %v1978, 16
      %v2065 = vrot.slane %v2063, 5
      %v2066 = vsel %vm223, %v2061, %v2065
      %v2068 = vshrl.u32 %v1979, 16
      %v2070 = vrot.slane %v2068, 4
      %v2071 = vshll.u32 %v1979, 16
      %v2073 = vrot.slane %v2071, 5
      %v2074 = vor.u32 %v2070, %v2073
      %v2075 = vrot.slane %v2074, 4
      %v2077 = vshll.u32 %v1980, 16
      %v2079 = vrot.slane %v2077, 5
      %v2080 = vsel %vm223, %v2075, %v2079
      %v2082 = vshrl.u32 %v1981, 16
      %v2084 = vrot.slane %v2082, 4
      %v2085 = vshll.u32 %v1981, 16
      %v2087 = vrot.slane %v2085, 5
      %v2088 = vor.u32 %v2084, %v2087
      %v2089 = vrot.slane %v2088, 4
      %v2091 = vshll.u32 %v1982, 16
      %v2093 = vrot.slane %v2091, 5
      %v2094 = vsel %vm223, %v2089, %v2093
      %s2095 = scalar_lea.vmem %s1, 264
      %v2096 = vld [vmem:[%s2095] sm:$0xf]
      %v2097 = vld [vmem:[%s2095 + $0x4] sm:$0xf]
      %v2098 = vld [vmem:[%s2095 + $0x8] sm:$0xf]
      %v2099 = vld [vmem:[%s2095 + $0xc] sm:$0xf]
      %v2100 = vld [vmem:[%s2095 + $0x10] sm:$0xf]
      %v2101 = vld [vmem:[%s2095 + $0x14] sm:$0xf]
      %v2102 = vunpack.c.l.b16 %v1996
      %v2103 = vunpack.c.l.b16 %v2010
      %v2104 = vunpack.c.l.b16 %v2024
      %v2105 = vunpack.c.l.b16 %v2038
      %v2106 = vunpack.c.l.b16 %v2052
      %v2107 = vunpack.c.l.b16 %v2066
      %v2108 = vunpack.c.l.b16 %v2080
      %v2109 = vunpack.c.l.b16 %v2094
      %v2110 = vpack.c.b16 %v2103, %v2102
      %v2111 = vpack.c.b16 %v2105, %v2104
      %v2112 = vpack.c.b16 %v2107, %v2106
      %v2113 = vpack.c.b16 %v2109, %v2108
      %v2120 = vunpack.c.l.b16 %v2096
      %v2121 = vunpack.c.l.b16 %v2097
      %v2122 = vunpack.c.l.b16 %v2098
      %v2123 = vunpack.c.l.b16 %v2099
      %v2124 = vunpack.c.l.b16 %v2100
      %v2125 = vunpack.c.l.b16 %v2101
      %v2126 = vpack.c.b16 %v2121, %v2120
      %v2127 = vpack.c.b16 %v2123, %v2122
      %v2128 = vpack.c.b16 %v2125, %v2124
      %v2133 = vsel %vm373, %v2110, 0
      %v2136 = vsel %vm373, %v2111, 0
      %v2139 = vsel %vm373, %v2112, 0
      %v2142 = vsel %vm373, %v2113, 0
      %2144 = vmatpush.bf16.msra.mxu0 0
      %2145 = vmatpush.bf16.msra.mxu0 0
      %2146 = vmatpush.bf16.msra.mxu0 0
      %2147 = vmatpush.bf16.msra.mxu0 0
      %2148 = vmatpush.bf16.msra.mxu0 0
      %2149 = vmatpush.bf16.msra.mxu0 %v2128
      %2150 = vmatpush.bf16.msra.mxu0 %v2127
      %2151 = vmatpush.bf16.msra.mxu0 %v2126
      %2152 = vmatmul.bf16.gmra.mxu0 %v2133
      %v2153 = vpop.f32.mrf.mxu0
      %v2154 = vadd.f32 0.0, %v2153
      %v2155 = vpop.f32.mrf.mxu0
      %v2156 = vadd.f32 0.0, %v2155
      %2157 = vmatmul.bf16.gmra.mxu0 %v2136
      %v2158 = vpop.f32.mrf.mxu0
      %v2159 = vadd.f32 0.0, %v2158
      %v2160 = vpop.f32.mrf.mxu0
      %v2161 = vadd.f32 0.0, %v2160
      %2162 = vmatmul.bf16.gmra.mxu0 %v2139
      %v2163 = vpop.f32.mrf.mxu0
      %v2164 = vadd.f32 0.0, %v2163
      %v2165 = vpop.f32.mrf.mxu0
      %v2166 = vadd.f32 0.0, %v2165
      %2167 = vmatmul.bf16.gmra.mxu0 %v2142
      %v2168 = vpop.f32.mrf.mxu0
      %v2169 = vadd.f32 0.0, %v2168
      %v2170 = vpop.f32.mrf.mxu0
      %v2171 = vadd.f32 0.0, %v2170
      %2172 = vdwg.mxu0
      %v2173 = vadd.f32 %v1959, %v2154
      %v2174 = vadd.f32 %v1960, %v2156
      %v2175 = vadd.f32 %v1961, %v2159
      %v2176 = vadd.f32 %v1962, %v2161
      %v2177 = vadd.f32 %v1963, %v2164
      %v2178 = vadd.f32 %v1964, %v2166
      %v2179 = vadd.f32 %v1965, %v2169
      %v2180 = vadd.f32 %v1966, %v2171
      %v2181 = vld [vmem:[%s1864] sm:$0xe]
      %v2182 = vld [vmem:[%s1864 + $0x8] sm:$0xe]
      %v2183 = vld [vmem:[%s1864 + $0x10] sm:$0xe]
      %v2184 = vld [vmem:[%s1864 + $0x18] sm:$0xe]
      %v2185 = vld [vmem:[%s1864 + $0x20] sm:$0xe]
      %v2186 = vld [vmem:[%s1864 + $0x28] sm:$0xe]
      %v2187 = vld [vmem:[%s1864 + $0x30] sm:$0xe]
      %v2188 = vld [vmem:[%s1864 + $0x38] sm:$0xe]
      %v2205 = vrot.slane %v2181, 5
      %v2206 = vrot.slane %v2205, 4
      %v2207 = vrot.slane %v1968, 5
      %v2208 = vsel %vm520, %v2206, %v2207
      %v2209 = vrot.slane %v2182, 5
      %v2210 = vrot.slane %v2209, 4
      %v2211 = vrot.slane %v1970, 5
      %v2212 = vsel %vm520, %v2210, %v2211
      %v2213 = vrot.slane %v2183, 5
      %v2214 = vrot.slane %v2213, 4
      %v2215 = vrot.slane %v1972, 5
      %v2216 = vsel %vm520, %v2214, %v2215
      %v2217 = vrot.slane %v2184, 5
      %v2218 = vrot.slane %v2217, 4
      %v2219 = vrot.slane %v1974, 5
      %v2220 = vsel %vm520, %v2218, %v2219
      %v2221 = vrot.slane %v2185, 5
      %v2222 = vrot.slane %v2221, 4
      %v2223 = vrot.slane %v1976, 5
      %v2224 = vsel %vm520, %v2222, %v2223
      %v2225 = vrot.slane %v2186, 5
      %v2226 = vrot.slane %v2225, 4
      %v2227 = vrot.slane %v1978, 5
      %v2228 = vsel %vm520, %v2226, %v2227
      %v2229 = vrot.slane %v2187, 5
      %v2230 = vrot.slane %v2229, 4
      %v2231 = vrot.slane %v1980, 5
      %v2232 = vsel %vm520, %v2230, %v2231
      %v2233 = vrot.slane %v2188, 5
      %v2234 = vrot.slane %v2233, 4
      %v2235 = vrot.slane %v1982, 5
      %v2236 = vsel %vm520, %v2234, %v2235
      %s2237 = scalar_lea.vmem %s1, 288
      %v2238 = vld [vmem:[%s2237] sm:$0xf]
      %v2239 = vld [vmem:[%s2237 + $0x4] sm:$0xf]
      %v2240 = vld [vmem:[%s2237 + $0x8] sm:$0xf]
      %v2241 = vld [vmem:[%s2237 + $0xc] sm:$0xf]
      %v2242 = vld [vmem:[%s2237 + $0x10] sm:$0xf]
      %v2243 = vld [vmem:[%s2237 + $0x14] sm:$0xf]
      %v2244 = vunpack.c.l.b16 %v2208
      %v2245 = vunpack.c.l.b16 %v2212
      %v2246 = vunpack.c.l.b16 %v2216
      %v2247 = vunpack.c.l.b16 %v2220
      %v2248 = vunpack.c.l.b16 %v2224
      %v2249 = vunpack.c.l.b16 %v2228
      %v2250 = vunpack.c.l.b16 %v2232
      %v2251 = vunpack.c.l.b16 %v2236
      %v2252 = vpack.c.b16 %v2245, %v2244
      %v2253 = vpack.c.b16 %v2247, %v2246
      %v2254 = vpack.c.b16 %v2249, %v2248
      %v2255 = vpack.c.b16 %v2251, %v2250
      %v2262 = vunpack.c.l.b16 %v2238
      %v2263 = vunpack.c.l.b16 %v2239
      %v2264 = vunpack.c.l.b16 %v2240
      %v2265 = vunpack.c.l.b16 %v2241
      %v2266 = vunpack.c.l.b16 %v2242
      %v2267 = vunpack.c.l.b16 %v2243
      %v2268 = vpack.c.b16 %v2263, %v2262
      %v2269 = vpack.c.b16 %v2265, %v2264
      %v2270 = vpack.c.b16 %v2267, %v2266
      %v2275 = vsel %vm373, %v2252, 0
      %v2278 = vsel %vm373, %v2253, 0
      %v2281 = vsel %vm373, %v2254, 0
      %v2284 = vsel %vm373, %v2255, 0
      %2286 = vmatpush.bf16.msra.mxu0 0
      %2287 = vmatpush.bf16.msra.mxu0 0
      %2288 = vmatpush.bf16.msra.mxu0 0
      %2289 = vmatpush.bf16.msra.mxu0 0
      %2290 = vmatpush.bf16.msra.mxu0 0
      %2291 = vmatpush.bf16.msra.mxu0 %v2270
      %2292 = vmatpush.bf16.msra.mxu0 %v2269
      %2293 = vmatpush.bf16.msra.mxu0 %v2268
      %2294 = vmatmul.bf16.gmra.mxu0 %v2275
      %v2295 = vpop.f32.mrf.mxu0
      %v2296 = vadd.f32 0.0, %v2295
      %v2297 = vpop.f32.mrf.mxu0
      %v2298 = vadd.f32 0.0, %v2297
      %2299 = vmatmul.bf16.gmra.mxu0 %v2278
      %v2300 = vpop.f32.mrf.mxu0
      %v2301 = vadd.f32 0.0, %v2300
      %v2302 = vpop.f32.mrf.mxu0
      %v2303 = vadd.f32 0.0, %v2302
      %2304 = vmatmul.bf16.gmra.mxu0 %v2281
      %v2305 = vpop.f32.mrf.mxu0
      %v2306 = vadd.f32 0.0, %v2305
      %v2307 = vpop.f32.mrf.mxu0
      %v2308 = vadd.f32 0.0, %v2307
      %2309 = vmatmul.bf16.gmra.mxu0 %v2284
      %v2310 = vpop.f32.mrf.mxu0
      %v2311 = vadd.f32 0.0, %v2310
      %v2312 = vpop.f32.mrf.mxu0
      %v2313 = vadd.f32 0.0, %v2312
      %2314 = vdwg.mxu0
      %v2315 = vadd.f32 %v2173, %v2296
      %v2316 = vadd.f32 %v2174, %v2298
      %v2317 = vadd.f32 %v2175, %v2301
      %v2318 = vadd.f32 %v2176, %v2303
      %v2319 = vadd.f32 %v2177, %v2306
      %v2320 = vadd.f32 %v2178, %v2308
      %v2321 = vadd.f32 %v2179, %v2311
      %v2322 = vadd.f32 %v2180, %v2313
      %v2323 = vld [vmem:[%s1864 + $0x4] sm:$0x3]
      %v2324 = vld [vmem:[%s1864 + $0xc] sm:$0x3]
      %v2325 = vld [vmem:[%s1864 + $0x14] sm:$0x3]
      %v2326 = vld [vmem:[%s1864 + $0x1c] sm:$0x3]
      %v2327 = vld [vmem:[%s1864 + $0x24] sm:$0x3]
      %v2328 = vld [vmem:[%s1864 + $0x2c] sm:$0x3]
      %v2329 = vld [vmem:[%s1864 + $0x34] sm:$0x3]
      %v2330 = vld [vmem:[%s1864 + $0x3c] sm:$0x3]
      %v2332 = vshrl.u32 %v2181, 16
      %v2334 = vrot.slane %v2332, 5
      %v2335 = vshll.u32 %v2181, 16
      %v2337 = vrot.slane %v2335, 6
      %v2338 = vor.u32 %v2334, %v2337
      %v2339 = vrot.slane %v2338, 4
      %v2341 = vshrl.u32 %v2323, 16
      %v2343 = vrot.slane %v2341, 5
      %v2344 = vshll.u32 %v2323, 16
      %v2346 = vrot.slane %v2344, 6
      %v2347 = vor.u32 %v2343, %v2346
      %v2348 = vsel %vm649, %v2339, %v2347
      %v2350 = vshrl.u32 %v2182, 16
      %v2352 = vrot.slane %v2350, 5
      %v2353 = vshll.u32 %v2182, 16
      %v2355 = vrot.slane %v2353, 6
      %v2356 = vor.u32 %v2352, %v2355
      %v2357 = vrot.slane %v2356, 4
      %v2359 = vshrl.u32 %v2324, 16
      %v2361 = vrot.slane %v2359, 5
      %v2362 = vshll.u32 %v2324, 16
      %v2364 = vrot.slane %v2362, 6
      %v2365 = vor.u32 %v2361, %v2364
      %v2366 = vsel %vm649, %v2357, %v2365
      %v2368 = vshrl.u32 %v2183, 16
      %v2370 = vrot.slane %v2368, 5
      %v2371 = vshll.u32 %v2183, 16
      %v2373 = vrot.slane %v2371, 6
      %v2374 = vor.u32 %v2370, %v2373
      %v2375 = vrot.slane %v2374, 4
      %v2377 = vshrl.u32 %v2325, 16
      %v2379 = vrot.slane %v2377, 5
      %v2380 = vshll.u32 %v2325, 16
      %v2382 = vrot.slane %v2380, 6
      %v2383 = vor.u32 %v2379, %v2382
      %v2384 = vsel %vm649, %v2375, %v2383
      %v2386 = vshrl.u32 %v2184, 16
      %v2388 = vrot.slane %v2386, 5
      %v2389 = vshll.u32 %v2184, 16
      %v2391 = vrot.slane %v2389, 6
      %v2392 = vor.u32 %v2388, %v2391
      %v2393 = vrot.slane %v2392, 4
      %v2395 = vshrl.u32 %v2326, 16
      %v2397 = vrot.slane %v2395, 5
      %v2398 = vshll.u32 %v2326, 16
      %v2400 = vrot.slane %v2398, 6
      %v2401 = vor.u32 %v2397, %v2400
      %v2402 = vsel %vm649, %v2393, %v2401
      %v2404 = vshrl.u32 %v2185, 16
      %v2406 = vrot.slane %v2404, 5
      %v2407 = vshll.u32 %v2185, 16
      %v2409 = vrot.slane %v2407, 6
      %v2410 = vor.u32 %v2406, %v2409
      %v2411 = vrot.slane %v2410, 4
      %v2413 = vshrl.u32 %v2327, 16
      %v2415 = vrot.slane %v2413, 5
      %v2416 = vshll.u32 %v2327, 16
      %v2418 = vrot.slane %v2416, 6
      %v2419 = vor.u32 %v2415, %v2418
      %v2420 = vsel %vm649, %v2411, %v2419
      %v2422 = vshrl.u32 %v2186, 16
      %v2424 = vrot.slane %v2422, 5
      %v2425 = vshll.u32 %v2186, 16
      %v2427 = vrot.slane %v2425, 6
      %v2428 = vor.u32 %v2424, %v2427
      %v2429 = vrot.slane %v2428, 4
      %v2431 = vshrl.u32 %v2328, 16
      %v2433 = vrot.slane %v2431, 5
      %v2434 = vshll.u32 %v2328, 16
      %v2436 = vrot.slane %v2434, 6
      %v2437 = vor.u32 %v2433, %v2436
      %v2438 = vsel %vm649, %v2429, %v2437
      %v2440 = vshrl.u32 %v2187, 16
      %v2442 = vrot.slane %v2440, 5
      %v2443 = vshll.u32 %v2187, 16
      %v2445 = vrot.slane %v2443, 6
      %v2446 = vor.u32 %v2442, %v2445
      %v2447 = vrot.slane %v2446, 4
      %v2449 = vshrl.u32 %v2329, 16
      %v2451 = vrot.slane %v2449, 5
      %v2452 = vshll.u32 %v2329, 16
      %v2454 = vrot.slane %v2452, 6
      %v2455 = vor.u32 %v2451, %v2454
      %v2456 = vsel %vm649, %v2447, %v2455
      %v2458 = vshrl.u32 %v2188, 16
      %v2460 = vrot.slane %v2458, 5
      %v2461 = vshll.u32 %v2188, 16
      %v2463 = vrot.slane %v2461, 6
      %v2464 = vor.u32 %v2460, %v2463
      %v2465 = vrot.slane %v2464, 4
      %v2467 = vshrl.u32 %v2330, 16
      %v2469 = vrot.slane %v2467, 5
      %v2470 = vshll.u32 %v2330, 16
      %v2472 = vrot.slane %v2470, 6
      %v2473 = vor.u32 %v2469, %v2472
      %v2474 = vsel %vm649, %v2465, %v2473
      %s2475 = scalar_lea.vmem %s1, 312
      %v2476 = vld [vmem:[%s2475] sm:$0xf]
      %v2477 = vld [vmem:[%s2475 + $0x4] sm:$0xf]
      %v2478 = vld [vmem:[%s2475 + $0x8] sm:$0xf]
      %v2479 = vld [vmem:[%s2475 + $0xc] sm:$0xf]
      %v2480 = vld [vmem:[%s2475 + $0x10] sm:$0xf]
      %v2481 = vld [vmem:[%s2475 + $0x14] sm:$0xf]
      %v2482 = vunpack.c.l.b16 %v2348
      %v2483 = vunpack.c.l.b16 %v2366
      %v2484 = vunpack.c.l.b16 %v2384
      %v2485 = vunpack.c.l.b16 %v2402
      %v2486 = vunpack.c.l.b16 %v2420
      %v2487 = vunpack.c.l.b16 %v2438
      %v2488 = vunpack.c.l.b16 %v2456
      %v2489 = vunpack.c.l.b16 %v2474
      %v2490 = vpack.c.b16 %v2483, %v2482
      %v2491 = vpack.c.b16 %v2485, %v2484
      %v2492 = vpack.c.b16 %v2487, %v2486
      %v2493 = vpack.c.b16 %v2489, %v2488
      %v2500 = vunpack.c.l.b16 %v2476
      %v2501 = vunpack.c.l.b16 %v2477
      %v2502 = vunpack.c.l.b16 %v2478
      %v2503 = vunpack.c.l.b16 %v2479
      %v2504 = vunpack.c.l.b16 %v2480
      %v2505 = vunpack.c.l.b16 %v2481
      %v2506 = vpack.c.b16 %v2501, %v2500
      %v2507 = vpack.c.b16 %v2503, %v2502
      %v2508 = vpack.c.b16 %v2505, %v2504
      %v2513 = vsel %vm373, %v2490, 0
      %v2516 = vsel %vm373, %v2491, 0
      %v2519 = vsel %vm373, %v2492, 0
      %v2522 = vsel %vm373, %v2493, 0
      %2524 = vmatpush.bf16.msra.mxu0 0
      %2525 = vmatpush.bf16.msra.mxu0 0
      %2526 = vmatpush.bf16.msra.mxu0 0
      %2527 = vmatpush.bf16.msra.mxu0 0
      %2528 = vmatpush.bf16.msra.mxu0 0
      %2529 = vmatpush.bf16.msra.mxu0 %v2508
      %2530 = vmatpush.bf16.msra.mxu0 %v2507
      %2531 = vmatpush.bf16.msra.mxu0 %v2506
      %2532 = vmatmul.bf16.gmra.mxu0 %v2513
      %v2533 = vpop.f32.mrf.mxu0
      %v2534 = vadd.f32 0.0, %v2533
      %v2535 = vpop.f32.mrf.mxu0
      %v2536 = vadd.f32 0.0, %v2535
      %2537 = vmatmul.bf16.gmra.mxu0 %v2516
      %v2538 = vpop.f32.mrf.mxu0
      %v2539 = vadd.f32 0.0, %v2538
      %v2540 = vpop.f32.mrf.mxu0
      %v2541 = vadd.f32 0.0, %v2540
      %2542 = vmatmul.bf16.gmra.mxu0 %v2519
      %v2543 = vpop.f32.mrf.mxu0
      %v2544 = vadd.f32 0.0, %v2543
      %v2545 = vpop.f32.mrf.mxu0
      %v2546 = vadd.f32 0.0, %v2545
      %2547 = vmatmul.bf16.gmra.mxu0 %v2522
      %v2548 = vpop.f32.mrf.mxu0
      %v2549 = vadd.f32 0.0, %v2548
      %v2550 = vpop.f32.mrf.mxu0
      %v2551 = vadd.f32 0.0, %v2550
      %2552 = vdwg.mxu0
      %v2553 = vadd.f32 %v2315, %v2534
      %v2554 = vadd.f32 %v2316, %v2536
      %v2555 = vadd.f32 %v2317, %v2539
      %v2556 = vadd.f32 %v2318, %v2541
      %v2557 = vadd.f32 %v2319, %v2544
      %v2558 = vadd.f32 %v2320, %v2546
      %v2559 = vadd.f32 %v2321, %v2549
      %v2560 = vadd.f32 %v2322, %v2551
      %v2561 = vld [vmem:[%s1864] sm:$0xc]
      %v2562 = vld [vmem:[%s1864 + $0x8] sm:$0xc]
      %v2563 = vld [vmem:[%s1864 + $0x10] sm:$0xc]
      %v2564 = vld [vmem:[%s1864 + $0x18] sm:$0xc]
      %v2565 = vld [vmem:[%s1864 + $0x20] sm:$0xc]
      %v2566 = vld [vmem:[%s1864 + $0x28] sm:$0xc]
      %v2567 = vld [vmem:[%s1864 + $0x30] sm:$0xc]
      %v2568 = vld [vmem:[%s1864 + $0x38] sm:$0xc]
      %v2585 = vrot.slane %v2561, 6
      %v2586 = vrot.slane %v2585, 4
      %v2587 = vrot.slane %v2323, 6
      %v2588 = vsel %vm906, %v2586, %v2587
      %v2589 = vrot.slane %v2562, 6
      %v2590 = vrot.slane %v2589, 4
      %v2591 = vrot.slane %v2324, 6
      %v2592 = vsel %vm906, %v2590, %v2591
      %v2593 = vrot.slane %v2563, 6
      %v2594 = vrot.slane %v2593, 4
      %v2595 = vrot.slane %v2325, 6
      %v2596 = vsel %vm906, %v2594, %v2595
      %v2597 = vrot.slane %v2564, 6
      %v2598 = vrot.slane %v2597, 4
      %v2599 = vrot.slane %v2326, 6
      %v2600 = vsel %vm906, %v2598, %v2599
      %v2601 = vrot.slane %v2565, 6
      %v2602 = vrot.slane %v2601, 4
      %v2603 = vrot.slane %v2327, 6
      %v2604 = vsel %vm906, %v2602, %v2603
      %v2605 = vrot.slane %v2566, 6
      %v2606 = vrot.slane %v2605, 4
      %v2607 = vrot.slane %v2328, 6
      %v2608 = vsel %vm906, %v2606, %v2607
      %v2609 = vrot.slane %v2567, 6
      %v2610 = vrot.slane %v2609, 4
      %v2611 = vrot.slane %v2329, 6
      %v2612 = vsel %vm906, %v2610, %v2611
      %v2613 = vrot.slane %v2568, 6
      %v2614 = vrot.slane %v2613, 4
      %v2615 = vrot.slane %v2330, 6
      %v2616 = vsel %vm906, %v2614, %v2615
      %s2617 = scalar_lea.vmem %s1, 336
      %v2618 = vld [vmem:[%s2617] sm:$0xf]
      %v2619 = vld [vmem:[%s2617 + $0x4] sm:$0xf]
      %v2620 = vld [vmem:[%s2617 + $0x8] sm:$0xf]
      %v2621 = vld [vmem:[%s2617 + $0xc] sm:$0xf]
      %v2622 = vld [vmem:[%s2617 + $0x10] sm:$0xf]
      %v2623 = vld [vmem:[%s2617 + $0x14] sm:$0xf]
      %v2624 = vunpack.c.l.b16 %v2588
      %v2625 = vunpack.c.l.b16 %v2592
      %v2626 = vunpack.c.l.b16 %v2596
      %v2627 = vunpack.c.l.b16 %v2600
      %v2628 = vunpack.c.l.b16 %v2604
      %v2629 = vunpack.c.l.b16 %v2608
      %v2630 = vunpack.c.l.b16 %v2612
      %v2631 = vunpack.c.l.b16 %v2616
      %v2632 = vpack.c.b16 %v2625, %v2624
      %v2633 = vpack.c.b16 %v2627, %v2626
      %v2634 = vpack.c.b16 %v2629, %v2628
      %v2635 = vpack.c.b16 %v2631, %v2630
      %v2642 = vunpack.c.l.b16 %v2618
      %v2643 = vunpack.c.l.b16 %v2619
      %v2644 = vunpack.c.l.b16 %v2620
      %v2645 = vunpack.c.l.b16 %v2621
      %v2646 = vunpack.c.l.b16 %v2622
      %v2647 = vunpack.c.l.b16 %v2623
      %v2648 = vpack.c.b16 %v2643, %v2642
      %v2649 = vpack.c.b16 %v2645, %v2644
      %v2650 = vpack.c.b16 %v2647, %v2646
      %v2655 = vsel %vm373, %v2632, 0
      %v2658 = vsel %vm373, %v2633, 0
      %v2661 = vsel %vm373, %v2634, 0
      %v2664 = vsel %vm373, %v2635, 0
      %2666 = vmatpush.bf16.msra.mxu0 0
      %2667 = vmatpush.bf16.msra.mxu0 0
      %2668 = vmatpush.bf16.msra.mxu0 0
      %2669 = vmatpush.bf16.msra.mxu0 0
      %2670 = vmatpush.bf16.msra.mxu0 0
      %2671 = vmatpush.bf16.msra.mxu0 %v2650
      %2672 = vmatpush.bf16.msra.mxu0 %v2649
      %2673 = vmatpush.bf16.msra.mxu0 %v2648
      %2674 = vmatmul.bf16.gmra.mxu0 %v2655
      %v2675 = vpop.f32.mrf.mxu0
      %v2676 = vadd.f32 0.0, %v2675
      %v2677 = vpop.f32.mrf.mxu0
      %v2678 = vadd.f32 0.0, %v2677
      %2679 = vmatmul.bf16.gmra.mxu0 %v2658
      %v2680 = vpop.f32.mrf.mxu0
      %v2681 = vadd.f32 0.0, %v2680
      %v2682 = vpop.f32.mrf.mxu0
      %v2683 = vadd.f32 0.0, %v2682
      %2684 = vmatmul.bf16.gmra.mxu0 %v2661
      %v2685 = vpop.f32.mrf.mxu0
      %v2686 = vadd.f32 0.0, %v2685
      %v2687 = vpop.f32.mrf.mxu0
      %v2688 = vadd.f32 0.0, %v2687
      %2689 = vmatmul.bf16.gmra.mxu0 %v2664
      %v2690 = vpop.f32.mrf.mxu0
      %v2691 = vadd.f32 0.0, %v2690
      %v2692 = vpop.f32.mrf.mxu0
      %v2693 = vadd.f32 0.0, %v2692
      %2694 = vdwg.mxu0
      %v2695 = vadd.f32 %v2553, %v2676
      %v2696 = vadd.f32 %v2554, %v2678
      %v2697 = vadd.f32 %v2555, %v2681
      %v2698 = vadd.f32 %v2556, %v2683
      %v2699 = vadd.f32 %v2557, %v2686
      %v2700 = vadd.f32 %v2558, %v2688
      %v2701 = vadd.f32 %v2559, %v2691
      %v2702 = vadd.f32 %v2560, %v2693
      %s2703 = scalar_lea.vmem %s192, 24
      %v2704 = vld [vmem:[%s2703] sm:$0xf]
      %v2705 = vld [vmem:[%s2703 + $0x8] sm:$0xf]
      %v2706 = vld [vmem:[%s2703 + $0x10] sm:$0xf]
      %v2707 = vld [vmem:[%s2703 + $0x18] sm:$0xf]
      %v2708 = vld [vmem:[%s2703 + $0x20] sm:$0xf]
      %v2709 = vld [vmem:[%s2703 + $0x28] sm:$0xf]
      %v2710 = vld [vmem:[%s2703 + $0x30] sm:$0xf]
      %v2711 = vld [vmem:[%s2703 + $0x38] sm:$0xf]
      %s2712 = scalar_lea.vmem %s1, 360
      %v2713 = vld [vmem:[%s2712] sm:$0xf]
      %v2714 = vld [vmem:[%s2712 + $0x4] sm:$0xf]
      %v2715 = vld [vmem:[%s2712 + $0x8] sm:$0xf]
      %v2716 = vld [vmem:[%s2712 + $0xc] sm:$0xf]
      %v2717 = vld [vmem:[%s2712 + $0x10] sm:$0xf]
      %v2718 = vld [vmem:[%s2712 + $0x14] sm:$0xf]
      %v2727 = vunpack.c.l.b16 %v2704
      %v2728 = vunpack.c.l.b16 %v2705
      %v2729 = vunpack.c.l.b16 %v2706
      %v2730 = vunpack.c.l.b16 %v2707
      %v2731 = vunpack.c.l.b16 %v2708
      %v2732 = vunpack.c.l.b16 %v2709
      %v2733 = vunpack.c.l.b16 %v2710
      %v2734 = vunpack.c.l.b16 %v2711
      %v2735 = vpack.c.b16 %v2728, %v2727
      %v2736 = vpack.c.b16 %v2730, %v2729
      %v2737 = vpack.c.b16 %v2732, %v2731
      %v2738 = vpack.c.b16 %v2734, %v2733
      %v2745 = vunpack.c.l.b16 %v2713
      %v2746 = vunpack.c.l.b16 %v2714
      %v2747 = vunpack.c.l.b16 %v2715
      %v2748 = vunpack.c.l.b16 %v2716
      %v2749 = vunpack.c.l.b16 %v2717
      %v2750 = vunpack.c.l.b16 %v2718
      %v2751 = vpack.c.b16 %v2746, %v2745
      %v2752 = vpack.c.b16 %v2748, %v2747
      %v2753 = vpack.c.b16 %v2750, %v2749
      %v2758 = vsel %vm373, %v2735, 0
      %v2761 = vsel %vm373, %v2736, 0
      %v2764 = vsel %vm373, %v2737, 0
      %v2767 = vsel %vm373, %v2738, 0
      %2769 = vmatpush.bf16.msra.mxu0 0
      %2770 = vmatpush.bf16.msra.mxu0 0
      %2771 = vmatpush.bf16.msra.mxu0 0
      %2772 = vmatpush.bf16.msra.mxu0 0
      %2773 = vmatpush.bf16.msra.mxu0 0
      %2774 = vmatpush.bf16.msra.mxu0 %v2753
      %2775 = vmatpush.bf16.msra.mxu0 %v2752
      %2776 = vmatpush.bf16.msra.mxu0 %v2751
      %2777 = vmatmul.bf16.gmra.mxu0 %v2758
      %v2778 = vpop.f32.mrf.mxu0
      %v2779 = vadd.f32 0.0, %v2778
      %v2780 = vpop.f32.mrf.mxu0
      %v2781 = vadd.f32 0.0, %v2780
      %2782 = vmatmul.bf16.gmra.mxu0 %v2761
      %v2783 = vpop.f32.mrf.mxu0
      %v2784 = vadd.f32 0.0, %v2783
      %v2785 = vpop.f32.mrf.mxu0
      %v2786 = vadd.f32 0.0, %v2785
      %2787 = vmatmul.bf16.gmra.mxu0 %v2764
      %v2788 = vpop.f32.mrf.mxu0
      %v2789 = vadd.f32 0.0, %v2788
      %v2790 = vpop.f32.mrf.mxu0
      %v2791 = vadd.f32 0.0, %v2790
      %2792 = vmatmul.bf16.gmra.mxu0 %v2767
      %v2793 = vpop.f32.mrf.mxu0
      %v2794 = vadd.f32 0.0, %v2793
      %v2795 = vpop.f32.mrf.mxu0
      %v2796 = vadd.f32 0.0, %v2795
      %2797 = vdwg.mxu0
      %v2798 = vadd.f32 %v2695, %v2779
      %v2799 = vadd.f32 %v2696, %v2781
      %v2800 = vadd.f32 %v2697, %v2784
      %v2801 = vadd.f32 %v2698, %v2786
      %v2802 = vadd.f32 %v2699, %v2789
      %v2803 = vadd.f32 %v2700, %v2791
      %v2804 = vadd.f32 %v2701, %v2794
      %v2805 = vadd.f32 %v2702, %v2796
      %v2806 = vld [vmem:[%s2703] sm:$0xf]
      %v2807 = vld [vmem:[%s2703 + $0x4] sm:$0x1]
      %v2808 = vld [vmem:[%s2703 + $0x8] sm:$0xf]
      %v2809 = vld [vmem:[%s2703 + $0xc] sm:$0x1]
      %v2810 = vld [vmem:[%s2703 + $0x10] sm:$0xf]
      %v2811 = vld [vmem:[%s2703 + $0x14] sm:$0x1]
      %v2812 = vld [vmem:[%s2703 + $0x18] sm:$0xf]
      %v2813 = vld [vmem:[%s2703 + $0x1c] sm:$0x1]
      %v2814 = vld [vmem:[%s2703 + $0x20] sm:$0xf]
      %v2815 = vld [vmem:[%s2703 + $0x24] sm:$0x1]
      %v2816 = vld [vmem:[%s2703 + $0x28] sm:$0xf]
      %v2817 = vld [vmem:[%s2703 + $0x2c] sm:$0x1]
      %v2818 = vld [vmem:[%s2703 + $0x30] sm:$0xf]
      %v2819 = vld [vmem:[%s2703 + $0x34] sm:$0x1]
      %v2820 = vld [vmem:[%s2703 + $0x38] sm:$0xf]
      %v2821 = vld [vmem:[%s2703 + $0x3c] sm:$0x1]
      %v2823 = vshrl.u32 %v2806, 16
      %v2825 = vrot.slane %v2823, 4
      %v2826 = vshll.u32 %v2806, 16
      %v2828 = vrot.slane %v2826, 5
      %v2829 = vor.u32 %v2825, %v2828
      %v2830 = vrot.slane %v2829, 4
      %v2832 = vshll.u32 %v2807, 16
      %v2834 = vrot.slane %v2832, 5
      %v2835 = vsel %vm223, %v2830, %v2834
      %v2837 = vshrl.u32 %v2808, 16
      %v2839 = vrot.slane %v2837, 4
      %v2840 = vshll.u32 %v2808, 16
      %v2842 = vrot.slane %v2840, 5
      %v2843 = vor.u32 %v2839, %v2842
      %v2844 = vrot.slane %v2843, 4
      %v2846 = vshll.u32 %v2809, 16
      %v2848 = vrot.slane %v2846, 5
      %v2849 = vsel %vm223, %v2844, %v2848
      %v2851 = vshrl.u32 %v2810, 16
      %v2853 = vrot.slane %v2851, 4
      %v2854 = vshll.u32 %v2810, 16
      %v2856 = vrot.slane %v2854, 5
      %v2857 = vor.u32 %v2853, %v2856
      %v2858 = vrot.slane %v2857, 4
      %v2860 = vshll.u32 %v2811, 16
      %v2862 = vrot.slane %v2860, 5
      %v2863 = vsel %vm223, %v2858, %v2862
      %v2865 = vshrl.u32 %v2812, 16
      %v2867 = vrot.slane %v2865, 4
      %v2868 = vshll.u32 %v2812, 16
      %v2870 = vrot.slane %v2868, 5
      %v2871 = vor.u32 %v2867, %v2870
      %v2872 = vrot.slane %v2871, 4
      %v2874 = vshll.u32 %v2813, 16
      %v2876 = vrot.slane %v2874, 5
      %v2877 = vsel %vm223, %v2872, %v2876
      %v2879 = vshrl.u32 %v2814, 16
      %v2881 = vrot.slane %v2879, 4
      %v2882 = vshll.u32 %v2814, 16
      %v2884 = vrot.slane %v2882, 5
      %v2885 = vor.u32 %v2881, %v2884
      %v2886 = vrot.slane %v2885, 4
      %v2888 = vshll.u32 %v2815, 16
      %v2890 = vrot.slane %v2888, 5
      %v2891 = vsel %vm223, %v2886, %v2890
      %v2893 = vshrl.u32 %v2816, 16
      %v2895 = vrot.slane %v2893, 4
      %v2896 = vshll.u32 %v2816, 16
      %v2898 = vrot.slane %v2896, 5
      %v2899 = vor.u32 %v2895, %v2898
      %v2900 = vrot.slane %v2899, 4
      %v2902 = vshll.u32 %v2817, 16
      %v2904 = vrot.slane %v2902, 5
      %v2905 = vsel %vm223, %v2900, %v2904
      %v2907 = vshrl.u32 %v2818, 16
      %v2909 = vrot.slane %v2907, 4
      %v2910 = vshll.u32 %v2818, 16
      %v2912 = vrot.slane %v2910, 5
      %v2913 = vor.u32 %v2909, %v2912
      %v2914 = vrot.slane %v2913, 4
      %v2916 = vshll.u32 %v2819, 16
      %v2918 = vrot.slane %v2916, 5
      %v2919 = vsel %vm223, %v2914, %v2918
      %v2921 = vshrl.u32 %v2820, 16
      %v2923 = vrot.slane %v2921, 4
      %v2924 = vshll.u32 %v2820, 16
      %v2926 = vrot.slane %v2924, 5
      %v2927 = vor.u32 %v2923, %v2926
      %v2928 = vrot.slane %v2927, 4
      %v2930 = vshll.u32 %v2821, 16
      %v2932 = vrot.slane %v2930, 5
      %v2933 = vsel %vm223, %v2928, %v2932
      %s2934 = scalar_lea.vmem %s1, 384
      %v2935 = vld [vmem:[%s2934] sm:$0xf]
      %v2936 = vld [vmem:[%s2934 + $0x4] sm:$0xf]
      %v2937 = vld [vmem:[%s2934 + $0x8] sm:$0xf]
      %v2938 = vld [vmem:[%s2934 + $0xc] sm:$0xf]
      %v2939 = vld [vmem:[%s2934 + $0x10] sm:$0xf]
      %v2940 = vld [vmem:[%s2934 + $0x14] sm:$0xf]
      %v2941 = vunpack.c.l.b16 %v2835
      %v2942 = vunpack.c.l.b16 %v2849
      %v2943 = vunpack.c.l.b16 %v2863
      %v2944 = vunpack.c.l.b16 %v2877
      %v2945 = vunpack.c.l.b16 %v2891
      %v2946 = vunpack.c.l.b16 %v2905
      %v2947 = vunpack.c.l.b16 %v2919
      %v2948 = vunpack.c.l.b16 %v2933
      %v2949 = vpack.c.b16 %v2942, %v2941
      %v2950 = vpack.c.b16 %v2944, %v2943
      %v2951 = vpack.c.b16 %v2946, %v2945
      %v2952 = vpack.c.b16 %v2948, %v2947
      %v2959 = vunpack.c.l.b16 %v2935
      %v2960 = vunpack.c.l.b16 %v2936
      %v2961 = vunpack.c.l.b16 %v2937
      %v2962 = vunpack.c.l.b16 %v2938
      %v2963 = vunpack.c.l.b16 %v2939
      %v2964 = vunpack.c.l.b16 %v2940
      %v2965 = vpack.c.b16 %v2960, %v2959
      %v2966 = vpack.c.b16 %v2962, %v2961
      %v2967 = vpack.c.b16 %v2964, %v2963
      %v2972 = vsel %vm373, %v2949, 0
      %v2975 = vsel %vm373, %v2950, 0
      %v2978 = vsel %vm373, %v2951, 0
      %v2981 = vsel %vm373, %v2952, 0
      %2983 = vmatpush.bf16.msra.mxu0 0
      %2984 = vmatpush.bf16.msra.mxu0 0
      %2985 = vmatpush.bf16.msra.mxu0 0
      %2986 = vmatpush.bf16.msra.mxu0 0
      %2987 = vmatpush.bf16.msra.mxu0 0
      %2988 = vmatpush.bf16.msra.mxu0 %v2967
      %2989 = vmatpush.bf16.msra.mxu0 %v2966
      %2990 = vmatpush.bf16.msra.mxu0 %v2965
      %2991 = vmatmul.bf16.gmra.mxu0 %v2972
      %v2992 = vpop.f32.mrf.mxu0
      %v2993 = vadd.f32 0.0, %v2992
      %v2994 = vpop.f32.mrf.mxu0
      %v2995 = vadd.f32 0.0, %v2994
      %2996 = vmatmul.bf16.gmra.mxu0 %v2975
      %v2997 = vpop.f32.mrf.mxu0
      %v2998 = vadd.f32 0.0, %v2997
      %v2999 = vpop.f32.mrf.mxu0
      %v3000 = vadd.f32 0.0, %v2999
      %3001 = vmatmul.bf16.gmra.mxu0 %v2978
      %v3002 = vpop.f32.mrf.mxu0
      %v3003 = vadd.f32 0.0, %v3002
      %v3004 = vpop.f32.mrf.mxu0
      %v3005 = vadd.f32 0.0, %v3004
      %3006 = vmatmul.bf16.gmra.mxu0 %v2981
      %v3007 = vpop.f32.mrf.mxu0
      %v3008 = vadd.f32 0.0, %v3007
      %v3009 = vpop.f32.mrf.mxu0
      %v3010 = vadd.f32 0.0, %v3009
      %3011 = vdwg.mxu0
      %v3012 = vadd.f32 %v2798, %v2993
      %v3013 = vadd.f32 %v2799, %v2995
      %v3014 = vadd.f32 %v2800, %v2998
      %v3015 = vadd.f32 %v2801, %v3000
      %v3016 = vadd.f32 %v2802, %v3003
      %v3017 = vadd.f32 %v2803, %v3005
      %v3018 = vadd.f32 %v2804, %v3008
      %v3019 = vadd.f32 %v2805, %v3010
      %v3020 = vld [vmem:[%s2703] sm:$0xe]
      %v3021 = vld [vmem:[%s2703 + $0x8] sm:$0xe]
      %v3022 = vld [vmem:[%s2703 + $0x10] sm:$0xe]
      %v3023 = vld [vmem:[%s2703 + $0x18] sm:$0xe]
      %v3024 = vld [vmem:[%s2703 + $0x20] sm:$0xe]
      %v3025 = vld [vmem:[%s2703 + $0x28] sm:$0xe]
      %v3026 = vld [vmem:[%s2703 + $0x30] sm:$0xe]
      %v3027 = vld [vmem:[%s2703 + $0x38] sm:$0xe]
      %v3044 = vrot.slane %v3020, 5
      %v3045 = vrot.slane %v3044, 4
      %v3046 = vrot.slane %v2807, 5
      %v3047 = vsel %vm520, %v3045, %v3046
      %v3048 = vrot.slane %v3021, 5
      %v3049 = vrot.slane %v3048, 4
      %v3050 = vrot.slane %v2809, 5
      %v3051 = vsel %vm520, %v3049, %v3050
      %v3052 = vrot.slane %v3022, 5
      %v3053 = vrot.slane %v3052, 4
      %v3054 = vrot.slane %v2811, 5
      %v3055 = vsel %vm520, %v3053, %v3054
      %v3056 = vrot.slane %v3023, 5
      %v3057 = vrot.slane %v3056, 4
      %v3058 = vrot.slane %v2813, 5
      %v3059 = vsel %vm520, %v3057, %v3058
      %v3060 = vrot.slane %v3024, 5
      %v3061 = vrot.slane %v3060, 4
      %v3062 = vrot.slane %v2815, 5
      %v3063 = vsel %vm520, %v3061, %v3062
      %v3064 = vrot.slane %v3025, 5
      %v3065 = vrot.slane %v3064, 4
      %v3066 = vrot.slane %v2817, 5
      %v3067 = vsel %vm520, %v3065, %v3066
      %v3068 = vrot.slane %v3026, 5
      %v3069 = vrot.slane %v3068, 4
      %v3070 = vrot.slane %v2819, 5
      %v3071 = vsel %vm520, %v3069, %v3070
      %v3072 = vrot.slane %v3027, 5
      %v3073 = vrot.slane %v3072, 4
      %v3074 = vrot.slane %v2821, 5
      %v3075 = vsel %vm520, %v3073, %v3074
      %s3076 = scalar_lea.vmem %s1, 408
      %v3077 = vld [vmem:[%s3076] sm:$0xf]
      %v3078 = vld [vmem:[%s3076 + $0x4] sm:$0xf]
      %v3079 = vld [vmem:[%s3076 + $0x8] sm:$0xf]
      %v3080 = vld [vmem:[%s3076 + $0xc] sm:$0xf]
      %v3081 = vld [vmem:[%s3076 + $0x10] sm:$0xf]
      %v3082 = vld [vmem:[%s3076 + $0x14] sm:$0xf]
      %v3083 = vunpack.c.l.b16 %v3047
      %v3084 = vunpack.c.l.b16 %v3051
      %v3085 = vunpack.c.l.b16 %v3055
      %v3086 = vunpack.c.l.b16 %v3059
      %v3087 = vunpack.c.l.b16 %v3063
      %v3088 = vunpack.c.l.b16 %v3067
      %v3089 = vunpack.c.l.b16 %v3071
      %v3090 = vunpack.c.l.b16 %v3075
      %v3091 = vpack.c.b16 %v3084, %v3083
      %v3092 = vpack.c.b16 %v3086, %v3085
      %v3093 = vpack.c.b16 %v3088, %v3087
      %v3094 = vpack.c.b16 %v3090, %v3089
      %v3101 = vunpack.c.l.b16 %v3077
      %v3102 = vunpack.c.l.b16 %v3078
      %v3103 = vunpack.c.l.b16 %v3079
      %v3104 = vunpack.c.l.b16 %v3080
      %v3105 = vunpack.c.l.b16 %v3081
      %v3106 = vunpack.c.l.b16 %v3082
      %v3107 = vpack.c.b16 %v3102, %v3101
      %v3108 = vpack.c.b16 %v3104, %v3103
      %v3109 = vpack.c.b16 %v3106, %v3105
      %v3114 = vsel %vm373, %v3091, 0
      %v3117 = vsel %vm373, %v3092, 0
      %v3120 = vsel %vm373, %v3093, 0
      %v3123 = vsel %vm373, %v3094, 0
      %3125 = vmatpush.bf16.msra.mxu0 0
      %3126 = vmatpush.bf16.msra.mxu0 0
      %3127 = vmatpush.bf16.msra.mxu0 0
      %3128 = vmatpush.bf16.msra.mxu0 0
      %3129 = vmatpush.bf16.msra.mxu0 0
      %3130 = vmatpush.bf16.msra.mxu0 %v3109
      %3131 = vmatpush.bf16.msra.mxu0 %v3108
      %3132 = vmatpush.bf16.msra.mxu0 %v3107
      %3133 = vmatmul.bf16.gmra.mxu0 %v3114
      %v3134 = vpop.f32.mrf.mxu0
      %v3135 = vadd.f32 0.0, %v3134
      %v3136 = vpop.f32.mrf.mxu0
      %v3137 = vadd.f32 0.0, %v3136
      %3138 = vmatmul.bf16.gmra.mxu0 %v3117
      %v3139 = vpop.f32.mrf.mxu0
      %v3140 = vadd.f32 0.0, %v3139
      %v3141 = vpop.f32.mrf.mxu0
      %v3142 = vadd.f32 0.0, %v3141
      %3143 = vmatmul.bf16.gmra.mxu0 %v3120
      %v3144 = vpop.f32.mrf.mxu0
      %v3145 = vadd.f32 0.0, %v3144
      %v3146 = vpop.f32.mrf.mxu0
      %v3147 = vadd.f32 0.0, %v3146
      %3148 = vmatmul.bf16.gmra.mxu0 %v3123
      %v3149 = vpop.f32.mrf.mxu0
      %v3150 = vadd.f32 0.0, %v3149
      %v3151 = vpop.f32.mrf.mxu0
      %v3152 = vadd.f32 0.0, %v3151
      %3153 = vdwg.mxu0
      %v3154 = vadd.f32 %v3012, %v3135
      %v3155 = vadd.f32 %v3013, %v3137
      %v3156 = vadd.f32 %v3014, %v3140
      %v3157 = vadd.f32 %v3015, %v3142
      %v3158 = vadd.f32 %v3016, %v3145
      %v3159 = vadd.f32 %v3017, %v3147
      %v3160 = vadd.f32 %v3018, %v3150
      %v3161 = vadd.f32 %v3019, %v3152
      %v3162 = vld [vmem:[%s2703 + $0x4] sm:$0x3]
      %v3163 = vld [vmem:[%s2703 + $0xc] sm:$0x3]
      %v3164 = vld [vmem:[%s2703 + $0x14] sm:$0x3]
      %v3165 = vld [vmem:[%s2703 + $0x1c] sm:$0x3]
      %v3166 = vld [vmem:[%s2703 + $0x24] sm:$0x3]
      %v3167 = vld [vmem:[%s2703 + $0x2c] sm:$0x3]
      %v3168 = vld [vmem:[%s2703 + $0x34] sm:$0x3]
      %v3169 = vld [vmem:[%s2703 + $0x3c] sm:$0x3]
      %v3171 = vshrl.u32 %v3020, 16
      %v3173 = vrot.slane %v3171, 5
      %v3174 = vshll.u32 %v3020, 16
      %v3176 = vrot.slane %v3174, 6
      %v3177 = vor.u32 %v3173, %v3176
      %v3178 = vrot.slane %v3177, 4
      %v3180 = vshrl.u32 %v3162, 16
      %v3182 = vrot.slane %v3180, 5
      %v3183 = vshll.u32 %v3162, 16
      %v3185 = vrot.slane %v3183, 6
      %v3186 = vor.u32 %v3182, %v3185
      %v3187 = vsel %vm649, %v3178, %v3186
      %v3189 = vshrl.u32 %v3021, 16
      %v3191 = vrot.slane %v3189, 5
      %v3192 = vshll.u32 %v3021, 16
      %v3194 = vrot.slane %v3192, 6
      %v3195 = vor.u32 %v3191, %v3194
      %v3196 = vrot.slane %v3195, 4
      %v3198 = vshrl.u32 %v3163, 16
      %v3200 = vrot.slane %v3198, 5
      %v3201 = vshll.u32 %v3163, 16
      %v3203 = vrot.slane %v3201, 6
      %v3204 = vor.u32 %v3200, %v3203
      %v3205 = vsel %vm649, %v3196, %v3204
      %v3207 = vshrl.u32 %v3022, 16
      %v3209 = vrot.slane %v3207, 5
      %v3210 = vshll.u32 %v3022, 16
      %v3212 = vrot.slane %v3210, 6
      %v3213 = vor.u32 %v3209, %v3212
      %v3214 = vrot.slane %v3213, 4
      %v3216 = vshrl.u32 %v3164, 16
      %v3218 = vrot.slane %v3216, 5
      %v3219 = vshll.u32 %v3164, 16
      %v3221 = vrot.slane %v3219, 6
      %v3222 = vor.u32 %v3218, %v3221
      %v3223 = vsel %vm649, %v3214, %v3222
      %v3225 = vshrl.u32 %v3023, 16
      %v3227 = vrot.slane %v3225, 5
      %v3228 = vshll.u32 %v3023, 16
      %v3230 = vrot.slane %v3228, 6
      %v3231 = vor.u32 %v3227, %v3230
      %v3232 = vrot.slane %v3231, 4
      %v3234 = vshrl.u32 %v3165, 16
      %v3236 = vrot.slane %v3234, 5
      %v3237 = vshll.u32 %v3165, 16
      %v3239 = vrot.slane %v3237, 6
      %v3240 = vor.u32 %v3236, %v3239
      %v3241 = vsel %vm649, %v3232, %v3240
      %v3243 = vshrl.u32 %v3024, 16
      %v3245 = vrot.slane %v3243, 5
      %v3246 = vshll.u32 %v3024, 16
      %v3248 = vrot.slane %v3246, 6
      %v3249 = vor.u32 %v3245, %v3248
      %v3250 = vrot.slane %v3249, 4
      %v3252 = vshrl.u32 %v3166, 16
      %v3254 = vrot.slane %v3252, 5
      %v3255 = vshll.u32 %v3166, 16
      %v3257 = vrot.slane %v3255, 6
      %v3258 = vor.u32 %v3254, %v3257
      %v3259 = vsel %vm649, %v3250, %v3258
      %v3261 = vshrl.u32 %v3025, 16
      %v3263 = vrot.slane %v3261, 5
      %v3264 = vshll.u32 %v3025, 16
      %v3266 = vrot.slane %v3264, 6
      %v3267 = vor.u32 %v3263, %v3266
      %v3268 = vrot.slane %v3267, 4
      %v3270 = vshrl.u32 %v3167, 16
      %v3272 = vrot.slane %v3270, 5
      %v3273 = vshll.u32 %v3167, 16
      %v3275 = vrot.slane %v3273, 6
      %v3276 = vor.u32 %v3272, %v3275
      %v3277 = vsel %vm649, %v3268, %v3276
      %v3279 = vshrl.u32 %v3026, 16
      %v3281 = vrot.slane %v3279, 5
      %v3282 = vshll.u32 %v3026, 16
      %v3284 = vrot.slane %v3282, 6
      %v3285 = vor.u32 %v3281, %v3284
      %v3286 = vrot.slane %v3285, 4
      %v3288 = vshrl.u32 %v3168, 16
      %v3290 = vrot.slane %v3288, 5
      %v3291 = vshll.u32 %v3168, 16
      %v3293 = vrot.slane %v3291, 6
      %v3294 = vor.u32 %v3290, %v3293
      %v3295 = vsel %vm649, %v3286, %v3294
      %v3297 = vshrl.u32 %v3027, 16
      %v3299 = vrot.slane %v3297, 5
      %v3300 = vshll.u32 %v3027, 16
      %v3302 = vrot.slane %v3300, 6
      %v3303 = vor.u32 %v3299, %v3302
      %v3304 = vrot.slane %v3303, 4
      %v3306 = vshrl.u32 %v3169, 16
      %v3308 = vrot.slane %v3306, 5
      %v3309 = vshll.u32 %v3169, 16
      %v3311 = vrot.slane %v3309, 6
      %v3312 = vor.u32 %v3308, %v3311
      %v3313 = vsel %vm649, %v3304, %v3312
      %s3314 = scalar_lea.vmem %s1, 432
      %v3315 = vld [vmem:[%s3314] sm:$0xf]
      %v3316 = vld [vmem:[%s3314 + $0x4] sm:$0xf]
      %v3317 = vld [vmem:[%s3314 + $0x8] sm:$0xf]
      %v3318 = vld [vmem:[%s3314 + $0xc] sm:$0xf]
      %v3319 = vld [vmem:[%s3314 + $0x10] sm:$0xf]
      %v3320 = vld [vmem:[%s3314 + $0x14] sm:$0xf]
      %v3321 = vunpack.c.l.b16 %v3187
      %v3322 = vunpack.c.l.b16 %v3205
      %v3323 = vunpack.c.l.b16 %v3223
      %v3324 = vunpack.c.l.b16 %v3241
      %v3325 = vunpack.c.l.b16 %v3259
      %v3326 = vunpack.c.l.b16 %v3277
      %v3327 = vunpack.c.l.b16 %v3295
      %v3328 = vunpack.c.l.b16 %v3313
      %v3329 = vpack.c.b16 %v3322, %v3321
      %v3330 = vpack.c.b16 %v3324, %v3323
      %v3331 = vpack.c.b16 %v3326, %v3325
      %v3332 = vpack.c.b16 %v3328, %v3327
      %v3339 = vunpack.c.l.b16 %v3315
      %v3340 = vunpack.c.l.b16 %v3316
      %v3341 = vunpack.c.l.b16 %v3317
      %v3342 = vunpack.c.l.b16 %v3318
      %v3343 = vunpack.c.l.b16 %v3319
      %v3344 = vunpack.c.l.b16 %v3320
      %v3345 = vpack.c.b16 %v3340, %v3339
      %v3346 = vpack.c.b16 %v3342, %v3341
      %v3347 = vpack.c.b16 %v3344, %v3343
      %v3352 = vsel %vm373, %v3329, 0
      %v3355 = vsel %vm373, %v3330, 0
      %v3358 = vsel %vm373, %v3331, 0
      %v3361 = vsel %vm373, %v3332, 0
      %3363 = vmatpush.bf16.msra.mxu0 0
      %3364 = vmatpush.bf16.msra.mxu0 0
      %3365 = vmatpush.bf16.msra.mxu0 0
      %3366 = vmatpush.bf16.msra.mxu0 0
      %3367 = vmatpush.bf16.msra.mxu0 0
      %3368 = vmatpush.bf16.msra.mxu0 %v3347
      %3369 = vmatpush.bf16.msra.mxu0 %v3346
      %3370 = vmatpush.bf16.msra.mxu0 %v3345
      %3371 = vmatmul.bf16.gmra.mxu0 %v3352
      %v3372 = vpop.f32.mrf.mxu0
      %v3373 = vadd.f32 0.0, %v3372
      %v3374 = vpop.f32.mrf.mxu0
      %v3375 = vadd.f32 0.0, %v3374
      %3376 = vmatmul.bf16.gmra.mxu0 %v3355
      %v3377 = vpop.f32.mrf.mxu0
      %v3378 = vadd.f32 0.0, %v3377
      %v3379 = vpop.f32.mrf.mxu0
      %v3380 = vadd.f32 0.0, %v3379
      %3381 = vmatmul.bf16.gmra.mxu0 %v3358
      %v3382 = vpop.f32.mrf.mxu0
      %v3383 = vadd.f32 0.0, %v3382
      %v3384 = vpop.f32.mrf.mxu0
      %v3385 = vadd.f32 0.0, %v3384
      %3386 = vmatmul.bf16.gmra.mxu0 %v3361
      %v3387 = vpop.f32.mrf.mxu0
      %v3388 = vadd.f32 0.0, %v3387
      %v3389 = vpop.f32.mrf.mxu0
      %v3390 = vadd.f32 0.0, %v3389
      %3391 = vdwg.mxu0
      %v3392 = vadd.f32 %v3154, %v3373
      %v3393 = vadd.f32 %v3155, %v3375
      %v3394 = vadd.f32 %v3156, %v3378
      %v3395 = vadd.f32 %v3157, %v3380
      %v3396 = vadd.f32 %v3158, %v3383
      %v3397 = vadd.f32 %v3159, %v3385
      %v3398 = vadd.f32 %v3160, %v3388
      %v3399 = vadd.f32 %v3161, %v3390
      %v3400 = vld [vmem:[%s2703] sm:$0xc]
      %v3401 = vld [vmem:[%s2703 + $0x8] sm:$0xc]
      %v3402 = vld [vmem:[%s2703 + $0x10] sm:$0xc]
      %v3403 = vld [vmem:[%s2703 + $0x18] sm:$0xc]
      %v3404 = vld [vmem:[%s2703 + $0x20] sm:$0xc]
      %v3405 = vld [vmem:[%s2703 + $0x28] sm:$0xc]
      %v3406 = vld [vmem:[%s2703 + $0x30] sm:$0xc]
      %v3407 = vld [vmem:[%s2703 + $0x38] sm:$0xc]
      %v3424 = vrot.slane %v3400, 6
      %v3425 = vrot.slane %v3424, 4
      %v3426 = vrot.slane %v3162, 6
      %v3427 = vsel %vm906, %v3425, %v3426
      %v3428 = vrot.slane %v3401, 6
      %v3429 = vrot.slane %v3428, 4
      %v3430 = vrot.slane %v3163, 6
      %v3431 = vsel %vm906, %v3429, %v3430
      %v3432 = vrot.slane %v3402, 6
      %v3433 = vrot.slane %v3432, 4
      %v3434 = vrot.slane %v3164, 6
      %v3435 = vsel %vm906, %v3433, %v3434
      %v3436 = vrot.slane %v3403, 6
      %v3437 = vrot.slane %v3436, 4
      %v3438 = vrot.slane %v3165, 6
      %v3439 = vsel %vm906, %v3437, %v3438
      %v3440 = vrot.slane %v3404, 6
      %v3441 = vrot.slane %v3440, 4
      %v3442 = vrot.slane %v3166, 6
      %v3443 = vsel %vm906, %v3441, %v3442
      %v3444 = vrot.slane %v3405, 6
      %v3445 = vrot.slane %v3444, 4
      %v3446 = vrot.slane %v3167, 6
      %v3447 = vsel %vm906, %v3445, %v3446
      %v3448 = vrot.slane %v3406, 6
      %v3449 = vrot.slane %v3448, 4
      %v3450 = vrot.slane %v3168, 6
      %v3451 = vsel %vm906, %v3449, %v3450
      %v3452 = vrot.slane %v3407, 6
      %v3453 = vrot.slane %v3452, 4
      %v3454 = vrot.slane %v3169, 6
      %v3455 = vsel %vm906, %v3453, %v3454
      %s3456 = scalar_lea.vmem %s1, 456
      %v3457 = vld [vmem:[%s3456] sm:$0xf]
      %v3458 = vld [vmem:[%s3456 + $0x4] sm:$0xf]
      %v3459 = vld [vmem:[%s3456 + $0x8] sm:$0xf]
      %v3460 = vld [vmem:[%s3456 + $0xc] sm:$0xf]
      %v3461 = vld [vmem:[%s3456 + $0x10] sm:$0xf]
      %v3462 = vld [vmem:[%s3456 + $0x14] sm:$0xf]
      %v3463 = vunpack.c.l.b16 %v3427
      %v3464 = vunpack.c.l.b16 %v3431
      %v3465 = vunpack.c.l.b16 %v3435
      %v3466 = vunpack.c.l.b16 %v3439
      %v3467 = vunpack.c.l.b16 %v3443
      %v3468 = vunpack.c.l.b16 %v3447
      %v3469 = vunpack.c.l.b16 %v3451
      %v3470 = vunpack.c.l.b16 %v3455
      %v3471 = vpack.c.b16 %v3464, %v3463
      %v3472 = vpack.c.b16 %v3466, %v3465
      %v3473 = vpack.c.b16 %v3468, %v3467
      %v3474 = vpack.c.b16 %v3470, %v3469
      %v3481 = vunpack.c.l.b16 %v3457
      %v3482 = vunpack.c.l.b16 %v3458
      %v3483 = vunpack.c.l.b16 %v3459
      %v3484 = vunpack.c.l.b16 %v3460
      %v3485 = vunpack.c.l.b16 %v3461
      %v3486 = vunpack.c.l.b16 %v3462
      %v3487 = vpack.c.b16 %v3482, %v3481
      %v3488 = vpack.c.b16 %v3484, %v3483
      %v3489 = vpack.c.b16 %v3486, %v3485
      %v3494 = vsel %vm373, %v3471, 0
      %v3497 = vsel %vm373, %v3472, 0
      %v3500 = vsel %vm373, %v3473, 0
      %v3503 = vsel %vm373, %v3474, 0
      %3505 = vmatpush.bf16.msra.mxu0 0
      %3506 = vmatpush.bf16.msra.mxu0 0
      %3507 = vmatpush.bf16.msra.mxu0 0
      %3508 = vmatpush.bf16.msra.mxu0 0
      %3509 = vmatpush.bf16.msra.mxu0 0
      %3510 = vmatpush.bf16.msra.mxu0 %v3489
      %3511 = vmatpush.bf16.msra.mxu0 %v3488
      %3512 = vmatpush.bf16.msra.mxu0 %v3487
      %3513 = vmatmul.bf16.gmra.mxu0 %v3494
      %v3514 = vpop.f32.mrf.mxu0
      %v3515 = vadd.f32 0.0, %v3514
      %v3516 = vpop.f32.mrf.mxu0
      %v3517 = vadd.f32 0.0, %v3516
      %3518 = vmatmul.bf16.gmra.mxu0 %v3497
      %v3519 = vpop.f32.mrf.mxu0
      %v3520 = vadd.f32 0.0, %v3519
      %v3521 = vpop.f32.mrf.mxu0
      %v3522 = vadd.f32 0.0, %v3521
      %3523 = vmatmul.bf16.gmra.mxu0 %v3500
      %v3524 = vpop.f32.mrf.mxu0
      %v3525 = vadd.f32 0.0, %v3524
      %v3526 = vpop.f32.mrf.mxu0
      %v3527 = vadd.f32 0.0, %v3526
      %3528 = vmatmul.bf16.gmra.mxu0 %v3503
      %v3529 = vpop.f32.mrf.mxu0
      %v3530 = vadd.f32 0.0, %v3529
      %v3531 = vpop.f32.mrf.mxu0
      %v3532 = vadd.f32 0.0, %v3531
      %3533 = vdwg.mxu0
      %v3534 = vadd.f32 %v3392, %v3515
      %v3535 = vadd.f32 %v3393, %v3517
      %v3536 = vadd.f32 %v3394, %v3520
      %v3537 = vadd.f32 %v3395, %v3522
      %v3538 = vadd.f32 %v3396, %v3525
      %v3539 = vadd.f32 %v3397, %v3527
      %v3540 = vadd.f32 %v3398, %v3530
      %v3541 = vadd.f32 %v3399, %v3532
      %s3542 = scalar_lea.vmem %s192, 32
      %v3543 = vld [vmem:[%s3542] sm:$0xf]
      %v3544 = vld [vmem:[%s3542 + $0x8] sm:$0xf]
      %v3545 = vld [vmem:[%s3542 + $0x10] sm:$0xf]
      %v3546 = vld [vmem:[%s3542 + $0x18] sm:$0xf]
      %v3547 = vld [vmem:[%s3542 + $0x20] sm:$0xf]
      %v3548 = vld [vmem:[%s3542 + $0x28] sm:$0xf]
      %v3549 = vld [vmem:[%s3542 + $0x30] sm:$0xf]
      %v3550 = vld [vmem:[%s3542 + $0x38] sm:$0xf]
      %s3551 = scalar_lea.vmem %s1, 480
      %v3552 = vld [vmem:[%s3551] sm:$0xf]
      %v3553 = vld [vmem:[%s3551 + $0x4] sm:$0xf]
      %v3554 = vld [vmem:[%s3551 + $0x8] sm:$0xf]
      %v3555 = vld [vmem:[%s3551 + $0xc] sm:$0xf]
      %v3556 = vld [vmem:[%s3551 + $0x10] sm:$0xf]
      %v3557 = vld [vmem:[%s3551 + $0x14] sm:$0xf]
      %v3566 = vunpack.c.l.b16 %v3543
      %v3567 = vunpack.c.l.b16 %v3544
      %v3568 = vunpack.c.l.b16 %v3545
      %v3569 = vunpack.c.l.b16 %v3546
      %v3570 = vunpack.c.l.b16 %v3547
      %v3571 = vunpack.c.l.b16 %v3548
      %v3572 = vunpack.c.l.b16 %v3549
      %v3573 = vunpack.c.l.b16 %v3550
      %v3574 = vpack.c.b16 %v3567, %v3566
      %v3575 = vpack.c.b16 %v3569, %v3568
      %v3576 = vpack.c.b16 %v3571, %v3570
      %v3577 = vpack.c.b16 %v3573, %v3572
      %v3584 = vunpack.c.l.b16 %v3552
      %v3585 = vunpack.c.l.b16 %v3553
      %v3586 = vunpack.c.l.b16 %v3554
      %v3587 = vunpack.c.l.b16 %v3555
      %v3588 = vunpack.c.l.b16 %v3556
      %v3589 = vunpack.c.l.b16 %v3557
      %v3590 = vpack.c.b16 %v3585, %v3584
      %v3591 = vpack.c.b16 %v3587, %v3586
      %v3592 = vpack.c.b16 %v3589, %v3588
      %v3597 = vsel %vm373, %v3574, 0
      %v3600 = vsel %vm373, %v3575, 0
      %v3603 = vsel %vm373, %v3576, 0
      %v3606 = vsel %vm373, %v3577, 0
      %3608 = vmatpush.bf16.msra.mxu0 0
      %3609 = vmatpush.bf16.msra.mxu0 0
      %3610 = vmatpush.bf16.msra.mxu0 0
      %3611 = vmatpush.bf16.msra.mxu0 0
      %3612 = vmatpush.bf16.msra.mxu0 0
      %3613 = vmatpush.bf16.msra.mxu0 %v3592
      %3614 = vmatpush.bf16.msra.mxu0 %v3591
      %3615 = vmatpush.bf16.msra.mxu0 %v3590
      %3616 = vmatmul.bf16.gmra.mxu0 %v3597
      %v3617 = vpop.f32.mrf.mxu0
      %v3618 = vadd.f32 0.0, %v3617
      %v3619 = vpop.f32.mrf.mxu0
      %v3620 = vadd.f32 0.0, %v3619
      %3621 = vmatmul.bf16.gmra.mxu0 %v3600
      %v3622 = vpop.f32.mrf.mxu0
      %v3623 = vadd.f32 0.0, %v3622
      %v3624 = vpop.f32.mrf.mxu0
      %v3625 = vadd.f32 0.0, %v3624
      %3626 = vmatmul.bf16.gmra.mxu0 %v3603
      %v3627 = vpop.f32.mrf.mxu0
      %v3628 = vadd.f32 0.0, %v3627
      %v3629 = vpop.f32.mrf.mxu0
      %v3630 = vadd.f32 0.0, %v3629
      %3631 = vmatmul.bf16.gmra.mxu0 %v3606
      %v3632 = vpop.f32.mrf.mxu0
      %v3633 = vadd.f32 0.0, %v3632
      %v3634 = vpop.f32.mrf.mxu0
      %v3635 = vadd.f32 0.0, %v3634
      %3636 = vdwg.mxu0
      %v3637 = vadd.f32 %v3534, %v3618
      %v3638 = vadd.f32 %v3535, %v3620
      %v3639 = vadd.f32 %v3536, %v3623
      %v3640 = vadd.f32 %v3537, %v3625
      %v3641 = vadd.f32 %v3538, %v3628
      %v3642 = vadd.f32 %v3539, %v3630
      %v3643 = vadd.f32 %v3540, %v3633
      %v3644 = vadd.f32 %v3541, %v3635
      %v3645 = vld [vmem:[%s3542] sm:$0xf]
      %v3646 = vld [vmem:[%s3542 + $0x4] sm:$0x1]
      %v3647 = vld [vmem:[%s3542 + $0x8] sm:$0xf]
      %v3648 = vld [vmem:[%s3542 + $0xc] sm:$0x1]
      %v3649 = vld [vmem:[%s3542 + $0x10] sm:$0xf]
      %v3650 = vld [vmem:[%s3542 + $0x14] sm:$0x1]
      %v3651 = vld [vmem:[%s3542 + $0x18] sm:$0xf]
      %v3652 = vld [vmem:[%s3542 + $0x1c] sm:$0x1]
      %v3653 = vld [vmem:[%s3542 + $0x20] sm:$0xf]
      %v3654 = vld [vmem:[%s3542 + $0x24] sm:$0x1]
      %v3655 = vld [vmem:[%s3542 + $0x28] sm:$0xf]
      %v3656 = vld [vmem:[%s3542 + $0x2c] sm:$0x1]
      %v3657 = vld [vmem:[%s3542 + $0x30] sm:$0xf]
      %v3658 = vld [vmem:[%s3542 + $0x34] sm:$0x1]
      %v3659 = vld [vmem:[%s3542 + $0x38] sm:$0xf]
      %v3660 = vld [vmem:[%s3542 + $0x3c] sm:$0x1]
      %v3662 = vshrl.u32 %v3645, 16
      %v3664 = vrot.slane %v3662, 4
      %v3665 = vshll.u32 %v3645, 16
      %v3667 = vrot.slane %v3665, 5
      %v3668 = vor.u32 %v3664, %v3667
      %v3669 = vrot.slane %v3668, 4
      %v3671 = vshll.u32 %v3646, 16
      %v3673 = vrot.slane %v3671, 5
      %v3674 = vsel %vm223, %v3669, %v3673
      %v3676 = vshrl.u32 %v3647, 16
      %v3678 = vrot.slane %v3676, 4
      %v3679 = vshll.u32 %v3647, 16
      %v3681 = vrot.slane %v3679, 5
      %v3682 = vor.u32 %v3678, %v3681
      %v3683 = vrot.slane %v3682, 4
      %v3685 = vshll.u32 %v3648, 16
      %v3687 = vrot.slane %v3685, 5
      %v3688 = vsel %vm223, %v3683, %v3687
      %v3690 = vshrl.u32 %v3649, 16
      %v3692 = vrot.slane %v3690, 4
      %v3693 = vshll.u32 %v3649, 16
      %v3695 = vrot.slane %v3693, 5
      %v3696 = vor.u32 %v3692, %v3695
      %v3697 = vrot.slane %v3696, 4
      %v3699 = vshll.u32 %v3650, 16
      %v3701 = vrot.slane %v3699, 5
      %v3702 = vsel %vm223, %v3697, %v3701
      %v3704 = vshrl.u32 %v3651, 16
      %v3706 = vrot.slane %v3704, 4
      %v3707 = vshll.u32 %v3651, 16
      %v3709 = vrot.slane %v3707, 5
      %v3710 = vor.u32 %v3706, %v3709
      %v3711 = vrot.slane %v3710, 4
      %v3713 = vshll.u32 %v3652, 16
      %v3715 = vrot.slane %v3713, 5
      %v3716 = vsel %vm223, %v3711, %v3715
      %v3718 = vshrl.u32 %v3653, 16
      %v3720 = vrot.slane %v3718, 4
      %v3721 = vshll.u32 %v3653, 16
      %v3723 = vrot.slane %v3721, 5
      %v3724 = vor.u32 %v3720, %v3723
      %v3725 = vrot.slane %v3724, 4
      %v3727 = vshll.u32 %v3654, 16
      %v3729 = vrot.slane %v3727, 5
      %v3730 = vsel %vm223, %v3725, %v3729
      %v3732 = vshrl.u32 %v3655, 16
      %v3734 = vrot.slane %v3732, 4
      %v3735 = vshll.u32 %v3655, 16
      %v3737 = vrot.slane %v3735, 5
      %v3738 = vor.u32 %v3734, %v3737
      %v3739 = vrot.slane %v3738, 4
      %v3741 = vshll.u32 %v3656, 16
      %v3743 = vrot.slane %v3741, 5
      %v3744 = vsel %vm223, %v3739, %v3743
      %v3746 = vshrl.u32 %v3657, 16
      %v3748 = vrot.slane %v3746, 4
      %v3749 = vshll.u32 %v3657, 16
      %v3751 = vrot.slane %v3749, 5
      %v3752 = vor.u32 %v3748, %v3751
      %v3753 = vrot.slane %v3752, 4
      %v3755 = vshll.u32 %v3658, 16
      %v3757 = vrot.slane %v3755, 5
      %v3758 = vsel %vm223, %v3753, %v3757
      %v3760 = vshrl.u32 %v3659, 16
      %v3762 = vrot.slane %v3760, 4
      %v3763 = vshll.u32 %v3659, 16
      %v3765 = vrot.slane %v3763, 5
      %v3766 = vor.u32 %v3762, %v3765
      %v3767 = vrot.slane %v3766, 4
      %v3769 = vshll.u32 %v3660, 16
      %v3771 = vrot.slane %v3769, 5
      %v3772 = vsel %vm223, %v3767, %v3771
      %s3773 = scalar_lea.vmem %s1, 504
      %v3774 = vld [vmem:[%s3773] sm:$0xf]
      %v3775 = vld [vmem:[%s3773 + $0x4] sm:$0xf]
      %v3776 = vld [vmem:[%s3773 + $0x8] sm:$0xf]
      %v3777 = vld [vmem:[%s3773 + $0xc] sm:$0xf]
      %v3778 = vld [vmem:[%s3773 + $0x10] sm:$0xf]
      %v3779 = vld [vmem:[%s3773 + $0x14] sm:$0xf]
      %v3780 = vunpack.c.l.b16 %v3674
      %v3781 = vunpack.c.l.b16 %v3688
      %v3782 = vunpack.c.l.b16 %v3702
      %v3783 = vunpack.c.l.b16 %v3716
      %v3784 = vunpack.c.l.b16 %v3730
      %v3785 = vunpack.c.l.b16 %v3744
      %v3786 = vunpack.c.l.b16 %v3758
      %v3787 = vunpack.c.l.b16 %v3772
      %v3788 = vpack.c.b16 %v3781, %v3780
      %v3789 = vpack.c.b16 %v3783, %v3782
      %v3790 = vpack.c.b16 %v3785, %v3784
      %v3791 = vpack.c.b16 %v3787, %v3786
      %v3798 = vunpack.c.l.b16 %v3774
      %v3799 = vunpack.c.l.b16 %v3775
      %v3800 = vunpack.c.l.b16 %v3776
      %v3801 = vunpack.c.l.b16 %v3777
      %v3802 = vunpack.c.l.b16 %v3778
      %v3803 = vunpack.c.l.b16 %v3779
      %v3804 = vpack.c.b16 %v3799, %v3798
      %v3805 = vpack.c.b16 %v3801, %v3800
      %v3806 = vpack.c.b16 %v3803, %v3802
      %v3811 = vsel %vm373, %v3788, 0
      %v3814 = vsel %vm373, %v3789, 0
      %v3817 = vsel %vm373, %v3790, 0
      %v3820 = vsel %vm373, %v3791, 0
      %3822 = vmatpush.bf16.msra.mxu0 0
      %3823 = vmatpush.bf16.msra.mxu0 0
      %3824 = vmatpush.bf16.msra.mxu0 0
      %3825 = vmatpush.bf16.msra.mxu0 0
      %3826 = vmatpush.bf16.msra.mxu0 0
      %3827 = vmatpush.bf16.msra.mxu0 %v3806
      %3828 = vmatpush.bf16.msra.mxu0 %v3805
      %3829 = vmatpush.bf16.msra.mxu0 %v3804
      %3830 = vmatmul.bf16.gmra.mxu0 %v3811
      %v3831 = vpop.f32.mrf.mxu0
      %v3832 = vadd.f32 0.0, %v3831
      %v3833 = vpop.f32.mrf.mxu0
      %v3834 = vadd.f32 0.0, %v3833
      %3835 = vmatmul.bf16.gmra.mxu0 %v3814
      %v3836 = vpop.f32.mrf.mxu0
      %v3837 = vadd.f32 0.0, %v3836
      %v3838 = vpop.f32.mrf.mxu0
      %v3839 = vadd.f32 0.0, %v3838
      %3840 = vmatmul.bf16.gmra.mxu0 %v3817
      %v3841 = vpop.f32.mrf.mxu0
      %v3842 = vadd.f32 0.0, %v3841
      %v3843 = vpop.f32.mrf.mxu0
      %v3844 = vadd.f32 0.0, %v3843
      %3845 = vmatmul.bf16.gmra.mxu0 %v3820
      %v3846 = vpop.f32.mrf.mxu0
      %v3847 = vadd.f32 0.0, %v3846
      %v3848 = vpop.f32.mrf.mxu0
      %v3849 = vadd.f32 0.0, %v3848
      %3850 = vdwg.mxu0
      %v3851 = vadd.f32 %v3637, %v3832
      %v3852 = vadd.f32 %v3638, %v3834
      %v3853 = vadd.f32 %v3639, %v3837
      %v3854 = vadd.f32 %v3640, %v3839
      %v3855 = vadd.f32 %v3641, %v3842
      %v3856 = vadd.f32 %v3642, %v3844
      %v3857 = vadd.f32 %v3643, %v3847
      %v3858 = vadd.f32 %v3644, %v3849
      %v3859 = vld [vmem:[%s3542] sm:$0xe]
      %v3860 = vld [vmem:[%s3542 + $0x8] sm:$0xe]
      %v3861 = vld [vmem:[%s3542 + $0x10] sm:$0xe]
      %v3862 = vld [vmem:[%s3542 + $0x18] sm:$0xe]
      %v3863 = vld [vmem:[%s3542 + $0x20] sm:$0xe]
      %v3864 = vld [vmem:[%s3542 + $0x28] sm:$0xe]
      %v3865 = vld [vmem:[%s3542 + $0x30] sm:$0xe]
      %v3866 = vld [vmem:[%s3542 + $0x38] sm:$0xe]
      %v3883 = vrot.slane %v3859, 5
      %v3884 = vrot.slane %v3883, 4
      %v3885 = vrot.slane %v3646, 5
      %v3886 = vsel %vm520, %v3884, %v3885
      %v3887 = vrot.slane %v3860, 5
      %v3888 = vrot.slane %v3887, 4
      %v3889 = vrot.slane %v3648, 5
      %v3890 = vsel %vm520, %v3888, %v3889
      %v3891 = vrot.slane %v3861, 5
      %v3892 = vrot.slane %v3891, 4
      %v3893 = vrot.slane %v3650, 5
      %v3894 = vsel %vm520, %v3892, %v3893
      %v3895 = vrot.slane %v3862, 5
      %v3896 = vrot.slane %v3895, 4
      %v3897 = vrot.slane %v3652, 5
      %v3898 = vsel %vm520, %v3896, %v3897
      %v3899 = vrot.slane %v3863, 5
      %v3900 = vrot.slane %v3899, 4
      %v3901 = vrot.slane %v3654, 5
      %v3902 = vsel %vm520, %v3900, %v3901
      %v3903 = vrot.slane %v3864, 5
      %v3904 = vrot.slane %v3903, 4
      %v3905 = vrot.slane %v3656, 5
      %v3906 = vsel %vm520, %v3904, %v3905
      %v3907 = vrot.slane %v3865, 5
      %v3908 = vrot.slane %v3907, 4
      %v3909 = vrot.slane %v3658, 5
      %v3910 = vsel %vm520, %v3908, %v3909
      %v3911 = vrot.slane %v3866, 5
      %v3912 = vrot.slane %v3911, 4
      %v3913 = vrot.slane %v3660, 5
      %v3914 = vsel %vm520, %v3912, %v3913
      %s3915 = scalar_lea.vmem %s1, 528
      %v3916 = vld [vmem:[%s3915] sm:$0xf]
      %v3917 = vld [vmem:[%s3915 + $0x4] sm:$0xf]
      %v3918 = vld [vmem:[%s3915 + $0x8] sm:$0xf]
      %v3919 = vld [vmem:[%s3915 + $0xc] sm:$0xf]
      %v3920 = vld [vmem:[%s3915 + $0x10] sm:$0xf]
      %v3921 = vld [vmem:[%s3915 + $0x14] sm:$0xf]
      %v3922 = vunpack.c.l.b16 %v3886
      %v3923 = vunpack.c.l.b16 %v3890
      %v3924 = vunpack.c.l.b16 %v3894
      %v3925 = vunpack.c.l.b16 %v3898
      %v3926 = vunpack.c.l.b16 %v3902
      %v3927 = vunpack.c.l.b16 %v3906
      %v3928 = vunpack.c.l.b16 %v3910
      %v3929 = vunpack.c.l.b16 %v3914
      %v3930 = vpack.c.b16 %v3923, %v3922
      %v3931 = vpack.c.b16 %v3925, %v3924
      %v3932 = vpack.c.b16 %v3927, %v3926
      %v3933 = vpack.c.b16 %v3929, %v3928
      %v3940 = vunpack.c.l.b16 %v3916
      %v3941 = vunpack.c.l.b16 %v3917
      %v3942 = vunpack.c.l.b16 %v3918
      %v3943 = vunpack.c.l.b16 %v3919
      %v3944 = vunpack.c.l.b16 %v3920
      %v3945 = vunpack.c.l.b16 %v3921
      %v3946 = vpack.c.b16 %v3941, %v3940
      %v3947 = vpack.c.b16 %v3943, %v3942
      %v3948 = vpack.c.b16 %v3945, %v3944
      %v3953 = vsel %vm373, %v3930, 0
      %v3956 = vsel %vm373, %v3931, 0
      %v3959 = vsel %vm373, %v3932, 0
      %v3962 = vsel %vm373, %v3933, 0
      %3964 = vmatpush.bf16.msra.mxu0 0
      %3965 = vmatpush.bf16.msra.mxu0 0
      %3966 = vmatpush.bf16.msra.mxu0 0
      %3967 = vmatpush.bf16.msra.mxu0 0
      %3968 = vmatpush.bf16.msra.mxu0 0
      %3969 = vmatpush.bf16.msra.mxu0 %v3948
      %3970 = vmatpush.bf16.msra.mxu0 %v3947
      %3971 = vmatpush.bf16.msra.mxu0 %v3946
      %3972 = vmatmul.bf16.gmra.mxu0 %v3953
      %v3973 = vpop.f32.mrf.mxu0
      %v3974 = vadd.f32 0.0, %v3973
      %v3975 = vpop.f32.mrf.mxu0
      %v3976 = vadd.f32 0.0, %v3975
      %3977 = vmatmul.bf16.gmra.mxu0 %v3956
      %v3978 = vpop.f32.mrf.mxu0
      %v3979 = vadd.f32 0.0, %v3978
      %v3980 = vpop.f32.mrf.mxu0
      %v3981 = vadd.f32 0.0, %v3980
      %3982 = vmatmul.bf16.gmra.mxu0 %v3959
      %v3983 = vpop.f32.mrf.mxu0
      %v3984 = vadd.f32 0.0, %v3983
      %v3985 = vpop.f32.mrf.mxu0
      %v3986 = vadd.f32 0.0, %v3985
      %3987 = vmatmul.bf16.gmra.mxu0 %v3962
      %v3988 = vpop.f32.mrf.mxu0
      %v3989 = vadd.f32 0.0, %v3988
      %v3990 = vpop.f32.mrf.mxu0
      %v3991 = vadd.f32 0.0, %v3990
      %3992 = vdwg.mxu0
      %v3993 = vadd.f32 %v3851, %v3974
      %v3994 = vadd.f32 %v3852, %v3976
      %v3995 = vadd.f32 %v3853, %v3979
      %v3996 = vadd.f32 %v3854, %v3981
      %v3997 = vadd.f32 %v3855, %v3984
      %v3998 = vadd.f32 %v3856, %v3986
      %v3999 = vadd.f32 %v3857, %v3989
      %v4000 = vadd.f32 %v3858, %v3991
      %v4001 = vld [vmem:[%s3542 + $0x4] sm:$0x3]
      %v4002 = vld [vmem:[%s3542 + $0xc] sm:$0x3]
      %v4003 = vld [vmem:[%s3542 + $0x14] sm:$0x3]
      %v4004 = vld [vmem:[%s3542 + $0x1c] sm:$0x3]
      %v4005 = vld [vmem:[%s3542 + $0x24] sm:$0x3]
      %v4006 = vld [vmem:[%s3542 + $0x2c] sm:$0x3]
      %v4007 = vld [vmem:[%s3542 + $0x34] sm:$0x3]
      %v4008 = vld [vmem:[%s3542 + $0x3c] sm:$0x3]
      %v4010 = vshrl.u32 %v3859, 16
      %v4012 = vrot.slane %v4010, 5
      %v4013 = vshll.u32 %v3859, 16
      %v4015 = vrot.slane %v4013, 6
      %v4016 = vor.u32 %v4012, %v4015
      %v4017 = vrot.slane %v4016, 4
      %v4019 = vshrl.u32 %v4001, 16
      %v4021 = vrot.slane %v4019, 5
      %v4022 = vshll.u32 %v4001, 16
      %v4024 = vrot.slane %v4022, 6
      %v4025 = vor.u32 %v4021, %v4024
      %v4026 = vsel %vm649, %v4017, %v4025
      %v4028 = vshrl.u32 %v3860, 16
      %v4030 = vrot.slane %v4028, 5
      %v4031 = vshll.u32 %v3860, 16
      %v4033 = vrot.slane %v4031, 6
      %v4034 = vor.u32 %v4030, %v4033
      %v4035 = vrot.slane %v4034, 4
      %v4037 = vshrl.u32 %v4002, 16
      %v4039 = vrot.slane %v4037, 5
      %v4040 = vshll.u32 %v4002, 16
      %v4042 = vrot.slane %v4040, 6
      %v4043 = vor.u32 %v4039, %v4042
      %v4044 = vsel %vm649, %v4035, %v4043
      %v4046 = vshrl.u32 %v3861, 16
      %v4048 = vrot.slane %v4046, 5
      %v4049 = vshll.u32 %v3861, 16
      %v4051 = vrot.slane %v4049, 6
      %v4052 = vor.u32 %v4048, %v4051
      %v4053 = vrot.slane %v4052, 4
      %v4055 = vshrl.u32 %v4003, 16
      %v4057 = vrot.slane %v4055, 5
      %v4058 = vshll.u32 %v4003, 16
      %v4060 = vrot.slane %v4058, 6
      %v4061 = vor.u32 %v4057, %v4060
      %v4062 = vsel %vm649, %v4053, %v4061
      %v4064 = vshrl.u32 %v3862, 16
      %v4066 = vrot.slane %v4064, 5
      %v4067 = vshll.u32 %v3862, 16
      %v4069 = vrot.slane %v4067, 6
      %v4070 = vor.u32 %v4066, %v4069
      %v4071 = vrot.slane %v4070, 4
      %v4073 = vshrl.u32 %v4004, 16
      %v4075 = vrot.slane %v4073, 5
      %v4076 = vshll.u32 %v4004, 16
      %v4078 = vrot.slane %v4076, 6
      %v4079 = vor.u32 %v4075, %v4078
      %v4080 = vsel %vm649, %v4071, %v4079
      %v4082 = vshrl.u32 %v3863, 16
      %v4084 = vrot.slane %v4082, 5
      %v4085 = vshll.u32 %v3863, 16
      %v4087 = vrot.slane %v4085, 6
      %v4088 = vor.u32 %v4084, %v4087
      %v4089 = vrot.slane %v4088, 4
      %v4091 = vshrl.u32 %v4005, 16
      %v4093 = vrot.slane %v4091, 5
      %v4094 = vshll.u32 %v4005, 16
      %v4096 = vrot.slane %v4094, 6
      %v4097 = vor.u32 %v4093, %v4096
      %v4098 = vsel %vm649, %v4089, %v4097
      %v4100 = vshrl.u32 %v3864, 16
      %v4102 = vrot.slane %v4100, 5
      %v4103 = vshll.u32 %v3864, 16
      %v4105 = vrot.slane %v4103, 6
      %v4106 = vor.u32 %v4102, %v4105
      %v4107 = vrot.slane %v4106, 4
      %v4109 = vshrl.u32 %v4006, 16
      %v4111 = vrot.slane %v4109, 5
      %v4112 = vshll.u32 %v4006, 16
      %v4114 = vrot.slane %v4112, 6
      %v4115 = vor.u32 %v4111, %v4114
      %v4116 = vsel %vm649, %v4107, %v4115
      %v4118 = vshrl.u32 %v3865, 16
      %v4120 = vrot.slane %v4118, 5
      %v4121 = vshll.u32 %v3865, 16
      %v4123 = vrot.slane %v4121, 6
      %v4124 = vor.u32 %v4120, %v4123
      %v4125 = vrot.slane %v4124, 4
      %v4127 = vshrl.u32 %v4007, 16
      %v4129 = vrot.slane %v4127, 5
      %v4130 = vshll.u32 %v4007, 16
      %v4132 = vrot.slane %v4130, 6
      %v4133 = vor.u32 %v4129, %v4132
      %v4134 = vsel %vm649, %v4125, %v4133
      %v4136 = vshrl.u32 %v3866, 16
      %v4138 = vrot.slane %v4136, 5
      %v4139 = vshll.u32 %v3866, 16
      %v4141 = vrot.slane %v4139, 6
      %v4142 = vor.u32 %v4138, %v4141
      %v4143 = vrot.slane %v4142, 4
      %v4145 = vshrl.u32 %v4008, 16
      %v4147 = vrot.slane %v4145, 5
      %v4148 = vshll.u32 %v4008, 16
      %v4150 = vrot.slane %v4148, 6
      %v4151 = vor.u32 %v4147, %v4150
      %v4152 = vsel %vm649, %v4143, %v4151
      %s4153 = scalar_lea.vmem %s1, 552
      %v4154 = vld [vmem:[%s4153] sm:$0xf]
      %v4155 = vld [vmem:[%s4153 + $0x4] sm:$0xf]
      %v4156 = vld [vmem:[%s4153 + $0x8] sm:$0xf]
      %v4157 = vld [vmem:[%s4153 + $0xc] sm:$0xf]
      %v4158 = vld [vmem:[%s4153 + $0x10] sm:$0xf]
      %v4159 = vld [vmem:[%s4153 + $0x14] sm:$0xf]
      %v4160 = vunpack.c.l.b16 %v4026
      %v4161 = vunpack.c.l.b16 %v4044
      %v4162 = vunpack.c.l.b16 %v4062
      %v4163 = vunpack.c.l.b16 %v4080
      %v4164 = vunpack.c.l.b16 %v4098
      %v4165 = vunpack.c.l.b16 %v4116
      %v4166 = vunpack.c.l.b16 %v4134
      %v4167 = vunpack.c.l.b16 %v4152
      %v4168 = vpack.c.b16 %v4161, %v4160
      %v4169 = vpack.c.b16 %v4163, %v4162
      %v4170 = vpack.c.b16 %v4165, %v4164
      %v4171 = vpack.c.b16 %v4167, %v4166
      %v4178 = vunpack.c.l.b16 %v4154
      %v4179 = vunpack.c.l.b16 %v4155
      %v4180 = vunpack.c.l.b16 %v4156
      %v4181 = vunpack.c.l.b16 %v4157
      %v4182 = vunpack.c.l.b16 %v4158
      %v4183 = vunpack.c.l.b16 %v4159
      %v4184 = vpack.c.b16 %v4179, %v4178
      %v4185 = vpack.c.b16 %v4181, %v4180
      %v4186 = vpack.c.b16 %v4183, %v4182
      %v4191 = vsel %vm373, %v4168, 0
      %v4194 = vsel %vm373, %v4169, 0
      %v4197 = vsel %vm373, %v4170, 0
      %v4200 = vsel %vm373, %v4171, 0
      %4202 = vmatpush.bf16.msra.mxu0 0
      %4203 = vmatpush.bf16.msra.mxu0 0
      %4204 = vmatpush.bf16.msra.mxu0 0
      %4205 = vmatpush.bf16.msra.mxu0 0
      %4206 = vmatpush.bf16.msra.mxu0 0
      %4207 = vmatpush.bf16.msra.mxu0 %v4186
      %4208 = vmatpush.bf16.msra.mxu0 %v4185
      %4209 = vmatpush.bf16.msra.mxu0 %v4184
      %4210 = vmatmul.bf16.gmra.mxu0 %v4191
      %v4211 = vpop.f32.mrf.mxu0
      %v4212 = vadd.f32 0.0, %v4211
      %v4213 = vpop.f32.mrf.mxu0
      %v4214 = vadd.f32 0.0, %v4213
      %4215 = vmatmul.bf16.gmra.mxu0 %v4194
      %v4216 = vpop.f32.mrf.mxu0
      %v4217 = vadd.f32 0.0, %v4216
      %v4218 = vpop.f32.mrf.mxu0
      %v4219 = vadd.f32 0.0, %v4218
      %4220 = vmatmul.bf16.gmra.mxu0 %v4197
      %v4221 = vpop.f32.mrf.mxu0
      %v4222 = vadd.f32 0.0, %v4221
      %v4223 = vpop.f32.mrf.mxu0
      %v4224 = vadd.f32 0.0, %v4223
      %4225 = vmatmul.bf16.gmra.mxu0 %v4200
      %v4226 = vpop.f32.mrf.mxu0
      %v4227 = vadd.f32 0.0, %v4226
      %v4228 = vpop.f32.mrf.mxu0
      %v4229 = vadd.f32 0.0, %v4228
      %4230 = vdwg.mxu0
      %v4231 = vadd.f32 %v3993, %v4212
      %v4232 = vadd.f32 %v3994, %v4214
      %v4233 = vadd.f32 %v3995, %v4217
      %v4234 = vadd.f32 %v3996, %v4219
      %v4235 = vadd.f32 %v3997, %v4222
      %v4236 = vadd.f32 %v3998, %v4224
      %v4237 = vadd.f32 %v3999, %v4227
      %v4238 = vadd.f32 %v4000, %v4229
      %v4239 = vld [vmem:[%s3542] sm:$0xc]
      %v4240 = vld [vmem:[%s3542 + $0x8] sm:$0xc]
      %v4241 = vld [vmem:[%s3542 + $0x10] sm:$0xc]
      %v4242 = vld [vmem:[%s3542 + $0x18] sm:$0xc]
      %v4243 = vld [vmem:[%s3542 + $0x20] sm:$0xc]
      %v4244 = vld [vmem:[%s3542 + $0x28] sm:$0xc]
      %v4245 = vld [vmem:[%s3542 + $0x30] sm:$0xc]
      %v4246 = vld [vmem:[%s3542 + $0x38] sm:$0xc]
      %v4263 = vrot.slane %v4239, 6
      %v4264 = vrot.slane %v4263, 4
      %v4265 = vrot.slane %v4001, 6
      %v4266 = vsel %vm906, %v4264, %v4265
      %v4267 = vrot.slane %v4240, 6
      %v4268 = vrot.slane %v4267, 4
      %v4269 = vrot.slane %v4002, 6
      %v4270 = vsel %vm906, %v4268, %v4269
      %v4271 = vrot.slane %v4241, 6
      %v4272 = vrot.slane %v4271, 4
      %v4273 = vrot.slane %v4003, 6
      %v4274 = vsel %vm906, %v4272, %v4273
      %v4275 = vrot.slane %v4242, 6
      %v4276 = vrot.slane %v4275, 4
      %v4277 = vrot.slane %v4004, 6
      %v4278 = vsel %vm906, %v4276, %v4277
      %v4279 = vrot.slane %v4243, 6
      %v4280 = vrot.slane %v4279, 4
      %v4281 = vrot.slane %v4005, 6
      %v4282 = vsel %vm906, %v4280, %v4281
      %v4283 = vrot.slane %v4244, 6
      %v4284 = vrot.slane %v4283, 4
      %v4285 = vrot.slane %v4006, 6
      %v4286 = vsel %vm906, %v4284, %v4285
      %v4287 = vrot.slane %v4245, 6
      %v4288 = vrot.slane %v4287, 4
      %v4289 = vrot.slane %v4007, 6
      %v4290 = vsel %vm906, %v4288, %v4289
      %v4291 = vrot.slane %v4246, 6
      %v4292 = vrot.slane %v4291, 4
      %v4293 = vrot.slane %v4008, 6
      %v4294 = vsel %vm906, %v4292, %v4293
      %s4295 = scalar_lea.vmem %s1, 576
      %v4296 = vld [vmem:[%s4295] sm:$0xf]
      %v4297 = vld [vmem:[%s4295 + $0x4] sm:$0xf]
      %v4298 = vld [vmem:[%s4295 + $0x8] sm:$0xf]
      %v4299 = vld [vmem:[%s4295 + $0xc] sm:$0xf]
      %v4300 = vld [vmem:[%s4295 + $0x10] sm:$0xf]
      %v4301 = vld [vmem:[%s4295 + $0x14] sm:$0xf]
      %v4302 = vunpack.c.l.b16 %v4266
      %v4303 = vunpack.c.l.b16 %v4270
      %v4304 = vunpack.c.l.b16 %v4274
      %v4305 = vunpack.c.l.b16 %v4278
      %v4306 = vunpack.c.l.b16 %v4282
      %v4307 = vunpack.c.l.b16 %v4286
      %v4308 = vunpack.c.l.b16 %v4290
      %v4309 = vunpack.c.l.b16 %v4294
      %v4310 = vpack.c.b16 %v4303, %v4302
      %v4311 = vpack.c.b16 %v4305, %v4304
      %v4312 = vpack.c.b16 %v4307, %v4306
      %v4313 = vpack.c.b16 %v4309, %v4308
      %v4320 = vunpack.c.l.b16 %v4296
      %v4321 = vunpack.c.l.b16 %v4297
      %v4322 = vunpack.c.l.b16 %v4298
      %v4323 = vunpack.c.l.b16 %v4299
      %v4324 = vunpack.c.l.b16 %v4300
      %v4325 = vunpack.c.l.b16 %v4301
      %v4326 = vpack.c.b16 %v4321, %v4320
      %v4327 = vpack.c.b16 %v4323, %v4322
      %v4328 = vpack.c.b16 %v4325, %v4324
      %v4333 = vsel %vm373, %v4310, 0
      %v4336 = vsel %vm373, %v4311, 0
      %v4339 = vsel %vm373, %v4312, 0
      %v4342 = vsel %vm373, %v4313, 0
      %4344 = vmatpush.bf16.msra.mxu0 0
      %4345 = vmatpush.bf16.msra.mxu0 0
      %4346 = vmatpush.bf16.msra.mxu0 0
      %4347 = vmatpush.bf16.msra.mxu0 0
      %4348 = vmatpush.bf16.msra.mxu0 0
      %4349 = vmatpush.bf16.msra.mxu0 %v4328
      %4350 = vmatpush.bf16.msra.mxu0 %v4327
      %4351 = vmatpush.bf16.msra.mxu0 %v4326
      %4352 = vmatmul.bf16.gmra.mxu0 %v4333
      %v4353 = vpop.f32.mrf.mxu0
      %v4354 = vadd.f32 0.0, %v4353
      %v4355 = vpop.f32.mrf.mxu0
      %v4356 = vadd.f32 0.0, %v4355
      %4357 = vmatmul.bf16.gmra.mxu0 %v4336
      %v4358 = vpop.f32.mrf.mxu0
      %v4359 = vadd.f32 0.0, %v4358
      %v4360 = vpop.f32.mrf.mxu0
      %v4361 = vadd.f32 0.0, %v4360
      %4362 = vmatmul.bf16.gmra.mxu0 %v4339
      %v4363 = vpop.f32.mrf.mxu0
      %v4364 = vadd.f32 0.0, %v4363
      %v4365 = vpop.f32.mrf.mxu0
      %v4366 = vadd.f32 0.0, %v4365
      %4367 = vmatmul.bf16.gmra.mxu0 %v4342
      %v4368 = vpop.f32.mrf.mxu0
      %v4369 = vadd.f32 0.0, %v4368
      %v4370 = vpop.f32.mrf.mxu0
      %v4371 = vadd.f32 0.0, %v4370
      %4372 = vdwg.mxu0
      %v4373 = vadd.f32 %v4231, %v4354
      %v4374 = vadd.f32 %v4232, %v4356
      %v4375 = vadd.f32 %v4233, %v4359
      %v4376 = vadd.f32 %v4234, %v4361
      %v4377 = vadd.f32 %v4235, %v4364
      %v4378 = vadd.f32 %v4236, %v4366
      %v4379 = vadd.f32 %v4237, %v4369
      %v4380 = vadd.f32 %v4238, %v4371
      %v4381 = vld [vmem:[%s2] sm:$0x1]
      %v4383 = vperm.slane %v4381, 0
      %v4385 = vmul.f32 %v4373, %v4383
      %v4386 = vmul.f32 %v4374, %v4383
      %v4387 = vmul.f32 %v4375, %v4383
      %v4388 = vmul.f32 %v4376, %v4383
      %v4389 = vmul.f32 %v4377, %v4383
      %v4390 = vmul.f32 %v4378, %v4383
      %v4391 = vmul.f32 %v4379, %v4383
      %v4392 = vmul.f32 %v4380, %v4383
      %v4393 = vld [vmem:[%s3] sm:$0x1]
      %v4395 = vperm.slane %v4393, 0
      %v4397 = vadd.f32 %v4385, %v4395
      %v4398 = vadd.f32 %v4386, %v4395
      %v4399 = vadd.f32 %v4387, %v4395
      %v4400 = vadd.f32 %v4388, %v4395
      %v4401 = vadd.f32 %v4389, %v4395
      %v4402 = vadd.f32 %v4390, %v4395
      %v4403 = vadd.f32 %v4391, %v4395
      %v4404 = vadd.f32 %v4392, %v4395
      %v4405 = vmax.f32 %v4397, 0.0
      %v4406 = vmax.f32 %v4398, 0.0
      %v4407 = vmax.f32 %v4399, 0.0
      %v4408 = vmax.f32 %v4400, 0.0
      %v4409 = vmax.f32 %v4401, 0.0
      %v4410 = vmax.f32 %v4402, 0.0
      %v4411 = vmax.f32 %v4403, 0.0
      %v4412 = vmax.f32 %v4404, 0.0
      %vm4413 = vcmask 523264
      %4414 = vst.msk [vmem:[%s197] sm:$0xff] %vm4413, %v4405
      %4415 = vst.msk [vmem:[%s197 + $0x8] sm:$0xff] %vm4413, %v4406
      %4416 = vst.msk [vmem:[%s197 + $0x10] sm:$0xff] %vm4413, %v4407
      %4417 = vst.msk [vmem:[%s197 + $0x18] sm:$0xff] %vm4413, %v4408
      %4418 = vst.msk [vmem:[%s197 + $0x20] sm:$0xff] %vm4413, %v4409
      %4419 = vst.msk [vmem:[%s197 + $0x28] sm:$0xff] %vm4413, %v4410
      %4420 = vst.msk [vmem:[%s197 + $0x30] sm:$0xff] %vm4413, %v4411
      %4421 = vst.msk [vmem:[%s197 + $0x38] sm:$0xff] %vm4413, %v4412
      %p4422 = scmp.lt.s32.totalorder %s15, 1
      %s4423 = scalar_select %p4422, %s15, 1
      %s4424 = smul.addr %s4423, 8
      %s4425 = smul.addr %s4424, 8
      %s4426 = scalar_lea.vmem %s4, %s4425
      // Predicated region
      $region37: #{inception_a_unit.6} parent=35 // pred_check
        %p4427 = pneg %p122
      $region38: #{inception_a_unit.6} parent=35 // pred_check_branch
        %4429 = sbr.rel (%p4427) target = $region40
      $region39: #{inception_a_unit.6} parent=35 // pred_region
        _
      $region40: #{inception_a_unit.6} parent=35 // pred_fallthru
        _
    $region36: #{inception_a_unit.6} parent=5 // pred_fallthru
      _
    %p4430 = scmp.le.s32.totalorder 2, %s10
    // Predicated region
    $region41: #{inception_a_unit.6} parent=5 // pred_check
      %p4431 = pneg %p4430
    $region42: #{inception_a_unit.6} parent=5 // pred_check_branch
      %4433 = sbr.rel (%p4431) target = $region44
    $region43: #{inception_a_unit.6} parent=5 // pred_region
      %s4434 = ssub.s32 %s10, 2
      // Predicated region
      $region45: #{inception_a_unit.6} parent=43 // pred_check
        %p4435 = pneg %p128
      $region46: #{inception_a_unit.6} parent=43 // pred_check_branch
        %4437 = sbr.rel (%p4435) target = $region48
      $region47: #{inception_a_unit.6} parent=43 // pred_region
        %p4438 = scmp.lt.s32.totalorder %s16, 1
        %s4439 = scalar_select %p4438, %s16, 1
        %s4440 = smul.addr %s4439, 8
        %s4441 = smul.addr %s4440, 8
        %s4442 = scalar_lea.vmem %s4, %s4441
      $region48: #{inception_a_unit.6} parent=43 // pred_fallthru
        _
    $region44: #{inception_a_unit.6} parent=5 // pred_fallthru
      _
  $region6: #{inception_a_unit.6} parent=0 // loop_footer
    %s14 = sadd.s32 1, %s10
  $region7: #{inception_a_unit.6} parent=0 // loop_footer_branch
    %9 = sbr.rel target = $region3
  $region8: #{inception_a_unit.6} parent=0 // loop_exit
    _

</llo_original>
